<compile_context>
chip_gen: v7x
topology: tpu7x:2x2x1
jax: 0.10.0
libtpu: 0.0.40
codegen_flags: <defaults>
</compile_context>

<pallas_src>
import functools

import jax
import jax.numpy as jnp
from jax import lax
from jax.experimental import pallas as pl
from jax.experimental.pallas import tpu as pltpu

NEG_INF = -1e30


def bilstm_maxpool_kernel(len_ref, x_ref, wih_ref, whh_ref, b_ref,
                          out_ref, g_ref, *,
                          T, TB, E, H, proj_chunk, fuse_recurrent, time_unroll):
    """Fused biLSTM + masked max-pool for one batch tile of TB sentences."""
    G4 = 4 * H
    G8 = 8 * H

    # ---- Phase 1: input projection for BOTH directions, chunked over time.
    # Each chunk: (PC*TB, E) @ (E, 8H) on the MXU, bias folded, result cast to
    # bf16 and stored straight into the single gate slab (no full-size f32
    # temporary, no slice copies).  Chunking bounds the f32 live value.
    n_chunks = T // proj_chunk

    @pl.loop(0, n_chunks)
    def _(c):
        t0 = pl.multiple_of(c * proj_chunk, proj_chunk)
        xc = x_ref[pl.ds(t0, proj_chunk)]                        # (PC, TB, E) bf16
        gc = jnp.dot(xc.reshape(proj_chunk * TB, E), wih_ref[...],
                     preferred_element_type=jnp.float32)
        gc = (gc + b_ref[...]).astype(jnp.bfloat16)              # bf16 gate inputs
        g_ref[pl.ds(t0, proj_chunk)] = gc.reshape(proj_chunk, TB, G8)

    lens = len_ref[...]                                          # (TB, 1) i32

    def gate_math(gates, c):
        # PyTorch LSTM gate order i, f, g, o; H % 128 == 0 so slices are
        # lane-tile aligned.
        i = jax.nn.sigmoid(gates[:, 0 * H:1 * H])
        f = jax.nn.sigmoid(gates[:, 1 * H:2 * H])
        gg = jnp.tanh(gates[:, 2 * H:3 * H])
        o = jax.nn.sigmoid(gates[:, 3 * H:4 * H])
        c_new = f * c + i * gg
        h_new = o * jnp.tanh(c_new)
        return h_new, c_new

    # ---- Phase 2: fused fwd/bwd recurrence + masked max-pool.
    def body(step, carry):
        hf, cf, accf, hb, cb, accb = carry
        t_b = T - 1 - step

        gin_f = g_ref[step, :, 0:G4]          # bf16, upcasts for free on add
        gin_b = g_ref[t_b, :, G4:G8]

        if fuse_recurrent:
            # One (TB, 2H) @ (2H, 8H) block-diagonal matmul: K = 2H fills the
            # 256-deep v6e/v7x MXU and halves the serial matmul chain.
            hcat = jnp.concatenate([hf, hb], axis=-1).astype(jnp.bfloat16)
            rec = jnp.dot(hcat, whh_ref[...],
                          preferred_element_type=jnp.float32)    # (TB, 8H) f32
            gates_f = gin_f + rec[:, 0:G4]
            gates_b = gin_b + rec[:, G4:G8]
        else:
            gates_f = gin_f + jnp.dot(hf.astype(jnp.bfloat16), whh_ref[:, 0:G4],
                                      preferred_element_type=jnp.float32)
            gates_b = gin_b + jnp.dot(hb.astype(jnp.bfloat16), whh_ref[:, G4:G8],
                                      preferred_element_type=jnp.float32)

        hf_new, cf_new = gate_math(gates_f, cf)
        hb_new, cb_new = gate_math(gates_b, cb)

        # In-kernel padding mask (packed-sequence semantics): padded steps do
        # not update state.  lens >= 1 is a documented precondition (Batcher).
        m_f = step < lens                                        # (TB, 1) bool
        m_b = t_b < lens
        hf = jnp.where(m_f, hf_new, hf)
        cf = jnp.where(m_f, cf_new, cf)
        hb = jnp.where(m_b, hb_new, hb)
        cb = jnp.where(m_b, cb_new, cb)

        # Forward mask is monotone and hf freezes once masked -> plain max.
        accf = jnp.maximum(accf, hf)
        # Backward state is still zero before t_b < len; keep the -inf select.
        accb = jnp.maximum(accb, jnp.where(m_b, hb, NEG_INF))
        return hf, cf, accf, hb, cb, accb

    z = jnp.zeros((TB, H), jnp.float32)
    neg = jnp.full((TB, H), NEG_INF, jnp.float32)
    _, _, accf, _, _, accb = lax.fori_loop(0, T, body, (z, z, neg, z, z, neg),
                                           unroll=time_unroll)

    # Lane-aligned direct slice stores (no concatenate / relayout).
    out_ref[:, 0:H] = accf
    out_ref[:, H:2 * H] = accb


def _device_kind():
    try:
        return jax.devices()[0].device_kind.lower()
    except Exception:
        return ""


def _vmem_budget_bytes():
    # Generation-aware VMEM cap: ~3/4 of physical (~96 MiB on v5e/v6e's
    # 128 MiB, ~48 MiB on v7x's 64 MiB).  Conservative fallback if the query
    # is unavailable.
    try:
        cap = int(pltpu.get_tpu_info().vmem_capacity_bytes)
    except Exception:
        cap = 64 * 1024 * 1024
    return cap * 3 // 4


def _pick_batch_tile(B):
    # Large batch tiles fill the MXU's M dim in the recurrent matmul; keep
    # >= 2 grid steps when B allows so v7x can shard across its 2 TCs.
    if B <= 8:
        return 8
    half = (B + 1) // 2
    tb = min(256, max(16, ((half + 15) // 16) * 16))
    if tb >= B:
        tb = max(8, (B // 2) // 8 * 8)
    return tb


def _pick_proj_chunk(T, TB, E, H, budget=6 << 20):
    # Bound the projection chunk's live values (bf16 x rows + f32 dot output
    # + bf16 store) to `budget` bytes; chunk must divide T.
    per_step = TB * (E * 2 + 8 * H * (4 + 2))
    c = max(1, min(T, budget // max(per_step, 1)))
    while T % c:
        c -= 1
    return c


def sentence_encoder_forward(tokens, lengths, params, *, batch_block=None):
    """tokens: (B, T) int32, lengths: (B,) int32 -> sentemb (B, 2H) float32."""
    embed = params["embed"]
    B, T = tokens.shape
    E0 = embed.shape[1]
    H = params["whh_f"].shape[1]                     # w_hh: (4H, H)
    assert H % 128 == 0, "hidden dim must be lane-aligned (LASER uses 512)"

    # Lane-pad the embedding dim (e.g. LASER E=320 -> 384): zero columns in x
    # and zero rows in w_ih are mathematically a no-op.
    E = -(-E0 // 128) * 128

    TB = _pick_batch_tile(B) if batch_block is None else batch_block
    assert TB % 8 == 0, "batch tile must be sublane-aligned"
    Bp = -(-B // TB) * TB                            # pad batch to tile multiple

    # Embedding gather done time-major and in bf16 in a single HBM pass.
    emb = embed.astype(jnp.bfloat16)
    if E != E0:
        emb = jnp.pad(emb, ((0, 0), (0, E - E0)))
    tok = tokens
    lens = lengths.astype(jnp.int32)
    if Bp != B:
        tok = jnp.concatenate(
            [tok, jnp.ones((Bp - B, T), tok.dtype)], axis=0)     # pad token rows
        lens = jnp.concatenate(
            [lens, jnp.ones((Bp - B,), jnp.int32)], axis=0)      # dummy length 1
    x = jnp.take(emb, tok.T, axis=0)                             # (T, Bp, E) bf16
    lens = lens.reshape(Bp, 1)

    # Fuse both directions' input weights into one (E, 8H) operand; fold biases.
    wih_all = jnp.concatenate([params["wih_f"].T, params["wih_b"].T], axis=1)
    if E != E0:
        wih_all = jnp.pad(wih_all, ((0, E - E0), (0, 0)))
    wih_all = wih_all.astype(jnp.bfloat16)
    bias = jnp.concatenate([params["bih_f"] + params["bhh_f"],
                            params["bih_b"] + params["bhh_b"]]
                           ).reshape(1, 8 * H).astype(jnp.float32)

    # Recurrent weights: for H <= 128 fuse fwd+bwd into one block-diagonal
    # (2H, 8H) operand (K = 2H fills the 256-deep v6e/v7x MXU); skip on v5e.
    kind = _device_kind()
    fuse_recurrent = (H <= 128) and ("v5 lite" not in kind) and ("v5e" not in kind)
    if fuse_recurrent:
        whh = jnp.zeros((2 * H, 8 * H), jnp.float32)
        whh = whh.at[0:H, 0:4 * H].set(params["whh_f"].T)
        whh = whh.at[H:2 * H, 4 * H:8 * H].set(params["whh_b"].T)
    else:
        whh = jnp.concatenate([params["whh_f"].T, params["whh_b"].T], axis=1)
    whh = whh.astype(jnp.bfloat16)

    proj_chunk = _pick_proj_chunk(T, TB, E, H)
    time_unroll = True if T <= 32 else 4

    # VMEM accounting: double-buffered blocks (x, weights, lens, out), the
    # single bf16 gate slab, projection-chunk live values and loop carries,
    # plus 25% + 4 MiB margin; capped by the generation-aware budget.
    # TODO(synk): for very long T on v7x (64 MiB VMEM) the gate slab should be
    # streamed from HBM with a manual double-buffered make_async_copy
    # (two-phase kernel); not needed at these sizes.
    need = (2 * T * TB * E * 2                       # x blocks (bf16, 2 bufs)
            + T * TB * 8 * H * 2                     # gate slab (bf16)
            + 2 * (wih_all.size + whh.size) * 2      # weight blocks (2 bufs)
            + 2 * bias.size * 4
            + 2 * 8 * 128 * 4                        # lens tile (padded)
            + 2 * TB * 2 * H * 4                     # out blocks (2 bufs)
            + proj_chunk * TB * (E * 2 + 8 * H * 6)  # projection live values
            + 10 * TB * H * 4)                       # loop carries + gate temps
    vmem_limit = int(min(_vmem_budget_bytes(), need + need // 4 + (4 << 20)))

    kernel = functools.partial(
        bilstm_maxpool_kernel, T=T, TB=TB, E=E, H=H, proj_chunk=proj_chunk,
        fuse_recurrent=fuse_recurrent, time_unroll=time_unroll)
    rep = lambda shape: pl.BlockSpec(shape, lambda b: (0,) * len(shape))

    out = pl.pallas_call(
        kernel,
        out_shape=jax.ShapeDtypeStruct((Bp, 2 * H), jnp.float32),
        grid=(Bp // TB,),
        in_specs=[
            pl.BlockSpec((TB, 1), lambda b: (b, 0)),          # lengths
            pl.BlockSpec((T, TB, E), lambda b: (0, b, 0)),    # x (bf16)
            rep(wih_all.shape),                               # w_ih both dirs
            rep(whh.shape),                                   # w_hh (fused/side-by-side)
            rep((1, 8 * H)),                                  # fused bias
        ],
        out_specs=pl.BlockSpec((TB, 2 * H), lambda b: (b, 0)),
        scratch_shapes=[pltpu.VMEM((T, TB, 8 * H), jnp.bfloat16)],  # gate slab
        compiler_params=pltpu.CompilerParams(
            dimension_semantics=("parallel",),
            vmem_limit_bytes=vmem_limit),
    )(lens, x, wih_all, whh, bias)
    return out[:B]


def reference_forward(tokens, lengths, params, matmul_dtype=jnp.float32,
                      round_gate_inputs=False):
    """Pure-JAX reference (mirrors torch LASER Encoder.forward sentemb).

    matmul_dtype=bf16 + round_gate_inputs=True mirrors the kernel's MXU input
    precision and its bf16 gate-input slab; matmul_dtype=f32 is the exact
    torch-semantics reference.
    """
    embed = params["embed"]
    B, T = tokens.shape
    H = params["whh_f"].shape[1]
    x = jnp.transpose(jnp.take(embed, tokens, axis=0), (1, 0, 2))  # (T,B,E)
    t_idx = jnp.arange(T)[:, None]
    mask = (t_idx < lengths[None, :])[:, :, None]                  # (T,B,1) bool

    def dot_(a, b):
        return jnp.dot(a.astype(matmul_dtype), b.astype(matmul_dtype),
                       preferred_element_type=jnp.float32)

    def run(reverse, wih, whh, bih, bhh):
        b = (bih + bhh)[None, :].astype(jnp.float32)
        xs = x[::-1] if reverse else x
        ms = mask[::-1] if reverse else mask

        def step(carry, inp):
            h, c = carry
            x_t, m = inp
            gin = dot_(x_t, wih.T) + b
            if round_gate_inputs:
                gin = gin.astype(jnp.bfloat16).astype(jnp.float32)
            gates = gin + dot_(h, whh.T)
            i = jax.nn.sigmoid(gates[:, 0 * H:1 * H])
            f = jax.nn.sigmoid(gates[:, 1 * H:2 * H])
            g = jnp.tanh(gates[:, 2 * H:3 * H])
            o = jax.nn.sigmoid(gates[:, 3 * H:4 * H])
            c_new = f * c + i * g
            h_new = o * jnp.tanh(c_new)
            h = jnp.where(m, h_new, h)
            c = jnp.where(m, c_new, c)
            return (h, c), h

        (_, _), hs = lax.scan(step, (jnp.zeros((B, H), jnp.float32),
                                     jnp.zeros((B, H), jnp.float32)), (xs, ms))
        hs = jnp.where(ms, hs, NEG_INF)
        return jnp.max(hs, axis=0)

    max_f = run(False, params["wih_f"], params["whh_f"],
                params["bih_f"], params["bhh_f"])
    max_b = run(True, params["wih_b"], params["whh_b"],
                params["bih_b"], params["bhh_b"])
    return jnp.concatenate([max_f, max_b], axis=-1)


def init_params(key, vocab, embed_dim, hidden, pad_idx=1):
    ks = jax.random.split(key, 9)
    s = 0.1
    embed = s * jax.random.normal(ks[0], (vocab, embed_dim), jnp.float32)
    embed = embed.at[pad_idx].set(0.0)   # nn.Embedding(padding_idx=pad_idx)
    return {
        "embed": embed,
        "wih_f": s * jax.random.normal(ks[1], (4 * hidden, embed_dim), jnp.float32),
        "whh_f": s * jax.random.normal(ks[2], (4 * hidden, hidden), jnp.float32),
        "bih_f": s * jax.random.normal(ks[3], (4 * hidden,), jnp.float32),
        "bhh_f": s * jax.random.normal(ks[4], (4 * hidden,), jnp.float32),
        "wih_b": s * jax.random.normal(ks[5], (4 * hidden, embed_dim), jnp.float32),
        "whh_b": s * jax.random.normal(ks[6], (4 * hidden, hidden), jnp.float32),
        "bih_b": s * jax.random.normal(ks[7], (4 * hidden,), jnp.float32),
        "bhh_b": s * jax.random.normal(ks[8], (4 * hidden,), jnp.float32),
    }


if __name__ == "__main__":
    # TODO(synk): host-side BPE tokenization / Batcher of the torch module has
    # no kernel equivalent; we start from synthetic token ids + lengths
    # (Batcher guarantees length >= 1, so the max-pool is never all-masked).
    # E=96 deliberately exercises the lane-padding path (LASER uses E=320);
    # B=32 gives a batch tile of 16 and a 2-step "parallel" grid (v7x 2 TCs).
    B, T, V, E, H = 32, 16, 64, 96, 128
    PAD = 1

    key = jax.random.PRNGKey(0)
    k_tok, k_len, k_par = jax.random.split(key, 3)

    lengths = jax.random.randint(k_len, (B,), 3, T + 1, dtype=jnp.int32)
    lengths = lengths.at[0].set(T)   # at least one full-length sentence
    tokens = jax.random.randint(k_tok, (B, T), 2, V, dtype=jnp.int32)
    pad_mask = jnp.arange(T)[None, :] >= lengths[:, None]
    tokens = jnp.where(pad_mask, PAD, tokens)

    params = init_params(k_par, V, E, H, pad_idx=PAD)

    sentemb = jax.block_until_ready(
        sentence_encoder_forward(tokens, lengths, params))

    # Tight check vs. a reference using the same bf16 matmul inputs and bf16
    # gate-input rounding (validates recurrence / masking / pooling), loose
    # check vs. the pure-f32 torch-semantics reference.
    ref_bf16 = jax.block_until_ready(
        reference_forward(tokens, lengths, params,
                          matmul_dtype=jnp.bfloat16, round_gate_inputs=True))
    ref_f32 = jax.block_until_ready(
        reference_forward(tokens, lengths, params, matmul_dtype=jnp.float32))

    assert sentemb.shape == (B, 2 * H)
    err_bf16 = float(jnp.max(jnp.abs(sentemb - ref_bf16)))
    err_f32 = float(jnp.max(jnp.abs(sentemb - ref_f32)))
    assert jnp.allclose(sentemb, ref_bf16, rtol=1e-2, atol=1e-2), err_bf16
    assert jnp.allclose(sentemb, ref_f32, rtol=3e-2, atol=3e-2), err_f32

    print("KERNEL_OK")
</pallas_src>

<mosaic_0001>
module attributes {stable_mosaic.version = 11 : i64} {
  func.func @bilstm_maxpool_kernel(%arg0: i32, %arg1: memref<16x1xi32, #tpu.memory_space<vmem>>, %arg2: memref<16x16x128xbf16, #tpu.memory_space<vmem>>, %arg3: memref<128x1024xbf16, #tpu.memory_space<vmem>>, %arg4: memref<256x1024xbf16, #tpu.memory_space<vmem>>, %arg5: memref<1x1024xf32, #tpu.memory_space<vmem>>, %arg6: memref<16x256xf32, #tpu.memory_space<vmem>>, %arg7: memref<16x16x1024xbf16, #tpu.memory_space<vmem>>) attributes {dimension_semantics = [#tpu.dimension_semantics<parallel>], iteration_bounds = array<i64: 2>, scalar_prefetch = 0 : i64, scratch_operands = 1 : i64, tpu.core_type = #tpu.core_type<tc>, window_params = [{transform_indices = @transform_0, window_bounds = array<i64: 16, 1>}, {transform_indices = @transform_1, window_bounds = array<i64: 16, 16, 128>}, {pipeline_mode = #tpu.pipeline_mode<synchronous>, transform_indices = @transform_2, window_bounds = array<i64: 128, 1024>}, {pipeline_mode = #tpu.pipeline_mode<synchronous>, transform_indices = @transform_3, window_bounds = array<i64: 256, 1024>}, {pipeline_mode = #tpu.pipeline_mode<synchronous>, transform_indices = @transform_4, window_bounds = array<i64: 1, 1024>}, {transform_indices = @transform_5, window_bounds = array<i64: 16, 256>}]} {
    %c0_i32 = arith.constant 0 : i32
    %c1_i32 = arith.constant 1 : i32
    %0 = arith.muli %c0_i32, %c1_i32 : i32
    %c0_i32_0 = arith.constant 0 : i32
    %1 = arith.addi %c0_i32_0, %0 : i32
    %c16_i32 = arith.constant 16 : i32
    %2 = arith.muli %1, %c16_i32 : i32
    %3 = tpu.assume_multiple %2, 16 : i32
    %4 = arith.index_cast %3 : i32 to index
    %c0 = arith.constant 0 : index
    %c0_1 = arith.constant 0 : index
    %5 = vector.load %arg2[%4, %c0, %c0_1] : memref<16x16x128xbf16, #tpu.memory_space<vmem>>, vector<16x16x128xbf16>
    %6 = vector.shape_cast %5 : vector<16x16x128xbf16> to vector<256x128xbf16>
    %c0_2 = arith.constant 0 : index
    %c0_3 = arith.constant 0 : index
    %7 = vector.load %arg3[%c0_2, %c0_3] : memref<128x1024xbf16, #tpu.memory_space<vmem>>, vector<128x1024xbf16>
    %cst = arith.constant dense<0.000000e+00> : vector<256x1024xf32>
    %8 = tpu.matmul %6, %7, %cst {dimension_numbers = #tpu.dot_dimension_numbers<[1], [0], [0], [1], [0, 0, 1, 1], [], []>} : vector<256x128xbf16>, vector<128x1024xbf16>, vector<256x1024xf32> -> vector<256x1024xf32>
    %c0_4 = arith.constant 0 : index
    %c0_5 = arith.constant 0 : index
    %9 = vector.load %arg5[%c0_4, %c0_5] : memref<1x1024xf32, #tpu.memory_space<vmem>>, vector<1x1024xf32>
    %10 = vector.broadcast %9 : vector<1x1024xf32> to vector<256x1024xf32>
    %11 = arith.addf %8, %10 : vector<256x1024xf32>
    %12 = arith.truncf %11 : vector<256x1024xf32> to vector<256x1024xbf16>
    %13 = vector.shape_cast %12 : vector<256x1024xbf16> to vector<16x16x1024xbf16>
    %14 = arith.index_cast %3 : i32 to index
    %c0_6 = arith.constant 0 : index
    %c0_7 = arith.constant 0 : index
    %15 = vector.load %arg7[%14, %c0_6, %c0_7] : memref<16x16x1024xbf16, #tpu.memory_space<vmem>>, vector<16x16x1024xbf16>
    tpu.vector_store %arg7[%14, %c0_6, %c0_7], %13 {strides = array<i32>} : memref<16x16x1024xbf16, #tpu.memory_space<vmem>>, vector<16x16x1024xbf16>,
    %c1_i32_8 = arith.constant 1 : i32
    %c0_9 = arith.constant 0 : index
    %c0_10 = arith.constant 0 : index
    %16 = vector.load %arg1[%c0_9, %c0_10] : memref<16x1xi32, #tpu.memory_space<vmem>>, vector<16x1xi32>
    %cst_11 = arith.constant 0.000000e+00 : f32
    %17 = vector.broadcast %cst_11 : f32 to vector<16x128xf32>
    %cst_12 = arith.constant -1.000000e+30 : f32
    %18 = vector.broadcast %cst_12 : f32 to vector<16x128xf32>
    %c0_i32_13 = arith.constant 0 : i32
    %c15_i32 = arith.constant 15 : i32
    %19 = arith.subi %c15_i32, %c0_i32_13 : i32
    %20 = arith.index_cast %c0_i32_13 : i32 to index
    %c0_14 = arith.constant 0 : index
    %c0_15 = arith.constant 0 : index
    %21 = vector.load %arg7[%20, %c0_14, %c0_15] : memref<16x16x1024xbf16, #tpu.memory_space<vmem>>, vector<1x16x512xbf16>
    %22 = vector.shape_cast %21 : vector<1x16x512xbf16> to vector<16x512xbf16>
    %23 = arith.index_cast %19 : i32 to index
    %c0_16 = arith.constant 0 : index
    %c512 = arith.constant 512 : index
    %24 = vector.load %arg7[%23, %c0_16, %c512] : memref<16x16x1024xbf16, #tpu.memory_space<vmem>>, vector<1x16x512xbf16>
    %25 = vector.shape_cast %24 : vector<1x16x512xbf16> to vector<16x512xbf16>
    %26 = tpu.concatenate %17, %17 in 1 : vector<16x128xf32>, vector<16x128xf32> -> vector<16x256xf32>
    %27 = arith.truncf %26 : vector<16x256xf32> to vector<16x256xbf16>
    %c0_17 = arith.constant 0 : index
    %c0_18 = arith.constant 0 : index
    %28 = vector.load %arg4[%c0_17, %c0_18] : memref<256x1024xbf16, #tpu.memory_space<vmem>>, vector<256x1024xbf16>
    %cst_19 = arith.constant dense<0.000000e+00> : vector<16x1024xf32>
    %29 = tpu.matmul %27, %28, %cst_19 {dimension_numbers = #tpu.dot_dimension_numbers<[1], [0], [0], [1], [0, 0, 1, 1], [], []>} : vector<16x256xbf16>, vector<256x1024xbf16>, vector<16x1024xf32> -> vector<16x1024xf32>
    %30 = vector.extract_strided_slice %29 {offsets = [0, 0], sizes = [16, 512], strides = [1, 1]} : vector<16x1024xf32> to vector<16x512xf32>
    %31 = arith.extf %22 : vector<16x512xbf16> to vector<16x512xf32>
    %32 = arith.addf %31, %30 : vector<16x512xf32>
    %33 = vector.extract_strided_slice %29 {offsets = [0, 512], sizes = [16, 512], strides = [1, 1]} : vector<16x1024xf32> to vector<16x512xf32>
    %34 = arith.extf %25 : vector<16x512xbf16> to vector<16x512xf32>
    %35 = arith.addf %34, %33 : vector<16x512xf32>
    %36 = vector.extract_strided_slice %32 {offsets = [0, 0], sizes = [16, 128], strides = [1, 1]} : vector<16x512xf32> to vector<16x128xf32>
    %37 = arith.negf %36 : vector<16x128xf32>
    %38 = math.exp %37 : vector<16x128xf32>
    %cst_20 = arith.constant 1.000000e+00 : f32
    %39 = vector.broadcast %cst_20 : f32 to vector<16x128xf32>
    %40 = arith.addf %39, %38 : vector<16x128xf32>
    %41 = arith.divf %39, %40 : vector<16x128xf32>
    %42 = vector.extract_strided_slice %32 {offsets = [0, 128], sizes = [16, 128], strides = [1, 1]} : vector<16x512xf32> to vector<16x128xf32>
    %43 = arith.negf %42 : vector<16x128xf32>
    %44 = math.exp %43 : vector<16x128xf32>
    %cst_21 = arith.constant 1.000000e+00 : f32
    %45 = vector.broadcast %cst_21 : f32 to vector<16x128xf32>
    %46 = arith.addf %45, %44 : vector<16x128xf32>
    %47 = arith.divf %45, %46 : vector<16x128xf32>
    %48 = vector.extract_strided_slice %32 {offsets = [0, 256], sizes = [16, 128], strides = [1, 1]} : vector<16x512xf32> to vector<16x128xf32>
    %49 = math.tanh %48 : vector<16x128xf32>
    %50 = vector.extract_strided_slice %32 {offsets = [0, 384], sizes = [16, 128], strides = [1, 1]} : vector<16x512xf32> to vector<16x128xf32>
    %51 = arith.negf %50 : vector<16x128xf32>
    %52 = math.exp %51 : vector<16x128xf32>
    %cst_22 = arith.constant 1.000000e+00 : f32
    %53 = vector.broadcast %cst_22 : f32 to vector<16x128xf32>
    %54 = arith.addf %53, %52 : vector<16x128xf32>
    %55 = arith.divf %53, %54 : vector<16x128xf32>
    %56 = arith.mulf %47, %17 : vector<16x128xf32>
    %57 = arith.mulf %41, %49 : vector<16x128xf32>
    %58 = arith.addf %56, %57 : vector<16x128xf32>
    %59 = math.tanh %58 : vector<16x128xf32>
    %60 = arith.mulf %55, %59 : vector<16x128xf32>
    %61 = vector.extract_strided_slice %35 {offsets = [0, 0], sizes = [16, 128], strides = [1, 1]} : vector<16x512xf32> to vector<16x128xf32>
    %62 = arith.negf %61 : vector<16x128xf32>
    %63 = math.exp %62 : vector<16x128xf32>
    %cst_23 = arith.constant 1.000000e+00 : f32
    %64 = vector.broadcast %cst_23 : f32 to vector<16x128xf32>
    %65 = arith.addf %64, %63 : vector<16x128xf32>
    %66 = arith.divf %64, %65 : vector<16x128xf32>
    %67 = vector.extract_strided_slice %35 {offsets = [0, 128], sizes = [16, 128], strides = [1, 1]} : vector<16x512xf32> to vector<16x128xf32>
    %68 = arith.negf %67 : vector<16x128xf32>
    %69 = math.exp %68 : vector<16x128xf32>
    %cst_24 = arith.constant 1.000000e+00 : f32
    %70 = vector.broadcast %cst_24 : f32 to vector<16x128xf32>
    %71 = arith.addf %70, %69 : vector<16x128xf32>
    %72 = arith.divf %70, %71 : vector<16x128xf32>
    %73 = vector.extract_strided_slice %35 {offsets = [0, 256], sizes = [16, 128], strides = [1, 1]} : vector<16x512xf32> to vector<16x128xf32>
    %74 = math.tanh %73 : vector<16x128xf32>
    %75 = vector.extract_strided_slice %35 {offsets = [0, 384], sizes = [16, 128], strides = [1, 1]} : vector<16x512xf32> to vector<16x128xf32>
    %76 = arith.negf %75 : vector<16x128xf32>
    %77 = math.exp %76 : vector<16x128xf32>
    %cst_25 = arith.constant 1.000000e+00 : f32
    %78 = vector.broadcast %cst_25 : f32 to vector<16x128xf32>
    %79 = arith.addf %78, %77 : vector<16x128xf32>
    %80 = arith.divf %78, %79 : vector<16x128xf32>
    %81 = arith.mulf %72, %17 : vector<16x128xf32>
    %82 = arith.mulf %66, %74 : vector<16x128xf32>
    %83 = arith.addf %81, %82 : vector<16x128xf32>
    %84 = math.tanh %83 : vector<16x128xf32>
    %85 = arith.mulf %80, %84 : vector<16x128xf32>
    %86 = vector.broadcast %c0_i32_13 : i32 to vector<16x1xi32>
    %87 = arith.cmpi slt, %86, %16 : vector<16x1xi32>
    %88 = vector.broadcast %19 : i32 to vector<16x1xi32>
    %89 = arith.cmpi slt, %88, %16 : vector<16x1xi32>
    %90 = vector.shape_cast %87 : vector<16x1xi1> to vector<16x1xi1>
    %91 = vector.broadcast %90 : vector<16x1xi1> to vector<16x128xi1>
    %92 = arith.select %91, %60, %17 : vector<16x128xi1>, vector<16x128xf32>
    %93 = vector.shape_cast %87 : vector<16x1xi1> to vector<16x1xi1>
    %94 = vector.broadcast %93 : vector<16x1xi1> to vector<16x128xi1>
    %95 = arith.select %94, %58, %17 : vector<16x128xi1>, vector<16x128xf32>
    %96 = vector.shape_cast %89 : vector<16x1xi1> to vector<16x1xi1>
    %97 = vector.broadcast %96 : vector<16x1xi1> to vector<16x128xi1>
    %98 = arith.select %97, %85, %17 : vector<16x128xi1>, vector<16x128xf32>
    %99 = vector.shape_cast %89 : vector<16x1xi1> to vector<16x1xi1>
    %100 = vector.broadcast %99 : vector<16x1xi1> to vector<16x128xi1>
    %101 = arith.select %100, %83, %17 : vector<16x128xi1>, vector<16x128xf32>
    %102 = arith.maximumf %18, %92 : vector<16x128xf32>
    %cst_26 = arith.constant -1.000000e+30 : f32
    %103 = vector.shape_cast %89 : vector<16x1xi1> to vector<16x1xi1>
    %104 = vector.broadcast %103 : vector<16x1xi1> to vector<16x128xi1>
    %105 = vector.broadcast %cst_26 : f32 to vector<16x128xf32>
    %106 = arith.select %104, %98, %105 : vector<16x128xi1>, vector<16x128xf32>
    %107 = arith.maximumf %18, %106 : vector<16x128xf32>
    %c1_i32_27 = arith.constant 1 : i32
    %c15_i32_28 = arith.constant 15 : i32
    %108 = arith.subi %c15_i32_28, %c1_i32_27 : i32
    %109 = arith.index_cast %c1_i32_27 : i32 to index
    %c0_29 = arith.constant 0 : index
    %c0_30 = arith.constant 0 : index
    %110 = vector.load %arg7[%109, %c0_29, %c0_30] : memref<16x16x1024xbf16, #tpu.memory_space<vmem>>, vector<1x16x512xbf16>
    %111 = vector.shape_cast %110 : vector<1x16x512xbf16> to vector<16x512xbf16>
    %112 = arith.index_cast %108 : i32 to index
    %c0_31 = arith.constant 0 : index
    %c512_32 = arith.constant 512 : index
    %113 = vector.load %arg7[%112, %c0_31, %c512_32] : memref<16x16x1024xbf16, #tpu.memory_space<vmem>>, vector<1x16x512xbf16>
    %114 = vector.shape_cast %113 : vector<1x16x512xbf16> to vector<16x512xbf16>
    %115 = tpu.concatenate %92, %98 in 1 : vector<16x128xf32>, vector<16x128xf32> -> vector<16x256xf32>
    %116 = arith.truncf %115 : vector<16x256xf32> to vector<16x256xbf16>
    %c0_33 = arith.constant 0 : index
    %c0_34 = arith.constant 0 : index
    %117 = vector.load %arg4[%c0_33, %c0_34] : memref<256x1024xbf16, #tpu.memory_space<vmem>>, vector<256x1024xbf16>
    %cst_35 = arith.constant dense<0.000000e+00> : vector<16x1024xf32>
    %118 = tpu.matmul %116, %117, %cst_35 {dimension_numbers = #tpu.dot_dimension_numbers<[1], [0], [0], [1], [0, 0, 1, 1], [], []>} : vector<16x256xbf16>, vector<256x1024xbf16>, vector<16x1024xf32> -> vector<16x1024xf32>
    %119 = vector.extract_strided_slice %118 {offsets = [0, 0], sizes = [16, 512], strides = [1, 1]} : vector<16x1024xf32> to vector<16x512xf32>
    %120 = arith.extf %111 : vector<16x512xbf16> to vector<16x512xf32>
    %121 = arith.addf %120, %119 : vector<16x512xf32>
    %122 = vector.extract_strided_slice %118 {offsets = [0, 512], sizes = [16, 512], strides = [1, 1]} : vector<16x1024xf32> to vector<16x512xf32>
    %123 = arith.extf %114 : vector<16x512xbf16> to vector<16x512xf32>
    %124 = arith.addf %123, %122 : vector<16x512xf32>
    %125 = vector.extract_strided_slice %121 {offsets = [0, 0], sizes = [16, 128], strides = [1, 1]} : vector<16x512xf32> to vector<16x128xf32>
    %126 = arith.negf %125 : vector<16x128xf32>
    %127 = math.exp %126 : vector<16x128xf32>
    %cst_36 = arith.constant 1.000000e+00 : f32
    %128 = vector.broadcast %cst_36 : f32 to vector<16x128xf32>
    %129 = arith.addf %128, %127 : vector<16x128xf32>
    %130 = arith.divf %128, %129 : vector<16x128xf32>
    %131 = vector.extract_strided_slice %121 {offsets = [0, 128], sizes = [16, 128], strides = [1, 1]} : vector<16x512xf32> to vector<16x128xf32>
    %132 = arith.negf %131 : vector<16x128xf32>
    %133 = math.exp %132 : vector<16x128xf32>
    %cst_37 = arith.constant 1.000000e+00 : f32
    %134 = vector.broadcast %cst_37 : f32 to vector<16x128xf32>
    %135 = arith.addf %134, %133 : vector<16x128xf32>
    %136 = arith.divf %134, %135 : vector<16x128xf32>
    %137 = vector.extract_strided_slice %121 {offsets = [0, 256], sizes = [16, 128], strides = [1, 1]} : vector<16x512xf32> to vector<16x128xf32>
    %138 = math.tanh %137 : vector<16x128xf32>
    %139 = vector.extract_strided_slice %121 {offsets = [0, 384], sizes = [16, 128], strides = [1, 1]} : vector<16x512xf32> to vector<16x128xf32>
    %140 = arith.negf %139 : vector<16x128xf32>
    %141 = math.exp %140 : vector<16x128xf32>
    %cst_38 = arith.constant 1.000000e+00 : f32
    %142 = vector.broadcast %cst_38 : f32 to vector<16x128xf32>
    %143 = arith.addf %142, %141 : vector<16x128xf32>
    %144 = arith.divf %142, %143 : vector<16x128xf32>
    %145 = arith.mulf %136, %95 : vector<16x128xf32>
    %146 = arith.mulf %130, %138 : vector<16x128xf32>
    %147 = arith.addf %145, %146 : vector<16x128xf32>
    %148 = math.tanh %147 : vector<16x128xf32>
    %149 = arith.mulf %144, %148 : vector<16x128xf32>
    %150 = vector.extract_strided_slice %124 {offsets = [0, 0], sizes = [16, 128], strides = [1, 1]} : vector<16x512xf32> to vector<16x128xf32>
    %151 = arith.negf %150 : vector<16x128xf32>
    %152 = math.exp %151 : vector<16x128xf32>
    %cst_39 = arith.constant 1.000000e+00 : f32
    %153 = vector.broadcast %cst_39 : f32 to vector<16x128xf32>
    %154 = arith.addf %153, %152 : vector<16x128xf32>
    %155 = arith.divf %153, %154 : vector<16x128xf32>
    %156 = vector.extract_strided_slice %124 {offsets = [0, 128], sizes = [16, 128], strides = [1, 1]} : vector<16x512xf32> to vector<16x128xf32>
    %157 = arith.negf %156 : vector<16x128xf32>
    %158 = math.exp %157 : vector<16x128xf32>
    %cst_40 = arith.constant 1.000000e+00 : f32
    %159 = vector.broadcast %cst_40 : f32 to vector<16x128xf32>
    %160 = arith.addf %159, %158 : vector<16x128xf32>
    %161 = arith.divf %159, %160 : vector<16x128xf32>
    %162 = vector.extract_strided_slice %124 {offsets = [0, 256], sizes = [16, 128], strides = [1, 1]} : vector<16x512xf32> to vector<16x128xf32>
    %163 = math.tanh %162 : vector<16x128xf32>
    %164 = vector.extract_strided_slice %124 {offsets = [0, 384], sizes = [16, 128], strides = [1, 1]} : vector<16x512xf32> to vector<16x128xf32>
    %165 = arith.negf %164 : vector<16x128xf32>
    %166 = math.exp %165 : vector<16x128xf32>
    %cst_41 = arith.constant 1.000000e+00 : f32
    %167 = vector.broadcast %cst_41 : f32 to vector<16x128xf32>
    %168 = arith.addf %167, %166 : vector<16x128xf32>
    %169 = arith.divf %167, %168 : vector<16x128xf32>
    %170 = arith.mulf %161, %101 : vector<16x128xf32>
    %171 = arith.mulf %155, %163 : vector<16x128xf32>
    %172 = arith.addf %170, %171 : vector<16x128xf32>
    %173 = math.tanh %172 : vector<16x128xf32>
    %174 = arith.mulf %169, %173 : vector<16x128xf32>
    %175 = vector.broadcast %c1_i32_27 : i32 to vector<16x1xi32>
    %176 = arith.cmpi slt, %175, %16 : vector<16x1xi32>
    %177 = vector.broadcast %108 : i32 to vector<16x1xi32>
    %178 = arith.cmpi slt, %177, %16 : vector<16x1xi32>
    %179 = vector.shape_cast %176 : vector<16x1xi1> to vector<16x1xi1>
    %180 = vector.broadcast %179 : vector<16x1xi1> to vector<16x128xi1>
    %181 = arith.select %180, %149, %92 : vector<16x128xi1>, vector<16x128xf32>
    %182 = vector.shape_cast %176 : vector<16x1xi1> to vector<16x1xi1>
    %183 = vector.broadcast %182 : vector<16x1xi1> to vector<16x128xi1>
    %184 = arith.select %183, %147, %95 : vector<16x128xi1>, vector<16x128xf32>
    %185 = vector.shape_cast %178 : vector<16x1xi1> to vector<16x1xi1>
    %186 = vector.broadcast %185 : vector<16x1xi1> to vector<16x128xi1>
    %187 = arith.select %186, %174, %98 : vector<16x128xi1>, vector<16x128xf32>
    %188 = vector.shape_cast %178 : vector<16x1xi1> to vector<16x1xi1>
    %189 = vector.broadcast %188 : vector<16x1xi1> to vector<16x128xi1>
    %190 = arith.select %189, %172, %101 : vector<16x128xi1>, vector<16x128xf32>
    %191 = arith.maximumf %102, %181 : vector<16x128xf32>
    %cst_42 = arith.constant -1.000000e+30 : f32
    %192 = vector.shape_cast %178 : vector<16x1xi1> to vector<16x1xi1>
    %193 = vector.broadcast %192 : vector<16x1xi1> to vector<16x128xi1>
    %194 = vector.broadcast %cst_42 : f32 to vector<16x128xf32>
    %195 = arith.select %193, %187, %194 : vector<16x128xi1>, vector<16x128xf32>
    %196 = arith.maximumf %107, %195 : vector<16x128xf32>
    %c2_i32 = arith.constant 2 : i32
    %c15_i32_43 = arith.constant 15 : i32
    %197 = arith.subi %c15_i32_43, %c2_i32 : i32
    %198 = arith.index_cast %c2_i32 : i32 to index
    %c0_44 = arith.constant 0 : index
    %c0_45 = arith.constant 0 : index
    %199 = vector.load %arg7[%198, %c0_44, %c0_45] : memref<16x16x1024xbf16, #tpu.memory_space<vmem>>, vector<1x16x512xbf16>
    %200 = vector.shape_cast %199 : vector<1x16x512xbf16> to vector<16x512xbf16>
    %201 = arith.index_cast %197 : i32 to index
    %c0_46 = arith.constant 0 : index
    %c512_47 = arith.constant 512 : index
    %202 = vector.load %arg7[%201, %c0_46, %c512_47] : memref<16x16x1024xbf16, #tpu.memory_space<vmem>>, vector<1x16x512xbf16>
    %203 = vector.shape_cast %202 : vector<1x16x512xbf16> to vector<16x512xbf16>
    %204 = tpu.concatenate %181, %187 in 1 : vector<16x128xf32>, vector<16x128xf32> -> vector<16x256xf32>
    %205 = arith.truncf %204 : vector<16x256xf32> to vector<16x256xbf16>
    %c0_48 = arith.constant 0 : index
    %c0_49 = arith.constant 0 : index
    %206 = vector.load %arg4[%c0_48, %c0_49] : memref<256x1024xbf16, #tpu.memory_space<vmem>>, vector<256x1024xbf16>
    %cst_50 = arith.constant dense<0.000000e+00> : vector<16x1024xf32>
    %207 = tpu.matmul %205, %206, %cst_50 {dimension_numbers = #tpu.dot_dimension_numbers<[1], [0], [0], [1], [0, 0, 1, 1], [], []>} : vector<16x256xbf16>, vector<256x1024xbf16>, vector<16x1024xf32> -> vector<16x1024xf32>
    %208 = vector.extract_strided_slice %207 {offsets = [0, 0], sizes = [16, 512], strides = [1, 1]} : vector<16x1024xf32> to vector<16x512xf32>
    %209 = arith.extf %200 : vector<16x512xbf16> to vector<16x512xf32>
    %210 = arith.addf %209, %208 : vector<16x512xf32>
    %211 = vector.extract_strided_slice %207 {offsets = [0, 512], sizes = [16, 512], strides = [1, 1]} : vector<16x1024xf32> to vector<16x512xf32>
    %212 = arith.extf %203 : vector<16x512xbf16> to vector<16x512xf32>
    %213 = arith.addf %212, %211 : vector<16x512xf32>
    %214 = vector.extract_strided_slice %210 {offsets = [0, 0], sizes = [16, 128], strides = [1, 1]} : vector<16x512xf32> to vector<16x128xf32>
    %215 = arith.negf %214 : vector<16x128xf32>
    %216 = math.exp %215 : vector<16x128xf32>
    %cst_51 = arith.constant 1.000000e+00 : f32
    %217 = vector.broadcast %cst_51 : f32 to vector<16x128xf32>
    %218 = arith.addf %217, %216 : vector<16x128xf32>
    %219 = arith.divf %217, %218 : vector<16x128xf32>
    %220 = vector.extract_strided_slice %210 {offsets = [0, 128], sizes = [16, 128], strides = [1, 1]} : vector<16x512xf32> to vector<16x128xf32>
    %221 = arith.negf %220 : vector<16x128xf32>
    %222 = math.exp %221 : vector<16x128xf32>
    %cst_52 = arith.constant 1.000000e+00 : f32
    %223 = vector.broadcast %cst_52 : f32 to vector<16x128xf32>
    %224 = arith.addf %223, %222 : vector<16x128xf32>
    %225 = arith.divf %223, %224 : vector<16x128xf32>
    %226 = vector.extract_strided_slice %210 {offsets = [0, 256], sizes = [16, 128], strides = [1, 1]} : vector<16x512xf32> to vector<16x128xf32>
    %227 = math.tanh %226 : vector<16x128xf32>
    %228 = vector.extract_strided_slice %210 {offsets = [0, 384], sizes = [16, 128], strides = [1, 1]} : vector<16x512xf32> to vector<16x128xf32>
    %229 = arith.negf %228 : vector<16x128xf32>
    %230 = math.exp %229 : vector<16x128xf32>
    %cst_53 = arith.constant 1.000000e+00 : f32
    %231 = vector.broadcast %cst_53 : f32 to vector<16x128xf32>
    %232 = arith.addf %231, %230 : vector<16x128xf32>
    %233 = arith.divf %231, %232 : vector<16x128xf32>
    %234 = arith.mulf %225, %184 : vector<16x128xf32>
    %235 = arith.mulf %219, %227 : vector<16x128xf32>
    %236 = arith.addf %234, %235 : vector<16x128xf32>
    %237 = math.tanh %236 : vector<16x128xf32>
    %238 = arith.mulf %233, %237 : vector<16x128xf32>
    %239 = vector.extract_strided_slice %213 {offsets = [0, 0], sizes = [16, 128], strides = [1, 1]} : vector<16x512xf32> to vector<16x128xf32>
    %240 = arith.negf %239 : vector<16x128xf32>
    %241 = math.exp %240 : vector<16x128xf32>
    %cst_54 = arith.constant 1.000000e+00 : f32
    %242 = vector.broadcast %cst_54 : f32 to vector<16x128xf32>
    %243 = arith.addf %242, %241 : vector<16x128xf32>
    %244 = arith.divf %242, %243 : vector<16x128xf32>
    %245 = vector.extract_strided_slice %213 {offsets = [0, 128], sizes = [16, 128], strides = [1, 1]} : vector<16x512xf32> to vector<16x128xf32>
    %246 = arith.negf %245 : vector<16x128xf32>
    %247 = math.exp %246 : vector<16x128xf32>
    %cst_55 = arith.constant 1.000000e+00 : f32
    %248 = vector.broadcast %cst_55 : f32 to vector<16x128xf32>
    %249 = arith.addf %248, %247 : vector<16x128xf32>
    %250 = arith.divf %248, %249 : vector<16x128xf32>
    %251 = vector.extract_strided_slice %213 {offsets = [0, 256], sizes = [16, 128], strides = [1, 1]} : vector<16x512xf32> to vector<16x128xf32>
    %252 = math.tanh %251 : vector<16x128xf32>
    %253 = vector.extract_strided_slice %213 {offsets = [0, 384], sizes = [16, 128], strides = [1, 1]} : vector<16x512xf32> to vector<16x128xf32>
    %254 = arith.negf %253 : vector<16x128xf32>
    %255 = math.exp %254 : vector<16x128xf32>
    %cst_56 = arith.constant 1.000000e+00 : f32
    %256 = vector.broadcast %cst_56 : f32 to vector<16x128xf32>
    %257 = arith.addf %256, %255 : vector<16x128xf32>
    %258 = arith.divf %256, %257 : vector<16x128xf32>
    %259 = arith.mulf %250, %190 : vector<16x128xf32>
    %260 = arith.mulf %244, %252 : vector<16x128xf32>
    %261 = arith.addf %259, %260 : vector<16x128xf32>
    %262 = math.tanh %261 : vector<16x128xf32>
    %263 = arith.mulf %258, %262 : vector<16x128xf32>
    %264 = vector.broadcast %c2_i32 : i32 to vector<16x1xi32>
    %265 = arith.cmpi slt, %264, %16 : vector<16x1xi32>
    %266 = vector.broadcast %197 : i32 to vector<16x1xi32>
    %267 = arith.cmpi slt, %266, %16 : vector<16x1xi32>
    %268 = vector.shape_cast %265 : vector<16x1xi1> to vector<16x1xi1>
    %269 = vector.broadcast %268 : vector<16x1xi1> to vector<16x128xi1>
    %270 = arith.select %269, %238, %181 : vector<16x128xi1>, vector<16x128xf32>
    %271 = vector.shape_cast %265 : vector<16x1xi1> to vector<16x1xi1>
    %272 = vector.broadcast %271 : vector<16x1xi1> to vector<16x128xi1>
    %273 = arith.select %272, %236, %184 : vector<16x128xi1>, vector<16x128xf32>
    %274 = vector.shape_cast %267 : vector<16x1xi1> to vector<16x1xi1>
    %275 = vector.broadcast %274 : vector<16x1xi1> to vector<16x128xi1>
    %276 = arith.select %275, %263, %187 : vector<16x128xi1>, vector<16x128xf32>
    %277 = vector.shape_cast %267 : vector<16x1xi1> to vector<16x1xi1>
    %278 = vector.broadcast %277 : vector<16x1xi1> to vector<16x128xi1>
    %279 = arith.select %278, %261, %190 : vector<16x128xi1>, vector<16x128xf32>
    %280 = arith.maximumf %191, %270 : vector<16x128xf32>
    %cst_57 = arith.constant -1.000000e+30 : f32
    %281 = vector.shape_cast %267 : vector<16x1xi1> to vector<16x1xi1>
    %282 = vector.broadcast %281 : vector<16x1xi1> to vector<16x128xi1>
    %283 = vector.broadcast %cst_57 : f32 to vector<16x128xf32>
    %284 = arith.select %282, %276, %283 : vector<16x128xi1>, vector<16x128xf32>
    %285 = arith.maximumf %196, %284 : vector<16x128xf32>
    %c3_i32 = arith.constant 3 : i32
    %c15_i32_58 = arith.constant 15 : i32
    %286 = arith.subi %c15_i32_58, %c3_i32 : i32
    %287 = arith.index_cast %c3_i32 : i32 to index
    %c0_59 = arith.constant 0 : index
    %c0_60 = arith.constant 0 : index
    %288 = vector.load %arg7[%287, %c0_59, %c0_60] : memref<16x16x1024xbf16, #tpu.memory_space<vmem>>, vector<1x16x512xbf16>
    %289 = vector.shape_cast %288 : vector<1x16x512xbf16> to vector<16x512xbf16>
    %290 = arith.index_cast %286 : i32 to index
    %c0_61 = arith.constant 0 : index
    %c512_62 = arith.constant 512 : index
    %291 = vector.load %arg7[%290, %c0_61, %c512_62] : memref<16x16x1024xbf16, #tpu.memory_space<vmem>>, vector<1x16x512xbf16>
    %292 = vector.shape_cast %291 : vector<1x16x512xbf16> to vector<16x512xbf16>
    %293 = tpu.concatenate %270, %276 in 1 : vector<16x128xf32>, vector<16x128xf32> -> vector<16x256xf32>
    %294 = arith.truncf %293 : vector<16x256xf32> to vector<16x256xbf16>
    %c0_63 = arith.constant 0 : index
    %c0_64 = arith.constant 0 : index
    %295 = vector.load %arg4[%c0_63, %c0_64] : memref<256x1024xbf16, #tpu.memory_space<vmem>>, vector<256x1024xbf16>
    %cst_65 = arith.constant dense<0.000000e+00> : vector<16x1024xf32>
    %296 = tpu.matmul %294, %295, %cst_65 {dimension_numbers = #tpu.dot_dimension_numbers<[1], [0], [0], [1], [0, 0, 1, 1], [], []>} : vector<16x256xbf16>, vector<256x1024xbf16>, vector<16x1024xf32> -> vector<16x1024xf32>
    %297 = vector.extract_strided_slice %296 {offsets = [0, 0], sizes = [16, 512], strides = [1, 1]} : vector<16x1024xf32> to vector<16x512xf32>
    %298 = arith.extf %289 : vector<16x512xbf16> to vector<16x512xf32>
    %299 = arith.addf %298, %297 : vector<16x512xf32>
    %300 = vector.extract_strided_slice %296 {offsets = [0, 512], sizes = [16, 512], strides = [1, 1]} : vector<16x1024xf32> to vector<16x512xf32>
    %301 = arith.extf %292 : vector<16x512xbf16> to vector<16x512xf32>
    %302 = arith.addf %301, %300 : vector<16x512xf32>
    %303 = vector.extract_strided_slice %299 {offsets = [0, 0], sizes = [16, 128], strides = [1, 1]} : vector<16x512xf32> to vector<16x128xf32>
    %304 = arith.negf %303 : vector<16x128xf32>
    %305 = math.exp %304 : vector<16x128xf32>
    %cst_66 = arith.constant 1.000000e+00 : f32
    %306 = vector.broadcast %cst_66 : f32 to vector<16x128xf32>
    %307 = arith.addf %306, %305 : vector<16x128xf32>
    %308 = arith.divf %306, %307 : vector<16x128xf32>
    %309 = vector.extract_strided_slice %299 {offsets = [0, 128], sizes = [16, 128], strides = [1, 1]} : vector<16x512xf32> to vector<16x128xf32>
    %310 = arith.negf %309 : vector<16x128xf32>
    %311 = math.exp %310 : vector<16x128xf32>
    %cst_67 = arith.constant 1.000000e+00 : f32
    %312 = vector.broadcast %cst_67 : f32 to vector<16x128xf32>
    %313 = arith.addf %312, %311 : vector<16x128xf32>
    %314 = arith.divf %312, %313 : vector<16x128xf32>
    %315 = vector.extract_strided_slice %299 {offsets = [0, 256], sizes = [16, 128], strides = [1, 1]} : vector<16x512xf32> to vector<16x128xf32>
    %316 = math.tanh %315 : vector<16x128xf32>
    %317 = vector.extract_strided_slice %299 {offsets = [0, 384], sizes = [16, 128], strides = [1, 1]} : vector<16x512xf32> to vector<16x128xf32>
    %318 = arith.negf %317 : vector<16x128xf32>
    %319 = math.exp %318 : vector<16x128xf32>
    %cst_68 = arith.constant 1.000000e+00 : f32
    %320 = vector.broadcast %cst_68 : f32 to vector<16x128xf32>
    %321 = arith.addf %320, %319 : vector<16x128xf32>
    %322 = arith.divf %320, %321 : vector<16x128xf32>
    %323 = arith.mulf %314, %273 : vector<16x128xf32>
    %324 = arith.mulf %308, %316 : vector<16x128xf32>
    %325 = arith.addf %323, %324 : vector<16x128xf32>
    %326 = math.tanh %325 : vector<16x128xf32>
    %327 = arith.mulf %322, %326 : vector<16x128xf32>
    %328 = vector.extract_strided_slice %302 {offsets = [0, 0], sizes = [16, 128], strides = [1, 1]} : vector<16x512xf32> to vector<16x128xf32>
    %329 = arith.negf %328 : vector<16x128xf32>
    %330 = math.exp %329 : vector<16x128xf32>
    %cst_69 = arith.constant 1.000000e+00 : f32
    %331 = vector.broadcast %cst_69 : f32 to vector<16x128xf32>
    %332 = arith.addf %331, %330 : vector<16x128xf32>
    %333 = arith.divf %331, %332 : vector<16x128xf32>
    %334 = vector.extract_strided_slice %302 {offsets = [0, 128], sizes = [16, 128], strides = [1, 1]} : vector<16x512xf32> to vector<16x128xf32>
    %335 = arith.negf %334 : vector<16x128xf32>
    %336 = math.exp %335 : vector<16x128xf32>
    %cst_70 = arith.constant 1.000000e+00 : f32
    %337 = vector.broadcast %cst_70 : f32 to vector<16x128xf32>
    %338 = arith.addf %337, %336 : vector<16x128xf32>
    %339 = arith.divf %337, %338 : vector<16x128xf32>
    %340 = vector.extract_strided_slice %302 {offsets = [0, 256], sizes = [16, 128], strides = [1, 1]} : vector<16x512xf32> to vector<16x128xf32>
    %341 = math.tanh %340 : vector<16x128xf32>
    %342 = vector.extract_strided_slice %302 {offsets = [0, 384], sizes = [16, 128], strides = [1, 1]} : vector<16x512xf32> to vector<16x128xf32>
    %343 = arith.negf %342 : vector<16x128xf32>
    %344 = math.exp %343 : vector<16x128xf32>
    %cst_71 = arith.constant 1.000000e+00 : f32
    %345 = vector.broadcast %cst_71 : f32 to vector<16x128xf32>
    %346 = arith.addf %345, %344 : vector<16x128xf32>
    %347 = arith.divf %345, %346 : vector<16x128xf32>
    %348 = arith.mulf %339, %279 : vector<16x128xf32>
    %349 = arith.mulf %333, %341 : vector<16x128xf32>
    %350 = arith.addf %348, %349 : vector<16x128xf32>
    %351 = math.tanh %350 : vector<16x128xf32>
    %352 = arith.mulf %347, %351 : vector<16x128xf32>
    %353 = vector.broadcast %c3_i32 : i32 to vector<16x1xi32>
    %354 = arith.cmpi slt, %353, %16 : vector<16x1xi32>
    %355 = vector.broadcast %286 : i32 to vector<16x1xi32>
    %356 = arith.cmpi slt, %355, %16 : vector<16x1xi32>
    %357 = vector.shape_cast %354 : vector<16x1xi1> to vector<16x1xi1>
    %358 = vector.broadcast %357 : vector<16x1xi1> to vector<16x128xi1>
    %359 = arith.select %358, %327, %270 : vector<16x128xi1>, vector<16x128xf32>
    %360 = vector.shape_cast %354 : vector<16x1xi1> to vector<16x1xi1>
    %361 = vector.broadcast %360 : vector<16x1xi1> to vector<16x128xi1>
    %362 = arith.select %361, %325, %273 : vector<16x128xi1>, vector<16x128xf32>
    %363 = vector.shape_cast %356 : vector<16x1xi1> to vector<16x1xi1>
    %364 = vector.broadcast %363 : vector<16x1xi1> to vector<16x128xi1>
    %365 = arith.select %364, %352, %276 : vector<16x128xi1>, vector<16x128xf32>
    %366 = vector.shape_cast %356 : vector<16x1xi1> to vector<16x1xi1>
    %367 = vector.broadcast %366 : vector<16x1xi1> to vector<16x128xi1>
    %368 = arith.select %367, %350, %279 : vector<16x128xi1>, vector<16x128xf32>
    %369 = arith.maximumf %280, %359 : vector<16x128xf32>
    %cst_72 = arith.constant -1.000000e+30 : f32
    %370 = vector.shape_cast %356 : vector<16x1xi1> to vector<16x1xi1>
    %371 = vector.broadcast %370 : vector<16x1xi1> to vector<16x128xi1>
    %372 = vector.broadcast %cst_72 : f32 to vector<16x128xf32>
    %373 = arith.select %371, %365, %372 : vector<16x128xi1>, vector<16x128xf32>
    %374 = arith.maximumf %285, %373 : vector<16x128xf32>
    %c4_i32 = arith.constant 4 : i32
    %c15_i32_73 = arith.constant 15 : i32
    %375 = arith.subi %c15_i32_73, %c4_i32 : i32
    %376 = arith.index_cast %c4_i32 : i32 to index
    %c0_74 = arith.constant 0 : index
    %c0_75 = arith.constant 0 : index
    %377 = vector.load %arg7[%376, %c0_74, %c0_75] : memref<16x16x1024xbf16, #tpu.memory_space<vmem>>, vector<1x16x512xbf16>
    %378 = vector.shape_cast %377 : vector<1x16x512xbf16> to vector<16x512xbf16>
    %379 = arith.index_cast %375 : i32 to index
    %c0_76 = arith.constant 0 : index
    %c512_77 = arith.constant 512 : index
    %380 = vector.load %arg7[%379, %c0_76, %c512_77] : memref<16x16x1024xbf16, #tpu.memory_space<vmem>>, vector<1x16x512xbf16>
    %381 = vector.shape_cast %380 : vector<1x16x512xbf16> to vector<16x512xbf16>
    %382 = tpu.concatenate %359, %365 in 1 : vector<16x128xf32>, vector<16x128xf32> -> vector<16x256xf32>
    %383 = arith.truncf %382 : vector<16x256xf32> to vector<16x256xbf16>
    %c0_78 = arith.constant 0 : index
    %c0_79 = arith.constant 0 : index
    %384 = vector.load %arg4[%c0_78, %c0_79] : memref<256x1024xbf16, #tpu.memory_space<vmem>>, vector<256x1024xbf16>
    %cst_80 = arith.constant dense<0.000000e+00> : vector<16x1024xf32>
    %385 = tpu.matmul %383, %384, %cst_80 {dimension_numbers = #tpu.dot_dimension_numbers<[1], [0], [0], [1], [0, 0, 1, 1], [], []>} : vector<16x256xbf16>, vector<256x1024xbf16>, vector<16x1024xf32> -> vector<16x1024xf32>
    %386 = vector.extract_strided_slice %385 {offsets = [0, 0], sizes = [16, 512], strides = [1, 1]} : vector<16x1024xf32> to vector<16x512xf32>
    %387 = arith.extf %378 : vector<16x512xbf16> to vector<16x512xf32>
    %388 = arith.addf %387, %386 : vector<16x512xf32>
    %389 = vector.extract_strided_slice %385 {offsets = [0, 512], sizes = [16, 512], strides = [1, 1]} : vector<16x1024xf32> to vector<16x512xf32>
    %390 = arith.extf %381 : vector<16x512xbf16> to vector<16x512xf32>
    %391 = arith.addf %390, %389 : vector<16x512xf32>
    %392 = vector.extract_strided_slice %388 {offsets = [0, 0], sizes = [16, 128], strides = [1, 1]} : vector<16x512xf32> to vector<16x128xf32>
    %393 = arith.negf %392 : vector<16x128xf32>
    %394 = math.exp %393 : vector<16x128xf32>
    %cst_81 = arith.constant 1.000000e+00 : f32
    %395 = vector.broadcast %cst_81 : f32 to vector<16x128xf32>
    %396 = arith.addf %395, %394 : vector<16x128xf32>
    %397 = arith.divf %395, %396 : vector<16x128xf32>
    %398 = vector.extract_strided_slice %388 {offsets = [0, 128], sizes = [16, 128], strides = [1, 1]} : vector<16x512xf32> to vector<16x128xf32>
    %399 = arith.negf %398 : vector<16x128xf32>
    %400 = math.exp %399 : vector<16x128xf32>
    %cst_82 = arith.constant 1.000000e+00 : f32
    %401 = vector.broadcast %cst_82 : f32 to vector<16x128xf32>
    %402 = arith.addf %401, %400 : vector<16x128xf32>
    %403 = arith.divf %401, %402 : vector<16x128xf32>
    %404 = vector.extract_strided_slice %388 {offsets = [0, 256], sizes = [16, 128], strides = [1, 1]} : vector<16x512xf32> to vector<16x128xf32>
    %405 = math.tanh %404 : vector<16x128xf32>
    %406 = vector.extract_strided_slice %388 {offsets = [0, 384], sizes = [16, 128], strides = [1, 1]} : vector<16x512xf32> to vector<16x128xf32>
    %407 = arith.negf %406 : vector<16x128xf32>
    %408 = math.exp %407 : vector<16x128xf32>
    %cst_83 = arith.constant 1.000000e+00 : f32
    %409 = vector.broadcast %cst_83 : f32 to vector<16x128xf32>
    %410 = arith.addf %409, %408 : vector<16x128xf32>
    %411 = arith.divf %409, %410 : vector<16x128xf32>
    %412 = arith.mulf %403, %362 : vector<16x128xf32>
    %413 = arith.mulf %397, %405 : vector<16x128xf32>
    %414 = arith.addf %412, %413 : vector<16x128xf32>
    %415 = math.tanh %414 : vector<16x128xf32>
    %416 = arith.mulf %411, %415 : vector<16x128xf32>
    %417 = vector.extract_strided_slice %391 {offsets = [0, 0], sizes = [16, 128], strides = [1, 1]} : vector<16x512xf32> to vector<16x128xf32>
    %418 = arith.negf %417 : vector<16x128xf32>
    %419 = math.exp %418 : vector<16x128xf32>
    %cst_84 = arith.constant 1.000000e+00 : f32
    %420 = vector.broadcast %cst_84 : f32 to vector<16x128xf32>
    %421 = arith.addf %420, %419 : vector<16x128xf32>
    %422 = arith.divf %420, %421 : vector<16x128xf32>
    %423 = vector.extract_strided_slice %391 {offsets = [0, 128], sizes = [16, 128], strides = [1, 1]} : vector<16x512xf32> to vector<16x128xf32>
    %424 = arith.negf %423 : vector<16x128xf32>
    %425 = math.exp %424 : vector<16x128xf32>
    %cst_85 = arith.constant 1.000000e+00 : f32
    %426 = vector.broadcast %cst_85 : f32 to vector<16x128xf32>
    %427 = arith.addf %426, %425 : vector<16x128xf32>
    %428 = arith.divf %426, %427 : vector<16x128xf32>
    %429 = vector.extract_strided_slice %391 {offsets = [0, 256], sizes = [16, 128], strides = [1, 1]} : vector<16x512xf32> to vector<16x128xf32>
    %430 = math.tanh %429 : vector<16x128xf32>
    %431 = vector.extract_strided_slice %391 {offsets = [0, 384], sizes = [16, 128], strides = [1, 1]} : vector<16x512xf32> to vector<16x128xf32>
    %432 = arith.negf %431 : vector<16x128xf32>
    %433 = math.exp %432 : vector<16x128xf32>
    %cst_86 = arith.constant 1.000000e+00 : f32
    %434 = vector.broadcast %cst_86 : f32 to vector<16x128xf32>
    %435 = arith.addf %434, %433 : vector<16x128xf32>
    %436 = arith.divf %434, %435 : vector<16x128xf32>
    %437 = arith.mulf %428, %368 : vector<16x128xf32>
    %438 = arith.mulf %422, %430 : vector<16x128xf32>
    %439 = arith.addf %437, %438 : vector<16x128xf32>
    %440 = math.tanh %439 : vector<16x128xf32>
    %441 = arith.mulf %436, %440 : vector<16x128xf32>
    %442 = vector.broadcast %c4_i32 : i32 to vector<16x1xi32>
    %443 = arith.cmpi slt, %442, %16 : vector<16x1xi32>
    %444 = vector.broadcast %375 : i32 to vector<16x1xi32>
    %445 = arith.cmpi slt, %444, %16 : vector<16x1xi32>
    %446 = vector.shape_cast %443 : vector<16x1xi1> to vector<16x1xi1>
    %447 = vector.broadcast %446 : vector<16x1xi1> to vector<16x128xi1>
    %448 = arith.select %447, %416, %359 : vector<16x128xi1>, vector<16x128xf32>
    %449 = vector.shape_cast %443 : vector<16x1xi1> to vector<16x1xi1>
    %450 = vector.broadcast %449 : vector<16x1xi1> to vector<16x128xi1>
    %451 = arith.select %450, %414, %362 : vector<16x128xi1>, vector<16x128xf32>
    %452 = vector.shape_cast %445 : vector<16x1xi1> to vector<16x1xi1>
    %453 = vector.broadcast %452 : vector<16x1xi1> to vector<16x128xi1>
    %454 = arith.select %453, %441, %365 : vector<16x128xi1>, vector<16x128xf32>
    %455 = vector.shape_cast %445 : vector<16x1xi1> to vector<16x1xi1>
    %456 = vector.broadcast %455 : vector<16x1xi1> to vector<16x128xi1>
    %457 = arith.select %456, %439, %368 : vector<16x128xi1>, vector<16x128xf32>
    %458 = arith.maximumf %369, %448 : vector<16x128xf32>
    %cst_87 = arith.constant -1.000000e+30 : f32
    %459 = vector.shape_cast %445 : vector<16x1xi1> to vector<16x1xi1>
    %460 = vector.broadcast %459 : vector<16x1xi1> to vector<16x128xi1>
    %461 = vector.broadcast %cst_87 : f32 to vector<16x128xf32>
    %462 = arith.select %460, %454, %461 : vector<16x128xi1>, vector<16x128xf32>
    %463 = arith.maximumf %374, %462 : vector<16x128xf32>
    %c5_i32 = arith.constant 5 : i32
    %c15_i32_88 = arith.constant 15 : i32
    %464 = arith.subi %c15_i32_88, %c5_i32 : i32
    %465 = arith.index_cast %c5_i32 : i32 to index
    %c0_89 = arith.constant 0 : index
    %c0_90 = arith.constant 0 : index
    %466 = vector.load %arg7[%465, %c0_89, %c0_90] : memref<16x16x1024xbf16, #tpu.memory_space<vmem>>, vector<1x16x512xbf16>
    %467 = vector.shape_cast %466 : vector<1x16x512xbf16> to vector<16x512xbf16>
    %468 = arith.index_cast %464 : i32 to index
    %c0_91 = arith.constant 0 : index
    %c512_92 = arith.constant 512 : index
    %469 = vector.load %arg7[%468, %c0_91, %c512_92] : memref<16x16x1024xbf16, #tpu.memory_space<vmem>>, vector<1x16x512xbf16>
    %470 = vector.shape_cast %469 : vector<1x16x512xbf16> to vector<16x512xbf16>
    %471 = tpu.concatenate %448, %454 in 1 : vector<16x128xf32>, vector<16x128xf32> -> vector<16x256xf32>
    %472 = arith.truncf %471 : vector<16x256xf32> to vector<16x256xbf16>
    %c0_93 = arith.constant 0 : index
    %c0_94 = arith.constant 0 : index
    %473 = vector.load %arg4[%c0_93, %c0_94] : memref<256x1024xbf16, #tpu.memory_space<vmem>>, vector<256x1024xbf16>
    %cst_95 = arith.constant dense<0.000000e+00> : vector<16x1024xf32>
    %474 = tpu.matmul %472, %473, %cst_95 {dimension_numbers = #tpu.dot_dimension_numbers<[1], [0], [0], [1], [0, 0, 1, 1], [], []>} : vector<16x256xbf16>, vector<256x1024xbf16>, vector<16x1024xf32> -> vector<16x1024xf32>
    %475 = vector.extract_strided_slice %474 {offsets = [0, 0], sizes = [16, 512], strides = [1, 1]} : vector<16x1024xf32> to vector<16x512xf32>
    %476 = arith.extf %467 : vector<16x512xbf16> to vector<16x512xf32>
    %477 = arith.addf %476, %475 : vector<16x512xf32>
    %478 = vector.extract_strided_slice %474 {offsets = [0, 512], sizes = [16, 512], strides = [1, 1]} : vector<16x1024xf32> to vector<16x512xf32>
    %479 = arith.extf %470 : vector<16x512xbf16> to vector<16x512xf32>
    %480 = arith.addf %479, %478 : vector<16x512xf32>
    %481 = vector.extract_strided_slice %477 {offsets = [0, 0], sizes = [16, 128], strides = [1, 1]} : vector<16x512xf32> to vector<16x128xf32>
    %482 = arith.negf %481 : vector<16x128xf32>
    %483 = math.exp %482 : vector<16x128xf32>
    %cst_96 = arith.constant 1.000000e+00 : f32
    %484 = vector.broadcast %cst_96 : f32 to vector<16x128xf32>
    %485 = arith.addf %484, %483 : vector<16x128xf32>
    %486 = arith.divf %484, %485 : vector<16x128xf32>
    %487 = vector.extract_strided_slice %477 {offsets = [0, 128], sizes = [16, 128], strides = [1, 1]} : vector<16x512xf32> to vector<16x128xf32>
    %488 = arith.negf %487 : vector<16x128xf32>
    %489 = math.exp %488 : vector<16x128xf32>
    %cst_97 = arith.constant 1.000000e+00 : f32
    %490 = vector.broadcast %cst_97 : f32 to vector<16x128xf32>
    %491 = arith.addf %490, %489 : vector<16x128xf32>
    %492 = arith.divf %490, %491 : vector<16x128xf32>
    %493 = vector.extract_strided_slice %477 {offsets = [0, 256], sizes = [16, 128], strides = [1, 1]} : vector<16x512xf32> to vector<16x128xf32>
    %494 = math.tanh %493 : vector<16x128xf32>
    %495 = vector.extract_strided_slice %477 {offsets = [0, 384], sizes = [16, 128], strides = [1, 1]} : vector<16x512xf32> to vector<16x128xf32>
    %496 = arith.negf %495 : vector<16x128xf32>
    %497 = math.exp %496 : vector<16x128xf32>
    %cst_98 = arith.constant 1.000000e+00 : f32
    %498 = vector.broadcast %cst_98 : f32 to vector<16x128xf32>
    %499 = arith.addf %498, %497 : vector<16x128xf32>
    %500 = arith.divf %498, %499 : vector<16x128xf32>
    %501 = arith.mulf %492, %451 : vector<16x128xf32>
    %502 = arith.mulf %486, %494 : vector<16x128xf32>
    %503 = arith.addf %501, %502 : vector<16x128xf32>
    %504 = math.tanh %503 : vector<16x128xf32>
    %505 = arith.mulf %500, %504 : vector<16x128xf32>
    %506 = vector.extract_strided_slice %480 {offsets = [0, 0], sizes = [16, 128], strides = [1, 1]} : vector<16x512xf32> to vector<16x128xf32>
    %507 = arith.negf %506 : vector<16x128xf32>
    %508 = math.exp %507 : vector<16x128xf32>
    %cst_99 = arith.constant 1.000000e+00 : f32
    %509 = vector.broadcast %cst_99 : f32 to vector<16x128xf32>
    %510 = arith.addf %509, %508 : vector<16x128xf32>
    %511 = arith.divf %509, %510 : vector<16x128xf32>
    %512 = vector.extract_strided_slice %480 {offsets = [0, 128], sizes = [16, 128], strides = [1, 1]} : vector<16x512xf32> to vector<16x128xf32>
    %513 = arith.negf %512 : vector<16x128xf32>
    %514 = math.exp %513 : vector<16x128xf32>
    %cst_100 = arith.constant 1.000000e+00 : f32
    %515 = vector.broadcast %cst_100 : f32 to vector<16x128xf32>
    %516 = arith.addf %515, %514 : vector<16x128xf32>
    %517 = arith.divf %515, %516 : vector<16x128xf32>
    %518 = vector.extract_strided_slice %480 {offsets = [0, 256], sizes = [16, 128], strides = [1, 1]} : vector<16x512xf32> to vector<16x128xf32>
    %519 = math.tanh %518 : vector<16x128xf32>
    %520 = vector.extract_strided_slice %480 {offsets = [0, 384], sizes = [16, 128], strides = [1, 1]} : vector<16x512xf32> to vector<16x128xf32>
    %521 = arith.negf %520 : vector<16x128xf32>
    %522 = math.exp %521 : vector<16x128xf32>
    %cst_101 = arith.constant 1.000000e+00 : f32
    %523 = vector.broadcast %cst_101 : f32 to vector<16x128xf32>
    %524 = arith.addf %523, %522 : vector<16x128xf32>
    %525 = arith.divf %523, %524 : vector<16x128xf32>
    %526 = arith.mulf %517, %457 : vector<16x128xf32>
    %527 = arith.mulf %511, %519 : vector<16x128xf32>
    %528 = arith.addf %526, %527 : vector<16x128xf32>
    %529 = math.tanh %528 : vector<16x128xf32>
    %530 = arith.mulf %525, %529 : vector<16x128xf32>
    %531 = vector.broadcast %c5_i32 : i32 to vector<16x1xi32>
    %532 = arith.cmpi slt, %531, %16 : vector<16x1xi32>
    %533 = vector.broadcast %464 : i32 to vector<16x1xi32>
    %534 = arith.cmpi slt, %533, %16 : vector<16x1xi32>
    %535 = vector.shape_cast %532 : vector<16x1xi1> to vector<16x1xi1>
    %536 = vector.broadcast %535 : vector<16x1xi1> to vector<16x128xi1>
    %537 = arith.select %536, %505, %448 : vector<16x128xi1>, vector<16x128xf32>
    %538 = vector.shape_cast %532 : vector<16x1xi1> to vector<16x1xi1>
    %539 = vector.broadcast %538 : vector<16x1xi1> to vector<16x128xi1>
    %540 = arith.select %539, %503, %451 : vector<16x128xi1>, vector<16x128xf32>
    %541 = vector.shape_cast %534 : vector<16x1xi1> to vector<16x1xi1>
    %542 = vector.broadcast %541 : vector<16x1xi1> to vector<16x128xi1>
    %543 = arith.select %542, %530, %454 : vector<16x128xi1>, vector<16x128xf32>
    %544 = vector.shape_cast %534 : vector<16x1xi1> to vector<16x1xi1>
    %545 = vector.broadcast %544 : vector<16x1xi1> to vector<16x128xi1>
    %546 = arith.select %545, %528, %457 : vector<16x128xi1>, vector<16x128xf32>
    %547 = arith.maximumf %458, %537 : vector<16x128xf32>
    %cst_102 = arith.constant -1.000000e+30 : f32
    %548 = vector.shape_cast %534 : vector<16x1xi1> to vector<16x1xi1>
    %549 = vector.broadcast %548 : vector<16x1xi1> to vector<16x128xi1>
    %550 = vector.broadcast %cst_102 : f32 to vector<16x128xf32>
    %551 = arith.select %549, %543, %550 : vector<16x128xi1>, vector<16x128xf32>
    %552 = arith.maximumf %463, %551 : vector<16x128xf32>
    %c6_i32 = arith.constant 6 : i32
    %c15_i32_103 = arith.constant 15 : i32
    %553 = arith.subi %c15_i32_103, %c6_i32 : i32
    %554 = arith.index_cast %c6_i32 : i32 to index
    %c0_104 = arith.constant 0 : index
    %c0_105 = arith.constant 0 : index
    %555 = vector.load %arg7[%554, %c0_104, %c0_105] : memref<16x16x1024xbf16, #tpu.memory_space<vmem>>, vector<1x16x512xbf16>
    %556 = vector.shape_cast %555 : vector<1x16x512xbf16> to vector<16x512xbf16>
    %557 = arith.index_cast %553 : i32 to index
    %c0_106 = arith.constant 0 : index
    %c512_107 = arith.constant 512 : index
    %558 = vector.load %arg7[%557, %c0_106, %c512_107] : memref<16x16x1024xbf16, #tpu.memory_space<vmem>>, vector<1x16x512xbf16>
    %559 = vector.shape_cast %558 : vector<1x16x512xbf16> to vector<16x512xbf16>
    %560 = tpu.concatenate %537, %543 in 1 : vector<16x128xf32>, vector<16x128xf32> -> vector<16x256xf32>
    %561 = arith.truncf %560 : vector<16x256xf32> to vector<16x256xbf16>
    %c0_108 = arith.constant 0 : index
    %c0_109 = arith.constant 0 : index
    %562 = vector.load %arg4[%c0_108, %c0_109] : memref<256x1024xbf16, #tpu.memory_space<vmem>>, vector<256x1024xbf16>
    %cst_110 = arith.constant dense<0.000000e+00> : vector<16x1024xf32>
    %563 = tpu.matmul %561, %562, %cst_110 {dimension_numbers = #tpu.dot_dimension_numbers<[1], [0], [0], [1], [0, 0, 1, 1], [], []>} : vector<16x256xbf16>, vector<256x1024xbf16>, vector<16x1024xf32> -> vector<16x1024xf32>
    %564 = vector.extract_strided_slice %563 {offsets = [0, 0], sizes = [16, 512], strides = [1, 1]} : vector<16x1024xf32> to vector<16x512xf32>
    %565 = arith.extf %556 : vector<16x512xbf16> to vector<16x512xf32>
    %566 = arith.addf %565, %564 : vector<16x512xf32>
    %567 = vector.extract_strided_slice %563 {offsets = [0, 512], sizes = [16, 512], strides = [1, 1]} : vector<16x1024xf32> to vector<16x512xf32>
    %568 = arith.extf %559 : vector<16x512xbf16> to vector<16x512xf32>
    %569 = arith.addf %568, %567 : vector<16x512xf32>
    %570 = vector.extract_strided_slice %566 {offsets = [0, 0], sizes = [16, 128], strides = [1, 1]} : vector<16x512xf32> to vector<16x128xf32>
    %571 = arith.negf %570 : vector<16x128xf32>
    %572 = math.exp %571 : vector<16x128xf32>
    %cst_111 = arith.constant 1.000000e+00 : f32
    %573 = vector.broadcast %cst_111 : f32 to vector<16x128xf32>
    %574 = arith.addf %573, %572 : vector<16x128xf32>
    %575 = arith.divf %573, %574 : vector<16x128xf32>
    %576 = vector.extract_strided_slice %566 {offsets = [0, 128], sizes = [16, 128], strides = [1, 1]} : vector<16x512xf32> to vector<16x128xf32>
    %577 = arith.negf %576 : vector<16x128xf32>
    %578 = math.exp %577 : vector<16x128xf32>
    %cst_112 = arith.constant 1.000000e+00 : f32
    %579 = vector.broadcast %cst_112 : f32 to vector<16x128xf32>
    %580 = arith.addf %579, %578 : vector<16x128xf32>
    %581 = arith.divf %579, %580 : vector<16x128xf32>
    %582 = vector.extract_strided_slice %566 {offsets = [0, 256], sizes = [16, 128], strides = [1, 1]} : vector<16x512xf32> to vector<16x128xf32>
    %583 = math.tanh %582 : vector<16x128xf32>
    %584 = vector.extract_strided_slice %566 {offsets = [0, 384], sizes = [16, 128], strides = [1, 1]} : vector<16x512xf32> to vector<16x128xf32>
    %585 = arith.negf %584 : vector<16x128xf32>
    %586 = math.exp %585 : vector<16x128xf32>
    %cst_113 = arith.constant 1.000000e+00 : f32
    %587 = vector.broadcast %cst_113 : f32 to vector<16x128xf32>
    %588 = arith.addf %587, %586 : vector<16x128xf32>
    %589 = arith.divf %587, %588 : vector<16x128xf32>
    %590 = arith.mulf %581, %540 : vector<16x128xf32>
    %591 = arith.mulf %575, %583 : vector<16x128xf32>
    %592 = arith.addf %590, %591 : vector<16x128xf32>
    %593 = math.tanh %592 : vector<16x128xf32>
    %594 = arith.mulf %589, %593 : vector<16x128xf32>
    %595 = vector.extract_strided_slice %569 {offsets = [0, 0], sizes = [16, 128], strides = [1, 1]} : vector<16x512xf32> to vector<16x128xf32>
    %596 = arith.negf %595 : vector<16x128xf32>
    %597 = math.exp %596 : vector<16x128xf32>
    %cst_114 = arith.constant 1.000000e+00 : f32
    %598 = vector.broadcast %cst_114 : f32 to vector<16x128xf32>
    %599 = arith.addf %598, %597 : vector<16x128xf32>
    %600 = arith.divf %598, %599 : vector<16x128xf32>
    %601 = vector.extract_strided_slice %569 {offsets = [0, 128], sizes = [16, 128], strides = [1, 1]} : vector<16x512xf32> to vector<16x128xf32>
    %602 = arith.negf %601 : vector<16x128xf32>
    %603 = math.exp %602 : vector<16x128xf32>
    %cst_115 = arith.constant 1.000000e+00 : f32
    %604 = vector.broadcast %cst_115 : f32 to vector<16x128xf32>
    %605 = arith.addf %604, %603 : vector<16x128xf32>
    %606 = arith.divf %604, %605 : vector<16x128xf32>
    %607 = vector.extract_strided_slice %569 {offsets = [0, 256], sizes = [16, 128], strides = [1, 1]} : vector<16x512xf32> to vector<16x128xf32>
    %608 = math.tanh %607 : vector<16x128xf32>
    %609 = vector.extract_strided_slice %569 {offsets = [0, 384], sizes = [16, 128], strides = [1, 1]} : vector<16x512xf32> to vector<16x128xf32>
    %610 = arith.negf %609 : vector<16x128xf32>
    %611 = math.exp %610 : vector<16x128xf32>
    %cst_116 = arith.constant 1.000000e+00 : f32
    %612 = vector.broadcast %cst_116 : f32 to vector<16x128xf32>
    %613 = arith.addf %612, %611 : vector<16x128xf32>
    %614 = arith.divf %612, %613 : vector<16x128xf32>
    %615 = arith.mulf %606, %546 : vector<16x128xf32>
    %616 = arith.mulf %600, %608 : vector<16x128xf32>
    %617 = arith.addf %615, %616 : vector<16x128xf32>
    %618 = math.tanh %617 : vector<16x128xf32>
    %619 = arith.mulf %614, %618 : vector<16x128xf32>
    %620 = vector.broadcast %c6_i32 : i32 to vector<16x1xi32>
    %621 = arith.cmpi slt, %620, %16 : vector<16x1xi32>
    %622 = vector.broadcast %553 : i32 to vector<16x1xi32>
    %623 = arith.cmpi slt, %622, %16 : vector<16x1xi32>
    %624 = vector.shape_cast %621 : vector<16x1xi1> to vector<16x1xi1>
    %625 = vector.broadcast %624 : vector<16x1xi1> to vector<16x128xi1>
    %626 = arith.select %625, %594, %537 : vector<16x128xi1>, vector<16x128xf32>
    %627 = vector.shape_cast %621 : vector<16x1xi1> to vector<16x1xi1>
    %628 = vector.broadcast %627 : vector<16x1xi1> to vector<16x128xi1>
    %629 = arith.select %628, %592, %540 : vector<16x128xi1>, vector<16x128xf32>
    %630 = vector.shape_cast %623 : vector<16x1xi1> to vector<16x1xi1>
    %631 = vector.broadcast %630 : vector<16x1xi1> to vector<16x128xi1>
    %632 = arith.select %631, %619, %543 : vector<16x128xi1>, vector<16x128xf32>
    %633 = vector.shape_cast %623 : vector<16x1xi1> to vector<16x1xi1>
    %634 = vector.broadcast %633 : vector<16x1xi1> to vector<16x128xi1>
    %635 = arith.select %634, %617, %546 : vector<16x128xi1>, vector<16x128xf32>
    %636 = arith.maximumf %547, %626 : vector<16x128xf32>
    %cst_117 = arith.constant -1.000000e+30 : f32
    %637 = vector.shape_cast %623 : vector<16x1xi1> to vector<16x1xi1>
    %638 = vector.broadcast %637 : vector<16x1xi1> to vector<16x128xi1>
    %639 = vector.broadcast %cst_117 : f32 to vector<16x128xf32>
    %640 = arith.select %638, %632, %639 : vector<16x128xi1>, vector<16x128xf32>
    %641 = arith.maximumf %552, %640 : vector<16x128xf32>
    %c7_i32 = arith.constant 7 : i32
    %c15_i32_118 = arith.constant 15 : i32
    %642 = arith.subi %c15_i32_118, %c7_i32 : i32
    %643 = arith.index_cast %c7_i32 : i32 to index
    %c0_119 = arith.constant 0 : index
    %c0_120 = arith.constant 0 : index
    %644 = vector.load %arg7[%643, %c0_119, %c0_120] : memref<16x16x1024xbf16, #tpu.memory_space<vmem>>, vector<1x16x512xbf16>
    %645 = vector.shape_cast %644 : vector<1x16x512xbf16> to vector<16x512xbf16>
    %646 = arith.index_cast %642 : i32 to index
    %c0_121 = arith.constant 0 : index
    %c512_122 = arith.constant 512 : index
    %647 = vector.load %arg7[%646, %c0_121, %c512_122] : memref<16x16x1024xbf16, #tpu.memory_space<vmem>>, vector<1x16x512xbf16>
    %648 = vector.shape_cast %647 : vector<1x16x512xbf16> to vector<16x512xbf16>
    %649 = tpu.concatenate %626, %632 in 1 : vector<16x128xf32>, vector<16x128xf32> -> vector<16x256xf32>
    %650 = arith.truncf %649 : vector<16x256xf32> to vector<16x256xbf16>
    %c0_123 = arith.constant 0 : index
    %c0_124 = arith.constant 0 : index
    %651 = vector.load %arg4[%c0_123, %c0_124] : memref<256x1024xbf16, #tpu.memory_space<vmem>>, vector<256x1024xbf16>
    %cst_125 = arith.constant dense<0.000000e+00> : vector<16x1024xf32>
    %652 = tpu.matmul %650, %651, %cst_125 {dimension_numbers = #tpu.dot_dimension_numbers<[1], [0], [0], [1], [0, 0, 1, 1], [], []>} : vector<16x256xbf16>, vector<256x1024xbf16>, vector<16x1024xf32> -> vector<16x1024xf32>
    %653 = vector.extract_strided_slice %652 {offsets = [0, 0], sizes = [16, 512], strides = [1, 1]} : vector<16x1024xf32> to vector<16x512xf32>
    %654 = arith.extf %645 : vector<16x512xbf16> to vector<16x512xf32>
    %655 = arith.addf %654, %653 : vector<16x512xf32>
    %656 = vector.extract_strided_slice %652 {offsets = [0, 512], sizes = [16, 512], strides = [1, 1]} : vector<16x1024xf32> to vector<16x512xf32>
    %657 = arith.extf %648 : vector<16x512xbf16> to vector<16x512xf32>
    %658 = arith.addf %657, %656 : vector<16x512xf32>
    %659 = vector.extract_strided_slice %655 {offsets = [0, 0], sizes = [16, 128], strides = [1, 1]} : vector<16x512xf32> to vector<16x128xf32>
    %660 = arith.negf %659 : vector<16x128xf32>
    %661 = math.exp %660 : vector<16x128xf32>
    %cst_126 = arith.constant 1.000000e+00 : f32
    %662 = vector.broadcast %cst_126 : f32 to vector<16x128xf32>
    %663 = arith.addf %662, %661 : vector<16x128xf32>
    %664 = arith.divf %662, %663 : vector<16x128xf32>
    %665 = vector.extract_strided_slice %655 {offsets = [0, 128], sizes = [16, 128], strides = [1, 1]} : vector<16x512xf32> to vector<16x128xf32>
    %666 = arith.negf %665 : vector<16x128xf32>
    %667 = math.exp %666 : vector<16x128xf32>
    %cst_127 = arith.constant 1.000000e+00 : f32
    %668 = vector.broadcast %cst_127 : f32 to vector<16x128xf32>
    %669 = arith.addf %668, %667 : vector<16x128xf32>
    %670 = arith.divf %668, %669 : vector<16x128xf32>
    %671 = vector.extract_strided_slice %655 {offsets = [0, 256], sizes = [16, 128], strides = [1, 1]} : vector<16x512xf32> to vector<16x128xf32>
    %672 = math.tanh %671 : vector<16x128xf32>
    %673 = vector.extract_strided_slice %655 {offsets = [0, 384], sizes = [16, 128], strides = [1, 1]} : vector<16x512xf32> to vector<16x128xf32>
    %674 = arith.negf %673 : vector<16x128xf32>
    %675 = math.exp %674 : vector<16x128xf32>
    %cst_128 = arith.constant 1.000000e+00 : f32
    %676 = vector.broadcast %cst_128 : f32 to vector<16x128xf32>
    %677 = arith.addf %676, %675 : vector<16x128xf32>
    %678 = arith.divf %676, %677 : vector<16x128xf32>
    %679 = arith.mulf %670, %629 : vector<16x128xf32>
    %680 = arith.mulf %664, %672 : vector<16x128xf32>
    %681 = arith.addf %679, %680 : vector<16x128xf32>
    %682 = math.tanh %681 : vector<16x128xf32>
    %683 = arith.mulf %678, %682 : vector<16x128xf32>
    %684 = vector.extract_strided_slice %658 {offsets = [0, 0], sizes = [16, 128], strides = [1, 1]} : vector<16x512xf32> to vector<16x128xf32>
    %685 = arith.negf %684 : vector<16x128xf32>
    %686 = math.exp %685 : vector<16x128xf32>
    %cst_129 = arith.constant 1.000000e+00 : f32
    %687 = vector.broadcast %cst_129 : f32 to vector<16x128xf32>
    %688 = arith.addf %687, %686 : vector<16x128xf32>
    %689 = arith.divf %687, %688 : vector<16x128xf32>
    %690 = vector.extract_strided_slice %658 {offsets = [0, 128], sizes = [16, 128], strides = [1, 1]} : vector<16x512xf32> to vector<16x128xf32>
    %691 = arith.negf %690 : vector<16x128xf32>
    %692 = math.exp %691 : vector<16x128xf32>
    %cst_130 = arith.constant 1.000000e+00 : f32
    %693 = vector.broadcast %cst_130 : f32 to vector<16x128xf32>
    %694 = arith.addf %693, %692 : vector<16x128xf32>
    %695 = arith.divf %693, %694 : vector<16x128xf32>
    %696 = vector.extract_strided_slice %658 {offsets = [0, 256], sizes = [16, 128], strides = [1, 1]} : vector<16x512xf32> to vector<16x128xf32>
    %697 = math.tanh %696 : vector<16x128xf32>
    %698 = vector.extract_strided_slice %658 {offsets = [0, 384], sizes = [16, 128], strides = [1, 1]} : vector<16x512xf32> to vector<16x128xf32>
    %699 = arith.negf %698 : vector<16x128xf32>
    %700 = math.exp %699 : vector<16x128xf32>
    %cst_131 = arith.constant 1.000000e+00 : f32
    %701 = vector.broadcast %cst_131 : f32 to vector<16x128xf32>
    %702 = arith.addf %701, %700 : vector<16x128xf32>
    %703 = arith.divf %701, %702 : vector<16x128xf32>
    %704 = arith.mulf %695, %635 : vector<16x128xf32>
    %705 = arith.mulf %689, %697 : vector<16x128xf32>
    %706 = arith.addf %704, %705 : vector<16x128xf32>
    %707 = math.tanh %706 : vector<16x128xf32>
    %708 = arith.mulf %703, %707 : vector<16x128xf32>
    %709 = vector.broadcast %c7_i32 : i32 to vector<16x1xi32>
    %710 = arith.cmpi slt, %709, %16 : vector<16x1xi32>
    %711 = vector.broadcast %642 : i32 to vector<16x1xi32>
    %712 = arith.cmpi slt, %711, %16 : vector<16x1xi32>
    %713 = vector.shape_cast %710 : vector<16x1xi1> to vector<16x1xi1>
    %714 = vector.broadcast %713 : vector<16x1xi1> to vector<16x128xi1>
    %715 = arith.select %714, %683, %626 : vector<16x128xi1>, vector<16x128xf32>
    %716 = vector.shape_cast %710 : vector<16x1xi1> to vector<16x1xi1>
    %717 = vector.broadcast %716 : vector<16x1xi1> to vector<16x128xi1>
    %718 = arith.select %717, %681, %629 : vector<16x128xi1>, vector<16x128xf32>
    %719 = vector.shape_cast %712 : vector<16x1xi1> to vector<16x1xi1>
    %720 = vector.broadcast %719 : vector<16x1xi1> to vector<16x128xi1>
    %721 = arith.select %720, %708, %632 : vector<16x128xi1>, vector<16x128xf32>
    %722 = vector.shape_cast %712 : vector<16x1xi1> to vector<16x1xi1>
    %723 = vector.broadcast %722 : vector<16x1xi1> to vector<16x128xi1>
    %724 = arith.select %723, %706, %635 : vector<16x128xi1>, vector<16x128xf32>
    %725 = arith.maximumf %636, %715 : vector<16x128xf32>
    %cst_132 = arith.constant -1.000000e+30 : f32
    %726 = vector.shape_cast %712 : vector<16x1xi1> to vector<16x1xi1>
    %727 = vector.broadcast %726 : vector<16x1xi1> to vector<16x128xi1>
    %728 = vector.broadcast %cst_132 : f32 to vector<16x128xf32>
    %729 = arith.select %727, %721, %728 : vector<16x128xi1>, vector<16x128xf32>
    %730 = arith.maximumf %641, %729 : vector<16x128xf32>
    %c8_i32 = arith.constant 8 : i32
    %c15_i32_133 = arith.constant 15 : i32
    %731 = arith.subi %c15_i32_133, %c8_i32 : i32
    %732 = arith.index_cast %c8_i32 : i32 to index
    %c0_134 = arith.constant 0 : index
    %c0_135 = arith.constant 0 : index
    %733 = vector.load %arg7[%732, %c0_134, %c0_135] : memref<16x16x1024xbf16, #tpu.memory_space<vmem>>, vector<1x16x512xbf16>
    %734 = vector.shape_cast %733 : vector<1x16x512xbf16> to vector<16x512xbf16>
    %735 = arith.index_cast %731 : i32 to index
    %c0_136 = arith.constant 0 : index
    %c512_137 = arith.constant 512 : index
    %736 = vector.load %arg7[%735, %c0_136, %c512_137] : memref<16x16x1024xbf16, #tpu.memory_space<vmem>>, vector<1x16x512xbf16>
    %737 = vector.shape_cast %736 : vector<1x16x512xbf16> to vector<16x512xbf16>
    %738 = tpu.concatenate %715, %721 in 1 : vector<16x128xf32>, vector<16x128xf32> -> vector<16x256xf32>
    %739 = arith.truncf %738 : vector<16x256xf32> to vector<16x256xbf16>
    %c0_138 = arith.constant 0 : index
    %c0_139 = arith.constant 0 : index
    %740 = vector.load %arg4[%c0_138, %c0_139] : memref<256x1024xbf16, #tpu.memory_space<vmem>>, vector<256x1024xbf16>
    %cst_140 = arith.constant dense<0.000000e+00> : vector<16x1024xf32>
    %741 = tpu.matmul %739, %740, %cst_140 {dimension_numbers = #tpu.dot_dimension_numbers<[1], [0], [0], [1], [0, 0, 1, 1], [], []>} : vector<16x256xbf16>, vector<256x1024xbf16>, vector<16x1024xf32> -> vector<16x1024xf32>
    %742 = vector.extract_strided_slice %741 {offsets = [0, 0], sizes = [16, 512], strides = [1, 1]} : vector<16x1024xf32> to vector<16x512xf32>
    %743 = arith.extf %734 : vector<16x512xbf16> to vector<16x512xf32>
    %744 = arith.addf %743, %742 : vector<16x512xf32>
    %745 = vector.extract_strided_slice %741 {offsets = [0, 512], sizes = [16, 512], strides = [1, 1]} : vector<16x1024xf32> to vector<16x512xf32>
    %746 = arith.extf %737 : vector<16x512xbf16> to vector<16x512xf32>
    %747 = arith.addf %746, %745 : vector<16x512xf32>
    %748 = vector.extract_strided_slice %744 {offsets = [0, 0], sizes = [16, 128], strides = [1, 1]} : vector<16x512xf32> to vector<16x128xf32>
    %749 = arith.negf %748 : vector<16x128xf32>
    %750 = math.exp %749 : vector<16x128xf32>
    %cst_141 = arith.constant 1.000000e+00 : f32
    %751 = vector.broadcast %cst_141 : f32 to vector<16x128xf32>
    %752 = arith.addf %751, %750 : vector<16x128xf32>
    %753 = arith.divf %751, %752 : vector<16x128xf32>
    %754 = vector.extract_strided_slice %744 {offsets = [0, 128], sizes = [16, 128], strides = [1, 1]} : vector<16x512xf32> to vector<16x128xf32>
    %755 = arith.negf %754 : vector<16x128xf32>
    %756 = math.exp %755 : vector<16x128xf32>
    %cst_142 = arith.constant 1.000000e+00 : f32
    %757 = vector.broadcast %cst_142 : f32 to vector<16x128xf32>
    %758 = arith.addf %757, %756 : vector<16x128xf32>
    %759 = arith.divf %757, %758 : vector<16x128xf32>
    %760 = vector.extract_strided_slice %744 {offsets = [0, 256], sizes = [16, 128], strides = [1, 1]} : vector<16x512xf32> to vector<16x128xf32>
    %761 = math.tanh %760 : vector<16x128xf32>
    %762 = vector.extract_strided_slice %744 {offsets = [0, 384], sizes = [16, 128], strides = [1, 1]} : vector<16x512xf32> to vector<16x128xf32>
    %763 = arith.negf %762 : vector<16x128xf32>
    %764 = math.exp %763 : vector<16x128xf32>
    %cst_143 = arith.constant 1.000000e+00 : f32
    %765 = vector.broadcast %cst_143 : f32 to vector<16x128xf32>
    %766 = arith.addf %765, %764 : vector<16x128xf32>
    %767 = arith.divf %765, %766 : vector<16x128xf32>
    %768 = arith.mulf %759, %718 : vector<16x128xf32>
    %769 = arith.mulf %753, %761 : vector<16x128xf32>
    %770 = arith.addf %768, %769 : vector<16x128xf32>
    %771 = math.tanh %770 : vector<16x128xf32>
    %772 = arith.mulf %767, %771 : vector<16x128xf32>
    %773 = vector.extract_strided_slice %747 {offsets = [0, 0], sizes = [16, 128], strides = [1, 1]} : vector<16x512xf32> to vector<16x128xf32>
    %774 = arith.negf %773 : vector<16x128xf32>
    %775 = math.exp %774 : vector<16x128xf32>
    %cst_144 = arith.constant 1.000000e+00 : f32
    %776 = vector.broadcast %cst_144 : f32 to vector<16x128xf32>
    %777 = arith.addf %776, %775 : vector<16x128xf32>
    %778 = arith.divf %776, %777 : vector<16x128xf32>
    %779 = vector.extract_strided_slice %747 {offsets = [0, 128], sizes = [16, 128], strides = [1, 1]} : vector<16x512xf32> to vector<16x128xf32>
    %780 = arith.negf %779 : vector<16x128xf32>
    %781 = math.exp %780 : vector<16x128xf32>
    %cst_145 = arith.constant 1.000000e+00 : f32
    %782 = vector.broadcast %cst_145 : f32 to vector<16x128xf32>
    %783 = arith.addf %782, %781 : vector<16x128xf32>
    %784 = arith.divf %782, %783 : vector<16x128xf32>
    %785 = vector.extract_strided_slice %747 {offsets = [0, 256], sizes = [16, 128], strides = [1, 1]} : vector<16x512xf32> to vector<16x128xf32>
    %786 = math.tanh %785 : vector<16x128xf32>
    %787 = vector.extract_strided_slice %747 {offsets = [0, 384], sizes = [16, 128], strides = [1, 1]} : vector<16x512xf32> to vector<16x128xf32>
    %788 = arith.negf %787 : vector<16x128xf32>
    %789 = math.exp %788 : vector<16x128xf32>
    %cst_146 = arith.constant 1.000000e+00 : f32
    %790 = vector.broadcast %cst_146 : f32 to vector<16x128xf32>
    %791 = arith.addf %790, %789 : vector<16x128xf32>
    %792 = arith.divf %790, %791 : vector<16x128xf32>
    %793 = arith.mulf %784, %724 : vector<16x128xf32>
    %794 = arith.mulf %778, %786 : vector<16x128xf32>
    %795 = arith.addf %793, %794 : vector<16x128xf32>
    %796 = math.tanh %795 : vector<16x128xf32>
    %797 = arith.mulf %792, %796 : vector<16x128xf32>
    %798 = vector.broadcast %c8_i32 : i32 to vector<16x1xi32>
    %799 = arith.cmpi slt, %798, %16 : vector<16x1xi32>
    %800 = vector.broadcast %731 : i32 to vector<16x1xi32>
    %801 = arith.cmpi slt, %800, %16 : vector<16x1xi32>
    %802 = vector.shape_cast %799 : vector<16x1xi1> to vector<16x1xi1>
    %803 = vector.broadcast %802 : vector<16x1xi1> to vector<16x128xi1>
    %804 = arith.select %803, %772, %715 : vector<16x128xi1>, vector<16x128xf32>
    %805 = vector.shape_cast %799 : vector<16x1xi1> to vector<16x1xi1>
    %806 = vector.broadcast %805 : vector<16x1xi1> to vector<16x128xi1>
    %807 = arith.select %806, %770, %718 : vector<16x128xi1>, vector<16x128xf32>
    %808 = vector.shape_cast %801 : vector<16x1xi1> to vector<16x1xi1>
    %809 = vector.broadcast %808 : vector<16x1xi1> to vector<16x128xi1>
    %810 = arith.select %809, %797, %721 : vector<16x128xi1>, vector<16x128xf32>
    %811 = vector.shape_cast %801 : vector<16x1xi1> to vector<16x1xi1>
    %812 = vector.broadcast %811 : vector<16x1xi1> to vector<16x128xi1>
    %813 = arith.select %812, %795, %724 : vector<16x128xi1>, vector<16x128xf32>
    %814 = arith.maximumf %725, %804 : vector<16x128xf32>
    %cst_147 = arith.constant -1.000000e+30 : f32
    %815 = vector.shape_cast %801 : vector<16x1xi1> to vector<16x1xi1>
    %816 = vector.broadcast %815 : vector<16x1xi1> to vector<16x128xi1>
    %817 = vector.broadcast %cst_147 : f32 to vector<16x128xf32>
    %818 = arith.select %816, %810, %817 : vector<16x128xi1>, vector<16x128xf32>
    %819 = arith.maximumf %730, %818 : vector<16x128xf32>
    %c9_i32 = arith.constant 9 : i32
    %c15_i32_148 = arith.constant 15 : i32
    %820 = arith.subi %c15_i32_148, %c9_i32 : i32
    %821 = arith.index_cast %c9_i32 : i32 to index
    %c0_149 = arith.constant 0 : index
    %c0_150 = arith.constant 0 : index
    %822 = vector.load %arg7[%821, %c0_149, %c0_150] : memref<16x16x1024xbf16, #tpu.memory_space<vmem>>, vector<1x16x512xbf16>
    %823 = vector.shape_cast %822 : vector<1x16x512xbf16> to vector<16x512xbf16>
    %824 = arith.index_cast %820 : i32 to index
    %c0_151 = arith.constant 0 : index
    %c512_152 = arith.constant 512 : index
    %825 = vector.load %arg7[%824, %c0_151, %c512_152] : memref<16x16x1024xbf16, #tpu.memory_space<vmem>>, vector<1x16x512xbf16>
    %826 = vector.shape_cast %825 : vector<1x16x512xbf16> to vector<16x512xbf16>
    %827 = tpu.concatenate %804, %810 in 1 : vector<16x128xf32>, vector<16x128xf32> -> vector<16x256xf32>
    %828 = arith.truncf %827 : vector<16x256xf32> to vector<16x256xbf16>
    %c0_153 = arith.constant 0 : index
    %c0_154 = arith.constant 0 : index
    %829 = vector.load %arg4[%c0_153, %c0_154] : memref<256x1024xbf16, #tpu.memory_space<vmem>>, vector<256x1024xbf16>
    %cst_155 = arith.constant dense<0.000000e+00> : vector<16x1024xf32>
    %830 = tpu.matmul %828, %829, %cst_155 {dimension_numbers = #tpu.dot_dimension_numbers<[1], [0], [0], [1], [0, 0, 1, 1], [], []>} : vector<16x256xbf16>, vector<256x1024xbf16>, vector<16x1024xf32> -> vector<16x1024xf32>
    %831 = vector.extract_strided_slice %830 {offsets = [0, 0], sizes = [16, 512], strides = [1, 1]} : vector<16x1024xf32> to vector<16x512xf32>
    %832 = arith.extf %823 : vector<16x512xbf16> to vector<16x512xf32>
    %833 = arith.addf %832, %831 : vector<16x512xf32>
    %834 = vector.extract_strided_slice %830 {offsets = [0, 512], sizes = [16, 512], strides = [1, 1]} : vector<16x1024xf32> to vector<16x512xf32>
    %835 = arith.extf %826 : vector<16x512xbf16> to vector<16x512xf32>
    %836 = arith.addf %835, %834 : vector<16x512xf32>
    %837 = vector.extract_strided_slice %833 {offsets = [0, 0], sizes = [16, 128], strides = [1, 1]} : vector<16x512xf32> to vector<16x128xf32>
    %838 = arith.negf %837 : vector<16x128xf32>
    %839 = math.exp %838 : vector<16x128xf32>
    %cst_156 = arith.constant 1.000000e+00 : f32
    %840 = vector.broadcast %cst_156 : f32 to vector<16x128xf32>
    %841 = arith.addf %840, %839 : vector<16x128xf32>
    %842 = arith.divf %840, %841 : vector<16x128xf32>
    %843 = vector.extract_strided_slice %833 {offsets = [0, 128], sizes = [16, 128], strides = [1, 1]} : vector<16x512xf32> to vector<16x128xf32>
    %844 = arith.negf %843 : vector<16x128xf32>
    %845 = math.exp %844 : vector<16x128xf32>
    %cst_157 = arith.constant 1.000000e+00 : f32
    %846 = vector.broadcast %cst_157 : f32 to vector<16x128xf32>
    %847 = arith.addf %846, %845 : vector<16x128xf32>
    %848 = arith.divf %846, %847 : vector<16x128xf32>
    %849 = vector.extract_strided_slice %833 {offsets = [0, 256], sizes = [16, 128], strides = [1, 1]} : vector<16x512xf32> to vector<16x128xf32>
    %850 = math.tanh %849 : vector<16x128xf32>
    %851 = vector.extract_strided_slice %833 {offsets = [0, 384], sizes = [16, 128], strides = [1, 1]} : vector<16x512xf32> to vector<16x128xf32>
    %852 = arith.negf %851 : vector<16x128xf32>
    %853 = math.exp %852 : vector<16x128xf32>
    %cst_158 = arith.constant 1.000000e+00 : f32
    %854 = vector.broadcast %cst_158 : f32 to vector<16x128xf32>
    %855 = arith.addf %854, %853 : vector<16x128xf32>
    %856 = arith.divf %854, %855 : vector<16x128xf32>
    %857 = arith.mulf %848, %807 : vector<16x128xf32>
    %858 = arith.mulf %842, %850 : vector<16x128xf32>
    %859 = arith.addf %857, %858 : vector<16x128xf32>
    %860 = math.tanh %859 : vector<16x128xf32>
    %861 = arith.mulf %856, %860 : vector<16x128xf32>
    %862 = vector.extract_strided_slice %836 {offsets = [0, 0], sizes = [16, 128], strides = [1, 1]} : vector<16x512xf32> to vector<16x128xf32>
    %863 = arith.negf %862 : vector<16x128xf32>
    %864 = math.exp %863 : vector<16x128xf32>
    %cst_159 = arith.constant 1.000000e+00 : f32
    %865 = vector.broadcast %cst_159 : f32 to vector<16x128xf32>
    %866 = arith.addf %865, %864 : vector<16x128xf32>
    %867 = arith.divf %865, %866 : vector<16x128xf32>
    %868 = vector.extract_strided_slice %836 {offsets = [0, 128], sizes = [16, 128], strides = [1, 1]} : vector<16x512xf32> to vector<16x128xf32>
    %869 = arith.negf %868 : vector<16x128xf32>
    %870 = math.exp %869 : vector<16x128xf32>
    %cst_160 = arith.constant 1.000000e+00 : f32
    %871 = vector.broadcast %cst_160 : f32 to vector<16x128xf32>
    %872 = arith.addf %871, %870 : vector<16x128xf32>
    %873 = arith.divf %871, %872 : vector<16x128xf32>
    %874 = vector.extract_strided_slice %836 {offsets = [0, 256], sizes = [16, 128], strides = [1, 1]} : vector<16x512xf32> to vector<16x128xf32>
    %875 = math.tanh %874 : vector<16x128xf32>
    %876 = vector.extract_strided_slice %836 {offsets = [0, 384], sizes = [16, 128], strides = [1, 1]} : vector<16x512xf32> to vector<16x128xf32>
    %877 = arith.negf %876 : vector<16x128xf32>
    %878 = math.exp %877 : vector<16x128xf32>
    %cst_161 = arith.constant 1.000000e+00 : f32
    %879 = vector.broadcast %cst_161 : f32 to vector<16x128xf32>
    %880 = arith.addf %879, %878 : vector<16x128xf32>
    %881 = arith.divf %879, %880 : vector<16x128xf32>
    %882 = arith.mulf %873, %813 : vector<16x128xf32>
    %883 = arith.mulf %867, %875 : vector<16x128xf32>
    %884 = arith.addf %882, %883 : vector<16x128xf32>
    %885 = math.tanh %884 : vector<16x128xf32>
    %886 = arith.mulf %881, %885 : vector<16x128xf32>
    %887 = vector.broadcast %c9_i32 : i32 to vector<16x1xi32>
    %888 = arith.cmpi slt, %887, %16 : vector<16x1xi32>
    %889 = vector.broadcast %820 : i32 to vector<16x1xi32>
    %890 = arith.cmpi slt, %889, %16 : vector<16x1xi32>
    %891 = vector.shape_cast %888 : vector<16x1xi1> to vector<16x1xi1>
    %892 = vector.broadcast %891 : vector<16x1xi1> to vector<16x128xi1>
    %893 = arith.select %892, %861, %804 : vector<16x128xi1>, vector<16x128xf32>
    %894 = vector.shape_cast %888 : vector<16x1xi1> to vector<16x1xi1>
    %895 = vector.broadcast %894 : vector<16x1xi1> to vector<16x128xi1>
    %896 = arith.select %895, %859, %807 : vector<16x128xi1>, vector<16x128xf32>
    %897 = vector.shape_cast %890 : vector<16x1xi1> to vector<16x1xi1>
    %898 = vector.broadcast %897 : vector<16x1xi1> to vector<16x128xi1>
    %899 = arith.select %898, %886, %810 : vector<16x128xi1>, vector<16x128xf32>
    %900 = vector.shape_cast %890 : vector<16x1xi1> to vector<16x1xi1>
    %901 = vector.broadcast %900 : vector<16x1xi1> to vector<16x128xi1>
    %902 = arith.select %901, %884, %813 : vector<16x128xi1>, vector<16x128xf32>
    %903 = arith.maximumf %814, %893 : vector<16x128xf32>
    %cst_162 = arith.constant -1.000000e+30 : f32
    %904 = vector.shape_cast %890 : vector<16x1xi1> to vector<16x1xi1>
    %905 = vector.broadcast %904 : vector<16x1xi1> to vector<16x128xi1>
    %906 = vector.broadcast %cst_162 : f32 to vector<16x128xf32>
    %907 = arith.select %905, %899, %906 : vector<16x128xi1>, vector<16x128xf32>
    %908 = arith.maximumf %819, %907 : vector<16x128xf32>
    %c10_i32 = arith.constant 10 : i32
    %c15_i32_163 = arith.constant 15 : i32
    %909 = arith.subi %c15_i32_163, %c10_i32 : i32
    %910 = arith.index_cast %c10_i32 : i32 to index
    %c0_164 = arith.constant 0 : index
    %c0_165 = arith.constant 0 : index
    %911 = vector.load %arg7[%910, %c0_164, %c0_165] : memref<16x16x1024xbf16, #tpu.memory_space<vmem>>, vector<1x16x512xbf16>
    %912 = vector.shape_cast %911 : vector<1x16x512xbf16> to vector<16x512xbf16>
    %913 = arith.index_cast %909 : i32 to index
    %c0_166 = arith.constant 0 : index
    %c512_167 = arith.constant 512 : index
    %914 = vector.load %arg7[%913, %c0_166, %c512_167] : memref<16x16x1024xbf16, #tpu.memory_space<vmem>>, vector<1x16x512xbf16>
    %915 = vector.shape_cast %914 : vector<1x16x512xbf16> to vector<16x512xbf16>
    %916 = tpu.concatenate %893, %899 in 1 : vector<16x128xf32>, vector<16x128xf32> -> vector<16x256xf32>
    %917 = arith.truncf %916 : vector<16x256xf32> to vector<16x256xbf16>
    %c0_168 = arith.constant 0 : index
    %c0_169 = arith.constant 0 : index
    %918 = vector.load %arg4[%c0_168, %c0_169] : memref<256x1024xbf16, #tpu.memory_space<vmem>>, vector<256x1024xbf16>
    %cst_170 = arith.constant dense<0.000000e+00> : vector<16x1024xf32>
    %919 = tpu.matmul %917, %918, %cst_170 {dimension_numbers = #tpu.dot_dimension_numbers<[1], [0], [0], [1], [0, 0, 1, 1], [], []>} : vector<16x256xbf16>, vector<256x1024xbf16>, vector<16x1024xf32> -> vector<16x1024xf32>
    %920 = vector.extract_strided_slice %919 {offsets = [0, 0], sizes = [16, 512], strides = [1, 1]} : vector<16x1024xf32> to vector<16x512xf32>
    %921 = arith.extf %912 : vector<16x512xbf16> to vector<16x512xf32>
    %922 = arith.addf %921, %920 : vector<16x512xf32>
    %923 = vector.extract_strided_slice %919 {offsets = [0, 512], sizes = [16, 512], strides = [1, 1]} : vector<16x1024xf32> to vector<16x512xf32>
    %924 = arith.extf %915 : vector<16x512xbf16> to vector<16x512xf32>
    %925 = arith.addf %924, %923 : vector<16x512xf32>
    %926 = vector.extract_strided_slice %922 {offsets = [0, 0], sizes = [16, 128], strides = [1, 1]} : vector<16x512xf32> to vector<16x128xf32>
    %927 = arith.negf %926 : vector<16x128xf32>
    %928 = math.exp %927 : vector<16x128xf32>
    %cst_171 = arith.constant 1.000000e+00 : f32
    %929 = vector.broadcast %cst_171 : f32 to vector<16x128xf32>
    %930 = arith.addf %929, %928 : vector<16x128xf32>
    %931 = arith.divf %929, %930 : vector<16x128xf32>
    %932 = vector.extract_strided_slice %922 {offsets = [0, 128], sizes = [16, 128], strides = [1, 1]} : vector<16x512xf32> to vector<16x128xf32>
    %933 = arith.negf %932 : vector<16x128xf32>
    %934 = math.exp %933 : vector<16x128xf32>
    %cst_172 = arith.constant 1.000000e+00 : f32
    %935 = vector.broadcast %cst_172 : f32 to vector<16x128xf32>
    %936 = arith.addf %935, %934 : vector<16x128xf32>
    %937 = arith.divf %935, %936 : vector<16x128xf32>
    %938 = vector.extract_strided_slice %922 {offsets = [0, 256], sizes = [16, 128], strides = [1, 1]} : vector<16x512xf32> to vector<16x128xf32>
    %939 = math.tanh %938 : vector<16x128xf32>
    %940 = vector.extract_strided_slice %922 {offsets = [0, 384], sizes = [16, 128], strides = [1, 1]} : vector<16x512xf32> to vector<16x128xf32>
    %941 = arith.negf %940 : vector<16x128xf32>
    %942 = math.exp %941 : vector<16x128xf32>
    %cst_173 = arith.constant 1.000000e+00 : f32
    %943 = vector.broadcast %cst_173 : f32 to vector<16x128xf32>
    %944 = arith.addf %943, %942 : vector<16x128xf32>
    %945 = arith.divf %943, %944 : vector<16x128xf32>
    %946 = arith.mulf %937, %896 : vector<16x128xf32>
    %947 = arith.mulf %931, %939 : vector<16x128xf32>
    %948 = arith.addf %946, %947 : vector<16x128xf32>
    %949 = math.tanh %948 : vector<16x128xf32>
    %950 = arith.mulf %945, %949 : vector<16x128xf32>
    %951 = vector.extract_strided_slice %925 {offsets = [0, 0], sizes = [16, 128], strides = [1, 1]} : vector<16x512xf32> to vector<16x128xf32>
    %952 = arith.negf %951 : vector<16x128xf32>
    %953 = math.exp %952 : vector<16x128xf32>
    %cst_174 = arith.constant 1.000000e+00 : f32
    %954 = vector.broadcast %cst_174 : f32 to vector<16x128xf32>
    %955 = arith.addf %954, %953 : vector<16x128xf32>
    %956 = arith.divf %954, %955 : vector<16x128xf32>
    %957 = vector.extract_strided_slice %925 {offsets = [0, 128], sizes = [16, 128], strides = [1, 1]} : vector<16x512xf32> to vector<16x128xf32>
    %958 = arith.negf %957 : vector<16x128xf32>
    %959 = math.exp %958 : vector<16x128xf32>
    %cst_175 = arith.constant 1.000000e+00 : f32
    %960 = vector.broadcast %cst_175 : f32 to vector<16x128xf32>
    %961 = arith.addf %960, %959 : vector<16x128xf32>
    %962 = arith.divf %960, %961 : vector<16x128xf32>
    %963 = vector.extract_strided_slice %925 {offsets = [0, 256], sizes = [16, 128], strides = [1, 1]} : vector<16x512xf32> to vector<16x128xf32>
    %964 = math.tanh %963 : vector<16x128xf32>
    %965 = vector.extract_strided_slice %925 {offsets = [0, 384], sizes = [16, 128], strides = [1, 1]} : vector<16x512xf32> to vector<16x128xf32>
    %966 = arith.negf %965 : vector<16x128xf32>
    %967 = math.exp %966 : vector<16x128xf32>
    %cst_176 = arith.constant 1.000000e+00 : f32
    %968 = vector.broadcast %cst_176 : f32 to vector<16x128xf32>
    %969 = arith.addf %968, %967 : vector<16x128xf32>
    %970 = arith.divf %968, %969 : vector<16x128xf32>
    %971 = arith.mulf %962, %902 : vector<16x128xf32>
    %972 = arith.mulf %956, %964 : vector<16x128xf32>
    %973 = arith.addf %971, %972 : vector<16x128xf32>
    %974 = math.tanh %973 : vector<16x128xf32>
    %975 = arith.mulf %970, %974 : vector<16x128xf32>
    %976 = vector.broadcast %c10_i32 : i32 to vector<16x1xi32>
    %977 = arith.cmpi slt, %976, %16 : vector<16x1xi32>
    %978 = vector.broadcast %909 : i32 to vector<16x1xi32>
    %979 = arith.cmpi slt, %978, %16 : vector<16x1xi32>
    %980 = vector.shape_cast %977 : vector<16x1xi1> to vector<16x1xi1>
    %981 = vector.broadcast %980 : vector<16x1xi1> to vector<16x128xi1>
    %982 = arith.select %981, %950, %893 : vector<16x128xi1>, vector<16x128xf32>
    %983 = vector.shape_cast %977 : vector<16x1xi1> to vector<16x1xi1>
    %984 = vector.broadcast %983 : vector<16x1xi1> to vector<16x128xi1>
    %985 = arith.select %984, %948, %896 : vector<16x128xi1>, vector<16x128xf32>
    %986 = vector.shape_cast %979 : vector<16x1xi1> to vector<16x1xi1>
    %987 = vector.broadcast %986 : vector<16x1xi1> to vector<16x128xi1>
    %988 = arith.select %987, %975, %899 : vector<16x128xi1>, vector<16x128xf32>
    %989 = vector.shape_cast %979 : vector<16x1xi1> to vector<16x1xi1>
    %990 = vector.broadcast %989 : vector<16x1xi1> to vector<16x128xi1>
    %991 = arith.select %990, %973, %902 : vector<16x128xi1>, vector<16x128xf32>
    %992 = arith.maximumf %903, %982 : vector<16x128xf32>
    %cst_177 = arith.constant -1.000000e+30 : f32
    %993 = vector.shape_cast %979 : vector<16x1xi1> to vector<16x1xi1>
    %994 = vector.broadcast %993 : vector<16x1xi1> to vector<16x128xi1>
    %995 = vector.broadcast %cst_177 : f32 to vector<16x128xf32>
    %996 = arith.select %994, %988, %995 : vector<16x128xi1>, vector<16x128xf32>
    %997 = arith.maximumf %908, %996 : vector<16x128xf32>
    %c11_i32 = arith.constant 11 : i32
    %c15_i32_178 = arith.constant 15 : i32
    %998 = arith.subi %c15_i32_178, %c11_i32 : i32
    %999 = arith.index_cast %c11_i32 : i32 to index
    %c0_179 = arith.constant 0 : index
    %c0_180 = arith.constant 0 : index
    %1000 = vector.load %arg7[%999, %c0_179, %c0_180] : memref<16x16x1024xbf16, #tpu.memory_space<vmem>>, vector<1x16x512xbf16>
    %1001 = vector.shape_cast %1000 : vector<1x16x512xbf16> to vector<16x512xbf16>
    %1002 = arith.index_cast %998 : i32 to index
    %c0_181 = arith.constant 0 : index
    %c512_182 = arith.constant 512 : index
    %1003 = vector.load %arg7[%1002, %c0_181, %c512_182] : memref<16x16x1024xbf16, #tpu.memory_space<vmem>>, vector<1x16x512xbf16>
    %1004 = vector.shape_cast %1003 : vector<1x16x512xbf16> to vector<16x512xbf16>
    %1005 = tpu.concatenate %982, %988 in 1 : vector<16x128xf32>, vector<16x128xf32> -> vector<16x256xf32>
    %1006 = arith.truncf %1005 : vector<16x256xf32> to vector<16x256xbf16>
    %c0_183 = arith.constant 0 : index
    %c0_184 = arith.constant 0 : index
    %1007 = vector.load %arg4[%c0_183, %c0_184] : memref<256x1024xbf16, #tpu.memory_space<vmem>>, vector<256x1024xbf16>
    %cst_185 = arith.constant dense<0.000000e+00> : vector<16x1024xf32>
    %1008 = tpu.matmul %1006, %1007, %cst_185 {dimension_numbers = #tpu.dot_dimension_numbers<[1], [0], [0], [1], [0, 0, 1, 1], [], []>} : vector<16x256xbf16>, vector<256x1024xbf16>, vector<16x1024xf32> -> vector<16x1024xf32>
    %1009 = vector.extract_strided_slice %1008 {offsets = [0, 0], sizes = [16, 512], strides = [1, 1]} : vector<16x1024xf32> to vector<16x512xf32>
    %1010 = arith.extf %1001 : vector<16x512xbf16> to vector<16x512xf32>
    %1011 = arith.addf %1010, %1009 : vector<16x512xf32>
    %1012 = vector.extract_strided_slice %1008 {offsets = [0, 512], sizes = [16, 512], strides = [1, 1]} : vector<16x1024xf32> to vector<16x512xf32>
    %1013 = arith.extf %1004 : vector<16x512xbf16> to vector<16x512xf32>
    %1014 = arith.addf %1013, %1012 : vector<16x512xf32>
    %1015 = vector.extract_strided_slice %1011 {offsets = [0, 0], sizes = [16, 128], strides = [1, 1]} : vector<16x512xf32> to vector<16x128xf32>
    %1016 = arith.negf %1015 : vector<16x128xf32>
    %1017 = math.exp %1016 : vector<16x128xf32>
    %cst_186 = arith.constant 1.000000e+00 : f32
    %1018 = vector.broadcast %cst_186 : f32 to vector<16x128xf32>
    %1019 = arith.addf %1018, %1017 : vector<16x128xf32>
    %1020 = arith.divf %1018, %1019 : vector<16x128xf32>
    %1021 = vector.extract_strided_slice %1011 {offsets = [0, 128], sizes = [16, 128], strides = [1, 1]} : vector<16x512xf32> to vector<16x128xf32>
    %1022 = arith.negf %1021 : vector<16x128xf32>
    %1023 = math.exp %1022 : vector<16x128xf32>
    %cst_187 = arith.constant 1.000000e+00 : f32
    %1024 = vector.broadcast %cst_187 : f32 to vector<16x128xf32>
    %1025 = arith.addf %1024, %1023 : vector<16x128xf32>
    %1026 = arith.divf %1024, %1025 : vector<16x128xf32>
    %1027 = vector.extract_strided_slice %1011 {offsets = [0, 256], sizes = [16, 128], strides = [1, 1]} : vector<16x512xf32> to vector<16x128xf32>
    %1028 = math.tanh %1027 : vector<16x128xf32>
    %1029 = vector.extract_strided_slice %1011 {offsets = [0, 384], sizes = [16, 128], strides = [1, 1]} : vector<16x512xf32> to vector<16x128xf32>
    %1030 = arith.negf %1029 : vector<16x128xf32>
    %1031 = math.exp %1030 : vector<16x128xf32>
    %cst_188 = arith.constant 1.000000e+00 : f32
    %1032 = vector.broadcast %cst_188 : f32 to vector<16x128xf32>
    %1033 = arith.addf %1032, %1031 : vector<16x128xf32>
    %1034 = arith.divf %1032, %1033 : vector<16x128xf32>
    %1035 = arith.mulf %1026, %985 : vector<16x128xf32>
    %1036 = arith.mulf %1020, %1028 : vector<16x128xf32>
    %1037 = arith.addf %1035, %1036 : vector<16x128xf32>
    %1038 = math.tanh %1037 : vector<16x128xf32>
    %1039 = arith.mulf %1034, %1038 : vector<16x128xf32>
    %1040 = vector.extract_strided_slice %1014 {offsets = [0, 0], sizes = [16, 128], strides = [1, 1]} : vector<16x512xf32> to vector<16x128xf32>
    %1041 = arith.negf %1040 : vector<16x128xf32>
    %1042 = math.exp %1041 : vector<16x128xf32>
    %cst_189 = arith.constant 1.000000e+00 : f32
    %1043 = vector.broadcast %cst_189 : f32 to vector<16x128xf32>
    %1044 = arith.addf %1043, %1042 : vector<16x128xf32>
    %1045 = arith.divf %1043, %1044 : vector<16x128xf32>
    %1046 = vector.extract_strided_slice %1014 {offsets = [0, 128], sizes = [16, 128], strides = [1, 1]} : vector<16x512xf32> to vector<16x128xf32>
    %1047 = arith.negf %1046 : vector<16x128xf32>
    %1048 = math.exp %1047 : vector<16x128xf32>
    %cst_190 = arith.constant 1.000000e+00 : f32
    %1049 = vector.broadcast %cst_190 : f32 to vector<16x128xf32>
    %1050 = arith.addf %1049, %1048 : vector<16x128xf32>
    %1051 = arith.divf %1049, %1050 : vector<16x128xf32>
    %1052 = vector.extract_strided_slice %1014 {offsets = [0, 256], sizes = [16, 128], strides = [1, 1]} : vector<16x512xf32> to vector<16x128xf32>
    %1053 = math.tanh %1052 : vector<16x128xf32>
    %1054 = vector.extract_strided_slice %1014 {offsets = [0, 384], sizes = [16, 128], strides = [1, 1]} : vector<16x512xf32> to vector<16x128xf32>
    %1055 = arith.negf %1054 : vector<16x128xf32>
    %1056 = math.exp %1055 : vector<16x128xf32>
    %cst_191 = arith.constant 1.000000e+00 : f32
    %1057 = vector.broadcast %cst_191 : f32 to vector<16x128xf32>
    %1058 = arith.addf %1057, %1056 : vector<16x128xf32>
    %1059 = arith.divf %1057, %1058 : vector<16x128xf32>
    %1060 = arith.mulf %1051, %991 : vector<16x128xf32>
    %1061 = arith.mulf %1045, %1053 : vector<16x128xf32>
    %1062 = arith.addf %1060, %1061 : vector<16x128xf32>
    %1063 = math.tanh %1062 : vector<16x128xf32>
    %1064 = arith.mulf %1059, %1063 : vector<16x128xf32>
    %1065 = vector.broadcast %c11_i32 : i32 to vector<16x1xi32>
    %1066 = arith.cmpi slt, %1065, %16 : vector<16x1xi32>
    %1067 = vector.broadcast %998 : i32 to vector<16x1xi32>
    %1068 = arith.cmpi slt, %1067, %16 : vector<16x1xi32>
    %1069 = vector.shape_cast %1066 : vector<16x1xi1> to vector<16x1xi1>
    %1070 = vector.broadcast %1069 : vector<16x1xi1> to vector<16x128xi1>
    %1071 = arith.select %1070, %1039, %982 : vector<16x128xi1>, vector<16x128xf32>
    %1072 = vector.shape_cast %1066 : vector<16x1xi1> to vector<16x1xi1>
    %1073 = vector.broadcast %1072 : vector<16x1xi1> to vector<16x128xi1>
    %1074 = arith.select %1073, %1037, %985 : vector<16x128xi1>, vector<16x128xf32>
    %1075 = vector.shape_cast %1068 : vector<16x1xi1> to vector<16x1xi1>
    %1076 = vector.broadcast %1075 : vector<16x1xi1> to vector<16x128xi1>
    %1077 = arith.select %1076, %1064, %988 : vector<16x128xi1>, vector<16x128xf32>
    %1078 = vector.shape_cast %1068 : vector<16x1xi1> to vector<16x1xi1>
    %1079 = vector.broadcast %1078 : vector<16x1xi1> to vector<16x128xi1>
    %1080 = arith.select %1079, %1062, %991 : vector<16x128xi1>, vector<16x128xf32>
    %1081 = arith.maximumf %992, %1071 : vector<16x128xf32>
    %cst_192 = arith.constant -1.000000e+30 : f32
    %1082 = vector.shape_cast %1068 : vector<16x1xi1> to vector<16x1xi1>
    %1083 = vector.broadcast %1082 : vector<16x1xi1> to vector<16x128xi1>
    %1084 = vector.broadcast %cst_192 : f32 to vector<16x128xf32>
    %1085 = arith.select %1083, %1077, %1084 : vector<16x128xi1>, vector<16x128xf32>
    %1086 = arith.maximumf %997, %1085 : vector<16x128xf32>
    %c12_i32 = arith.constant 12 : i32
    %c15_i32_193 = arith.constant 15 : i32
    %1087 = arith.subi %c15_i32_193, %c12_i32 : i32
    %1088 = arith.index_cast %c12_i32 : i32 to index
    %c0_194 = arith.constant 0 : index
    %c0_195 = arith.constant 0 : index
    %1089 = vector.load %arg7[%1088, %c0_194, %c0_195] : memref<16x16x1024xbf16, #tpu.memory_space<vmem>>, vector<1x16x512xbf16>
    %1090 = vector.shape_cast %1089 : vector<1x16x512xbf16> to vector<16x512xbf16>
    %1091 = arith.index_cast %1087 : i32 to index
    %c0_196 = arith.constant 0 : index
    %c512_197 = arith.constant 512 : index
    %1092 = vector.load %arg7[%1091, %c0_196, %c512_197] : memref<16x16x1024xbf16, #tpu.memory_space<vmem>>, vector<1x16x512xbf16>
    %1093 = vector.shape_cast %1092 : vector<1x16x512xbf16> to vector<16x512xbf16>
    %1094 = tpu.concatenate %1071, %1077 in 1 : vector<16x128xf32>, vector<16x128xf32> -> vector<16x256xf32>
    %1095 = arith.truncf %1094 : vector<16x256xf32> to vector<16x256xbf16>
    %c0_198 = arith.constant 0 : index
    %c0_199 = arith.constant 0 : index
    %1096 = vector.load %arg4[%c0_198, %c0_199] : memref<256x1024xbf16, #tpu.memory_space<vmem>>, vector<256x1024xbf16>
    %cst_200 = arith.constant dense<0.000000e+00> : vector<16x1024xf32>
    %1097 = tpu.matmul %1095, %1096, %cst_200 {dimension_numbers = #tpu.dot_dimension_numbers<[1], [0], [0], [1], [0, 0, 1, 1], [], []>} : vector<16x256xbf16>, vector<256x1024xbf16>, vector<16x1024xf32> -> vector<16x1024xf32>
    %1098 = vector.extract_strided_slice %1097 {offsets = [0, 0], sizes = [16, 512], strides = [1, 1]} : vector<16x1024xf32> to vector<16x512xf32>
    %1099 = arith.extf %1090 : vector<16x512xbf16> to vector<16x512xf32>
    %1100 = arith.addf %1099, %1098 : vector<16x512xf32>
    %1101 = vector.extract_strided_slice %1097 {offsets = [0, 512], sizes = [16, 512], strides = [1, 1]} : vector<16x1024xf32> to vector<16x512xf32>
    %1102 = arith.extf %1093 : vector<16x512xbf16> to vector<16x512xf32>
    %1103 = arith.addf %1102, %1101 : vector<16x512xf32>
    %1104 = vector.extract_strided_slice %1100 {offsets = [0, 0], sizes = [16, 128], strides = [1, 1]} : vector<16x512xf32> to vector<16x128xf32>
    %1105 = arith.negf %1104 : vector<16x128xf32>
    %1106 = math.exp %1105 : vector<16x128xf32>
    %cst_201 = arith.constant 1.000000e+00 : f32
    %1107 = vector.broadcast %cst_201 : f32 to vector<16x128xf32>
    %1108 = arith.addf %1107, %1106 : vector<16x128xf32>
    %1109 = arith.divf %1107, %1108 : vector<16x128xf32>
    %1110 = vector.extract_strided_slice %1100 {offsets = [0, 128], sizes = [16, 128], strides = [1, 1]} : vector<16x512xf32> to vector<16x128xf32>
    %1111 = arith.negf %1110 : vector<16x128xf32>
    %1112 = math.exp %1111 : vector<16x128xf32>
    %cst_202 = arith.constant 1.000000e+00 : f32
    %1113 = vector.broadcast %cst_202 : f32 to vector<16x128xf32>
    %1114 = arith.addf %1113, %1112 : vector<16x128xf32>
    %1115 = arith.divf %1113, %1114 : vector<16x128xf32>
    %1116 = vector.extract_strided_slice %1100 {offsets = [0, 256], sizes = [16, 128], strides = [1, 1]} : vector<16x512xf32> to vector<16x128xf32>
    %1117 = math.tanh %1116 : vector<16x128xf32>
    %1118 = vector.extract_strided_slice %1100 {offsets = [0, 384], sizes = [16, 128], strides = [1, 1]} : vector<16x512xf32> to vector<16x128xf32>
    %1119 = arith.negf %1118 : vector<16x128xf32>
    %1120 = math.exp %1119 : vector<16x128xf32>
    %cst_203 = arith.constant 1.000000e+00 : f32
    %1121 = vector.broadcast %cst_203 : f32 to vector<16x128xf32>
    %1122 = arith.addf %1121, %1120 : vector<16x128xf32>
    %1123 = arith.divf %1121, %1122 : vector<16x128xf32>
    %1124 = arith.mulf %1115, %1074 : vector<16x128xf32>
    %1125 = arith.mulf %1109, %1117 : vector<16x128xf32>
    %1126 = arith.addf %1124, %1125 : vector<16x128xf32>
    %1127 = math.tanh %1126 : vector<16x128xf32>
    %1128 = arith.mulf %1123, %1127 : vector<16x128xf32>
    %1129 = vector.extract_strided_slice %1103 {offsets = [0, 0], sizes = [16, 128], strides = [1, 1]} : vector<16x512xf32> to vector<16x128xf32>
    %1130 = arith.negf %1129 : vector<16x128xf32>
    %1131 = math.exp %1130 : vector<16x128xf32>
    %cst_204 = arith.constant 1.000000e+00 : f32
    %1132 = vector.broadcast %cst_204 : f32 to vector<16x128xf32>
    %1133 = arith.addf %1132, %1131 : vector<16x128xf32>
    %1134 = arith.divf %1132, %1133 : vector<16x128xf32>
    %1135 = vector.extract_strided_slice %1103 {offsets = [0, 128], sizes = [16, 128], strides = [1, 1]} : vector<16x512xf32> to vector<16x128xf32>
    %1136 = arith.negf %1135 : vector<16x128xf32>
    %1137 = math.exp %1136 : vector<16x128xf32>
    %cst_205 = arith.constant 1.000000e+00 : f32
    %1138 = vector.broadcast %cst_205 : f32 to vector<16x128xf32>
    %1139 = arith.addf %1138, %1137 : vector<16x128xf32>
    %1140 = arith.divf %1138, %1139 : vector<16x128xf32>
    %1141 = vector.extract_strided_slice %1103 {offsets = [0, 256], sizes = [16, 128], strides = [1, 1]} : vector<16x512xf32> to vector<16x128xf32>
    %1142 = math.tanh %1141 : vector<16x128xf32>
    %1143 = vector.extract_strided_slice %1103 {offsets = [0, 384], sizes = [16, 128], strides = [1, 1]} : vector<16x512xf32> to vector<16x128xf32>
    %1144 = arith.negf %1143 : vector<16x128xf32>
    %1145 = math.exp %1144 : vector<16x128xf32>
    %cst_206 = arith.constant 1.000000e+00 : f32
    %1146 = vector.broadcast %cst_206 : f32 to vector<16x128xf32>
    %1147 = arith.addf %1146, %1145 : vector<16x128xf32>
    %1148 = arith.divf %1146, %1147 : vector<16x128xf32>
    %1149 = arith.mulf %1140, %1080 : vector<16x128xf32>
    %1150 = arith.mulf %1134, %1142 : vector<16x128xf32>
    %1151 = arith.addf %1149, %1150 : vector<16x128xf32>
    %1152 = math.tanh %1151 : vector<16x128xf32>
    %1153 = arith.mulf %1148, %1152 : vector<16x128xf32>
    %1154 = vector.broadcast %c12_i32 : i32 to vector<16x1xi32>
    %1155 = arith.cmpi slt, %1154, %16 : vector<16x1xi32>
    %1156 = vector.broadcast %1087 : i32 to vector<16x1xi32>
    %1157 = arith.cmpi slt, %1156, %16 : vector<16x1xi32>
    %1158 = vector.shape_cast %1155 : vector<16x1xi1> to vector<16x1xi1>
    %1159 = vector.broadcast %1158 : vector<16x1xi1> to vector<16x128xi1>
    %1160 = arith.select %1159, %1128, %1071 : vector<16x128xi1>, vector<16x128xf32>
    %1161 = vector.shape_cast %1155 : vector<16x1xi1> to vector<16x1xi1>
    %1162 = vector.broadcast %1161 : vector<16x1xi1> to vector<16x128xi1>
    %1163 = arith.select %1162, %1126, %1074 : vector<16x128xi1>, vector<16x128xf32>
    %1164 = vector.shape_cast %1157 : vector<16x1xi1> to vector<16x1xi1>
    %1165 = vector.broadcast %1164 : vector<16x1xi1> to vector<16x128xi1>
    %1166 = arith.select %1165, %1153, %1077 : vector<16x128xi1>, vector<16x128xf32>
    %1167 = vector.shape_cast %1157 : vector<16x1xi1> to vector<16x1xi1>
    %1168 = vector.broadcast %1167 : vector<16x1xi1> to vector<16x128xi1>
    %1169 = arith.select %1168, %1151, %1080 : vector<16x128xi1>, vector<16x128xf32>
    %1170 = arith.maximumf %1081, %1160 : vector<16x128xf32>
    %cst_207 = arith.constant -1.000000e+30 : f32
    %1171 = vector.shape_cast %1157 : vector<16x1xi1> to vector<16x1xi1>
    %1172 = vector.broadcast %1171 : vector<16x1xi1> to vector<16x128xi1>
    %1173 = vector.broadcast %cst_207 : f32 to vector<16x128xf32>
    %1174 = arith.select %1172, %1166, %1173 : vector<16x128xi1>, vector<16x128xf32>
    %1175 = arith.maximumf %1086, %1174 : vector<16x128xf32>
    %c13_i32 = arith.constant 13 : i32
    %c15_i32_208 = arith.constant 15 : i32
    %1176 = arith.subi %c15_i32_208, %c13_i32 : i32
    %1177 = arith.index_cast %c13_i32 : i32 to index
    %c0_209 = arith.constant 0 : index
    %c0_210 = arith.constant 0 : index
    %1178 = vector.load %arg7[%1177, %c0_209, %c0_210] : memref<16x16x1024xbf16, #tpu.memory_space<vmem>>, vector<1x16x512xbf16>
    %1179 = vector.shape_cast %1178 : vector<1x16x512xbf16> to vector<16x512xbf16>
    %1180 = arith.index_cast %1176 : i32 to index
    %c0_211 = arith.constant 0 : index
    %c512_212 = arith.constant 512 : index
    %1181 = vector.load %arg7[%1180, %c0_211, %c512_212] : memref<16x16x1024xbf16, #tpu.memory_space<vmem>>, vector<1x16x512xbf16>
    %1182 = vector.shape_cast %1181 : vector<1x16x512xbf16> to vector<16x512xbf16>
    %1183 = tpu.concatenate %1160, %1166 in 1 : vector<16x128xf32>, vector<16x128xf32> -> vector<16x256xf32>
    %1184 = arith.truncf %1183 : vector<16x256xf32> to vector<16x256xbf16>
    %c0_213 = arith.constant 0 : index
    %c0_214 = arith.constant 0 : index
    %1185 = vector.load %arg4[%c0_213, %c0_214] : memref<256x1024xbf16, #tpu.memory_space<vmem>>, vector<256x1024xbf16>
    %cst_215 = arith.constant dense<0.000000e+00> : vector<16x1024xf32>
    %1186 = tpu.matmul %1184, %1185, %cst_215 {dimension_numbers = #tpu.dot_dimension_numbers<[1], [0], [0], [1], [0, 0, 1, 1], [], []>} : vector<16x256xbf16>, vector<256x1024xbf16>, vector<16x1024xf32> -> vector<16x1024xf32>
    %1187 = vector.extract_strided_slice %1186 {offsets = [0, 0], sizes = [16, 512], strides = [1, 1]} : vector<16x1024xf32> to vector<16x512xf32>
    %1188 = arith.extf %1179 : vector<16x512xbf16> to vector<16x512xf32>
    %1189 = arith.addf %1188, %1187 : vector<16x512xf32>
    %1190 = vector.extract_strided_slice %1186 {offsets = [0, 512], sizes = [16, 512], strides = [1, 1]} : vector<16x1024xf32> to vector<16x512xf32>
    %1191 = arith.extf %1182 : vector<16x512xbf16> to vector<16x512xf32>
    %1192 = arith.addf %1191, %1190 : vector<16x512xf32>
    %1193 = vector.extract_strided_slice %1189 {offsets = [0, 0], sizes = [16, 128], strides = [1, 1]} : vector<16x512xf32> to vector<16x128xf32>
    %1194 = arith.negf %1193 : vector<16x128xf32>
    %1195 = math.exp %1194 : vector<16x128xf32>
    %cst_216 = arith.constant 1.000000e+00 : f32
    %1196 = vector.broadcast %cst_216 : f32 to vector<16x128xf32>
    %1197 = arith.addf %1196, %1195 : vector<16x128xf32>
    %1198 = arith.divf %1196, %1197 : vector<16x128xf32>
    %1199 = vector.extract_strided_slice %1189 {offsets = [0, 128], sizes = [16, 128], strides = [1, 1]} : vector<16x512xf32> to vector<16x128xf32>
    %1200 = arith.negf %1199 : vector<16x128xf32>
    %1201 = math.exp %1200 : vector<16x128xf32>
    %cst_217 = arith.constant 1.000000e+00 : f32
    %1202 = vector.broadcast %cst_217 : f32 to vector<16x128xf32>
    %1203 = arith.addf %1202, %1201 : vector<16x128xf32>
    %1204 = arith.divf %1202, %1203 : vector<16x128xf32>
    %1205 = vector.extract_strided_slice %1189 {offsets = [0, 256], sizes = [16, 128], strides = [1, 1]} : vector<16x512xf32> to vector<16x128xf32>
    %1206 = math.tanh %1205 : vector<16x128xf32>
    %1207 = vector.extract_strided_slice %1189 {offsets = [0, 384], sizes = [16, 128], strides = [1, 1]} : vector<16x512xf32> to vector<16x128xf32>
    %1208 = arith.negf %1207 : vector<16x128xf32>
    %1209 = math.exp %1208 : vector<16x128xf32>
    %cst_218 = arith.constant 1.000000e+00 : f32
    %1210 = vector.broadcast %cst_218 : f32 to vector<16x128xf32>
    %1211 = arith.addf %1210, %1209 : vector<16x128xf32>
    %1212 = arith.divf %1210, %1211 : vector<16x128xf32>
    %1213 = arith.mulf %1204, %1163 : vector<16x128xf32>
    %1214 = arith.mulf %1198, %1206 : vector<16x128xf32>
    %1215 = arith.addf %1213, %1214 : vector<16x128xf32>
    %1216 = math.tanh %1215 : vector<16x128xf32>
    %1217 = arith.mulf %1212, %1216 : vector<16x128xf32>
    %1218 = vector.extract_strided_slice %1192 {offsets = [0, 0], sizes = [16, 128], strides = [1, 1]} : vector<16x512xf32> to vector<16x128xf32>
    %1219 = arith.negf %1218 : vector<16x128xf32>
    %1220 = math.exp %1219 : vector<16x128xf32>
    %cst_219 = arith.constant 1.000000e+00 : f32
    %1221 = vector.broadcast %cst_219 : f32 to vector<16x128xf32>
    %1222 = arith.addf %1221, %1220 : vector<16x128xf32>
    %1223 = arith.divf %1221, %1222 : vector<16x128xf32>
    %1224 = vector.extract_strided_slice %1192 {offsets = [0, 128], sizes = [16, 128], strides = [1, 1]} : vector<16x512xf32> to vector<16x128xf32>
    %1225 = arith.negf %1224 : vector<16x128xf32>
    %1226 = math.exp %1225 : vector<16x128xf32>
    %cst_220 = arith.constant 1.000000e+00 : f32
    %1227 = vector.broadcast %cst_220 : f32 to vector<16x128xf32>
    %1228 = arith.addf %1227, %1226 : vector<16x128xf32>
    %1229 = arith.divf %1227, %1228 : vector<16x128xf32>
    %1230 = vector.extract_strided_slice %1192 {offsets = [0, 256], sizes = [16, 128], strides = [1, 1]} : vector<16x512xf32> to vector<16x128xf32>
    %1231 = math.tanh %1230 : vector<16x128xf32>
    %1232 = vector.extract_strided_slice %1192 {offsets = [0, 384], sizes = [16, 128], strides = [1, 1]} : vector<16x512xf32> to vector<16x128xf32>
    %1233 = arith.negf %1232 : vector<16x128xf32>
    %1234 = math.exp %1233 : vector<16x128xf32>
    %cst_221 = arith.constant 1.000000e+00 : f32
    %1235 = vector.broadcast %cst_221 : f32 to vector<16x128xf32>
    %1236 = arith.addf %1235, %1234 : vector<16x128xf32>
    %1237 = arith.divf %1235, %1236 : vector<16x128xf32>
    %1238 = arith.mulf %1229, %1169 : vector<16x128xf32>
    %1239 = arith.mulf %1223, %1231 : vector<16x128xf32>
    %1240 = arith.addf %1238, %1239 : vector<16x128xf32>
    %1241 = math.tanh %1240 : vector<16x128xf32>
    %1242 = arith.mulf %1237, %1241 : vector<16x128xf32>
    %1243 = vector.broadcast %c13_i32 : i32 to vector<16x1xi32>
    %1244 = arith.cmpi slt, %1243, %16 : vector<16x1xi32>
    %1245 = vector.broadcast %1176 : i32 to vector<16x1xi32>
    %1246 = arith.cmpi slt, %1245, %16 : vector<16x1xi32>
    %1247 = vector.shape_cast %1244 : vector<16x1xi1> to vector<16x1xi1>
    %1248 = vector.broadcast %1247 : vector<16x1xi1> to vector<16x128xi1>
    %1249 = arith.select %1248, %1217, %1160 : vector<16x128xi1>, vector<16x128xf32>
    %1250 = vector.shape_cast %1244 : vector<16x1xi1> to vector<16x1xi1>
    %1251 = vector.broadcast %1250 : vector<16x1xi1> to vector<16x128xi1>
    %1252 = arith.select %1251, %1215, %1163 : vector<16x128xi1>, vector<16x128xf32>
    %1253 = vector.shape_cast %1246 : vector<16x1xi1> to vector<16x1xi1>
    %1254 = vector.broadcast %1253 : vector<16x1xi1> to vector<16x128xi1>
    %1255 = arith.select %1254, %1242, %1166 : vector<16x128xi1>, vector<16x128xf32>
    %1256 = vector.shape_cast %1246 : vector<16x1xi1> to vector<16x1xi1>
    %1257 = vector.broadcast %1256 : vector<16x1xi1> to vector<16x128xi1>
    %1258 = arith.select %1257, %1240, %1169 : vector<16x128xi1>, vector<16x128xf32>
    %1259 = arith.maximumf %1170, %1249 : vector<16x128xf32>
    %cst_222 = arith.constant -1.000000e+30 : f32
    %1260 = vector.shape_cast %1246 : vector<16x1xi1> to vector<16x1xi1>
    %1261 = vector.broadcast %1260 : vector<16x1xi1> to vector<16x128xi1>
    %1262 = vector.broadcast %cst_222 : f32 to vector<16x128xf32>
    %1263 = arith.select %1261, %1255, %1262 : vector<16x128xi1>, vector<16x128xf32>
    %1264 = arith.maximumf %1175, %1263 : vector<16x128xf32>
    %c14_i32 = arith.constant 14 : i32
    %c15_i32_223 = arith.constant 15 : i32
    %1265 = arith.subi %c15_i32_223, %c14_i32 : i32
    %1266 = arith.index_cast %c14_i32 : i32 to index
    %c0_224 = arith.constant 0 : index
    %c0_225 = arith.constant 0 : index
    %1267 = vector.load %arg7[%1266, %c0_224, %c0_225] : memref<16x16x1024xbf16, #tpu.memory_space<vmem>>, vector<1x16x512xbf16>
    %1268 = vector.shape_cast %1267 : vector<1x16x512xbf16> to vector<16x512xbf16>
    %1269 = arith.index_cast %1265 : i32 to index
    %c0_226 = arith.constant 0 : index
    %c512_227 = arith.constant 512 : index
    %1270 = vector.load %arg7[%1269, %c0_226, %c512_227] : memref<16x16x1024xbf16, #tpu.memory_space<vmem>>, vector<1x16x512xbf16>
    %1271 = vector.shape_cast %1270 : vector<1x16x512xbf16> to vector<16x512xbf16>
    %1272 = tpu.concatenate %1249, %1255 in 1 : vector<16x128xf32>, vector<16x128xf32> -> vector<16x256xf32>
    %1273 = arith.truncf %1272 : vector<16x256xf32> to vector<16x256xbf16>
    %c0_228 = arith.constant 0 : index
    %c0_229 = arith.constant 0 : index
    %1274 = vector.load %arg4[%c0_228, %c0_229] : memref<256x1024xbf16, #tpu.memory_space<vmem>>, vector<256x1024xbf16>
    %cst_230 = arith.constant dense<0.000000e+00> : vector<16x1024xf32>
    %1275 = tpu.matmul %1273, %1274, %cst_230 {dimension_numbers = #tpu.dot_dimension_numbers<[1], [0], [0], [1], [0, 0, 1, 1], [], []>} : vector<16x256xbf16>, vector<256x1024xbf16>, vector<16x1024xf32> -> vector<16x1024xf32>
    %1276 = vector.extract_strided_slice %1275 {offsets = [0, 0], sizes = [16, 512], strides = [1, 1]} : vector<16x1024xf32> to vector<16x512xf32>
    %1277 = arith.extf %1268 : vector<16x512xbf16> to vector<16x512xf32>
    %1278 = arith.addf %1277, %1276 : vector<16x512xf32>
    %1279 = vector.extract_strided_slice %1275 {offsets = [0, 512], sizes = [16, 512], strides = [1, 1]} : vector<16x1024xf32> to vector<16x512xf32>
    %1280 = arith.extf %1271 : vector<16x512xbf16> to vector<16x512xf32>
    %1281 = arith.addf %1280, %1279 : vector<16x512xf32>
    %1282 = vector.extract_strided_slice %1278 {offsets = [0, 0], sizes = [16, 128], strides = [1, 1]} : vector<16x512xf32> to vector<16x128xf32>
    %1283 = arith.negf %1282 : vector<16x128xf32>
    %1284 = math.exp %1283 : vector<16x128xf32>
    %cst_231 = arith.constant 1.000000e+00 : f32
    %1285 = vector.broadcast %cst_231 : f32 to vector<16x128xf32>
    %1286 = arith.addf %1285, %1284 : vector<16x128xf32>
    %1287 = arith.divf %1285, %1286 : vector<16x128xf32>
    %1288 = vector.extract_strided_slice %1278 {offsets = [0, 128], sizes = [16, 128], strides = [1, 1]} : vector<16x512xf32> to vector<16x128xf32>
    %1289 = arith.negf %1288 : vector<16x128xf32>
    %1290 = math.exp %1289 : vector<16x128xf32>
    %cst_232 = arith.constant 1.000000e+00 : f32
    %1291 = vector.broadcast %cst_232 : f32 to vector<16x128xf32>
    %1292 = arith.addf %1291, %1290 : vector<16x128xf32>
    %1293 = arith.divf %1291, %1292 : vector<16x128xf32>
    %1294 = vector.extract_strided_slice %1278 {offsets = [0, 256], sizes = [16, 128], strides = [1, 1]} : vector<16x512xf32> to vector<16x128xf32>
    %1295 = math.tanh %1294 : vector<16x128xf32>
    %1296 = vector.extract_strided_slice %1278 {offsets = [0, 384], sizes = [16, 128], strides = [1, 1]} : vector<16x512xf32> to vector<16x128xf32>
    %1297 = arith.negf %1296 : vector<16x128xf32>
    %1298 = math.exp %1297 : vector<16x128xf32>
    %cst_233 = arith.constant 1.000000e+00 : f32
    %1299 = vector.broadcast %cst_233 : f32 to vector<16x128xf32>
    %1300 = arith.addf %1299, %1298 : vector<16x128xf32>
    %1301 = arith.divf %1299, %1300 : vector<16x128xf32>
    %1302 = arith.mulf %1293, %1252 : vector<16x128xf32>
    %1303 = arith.mulf %1287, %1295 : vector<16x128xf32>
    %1304 = arith.addf %1302, %1303 : vector<16x128xf32>
    %1305 = math.tanh %1304 : vector<16x128xf32>
    %1306 = arith.mulf %1301, %1305 : vector<16x128xf32>
    %1307 = vector.extract_strided_slice %1281 {offsets = [0, 0], sizes = [16, 128], strides = [1, 1]} : vector<16x512xf32> to vector<16x128xf32>
    %1308 = arith.negf %1307 : vector<16x128xf32>
    %1309 = math.exp %1308 : vector<16x128xf32>
    %cst_234 = arith.constant 1.000000e+00 : f32
    %1310 = vector.broadcast %cst_234 : f32 to vector<16x128xf32>
    %1311 = arith.addf %1310, %1309 : vector<16x128xf32>
    %1312 = arith.divf %1310, %1311 : vector<16x128xf32>
    %1313 = vector.extract_strided_slice %1281 {offsets = [0, 128], sizes = [16, 128], strides = [1, 1]} : vector<16x512xf32> to vector<16x128xf32>
    %1314 = arith.negf %1313 : vector<16x128xf32>
    %1315 = math.exp %1314 : vector<16x128xf32>
    %cst_235 = arith.constant 1.000000e+00 : f32
    %1316 = vector.broadcast %cst_235 : f32 to vector<16x128xf32>
    %1317 = arith.addf %1316, %1315 : vector<16x128xf32>
    %1318 = arith.divf %1316, %1317 : vector<16x128xf32>
    %1319 = vector.extract_strided_slice %1281 {offsets = [0, 256], sizes = [16, 128], strides = [1, 1]} : vector<16x512xf32> to vector<16x128xf32>
    %1320 = math.tanh %1319 : vector<16x128xf32>
    %1321 = vector.extract_strided_slice %1281 {offsets = [0, 384], sizes = [16, 128], strides = [1, 1]} : vector<16x512xf32> to vector<16x128xf32>
    %1322 = arith.negf %1321 : vector<16x128xf32>
    %1323 = math.exp %1322 : vector<16x128xf32>
    %cst_236 = arith.constant 1.000000e+00 : f32
    %1324 = vector.broadcast %cst_236 : f32 to vector<16x128xf32>
    %1325 = arith.addf %1324, %1323 : vector<16x128xf32>
    %1326 = arith.divf %1324, %1325 : vector<16x128xf32>
    %1327 = arith.mulf %1318, %1258 : vector<16x128xf32>
    %1328 = arith.mulf %1312, %1320 : vector<16x128xf32>
    %1329 = arith.addf %1327, %1328 : vector<16x128xf32>
    %1330 = math.tanh %1329 : vector<16x128xf32>
    %1331 = arith.mulf %1326, %1330 : vector<16x128xf32>
    %1332 = vector.broadcast %c14_i32 : i32 to vector<16x1xi32>
    %1333 = arith.cmpi slt, %1332, %16 : vector<16x1xi32>
    %1334 = vector.broadcast %1265 : i32 to vector<16x1xi32>
    %1335 = arith.cmpi slt, %1334, %16 : vector<16x1xi32>
    %1336 = vector.shape_cast %1333 : vector<16x1xi1> to vector<16x1xi1>
    %1337 = vector.broadcast %1336 : vector<16x1xi1> to vector<16x128xi1>
    %1338 = arith.select %1337, %1306, %1249 : vector<16x128xi1>, vector<16x128xf32>
    %1339 = vector.shape_cast %1333 : vector<16x1xi1> to vector<16x1xi1>
    %1340 = vector.broadcast %1339 : vector<16x1xi1> to vector<16x128xi1>
    %1341 = arith.select %1340, %1304, %1252 : vector<16x128xi1>, vector<16x128xf32>
    %1342 = vector.shape_cast %1335 : vector<16x1xi1> to vector<16x1xi1>
    %1343 = vector.broadcast %1342 : vector<16x1xi1> to vector<16x128xi1>
    %1344 = arith.select %1343, %1331, %1255 : vector<16x128xi1>, vector<16x128xf32>
    %1345 = vector.shape_cast %1335 : vector<16x1xi1> to vector<16x1xi1>
    %1346 = vector.broadcast %1345 : vector<16x1xi1> to vector<16x128xi1>
    %1347 = arith.select %1346, %1329, %1258 : vector<16x128xi1>, vector<16x128xf32>
    %1348 = arith.maximumf %1259, %1338 : vector<16x128xf32>
    %cst_237 = arith.constant -1.000000e+30 : f32
    %1349 = vector.shape_cast %1335 : vector<16x1xi1> to vector<16x1xi1>
    %1350 = vector.broadcast %1349 : vector<16x1xi1> to vector<16x128xi1>
    %1351 = vector.broadcast %cst_237 : f32 to vector<16x128xf32>
    %1352 = arith.select %1350, %1344, %1351 : vector<16x128xi1>, vector<16x128xf32>
    %1353 = arith.maximumf %1264, %1352 : vector<16x128xf32>
    %c15_i32_238 = arith.constant 15 : i32
    %c15_i32_239 = arith.constant 15 : i32
    %1354 = arith.subi %c15_i32_239, %c15_i32_238 : i32
    %1355 = arith.index_cast %c15_i32_238 : i32 to index
    %c0_240 = arith.constant 0 : index
    %c0_241 = arith.constant 0 : index
    %1356 = vector.load %arg7[%1355, %c0_240, %c0_241] : memref<16x16x1024xbf16, #tpu.memory_space<vmem>>, vector<1x16x512xbf16>
    %1357 = vector.shape_cast %1356 : vector<1x16x512xbf16> to vector<16x512xbf16>
    %1358 = arith.index_cast %1354 : i32 to index
    %c0_242 = arith.constant 0 : index
    %c512_243 = arith.constant 512 : index
    %1359 = vector.load %arg7[%1358, %c0_242, %c512_243] : memref<16x16x1024xbf16, #tpu.memory_space<vmem>>, vector<1x16x512xbf16>
    %1360 = vector.shape_cast %1359 : vector<1x16x512xbf16> to vector<16x512xbf16>
    %1361 = tpu.concatenate %1338, %1344 in 1 : vector<16x128xf32>, vector<16x128xf32> -> vector<16x256xf32>
    %1362 = arith.truncf %1361 : vector<16x256xf32> to vector<16x256xbf16>
    %c0_244 = arith.constant 0 : index
    %c0_245 = arith.constant 0 : index
    %1363 = vector.load %arg4[%c0_244, %c0_245] : memref<256x1024xbf16, #tpu.memory_space<vmem>>, vector<256x1024xbf16>
    %cst_246 = arith.constant dense<0.000000e+00> : vector<16x1024xf32>
    %1364 = tpu.matmul %1362, %1363, %cst_246 {dimension_numbers = #tpu.dot_dimension_numbers<[1], [0], [0], [1], [0, 0, 1, 1], [], []>} : vector<16x256xbf16>, vector<256x1024xbf16>, vector<16x1024xf32> -> vector<16x1024xf32>
    %1365 = vector.extract_strided_slice %1364 {offsets = [0, 0], sizes = [16, 512], strides = [1, 1]} : vector<16x1024xf32> to vector<16x512xf32>
    %1366 = arith.extf %1357 : vector<16x512xbf16> to vector<16x512xf32>
    %1367 = arith.addf %1366, %1365 : vector<16x512xf32>
    %1368 = vector.extract_strided_slice %1364 {offsets = [0, 512], sizes = [16, 512], strides = [1, 1]} : vector<16x1024xf32> to vector<16x512xf32>
    %1369 = arith.extf %1360 : vector<16x512xbf16> to vector<16x512xf32>
    %1370 = arith.addf %1369, %1368 : vector<16x512xf32>
    %1371 = vector.extract_strided_slice %1367 {offsets = [0, 0], sizes = [16, 128], strides = [1, 1]} : vector<16x512xf32> to vector<16x128xf32>
    %1372 = arith.negf %1371 : vector<16x128xf32>
    %1373 = math.exp %1372 : vector<16x128xf32>
    %cst_247 = arith.constant 1.000000e+00 : f32
    %1374 = vector.broadcast %cst_247 : f32 to vector<16x128xf32>
    %1375 = arith.addf %1374, %1373 : vector<16x128xf32>
    %1376 = arith.divf %1374, %1375 : vector<16x128xf32>
    %1377 = vector.extract_strided_slice %1367 {offsets = [0, 128], sizes = [16, 128], strides = [1, 1]} : vector<16x512xf32> to vector<16x128xf32>
    %1378 = arith.negf %1377 : vector<16x128xf32>
    %1379 = math.exp %1378 : vector<16x128xf32>
    %cst_248 = arith.constant 1.000000e+00 : f32
    %1380 = vector.broadcast %cst_248 : f32 to vector<16x128xf32>
    %1381 = arith.addf %1380, %1379 : vector<16x128xf32>
    %1382 = arith.divf %1380, %1381 : vector<16x128xf32>
    %1383 = vector.extract_strided_slice %1367 {offsets = [0, 256], sizes = [16, 128], strides = [1, 1]} : vector<16x512xf32> to vector<16x128xf32>
    %1384 = math.tanh %1383 : vector<16x128xf32>
    %1385 = vector.extract_strided_slice %1367 {offsets = [0, 384], sizes = [16, 128], strides = [1, 1]} : vector<16x512xf32> to vector<16x128xf32>
    %1386 = arith.negf %1385 : vector<16x128xf32>
    %1387 = math.exp %1386 : vector<16x128xf32>
    %cst_249 = arith.constant 1.000000e+00 : f32
    %1388 = vector.broadcast %cst_249 : f32 to vector<16x128xf32>
    %1389 = arith.addf %1388, %1387 : vector<16x128xf32>
    %1390 = arith.divf %1388, %1389 : vector<16x128xf32>
    %1391 = arith.mulf %1382, %1341 : vector<16x128xf32>
    %1392 = arith.mulf %1376, %1384 : vector<16x128xf32>
    %1393 = arith.addf %1391, %1392 : vector<16x128xf32>
    %1394 = math.tanh %1393 : vector<16x128xf32>
    %1395 = arith.mulf %1390, %1394 : vector<16x128xf32>
    %1396 = vector.extract_strided_slice %1370 {offsets = [0, 0], sizes = [16, 128], strides = [1, 1]} : vector<16x512xf32> to vector<16x128xf32>
    %1397 = arith.negf %1396 : vector<16x128xf32>
    %1398 = math.exp %1397 : vector<16x128xf32>
    %cst_250 = arith.constant 1.000000e+00 : f32
    %1399 = vector.broadcast %cst_250 : f32 to vector<16x128xf32>
    %1400 = arith.addf %1399, %1398 : vector<16x128xf32>
    %1401 = arith.divf %1399, %1400 : vector<16x128xf32>
    %1402 = vector.extract_strided_slice %1370 {offsets = [0, 128], sizes = [16, 128], strides = [1, 1]} : vector<16x512xf32> to vector<16x128xf32>
    %1403 = arith.negf %1402 : vector<16x128xf32>
    %1404 = math.exp %1403 : vector<16x128xf32>
    %cst_251 = arith.constant 1.000000e+00 : f32
    %1405 = vector.broadcast %cst_251 : f32 to vector<16x128xf32>
    %1406 = arith.addf %1405, %1404 : vector<16x128xf32>
    %1407 = arith.divf %1405, %1406 : vector<16x128xf32>
    %1408 = vector.extract_strided_slice %1370 {offsets = [0, 256], sizes = [16, 128], strides = [1, 1]} : vector<16x512xf32> to vector<16x128xf32>
    %1409 = math.tanh %1408 : vector<16x128xf32>
    %1410 = vector.extract_strided_slice %1370 {offsets = [0, 384], sizes = [16, 128], strides = [1, 1]} : vector<16x512xf32> to vector<16x128xf32>
    %1411 = arith.negf %1410 : vector<16x128xf32>
    %1412 = math.exp %1411 : vector<16x128xf32>
    %cst_252 = arith.constant 1.000000e+00 : f32
    %1413 = vector.broadcast %cst_252 : f32 to vector<16x128xf32>
    %1414 = arith.addf %1413, %1412 : vector<16x128xf32>
    %1415 = arith.divf %1413, %1414 : vector<16x128xf32>
    %1416 = arith.mulf %1407, %1347 : vector<16x128xf32>
    %1417 = arith.mulf %1401, %1409 : vector<16x128xf32>
    %1418 = arith.addf %1416, %1417 : vector<16x128xf32>
    %1419 = math.tanh %1418 : vector<16x128xf32>
    %1420 = arith.mulf %1415, %1419 : vector<16x128xf32>
    %1421 = vector.broadcast %c15_i32_238 : i32 to vector<16x1xi32>
    %1422 = arith.cmpi slt, %1421, %16 : vector<16x1xi32>
    %1423 = vector.broadcast %1354 : i32 to vector<16x1xi32>
    %1424 = arith.cmpi slt, %1423, %16 : vector<16x1xi32>
    %1425 = vector.shape_cast %1422 : vector<16x1xi1> to vector<16x1xi1>
    %1426 = vector.broadcast %1425 : vector<16x1xi1> to vector<16x128xi1>
    %1427 = arith.select %1426, %1395, %1338 : vector<16x128xi1>, vector<16x128xf32>
    %1428 = vector.shape_cast %1422 : vector<16x1xi1> to vector<16x1xi1>
    %1429 = vector.broadcast %1428 : vector<16x1xi1> to vector<16x128xi1>
    %1430 = arith.select %1429, %1393, %1341 : vector<16x128xi1>, vector<16x128xf32>
    %1431 = vector.shape_cast %1424 : vector<16x1xi1> to vector<16x1xi1>
    %1432 = vector.broadcast %1431 : vector<16x1xi1> to vector<16x128xi1>
    %1433 = arith.select %1432, %1420, %1344 : vector<16x128xi1>, vector<16x128xf32>
    %1434 = vector.shape_cast %1424 : vector<16x1xi1> to vector<16x1xi1>
    %1435 = vector.broadcast %1434 : vector<16x1xi1> to vector<16x128xi1>
    %1436 = arith.select %1435, %1418, %1347 : vector<16x128xi1>, vector<16x128xf32>
    %1437 = arith.maximumf %1348, %1427 : vector<16x128xf32>
    %cst_253 = arith.constant -1.000000e+30 : f32
    %1438 = vector.shape_cast %1424 : vector<16x1xi1> to vector<16x1xi1>
    %1439 = vector.broadcast %1438 : vector<16x1xi1> to vector<16x128xi1>
    %1440 = vector.broadcast %cst_253 : f32 to vector<16x128xf32>
    %1441 = arith.select %1439, %1433, %1440 : vector<16x128xi1>, vector<16x128xf32>
    %1442 = arith.maximumf %1353, %1441 : vector<16x128xf32>
    %c16_i32_254 = arith.constant 16 : i32
    %c0_255 = arith.constant 0 : index
    %c0_256 = arith.constant 0 : index
    %1443 = vector.load %arg6[%c0_255, %c0_256] : memref<16x256xf32, #tpu.memory_space<vmem>>, vector<16x128xf32>
    tpu.vector_store %arg6[%c0_255, %c0_256], %1437 {strides = array<i32>} : memref<16x256xf32, #tpu.memory_space<vmem>>, vector<16x128xf32>,
    %c0_257 = arith.constant 0 : index
    %c128 = arith.constant 128 : index
    %1444 = vector.load %arg6[%c0_257, %c128] : memref<16x256xf32, #tpu.memory_space<vmem>>, vector<16x128xf32>
    tpu.vector_store %arg6[%c0_257, %c128], %1442 {strides = array<i32>} : memref<16x256xf32, #tpu.memory_space<vmem>>, vector<16x128xf32>,
    return
  }
  func.func @transform_0(%arg0: i32) -> (i32, i32) {
    %c0_i32 = arith.constant 0 : i32
    %c0_i32_0 = arith.constant 0 : i32
    return %arg0, %c0_i32 : i32, i32
  }
  func.func @transform_1(%arg0: i32) -> (i32, i32, i32) {
    %c0_i32 = arith.constant 0 : i32
    %c0_i32_0 = arith.constant 0 : i32
    %c0_i32_1 = arith.constant 0 : i32
    return %c0_i32, %arg0, %c0_i32_0 : i32, i32, i32
  }
  func.func @transform_2(%arg0: i32) -> (i32, i32) {
    %c0_i32 = arith.constant 0 : i32
    %c0_i32_0 = arith.constant 0 : i32
    %c0_i32_1 = arith.constant 0 : i32
    return %c0_i32, %c0_i32_0 : i32, i32
  }
  func.func @transform_3(%arg0: i32) -> (i32, i32) {
    %c0_i32 = arith.constant 0 : i32
    %c0_i32_0 = arith.constant 0 : i32
    %c0_i32_1 = arith.constant 0 : i32
    return %c0_i32, %c0_i32_0 : i32, i32
  }
  func.func @transform_4(%arg0: i32) -> (i32, i32) {
    %c0_i32 = arith.constant 0 : i32
    %c0_i32_0 = arith.constant 0 : i32
    %c0_i32_1 = arith.constant 0 : i32
    return %c0_i32, %c0_i32_0 : i32, i32
  }
  func.func @transform_5(%arg0: i32) -> (i32, i32) {
    %c0_i32 = arith.constant 0 : i32
    %c0_i32_0 = arith.constant 0 : i32
    return %arg0, %c0_i32 : i32, i32
  }
}

</mosaic_0001>

<llo_original>
// kernel: tpu_custom_call.1
$region0: #{tpu_custom_call.1}
  #allocation0 [shape = 'u32[]', space=smem, size = 0x4, offset = 0x4, fixed_abs, tag = 'smem constant byte address 0x4 - core index']
  #allocation1 [shape = 'u32[144,128]{1,0:T(1,128)}', space=vmem, size = 0x12000, scoped, tag = 'internal scratch']
  #allocation2 [shape = 'bf16[16,16,1024]{2,1,0:T(16,128)(2,1)}', space=vmem, size = 0x80000, scoped, tag = 'scratch operand']
  #allocation10 [shape = 's32[]', space=sflag, size = 0x4, offset = 0, fixed_abs, tag = 'sflag constant byte address 0x0 - dummy sync flag']
  %s0 = inlined_call_operand.vmem [shape: s32[32,1], index: 0, kind: input, shape index: {}]
  %s1 = inlined_call_operand.hbm [shape: bf16[16,32,128], index: 1, kind: input, shape index: {}]
  %s2 = inlined_call_operand.hbm [shape: bf16[128,1024], index: 2, kind: input, shape index: {}]
  %s3 = inlined_call_operand.hbm [shape: bf16[256,1024], index: 3, kind: input, shape index: {}]
  %s4 = inlined_call_operand.vmem [shape: f32[1,1024], index: 4, kind: input, shape index: {}]
  %s5 = inlined_call_operand.hbm [shape: f32[32,256], index: 5, kind: output, shape index: {}]
  %s6 = sld [smem:[#allocation0]]
  $region65: #{tpu_custom_call.1} parent=0
    _
  %s8 = ssub.s32 1, %s6
  %s9 = scalar_select 0, %s8, %s6
  $region1: #{tpu_custom_call.1} parent=0
    #allocation3 [shape = 'u8[131072]{0}', space=vmem, size = 0x20000, scoped, tag = 'input window, operand 1']
    #allocation4 [shape = 's32[2]{0}', space=sflag, size = 0x8, scoped, tag = 'scoped memory for tpu_custom_call.1']
    #allocation5 [shape = 's32[2]{0}', space=sflag, size = 0x8, scoped, tag = 'scoped memory for tpu_custom_call.1']
    #allocation6 [shape = 'u8[262144]{0}', space=vmem, size = 0x40000, scoped, tag = 'input window, operand 2, single buffered']
    #allocation7 [shape = 's32[1]{0}', space=sflag, size = 0x4, scoped, tag = 'scoped memory for tpu_custom_call.1']
    #allocation8 [shape = 'u8[524288]{0}', space=vmem, size = 0x80000, scoped, tag = 'input window, operand 3, single buffered']
    #allocation9 [shape = 'u8[32768]{0}', space=vmem, size = 0x8000, scoped, tag = 'output window, operand 0']
    %10 = vsyncpa [#allocation4], 0
    %s11 = scalar_lea.sflag [#allocation4], 1
    %12 = vsyncpa %s11, 0
    %13 = vsyncpa [#allocation7], 0
    %14 = vsyncpa [#allocation5], 0
    %s15 = scalar_lea.sflag [#allocation5], 1
    %16 = vsyncpa %s15, 0
    loop: start=0, step=1, limit=4
    $region2: #{tpu_custom_call.1} parent=1 // loop_pre_header
      _
    $region3: #{tpu_custom_call.1} parent=1 // loop_header
      %s18 = sphi 0, %s22
      %p19 = scmp.ge.s32.totalorder %s18, 4
      %s28 = sphi 0, %s30
      %s31 = sphi 0, %s28
      %s32 = sphi 0, %s31
      %s48 = sphi 0, %s32
      %s54 = sphi 0, %s56
      %s57 = sphi 0, %s54
      %s58 = sphi 0, %s57
      %s74 = sphi 0, %s58
      %s78 = sphi 0, %s78
      %s80 = sphi 0, %s78
      %s81 = sphi 0, %s80
      %s95 = sphi 0, %s81
      %s99 = sphi 0, %s99
      %s101 = sphi 0, %s99
      %s102 = sphi 0, %s101
      %s116 = sphi 0, %s102
      %s120 = sphi 0, %s120
      %s122 = sphi 0, %s120
      %s123 = sphi 0, %s122
      %s137 = sphi 0, %s123
      %s143 = sphi 0, %s145
      %s146 = sphi 0, %s143
      %s147 = sphi 0, %s146
      %s163 = sphi 0, %s147
    $region4: #{tpu_custom_call.1} parent=1 // loop_header_branch
      %21 = sbr.rel (%p19) target = $region8
    $region5: #{tpu_custom_call.1} parent=1 // loop_body
      %s23 = ssub.s32 %s18, 1
      %s24 = ssub.s32 %s18, 2
      %s25 = sadd.s32 %s18, 1
      %s26 = ssub.s32 %s18, %s25
      %p27 = scmp.eq.s32.totalorder %s26, 0
      %s29 = sadd.s32 %s28, 1
      %s30 = scalar_select %p27, %s28, %s29
      %p33 = pneg %p27
      %p34 = scmp.eq.s32.totalorder %s18, 1
      %p35 = por %p33, %p34
      %p36 = scmp.ne.s32.totalorder %s28, %s31
      %p37 = scmp.eq.s32.totalorder %s18, 0
      %p38 = por %p36, %p37
      %p39 = scmp.ne.s32.totalorder %s28, %s31
      %p40 = scmp.eq.s32.totalorder %s23, 1
      %p41 = por %p39, %p40
      %p42 = scmp.ne.s32.totalorder %s31, %s32
      %p43 = scmp.eq.s32.totalorder %s23, 0
      %p44 = por %p42, %p43
      %p45 = scmp.ne.s32.totalorder %s31, %s32
      %p46 = scmp.eq.s32.totalorder %s24, 1
      %p47 = por %p45, %p46
      %p49 = scmp.ne.s32.totalorder %s32, %s48
      %p50 = scmp.eq.s32.totalorder %s24, 0
      %p51 = por %p49, %p50
      %s52 = ssub.s32 %s18, %s25
      %p53 = scmp.eq.s32.totalorder %s52, 0
      %s55 = sadd.s32 %s54, 1
      %s56 = scalar_select %p53, %s54, %s55
      %p59 = pneg %p53
      %p60 = scmp.eq.s32.totalorder %s18, 1
      %p61 = por %p59, %p60
      %p62 = scmp.ne.s32.totalorder %s54, %s57
      %p63 = scmp.eq.s32.totalorder %s18, 0
      %p64 = por %p62, %p63
      %p65 = scmp.ne.s32.totalorder %s54, %s57
      %p66 = scmp.eq.s32.totalorder %s23, 1
      %p67 = por %p65, %p66
      %p68 = scmp.ne.s32.totalorder %s57, %s58
      %p69 = scmp.eq.s32.totalorder %s23, 0
      %p70 = por %p68, %p69
      %p71 = scmp.ne.s32.totalorder %s57, %s58
      %p72 = scmp.eq.s32.totalorder %s24, 1
      %p73 = por %p71, %p72
      %p75 = scmp.ne.s32.totalorder %s58, %s74
      %p76 = scmp.eq.s32.totalorder %s24, 0
      %p77 = por %p75, %p76
      %s79 = sadd.s32 %s78, 1
      %p82 = scmp.eq.s32.totalorder %s18, 1
      %p83 = scmp.ne.s32.totalorder %s78, %s80
      %p84 = scmp.eq.s32.totalorder %s18, 0
      %p85 = por %p83, %p84
      %p86 = scmp.ne.s32.totalorder %s78, %s80
      %p87 = scmp.eq.s32.totalorder %s23, 1
      %p88 = por %p86, %p87
      %p89 = scmp.ne.s32.totalorder %s80, %s81
      %p90 = scmp.eq.s32.totalorder %s23, 0
      %p91 = por %p89, %p90
      %p92 = scmp.ne.s32.totalorder %s80, %s81
      %p93 = scmp.eq.s32.totalorder %s24, 1
      %p94 = por %p92, %p93
      %p96 = scmp.ne.s32.totalorder %s81, %s95
      %p97 = scmp.eq.s32.totalorder %s24, 0
      %p98 = por %p96, %p97
      %s100 = sadd.s32 %s99, 1
      %p103 = scmp.eq.s32.totalorder %s18, 1
      %p104 = scmp.ne.s32.totalorder %s99, %s101
      %p105 = scmp.eq.s32.totalorder %s18, 0
      %p106 = por %p104, %p105
      %p107 = scmp.ne.s32.totalorder %s99, %s101
      %p108 = scmp.eq.s32.totalorder %s23, 1
      %p109 = por %p107, %p108
      %p110 = scmp.ne.s32.totalorder %s101, %s102
      %p111 = scmp.eq.s32.totalorder %s23, 0
      %p112 = por %p110, %p111
      %p113 = scmp.ne.s32.totalorder %s101, %s102
      %p114 = scmp.eq.s32.totalorder %s24, 1
      %p115 = por %p113, %p114
      %p117 = scmp.ne.s32.totalorder %s102, %s116
      %p118 = scmp.eq.s32.totalorder %s24, 0
      %p119 = por %p117, %p118
      %s121 = sadd.s32 %s120, 1
      %p124 = scmp.eq.s32.totalorder %s18, 1
      %p125 = scmp.ne.s32.totalorder %s120, %s122
      %p126 = scmp.eq.s32.totalorder %s18, 0
      %p127 = por %p125, %p126
      %p128 = scmp.ne.s32.totalorder %s120, %s122
      %p129 = scmp.eq.s32.totalorder %s23, 1
      %p130 = por %p128, %p129
      %p131 = scmp.ne.s32.totalorder %s122, %s123
      %p132 = scmp.eq.s32.totalorder %s23, 0
      %p133 = por %p131, %p132
      %p134 = scmp.ne.s32.totalorder %s122, %s123
      %p135 = scmp.eq.s32.totalorder %s24, 1
      %p136 = por %p134, %p135
      %p138 = scmp.ne.s32.totalorder %s123, %s137
      %p139 = scmp.eq.s32.totalorder %s24, 0
      %p140 = por %p138, %p139
      %s141 = ssub.s32 %s18, %s25
      %p142 = scmp.eq.s32.totalorder %s141, 0
      %s144 = sadd.s32 %s143, 1
      %s145 = scalar_select %p142, %s143, %s144
      %p148 = pneg %p142
      %p149 = scmp.eq.s32.totalorder %s18, 1
      %p150 = por %p148, %p149
      %p151 = scmp.ne.s32.totalorder %s143, %s146
      %p152 = scmp.eq.s32.totalorder %s18, 0
      %p153 = por %p151, %p152
      %p154 = scmp.ne.s32.totalorder %s143, %s146
      %p155 = scmp.eq.s32.totalorder %s23, 1
      %p156 = por %p154, %p155
      %p157 = scmp.ne.s32.totalorder %s146, %s147
      %p158 = scmp.eq.s32.totalorder %s23, 0
      %p159 = por %p157, %p158
      %p160 = scmp.ne.s32.totalorder %s146, %s147
      %p161 = scmp.eq.s32.totalorder %s24, 1
      %p162 = por %p160, %p161
      %p164 = scmp.ne.s32.totalorder %s147, %s163
      %p165 = scmp.eq.s32.totalorder %s24, 0
      %p166 = por %p164, %p165
      %p167 = scmp.le.s32.totalorder 1, %s18
      %p168 = scmp.lt.s32.totalorder %s18, 3
      %p169 = pnand %p167, %p168
      %p170 = pneg %p169
      // Predicated region
      $region9: #{tpu_custom_call.1} parent=5 // pred_check
        _
      $region10: #{tpu_custom_call.1} parent=5 // pred_check_branch
        %172 = sbr.rel (%p169) target = $region12
      $region11: #{tpu_custom_call.1} parent=5 // pred_region
        %s173 = ssub.s32 %s18, 1
        // Predicated region
        $region13: #{tpu_custom_call.1} parent=11 // pred_check
          %p174 = pneg %p91
        $region14: #{tpu_custom_call.1} parent=11 // pred_check_branch
          %176 = sbr.rel (%p174) target = $region16
        $region15: #{tpu_custom_call.1} parent=11 // pred_region
          %s178 = ssub.s32 8192, 8192
          %179 = vsyncadd [#allocation7], %s178
          %s180 = sshll.u32 [#allocation6], 4
          %s181 = int_to_ptr.vmem [resolvable:$true] %s180
          %186 = dma.hbm_to_vmem [thread:$0]  %s2, 8192, %s181, [#allocation7], 512, 512, 32
        $region16: #{tpu_custom_call.1} parent=11 // pred_fallthru
          _
        // Predicated region
        $region17: #{tpu_custom_call.1} parent=11 // pred_check
          %p187 = pneg %p112
        $region18: #{tpu_custom_call.1} parent=11 // pred_check_branch
          %189 = sbr.rel (%p187) target = $region20
        $region19: #{tpu_custom_call.1} parent=11 // pred_region
          %s191 = ssub.s32 16384, 16384
          %192 = vsyncadd [#allocation7], %s191
          %s193 = sshll.u32 [#allocation8], 4
          %s194 = int_to_ptr.vmem [resolvable:$true] %s193
          %199 = dma.hbm_to_vmem [thread:$0]  %s3, 16384, %s194, [#allocation7], 512, 512, 32
        $region20: #{tpu_custom_call.1} parent=11 // pred_fallthru
          _
        // Predicated region
        $region21: #{tpu_custom_call.1} parent=11 // pred_check
          %p200 = pneg %p133
        $region22: #{tpu_custom_call.1} parent=11 // pred_check_branch
          %202 = sbr.rel (%p200) target = $region24
        $region23: #{tpu_custom_call.1} parent=11 // pred_region
          _
        $region24: #{tpu_custom_call.1} parent=11 // pred_fallthru
          _
      $region12: #{tpu_custom_call.1} parent=5 // pred_fallthru
        _
      %p203 = scmp.lt.s32.totalorder %s18, 2
      // Predicated region
      $region25: #{tpu_custom_call.1} parent=5 // pred_check
        %p204 = pneg %p203
      $region26: #{tpu_custom_call.1} parent=5 // pred_check_branch
        %206 = sbr.rel (%p204) target = $region28
      $region27: #{tpu_custom_call.1} parent=5 // pred_region
        // Predicated region
        $region29: #{tpu_custom_call.1} parent=27 // pred_check
          %p207 = pneg %p38
        $region30: #{tpu_custom_call.1} parent=27 // pred_check_branch
          %209 = sbr.rel (%p207) target = $region32
        $region31: #{tpu_custom_call.1} parent=27 // pred_region
          %s210 = smul.u32 2, %s18
          %p211 = scmp.lt.s32.totalorder %s210, 3
          %s212 = scalar_select %p211, %s210, 3
          %s213 = smul.addr %s212, 8
          %s214 = scalar_lea.vmem %s0, %s213
          %s215 = smul.u32 2, %s18
        $region32: #{tpu_custom_call.1} parent=27 // pred_fallthru
          _
        // Predicated region
        $region33: #{tpu_custom_call.1} parent=27 // pred_check
          %p216 = pneg %p64
        $region34: #{tpu_custom_call.1} parent=27 // pred_check_branch
          %218 = sbr.rel (%p216) target = $region36
        $region35: #{tpu_custom_call.1} parent=27 // pred_region
          #allocation11 [shape = 'u32[6]{0}', space=smem, size = 0x18, scoped, tag = 'DMA stride descriptor']
          %s219 = sand.u32 %s54, 1
          %s220 = scalar_lea.sflag [#allocation4], %s219
          %s221 = sand.u32 %s54, 1
          %s222 = smul.addr %s221, 128
          %s223 = scalar_lea.vmem [#allocation3], %s222
          %s224 = smul.u32 2, %s18
          %s226 = ssub.s32 2048, 2048
          %227 = vsyncadd %s220, %s226
          %s228 = smul.addr %s224, 64
          %s229 = scalar_lea.hbm %s1, %s228
          %s231 = sshll.u32 1, 14
          %s232 = sxor.u32 4294967295, %s231
          %s234 = sld [smem:[#allocation0]]
          %s235 = sadd.s32 2, %s234
          %s237 = sshll.u32 7, 26
          %s238 = sxor.u32 4294967295, %s237
          %s239 = sand.u32 0, %s238
          %s240 = sshll.u32 %s235, 26
          %s241 = sor.u32 %s239, %s240
          %s242 = sshll.u32 %s223, 4
          %s243 = int_to_ptr.vmem [resolvable:$true] %s242
          %249 = sst [smem:[#allocation11]] 256
          %s250 = scalar_lea.smem [#allocation11], 1
          %251 = sst [smem:[%s250]] 128
          %s252 = scalar_lea.smem [#allocation11], 2
          %253 = sst [smem:[%s252]] 2
          %s254 = scalar_lea.smem [#allocation11], 3
          %255 = sst [smem:[%s254]] 64
          %s256 = scalar_lea.smem [#allocation11], 4
          %257 = sst [smem:[%s256]] 64
          %s258 = scalar_lea.smem [#allocation11], 5
          %259 = sst [smem:[%s258]] 4
          %261 = dma.general %s229, 2048, %s243, %s220, [#allocation10], [#allocation11], %s241, 0
        $region36: #{tpu_custom_call.1} parent=27 // pred_fallthru
          _
      $region28: #{tpu_custom_call.1} parent=5 // pred_fallthru
        _
      %p262 = scmp.le.s32.totalorder 1, %s18
      %p263 = scmp.lt.s32.totalorder %s18, 3
      %p264 = pnand %p262, %p263
      %p265 = pneg %p264
      // Predicated region
      $region37: #{tpu_custom_call.1} parent=5 // pred_check
        _
      $region38: #{tpu_custom_call.1} parent=5 // pred_check_branch
        %267 = sbr.rel (%p264) target = $region40
      $region39: #{tpu_custom_call.1} parent=5 // pred_region
        %s268 = ssub.s32 %s18, 1
        %s269 = sand.u32 %s57, 1
        %s270 = scalar_lea.sflag [#allocation4], %s269
        %s271 = sand.u32 %s57, 1
        %s272 = smul.addr %s271, 128
        %s273 = scalar_lea.vmem [#allocation3], %s272
        // Predicated region
        $region41: #{tpu_custom_call.1} parent=39 // pred_check
          %p274 = pneg %p70
        $region42: #{tpu_custom_call.1} parent=39 // pred_check_branch
          %276 = sbr.rel (%p274) target = $region44
        $region43: #{tpu_custom_call.1} parent=39 // pred_region
          %277 = dma.done %s270, 2048
        $region44: #{tpu_custom_call.1} parent=39 // pred_fallthru
          _
        // Predicated region
        $region45: #{tpu_custom_call.1} parent=39 // pred_check
          %p278 = pneg %p91
        $region46: #{tpu_custom_call.1} parent=39 // pred_check_branch
          %280 = sbr.rel (%p278) target = $region48
        $region47: #{tpu_custom_call.1} parent=39 // pred_region
          %281 = dma.done [#allocation7], 8192
        $region48: #{tpu_custom_call.1} parent=39 // pred_fallthru
          _
        // Predicated region
        $region49: #{tpu_custom_call.1} parent=39 // pred_check
          %p282 = pneg %p112
        $region50: #{tpu_custom_call.1} parent=39 // pred_check_branch
          %284 = sbr.rel (%p282) target = $region52
        $region51: #{tpu_custom_call.1} parent=39 // pred_region
          %285 = dma.done [#allocation7], 16384
        $region52: #{tpu_custom_call.1} parent=39 // pred_fallthru
          _
        %s286 = smul.u32 2, %s23
        %p287 = scmp.lt.s32.totalorder %s286, 3
        %s288 = scalar_select %p287, %s286, 3
        %s289 = smul.addr %s288, 8
        %s290 = scalar_lea.vmem %s0, %s289
        %p291 = pneg %p44
        %p292 = pneg %p41
        %s293 = sand.u32 %s57, 1
        %s294 = scalar_lea.sflag [#allocation4], %s293
        %s295 = sand.u32 %s57, 1
        %s296 = smul.addr %s295, 128
        %s297 = scalar_lea.vmem [#allocation3], %s296
        %p298 = pneg %p70
        %p299 = pneg %p67
        %p300 = pneg %p91
        %p301 = pneg %p88
        %p302 = pneg %p112
        %p303 = pneg %p109
        %p304 = pneg %p133
        %p305 = pneg %p130
        %p306 = pneg %p159
        %p307 = pneg %p156
        %s308 = sand.u32 %s146, 1
        %s309 = scalar_lea.sflag [#allocation5], %s308
        %s310 = sand.u32 %s146, 1
        %s311 = smul.addr %s310, 32
        %s312 = scalar_lea.vmem [#allocation9], %s311
        %s313 = smul.u32 2, %s23
        %p314 = scmp.lt.s32.totalorder %s313, 3
        %s315 = scalar_select %p314, %s313, 3
        %s316 = smul.addr %s315, 8
        %s317 = scalar_lea.vmem %s0, %s316
        %s318 = smul.u32 2, %s23
        %s319 = smul.u32 2, %s23
        %s320 = smul.u32 2, %s23
        %s322 = smul.u32 0, 2
        %s323 = smul.addr %s322, 4
        %s324 = scalar_lea.vmem %s273, %s323 [#allocation3]
        %v325 = vld [vmem:[%s324] sm:$0xf]
        %v326 = vld [vmem:[%s324 + $0x4] sm:$0xf]
        %v327 = vld [vmem:[%s324 + $0x8] sm:$0xf]
        %v328 = vld [vmem:[%s324 + $0xc] sm:$0xf]
        %v329 = vld [vmem:[%s324 + $0x10] sm:$0xf]
        %v330 = vld [vmem:[%s324 + $0x14] sm:$0xf]
        %v331 = vld [vmem:[%s324 + $0x18] sm:$0xf]
        %v332 = vld [vmem:[%s324 + $0x1c] sm:$0xf]
        %v333 = vld [vmem:[%s324 + $0x20] sm:$0xf]
        %v334 = vld [vmem:[%s324 + $0x24] sm:$0xf]
        %v335 = vld [vmem:[%s324 + $0x28] sm:$0xf]
        %v336 = vld [vmem:[%s324 + $0x2c] sm:$0xf]
        %v337 = vld [vmem:[%s324 + $0x30] sm:$0xf]
        %v338 = vld [vmem:[%s324 + $0x34] sm:$0xf]
        %v339 = vld [vmem:[%s324 + $0x38] sm:$0xf]
        %v340 = vld [vmem:[%s324 + $0x3c] sm:$0xf]
        %v341 = vld [vmem:[%s324 + $0x40] sm:$0xf]
        %v342 = vld [vmem:[%s324 + $0x44] sm:$0xf]
        %v343 = vld [vmem:[%s324 + $0x48] sm:$0xf]
        %v344 = vld [vmem:[%s324 + $0x4c] sm:$0xf]
        %v345 = vld [vmem:[%s324 + $0x50] sm:$0xf]
        %v346 = vld [vmem:[%s324 + $0x54] sm:$0xf]
        %v347 = vld [vmem:[%s324 + $0x58] sm:$0xf]
        %v348 = vld [vmem:[%s324 + $0x5c] sm:$0xf]
        %v349 = vld [vmem:[%s324 + $0x60] sm:$0xf]
        %v350 = vld [vmem:[%s324 + $0x64] sm:$0xf]
        %v351 = vld [vmem:[%s324 + $0x68] sm:$0xf]
        %v352 = vld [vmem:[%s324 + $0x6c] sm:$0xf]
        %v353 = vld [vmem:[%s324 + $0x70] sm:$0xf]
        %v354 = vld [vmem:[%s324 + $0x74] sm:$0xf]
        %v355 = vld [vmem:[%s324 + $0x78] sm:$0xf]
        %v356 = vld [vmem:[%s324 + $0x7c] sm:$0xf]
        %v357 = vld [vmem:[#allocation6] sm:$0xff]
        %v358 = vld [vmem:[#allocation6 + $0x8] sm:$0xff]
        %v359 = vld [vmem:[#allocation6 + $0x10] sm:$0xff]
        %v360 = vld [vmem:[#allocation6 + $0x18] sm:$0xff]
        %v361 = vld [vmem:[#allocation6 + $0x20] sm:$0xff]
        %v362 = vld [vmem:[#allocation6 + $0x28] sm:$0xff]
        %v363 = vld [vmem:[#allocation6 + $0x30] sm:$0xff]
        %v364 = vld [vmem:[#allocation6 + $0x38] sm:$0xff]
        %v365 = vld [vmem:[#allocation6 + $0x40] sm:$0xff]
        %v366 = vld [vmem:[#allocation6 + $0x48] sm:$0xff]
        %v367 = vld [vmem:[#allocation6 + $0x50] sm:$0xff]
        %v368 = vld [vmem:[#allocation6 + $0x58] sm:$0xff]
        %v369 = vld [vmem:[#allocation6 + $0x60] sm:$0xff]
        %v370 = vld [vmem:[#allocation6 + $0x68] sm:$0xff]
        %v371 = vld [vmem:[#allocation6 + $0x70] sm:$0xff]
        %v372 = vld [vmem:[#allocation6 + $0x78] sm:$0xff]
        %v373 = vld [vmem:[#allocation6 + $0x80] sm:$0xff]
        %v374 = vld [vmem:[#allocation6 + $0x88] sm:$0xff]
        %v375 = vld [vmem:[#allocation6 + $0x90] sm:$0xff]
        %v376 = vld [vmem:[#allocation6 + $0x98] sm:$0xff]
        %v377 = vld [vmem:[#allocation6 + $0xa0] sm:$0xff]
        %v378 = vld [vmem:[#allocation6 + $0xa8] sm:$0xff]
        %v379 = vld [vmem:[#allocation6 + $0xb0] sm:$0xff]
        %v380 = vld [vmem:[#allocation6 + $0xb8] sm:$0xff]
        %v381 = vld [vmem:[#allocation6 + $0xc0] sm:$0xff]
        %v382 = vld [vmem:[#allocation6 + $0xc8] sm:$0xff]
        %v383 = vld [vmem:[#allocation6 + $0xd0] sm:$0xff]
        %v384 = vld [vmem:[#allocation6 + $0xd8] sm:$0xff]
        %v385 = vld [vmem:[#allocation6 + $0xe0] sm:$0xff]
        %v386 = vld [vmem:[#allocation6 + $0xe8] sm:$0xff]
        %v387 = vld [vmem:[#allocation6 + $0xf0] sm:$0xff]
        %v388 = vld [vmem:[#allocation6 + $0xf8] sm:$0xff]
        %v389 = vld [vmem:[#allocation6 + $0x100] sm:$0xff]
        %v390 = vld [vmem:[#allocation6 + $0x108] sm:$0xff]
        %v391 = vld [vmem:[#allocation6 + $0x110] sm:$0xff]
        %v392 = vld [vmem:[#allocation6 + $0x118] sm:$0xff]
        %v393 = vld [vmem:[#allocation6 + $0x120] sm:$0xff]
        %v394 = vld [vmem:[#allocation6 + $0x128] sm:$0xff]
        %v395 = vld [vmem:[#allocation6 + $0x130] sm:$0xff]
        %v396 = vld [vmem:[#allocation6 + $0x138] sm:$0xff]
        %v397 = vld [vmem:[#allocation6 + $0x140] sm:$0xff]
        %v398 = vld [vmem:[#allocation6 + $0x148] sm:$0xff]
        %v399 = vld [vmem:[#allocation6 + $0x150] sm:$0xff]
        %v400 = vld [vmem:[#allocation6 + $0x158] sm:$0xff]
        %v401 = vld [vmem:[#allocation6 + $0x160] sm:$0xff]
        %v402 = vld [vmem:[#allocation6 + $0x168] sm:$0xff]
        %v403 = vld [vmem:[#allocation6 + $0x170] sm:$0xff]
        %v404 = vld [vmem:[#allocation6 + $0x178] sm:$0xff]
        %v405 = vld [vmem:[#allocation6 + $0x180] sm:$0xff]
        %v406 = vld [vmem:[#allocation6 + $0x188] sm:$0xff]
        %v407 = vld [vmem:[#allocation6 + $0x190] sm:$0xff]
        %v408 = vld [vmem:[#allocation6 + $0x198] sm:$0xff]
        %v409 = vld [vmem:[#allocation6 + $0x1a0] sm:$0xff]
        %v410 = vld [vmem:[#allocation6 + $0x1a8] sm:$0xff]
        %v411 = vld [vmem:[#allocation6 + $0x1b0] sm:$0xff]
        %v412 = vld [vmem:[#allocation6 + $0x1b8] sm:$0xff]
        %v413 = vld [vmem:[#allocation6 + $0x1c0] sm:$0xff]
        %v414 = vld [vmem:[#allocation6 + $0x1c8] sm:$0xff]
        %v415 = vld [vmem:[#allocation6 + $0x1d0] sm:$0xff]
        %v416 = vld [vmem:[#allocation6 + $0x1d8] sm:$0xff]
        %v417 = vld [vmem:[#allocation6 + $0x1e0] sm:$0xff]
        %v418 = vld [vmem:[#allocation6 + $0x1e8] sm:$0xff]
        %v419 = vld [vmem:[#allocation6 + $0x1f0] sm:$0xff]
        %v420 = vld [vmem:[#allocation6 + $0x1f8] sm:$0xff]
        %v421 = vld [vmem:[%s4] sm:$0xff]
        %v423 = vlaneseq
        %v424 = vshrl.u32 %v423, 7
        %v425 = vsub.s32 0, %v424
        %v426 = vrot.slane %v421, %v425
        %v427 = vlaneseq
        %v428 = vshrl.u32 %v427, 7
        %v429 = vsub.s32 1, %v428
        %v430 = vrot.slane %v421, %v429
        %v431 = vlaneseq
        %v432 = vshrl.u32 %v431, 7
        %v433 = vsub.s32 2, %v432
        %v434 = vrot.slane %v421, %v433
        %v435 = vlaneseq
        %v436 = vshrl.u32 %v435, 7
        %v437 = vsub.s32 3, %v436
        %v438 = vrot.slane %v421, %v437
        %v439 = vlaneseq
        %v440 = vshrl.u32 %v439, 7
        %v441 = vsub.s32 4, %v440
        %v442 = vrot.slane %v421, %v441
        %v443 = vlaneseq
        %v444 = vshrl.u32 %v443, 7
        %v445 = vsub.s32 5, %v444
        %v446 = vrot.slane %v421, %v445
        %v447 = vlaneseq
        %v448 = vshrl.u32 %v447, 7
        %v449 = vsub.s32 6, %v448
        %v450 = vrot.slane %v421, %v449
        %v451 = vlaneseq
        %v452 = vshrl.u32 %v451, 7
        %v453 = vsub.s32 7, %v452
        %v454 = vrot.slane %v421, %v453
        %v495 = vunpack.c.l.b16 %v325
        %v496 = vunpack.c.l.b16 %v326
        %v497 = vunpack.c.l.b16 %v327
        %v498 = vunpack.c.l.b16 %v328
        %v499 = vunpack.c.l.b16 %v329
        %v500 = vunpack.c.l.b16 %v330
        %v501 = vunpack.c.l.b16 %v331
        %v502 = vunpack.c.l.b16 %v332
        %v503 = vunpack.c.l.b16 %v333
        %v504 = vunpack.c.l.b16 %v334
        %v505 = vunpack.c.l.b16 %v335
        %v506 = vunpack.c.l.b16 %v336
        %v507 = vunpack.c.l.b16 %v337
        %v508 = vunpack.c.l.b16 %v338
        %v509 = vunpack.c.l.b16 %v339
        %v510 = vunpack.c.l.b16 %v340
        %v511 = vunpack.c.l.b16 %v341
        %v512 = vunpack.c.l.b16 %v342
        %v513 = vunpack.c.l.b16 %v343
        %v514 = vunpack.c.l.b16 %v344
        %v515 = vunpack.c.l.b16 %v345
        %v516 = vunpack.c.l.b16 %v346
        %v517 = vunpack.c.l.b16 %v347
        %v518 = vunpack.c.l.b16 %v348
        %v519 = vunpack.c.l.b16 %v349
        %v520 = vunpack.c.l.b16 %v350
        %v521 = vunpack.c.l.b16 %v351
        %v522 = vunpack.c.l.b16 %v352
        %v523 = vunpack.c.l.b16 %v353
        %v524 = vunpack.c.l.b16 %v354
        %v525 = vunpack.c.l.b16 %v355
        %v526 = vunpack.c.l.b16 %v356
        %v527 = vpack.c.b16 %v496, %v495
        %v528 = vpack.c.b16 %v498, %v497
        %v529 = vpack.c.b16 %v500, %v499
        %v530 = vpack.c.b16 %v502, %v501
        %v531 = vpack.c.b16 %v504, %v503
        %v532 = vpack.c.b16 %v506, %v505
        %v533 = vpack.c.b16 %v508, %v507
        %v534 = vpack.c.b16 %v510, %v509
        %v535 = vpack.c.b16 %v512, %v511
        %v536 = vpack.c.b16 %v514, %v513
        %v537 = vpack.c.b16 %v516, %v515
        %v538 = vpack.c.b16 %v518, %v517
        %v539 = vpack.c.b16 %v520, %v519
        %v540 = vpack.c.b16 %v522, %v521
        %v541 = vpack.c.b16 %v524, %v523
        %v542 = vpack.c.b16 %v526, %v525
        %v623 = vunpack.c.l.b16 %v357
        %v624 = vunpack.c.h.b16 %v357
        %v625 = vunpack.c.l.b16 %v358
        %v626 = vunpack.c.h.b16 %v358
        %v627 = vunpack.c.l.b16 %v359
        %v628 = vunpack.c.h.b16 %v359
        %v629 = vunpack.c.l.b16 %v360
        %v630 = vunpack.c.h.b16 %v360
        %v631 = vunpack.c.l.b16 %v361
        %v632 = vunpack.c.h.b16 %v361
        %v633 = vunpack.c.l.b16 %v362
        %v634 = vunpack.c.h.b16 %v362
        %v635 = vunpack.c.l.b16 %v363
        %v636 = vunpack.c.h.b16 %v363
        %v637 = vunpack.c.l.b16 %v364
        %v638 = vunpack.c.h.b16 %v364
        %v639 = vunpack.c.l.b16 %v365
        %v640 = vunpack.c.h.b16 %v365
        %v641 = vunpack.c.l.b16 %v366
        %v642 = vunpack.c.h.b16 %v366
        %v643 = vunpack.c.l.b16 %v367
        %v644 = vunpack.c.h.b16 %v367
        %v645 = vunpack.c.l.b16 %v368
        %v646 = vunpack.c.h.b16 %v368
        %v647 = vunpack.c.l.b16 %v369
        %v648 = vunpack.c.h.b16 %v369
        %v649 = vunpack.c.l.b16 %v370
        %v650 = vunpack.c.h.b16 %v370
        %v651 = vunpack.c.l.b16 %v371
        %v652 = vunpack.c.h.b16 %v371
        %v653 = vunpack.c.l.b16 %v372
        %v654 = vunpack.c.h.b16 %v372
        %v655 = vunpack.c.l.b16 %v373
        %v656 = vunpack.c.h.b16 %v373
        %v657 = vunpack.c.l.b16 %v374
        %v658 = vunpack.c.h.b16 %v374
        %v659 = vunpack.c.l.b16 %v375
        %v660 = vunpack.c.h.b16 %v375
        %v661 = vunpack.c.l.b16 %v376
        %v662 = vunpack.c.h.b16 %v376
        %v663 = vunpack.c.l.b16 %v377
        %v664 = vunpack.c.h.b16 %v377
        %v665 = vunpack.c.l.b16 %v378
        %v666 = vunpack.c.h.b16 %v378
        %v667 = vunpack.c.l.b16 %v379
        %v668 = vunpack.c.h.b16 %v379
        %v669 = vunpack.c.l.b16 %v380
        %v670 = vunpack.c.h.b16 %v380
        %v671 = vunpack.c.l.b16 %v381
        %v672 = vunpack.c.h.b16 %v381
        %v673 = vunpack.c.l.b16 %v382
        %v674 = vunpack.c.h.b16 %v382
        %v675 = vunpack.c.l.b16 %v383
        %v676 = vunpack.c.h.b16 %v383
        %v677 = vunpack.c.l.b16 %v384
        %v678 = vunpack.c.h.b16 %v384
        %v679 = vunpack.c.l.b16 %v385
        %v680 = vunpack.c.h.b16 %v385
        %v681 = vunpack.c.l.b16 %v386
        %v682 = vunpack.c.h.b16 %v386
        %v683 = vunpack.c.l.b16 %v387
        %v684 = vunpack.c.h.b16 %v387
        %v685 = vunpack.c.l.b16 %v388
        %v686 = vunpack.c.h.b16 %v388
        %v687 = vunpack.c.l.b16 %v389
        %v688 = vunpack.c.h.b16 %v389
        %v689 = vunpack.c.l.b16 %v390
        %v690 = vunpack.c.h.b16 %v390
        %v691 = vunpack.c.l.b16 %v391
        %v692 = vunpack.c.h.b16 %v391
        %v693 = vunpack.c.l.b16 %v392
        %v694 = vunpack.c.h.b16 %v392
        %v695 = vunpack.c.l.b16 %v393
        %v696 = vunpack.c.h.b16 %v393
        %v697 = vunpack.c.l.b16 %v394
        %v698 = vunpack.c.h.b16 %v394
        %v699 = vunpack.c.l.b16 %v395
        %v700 = vunpack.c.h.b16 %v395
        %v701 = vunpack.c.l.b16 %v396
        %v702 = vunpack.c.h.b16 %v396
        %v703 = vunpack.c.l.b16 %v397
        %v704 = vunpack.c.h.b16 %v397
        %v705 = vunpack.c.l.b16 %v398
        %v706 = vunpack.c.h.b16 %v398
        %v707 = vunpack.c.l.b16 %v399
        %v708 = vunpack.c.h.b16 %v399
        %v709 = vunpack.c.l.b16 %v400
        %v710 = vunpack.c.h.b16 %v400
        %v711 = vunpack.c.l.b16 %v401
        %v712 = vunpack.c.h.b16 %v401
        %v713 = vunpack.c.l.b16 %v402
        %v714 = vunpack.c.h.b16 %v402
        %v715 = vunpack.c.l.b16 %v403
        %v716 = vunpack.c.h.b16 %v403
        %v717 = vunpack.c.l.b16 %v404
        %v718 = vunpack.c.h.b16 %v404
        %v719 = vunpack.c.l.b16 %v405
        %v720 = vunpack.c.h.b16 %v405
        %v721 = vunpack.c.l.b16 %v406
        %v722 = vunpack.c.h.b16 %v406
        %v723 = vunpack.c.l.b16 %v407
        %v724 = vunpack.c.h.b16 %v407
        %v725 = vunpack.c.l.b16 %v408
        %v726 = vunpack.c.h.b16 %v408
        %v727 = vunpack.c.l.b16 %v409
        %v728 = vunpack.c.h.b16 %v409
        %v729 = vunpack.c.l.b16 %v410
        %v730 = vunpack.c.h.b16 %v410
        %v731 = vunpack.c.l.b16 %v411
        %v732 = vunpack.c.h.b16 %v411
        %v733 = vunpack.c.l.b16 %v412
        %v734 = vunpack.c.h.b16 %v412
        %v735 = vunpack.c.l.b16 %v413
        %v736 = vunpack.c.h.b16 %v413
        %v737 = vunpack.c.l.b16 %v414
        %v738 = vunpack.c.h.b16 %v414
        %v739 = vunpack.c.l.b16 %v415
        %v740 = vunpack.c.h.b16 %v415
        %v741 = vunpack.c.l.b16 %v416
        %v742 = vunpack.c.h.b16 %v416
        %v743 = vunpack.c.l.b16 %v417
        %v744 = vunpack.c.h.b16 %v417
        %v745 = vunpack.c.l.b16 %v418
        %v746 = vunpack.c.h.b16 %v418
        %v747 = vunpack.c.l.b16 %v419
        %v748 = vunpack.c.h.b16 %v419
        %v749 = vunpack.c.l.b16 %v420
        %v750 = vunpack.c.h.b16 %v420
        %v751 = vpack.c.b16 %v631, %v623
        %v752 = vpack.c.b16 %v632, %v624
        %v753 = vpack.c.b16 %v633, %v625
        %v754 = vpack.c.b16 %v634, %v626
        %v755 = vpack.c.b16 %v635, %v627
        %v756 = vpack.c.b16 %v636, %v628
        %v757 = vpack.c.b16 %v637, %v629
        %v758 = vpack.c.b16 %v638, %v630
        %v759 = vpack.c.b16 %v647, %v639
        %v760 = vpack.c.b16 %v648, %v640
        %v761 = vpack.c.b16 %v649, %v641
        %v762 = vpack.c.b16 %v650, %v642
        %v763 = vpack.c.b16 %v651, %v643
        %v764 = vpack.c.b16 %v652, %v644
        %v765 = vpack.c.b16 %v653, %v645
        %v766 = vpack.c.b16 %v654, %v646
        %v767 = vpack.c.b16 %v663, %v655
        %v768 = vpack.c.b16 %v664, %v656
        %v769 = vpack.c.b16 %v665, %v657
        %v770 = vpack.c.b16 %v666, %v658
        %v771 = vpack.c.b16 %v667, %v659
        %v772 = vpack.c.b16 %v668, %v660
        %v773 = vpack.c.b16 %v669, %v661
        %v774 = vpack.c.b16 %v670, %v662
        %v775 = vpack.c.b16 %v679, %v671
        %v776 = vpack.c.b16 %v680, %v672
        %v777 = vpack.c.b16 %v681, %v673
        %v778 = vpack.c.b16 %v682, %v674
        %v779 = vpack.c.b16 %v683, %v675
        %v780 = vpack.c.b16 %v684, %v676
        %v781 = vpack.c.b16 %v685, %v677
        %v782 = vpack.c.b16 %v686, %v678
        %v783 = vpack.c.b16 %v695, %v687
        %v784 = vpack.c.b16 %v696, %v688
        %v785 = vpack.c.b16 %v697, %v689
        %v786 = vpack.c.b16 %v698, %v690
        %v787 = vpack.c.b16 %v699, %v691
        %v788 = vpack.c.b16 %v700, %v692
        %v789 = vpack.c.b16 %v701, %v693
        %v790 = vpack.c.b16 %v702, %v694
        %v791 = vpack.c.b16 %v711, %v703
        %v792 = vpack.c.b16 %v712, %v704
        %v793 = vpack.c.b16 %v713, %v705
        %v794 = vpack.c.b16 %v714, %v706
        %v795 = vpack.c.b16 %v715, %v707
        %v796 = vpack.c.b16 %v716, %v708
        %v797 = vpack.c.b16 %v717, %v709
        %v798 = vpack.c.b16 %v718, %v710
        %v799 = vpack.c.b16 %v727, %v719
        %v800 = vpack.c.b16 %v728, %v720
        %v801 = vpack.c.b16 %v729, %v721
        %v802 = vpack.c.b16 %v730, %v722
        %v803 = vpack.c.b16 %v731, %v723
        %v804 = vpack.c.b16 %v732, %v724
        %v805 = vpack.c.b16 %v733, %v725
        %v806 = vpack.c.b16 %v734, %v726
        %v807 = vpack.c.b16 %v743, %v735
        %v808 = vpack.c.b16 %v744, %v736
        %v809 = vpack.c.b16 %v745, %v737
        %v810 = vpack.c.b16 %v746, %v738
        %v811 = vpack.c.b16 %v747, %v739
        %v812 = vpack.c.b16 %v748, %v740
        %v813 = vpack.c.b16 %v749, %v741
        %v814 = vpack.c.b16 %v750, %v742
        %879 = vmatprep.subr.bf16.mxu0 %v752
        %880 = vmatpush1.bf16.msra.mxu0 %v751
        %881 = vmatprep.subr.bf16.mxu0 %v760
        %882 = vmatpush1.bf16.msra.mxu0 %v759
        %883 = vmatprep.subr.bf16.mxu0 %v768
        %884 = vmatpush1.bf16.msra.mxu0 %v767
        %885 = vmatprep.subr.bf16.mxu0 %v776
        %886 = vmatpush1.bf16.msra.mxu0 %v775
        %887 = vmatprep.subr.bf16.mxu0 %v784
        %888 = vmatpush1.bf16.msra.mxu0 %v783
        %889 = vmatprep.subr.bf16.mxu0 %v792
        %890 = vmatpush1.bf16.msra.mxu0 %v791
        %891 = vmatprep.subr.bf16.mxu0 %v800
        %892 = vmatpush1.bf16.msra.mxu0 %v799
        %893 = vmatprep.subr.bf16.mxu0 %v808
        %894 = vmatpush1.bf16.msra.mxu0 %v807
        %895 = vmatprep.subr.bf16.mxu0 0
        %896 = vmatpush1.bf16.msra.mxu0 0
        %897 = vmatprep.subr.bf16.mxu0 0
        %898 = vmatpush1.bf16.msra.mxu0 0
        %899 = vmatprep.subr.bf16.mxu0 0
        %900 = vmatpush1.bf16.msra.mxu0 0
        %901 = vmatprep.subr.bf16.mxu0 0
        %902 = vmatpush1.bf16.msra.mxu0 0
        %903 = vmatprep.subr.bf16.mxu0 0
        %904 = vmatpush1.bf16.msra.mxu0 0
        %905 = vmatprep.subr.bf16.mxu0 0
        %906 = vmatpush1.bf16.msra.mxu0 0
        %907 = vmatprep.subr.bf16.mxu0 0
        %908 = vmatpush1.bf16.msra.mxu0 0
        %909 = vmatprep.subr.bf16.mxu0 0
        %910 = vmatpush1.bf16.msra.mxu0 0
        %911 = vmatprep.mubr.bf16.mxu0 0
        %912 = vmatmul.mubr.bf16.gmra.mrb[0].mxu0 %v527
        %v913 = vpop.f32.mrb[0].mxu0
        %v914 = vadd.f32 %v426, %v913
        %v915 = vpop.f32.mrb[0].mxu0
        %v916 = vadd.f32 %v430, %v915
        %v917 = vpop.f32.mrb[0].mxu0
        %v918 = vadd.f32 %v426, %v917
        %v919 = vpop.f32.mrb[0].mxu0
        %v920 = vadd.f32 %v430, %v919
        %921 = vmatprep.mubr.bf16.mxu0 0
        %922 = vmatmul.mubr.bf16.gmra.mrb[0].mxu0 %v528
        %v923 = vpop.f32.mrb[0].mxu0
        %v924 = vadd.f32 %v426, %v923
        %v925 = vpop.f32.mrb[0].mxu0
        %v926 = vadd.f32 %v430, %v925
        %v927 = vpop.f32.mrb[0].mxu0
        %v928 = vadd.f32 %v426, %v927
        %v929 = vpop.f32.mrb[0].mxu0
        %v930 = vadd.f32 %v430, %v929
        %931 = vmatprep.mubr.bf16.mxu0 0
        %932 = vmatmul.mubr.bf16.gmra.mrb[0].mxu0 %v529
        %v933 = vpop.f32.mrb[0].mxu0
        %v934 = vadd.f32 %v426, %v933
        %v935 = vpop.f32.mrb[0].mxu0
        %v936 = vadd.f32 %v430, %v935
        %v937 = vpop.f32.mrb[0].mxu0
        %v938 = vadd.f32 %v426, %v937
        %v939 = vpop.f32.mrb[0].mxu0
        %v940 = vadd.f32 %v430, %v939
        %941 = vmatprep.mubr.bf16.mxu0 0
        %942 = vmatmul.mubr.bf16.gmra.mrb[0].mxu0 %v530
        %v943 = vpop.f32.mrb[0].mxu0
        %v944 = vadd.f32 %v426, %v943
        %v945 = vpop.f32.mrb[0].mxu0
        %v946 = vadd.f32 %v430, %v945
        %v947 = vpop.f32.mrb[0].mxu0
        %v948 = vadd.f32 %v426, %v947
        %v949 = vpop.f32.mrb[0].mxu0
        %v950 = vadd.f32 %v430, %v949
        %951 = vmatprep.mubr.bf16.mxu0 0
        %952 = vmatmul.mubr.bf16.gmra.mrb[0].mxu0 %v531
        %v953 = vpop.f32.mrb[0].mxu0
        %v954 = vadd.f32 %v426, %v953
        %v955 = vpop.f32.mrb[0].mxu0
        %v956 = vadd.f32 %v430, %v955
        %v957 = vpop.f32.mrb[0].mxu0
        %v958 = vadd.f32 %v426, %v957
        %v959 = vpop.f32.mrb[0].mxu0
        %v960 = vadd.f32 %v430, %v959
        %961 = vmatprep.mubr.bf16.mxu0 0
        %962 = vmatmul.mubr.bf16.gmra.mrb[0].mxu0 %v532
        %v963 = vpop.f32.mrb[0].mxu0
        %v964 = vadd.f32 %v426, %v963
        %v965 = vpop.f32.mrb[0].mxu0
        %v966 = vadd.f32 %v430, %v965
        %v967 = vpop.f32.mrb[0].mxu0
        %v968 = vadd.f32 %v426, %v967
        %v969 = vpop.f32.mrb[0].mxu0
        %v970 = vadd.f32 %v430, %v969
        %971 = vmatprep.mubr.bf16.mxu0 0
        %972 = vmatmul.mubr.bf16.gmra.mrb[0].mxu0 %v533
        %v973 = vpop.f32.mrb[0].mxu0
        %v974 = vadd.f32 %v426, %v973
        %v975 = vpop.f32.mrb[0].mxu0
        %v976 = vadd.f32 %v430, %v975
        %v977 = vpop.f32.mrb[0].mxu0
        %v978 = vadd.f32 %v426, %v977
        %v979 = vpop.f32.mrb[0].mxu0
        %v980 = vadd.f32 %v430, %v979
        %981 = vmatprep.mubr.bf16.mxu0 0
        %982 = vmatmul.mubr.bf16.gmra.mrb[0].mxu0 %v534
        %v983 = vpop.f32.mrb[0].mxu0
        %v984 = vadd.f32 %v426, %v983
        %v985 = vpop.f32.mrb[0].mxu0
        %v986 = vadd.f32 %v430, %v985
        %v987 = vpop.f32.mrb[0].mxu0
        %v988 = vadd.f32 %v426, %v987
        %v989 = vpop.f32.mrb[0].mxu0
        %v990 = vadd.f32 %v430, %v989
        %991 = vmatprep.mubr.bf16.mxu0 0
        %992 = vmatmul.mubr.bf16.gmra.mrb[0].mxu0 %v535
        %v993 = vpop.f32.mrb[0].mxu0
        %v994 = vadd.f32 %v426, %v993
        %v995 = vpop.f32.mrb[0].mxu0
        %v996 = vadd.f32 %v430, %v995
        %v997 = vpop.f32.mrb[0].mxu0
        %v998 = vadd.f32 %v426, %v997
        %v999 = vpop.f32.mrb[0].mxu0
        %v1000 = vadd.f32 %v430, %v999
        %1001 = vmatprep.mubr.bf16.mxu0 0
        %1002 = vmatmul.mubr.bf16.gmra.mrb[0].mxu0 %v536
        %v1003 = vpop.f32.mrb[0].mxu0
        %v1004 = vadd.f32 %v426, %v1003
        %v1005 = vpop.f32.mrb[0].mxu0
        %v1006 = vadd.f32 %v430, %v1005
        %v1007 = vpop.f32.mrb[0].mxu0
        %v1008 = vadd.f32 %v426, %v1007
        %v1009 = vpop.f32.mrb[0].mxu0
        %v1010 = vadd.f32 %v430, %v1009
        %1011 = vmatprep.mubr.bf16.mxu0 0
        %1012 = vmatmul.mubr.bf16.gmra.mrb[0].mxu0 %v537
        %v1013 = vpop.f32.mrb[0].mxu0
        %v1014 = vadd.f32 %v426, %v1013
        %v1015 = vpop.f32.mrb[0].mxu0
        %v1016 = vadd.f32 %v430, %v1015
        %v1017 = vpop.f32.mrb[0].mxu0
        %v1018 = vadd.f32 %v426, %v1017
        %v1019 = vpop.f32.mrb[0].mxu0
        %v1020 = vadd.f32 %v430, %v1019
        %1021 = vmatprep.mubr.bf16.mxu0 0
        %1022 = vmatmul.mubr.bf16.gmra.mrb[0].mxu0 %v538
        %v1023 = vpop.f32.mrb[0].mxu0
        %v1024 = vadd.f32 %v426, %v1023
        %v1025 = vpop.f32.mrb[0].mxu0
        %v1026 = vadd.f32 %v430, %v1025
        %v1027 = vpop.f32.mrb[0].mxu0
        %v1028 = vadd.f32 %v426, %v1027
        %v1029 = vpop.f32.mrb[0].mxu0
        %v1030 = vadd.f32 %v430, %v1029
        %1031 = vmatprep.mubr.bf16.mxu0 0
        %1032 = vmatmul.mubr.bf16.gmra.mrb[0].mxu0 %v539
        %v1033 = vpop.f32.mrb[0].mxu0
        %v1034 = vadd.f32 %v426, %v1033
        %v1035 = vpop.f32.mrb[0].mxu0
        %v1036 = vadd.f32 %v430, %v1035
        %v1037 = vpop.f32.mrb[0].mxu0
        %v1038 = vadd.f32 %v426, %v1037
        %v1039 = vpop.f32.mrb[0].mxu0
        %v1040 = vadd.f32 %v430, %v1039
        %1041 = vmatprep.mubr.bf16.mxu0 0
        %1042 = vmatmul.mubr.bf16.gmra.mrb[0].mxu0 %v540
        %v1043 = vpop.f32.mrb[0].mxu0
        %v1044 = vadd.f32 %v426, %v1043
        %v1045 = vpop.f32.mrb[0].mxu0
        %v1046 = vadd.f32 %v430, %v1045
        %v1047 = vpop.f32.mrb[0].mxu0
        %v1048 = vadd.f32 %v426, %v1047
        %v1049 = vpop.f32.mrb[0].mxu0
        %v1050 = vadd.f32 %v430, %v1049
        %1051 = vmatprep.mubr.bf16.mxu0 0
        %1052 = vmatmul.mubr.bf16.gmra.mrb[0].mxu0 %v541
        %v1053 = vpop.f32.mrb[0].mxu0
        %v1054 = vadd.f32 %v426, %v1053
        %v1055 = vpop.f32.mrb[0].mxu0
        %v1056 = vadd.f32 %v430, %v1055
        %v1057 = vpop.f32.mrb[0].mxu0
        %v1058 = vadd.f32 %v426, %v1057
        %v1059 = vpop.f32.mrb[0].mxu0
        %v1060 = vadd.f32 %v430, %v1059
        %1061 = vmatprep.mubr.bf16.mxu0 0
        %1062 = vmatmul.mubr.bf16.gmra.mrb[0].mxu0 %v542
        %v1063 = vpop.f32.mrb[0].mxu0
        %v1064 = vadd.f32 %v426, %v1063
        %v1065 = vpop.f32.mrb[0].mxu0
        %v1066 = vadd.f32 %v430, %v1065
        %v1067 = vpop.f32.mrb[0].mxu0
        %v1068 = vadd.f32 %v426, %v1067
        %v1069 = vpop.f32.mrb[0].mxu0
        %v1070 = vadd.f32 %v430, %v1069
        %1071 = vdwg.mxu0
        %1072 = vmatprep.subr.bf16.mxu0 %v754
        %1073 = vmatpush1.bf16.msra.mxu0 %v753
        %1074 = vmatprep.subr.bf16.mxu0 %v762
        %1075 = vmatpush1.bf16.msra.mxu0 %v761
        %1076 = vmatprep.subr.bf16.mxu0 %v770
        %1077 = vmatpush1.bf16.msra.mxu0 %v769
        %1078 = vmatprep.subr.bf16.mxu0 %v778
        %1079 = vmatpush1.bf16.msra.mxu0 %v777
        %1080 = vmatprep.subr.bf16.mxu0 %v786
        %1081 = vmatpush1.bf16.msra.mxu0 %v785
        %1082 = vmatprep.subr.bf16.mxu0 %v794
        %1083 = vmatpush1.bf16.msra.mxu0 %v793
        %1084 = vmatprep.subr.bf16.mxu0 %v802
        %1085 = vmatpush1.bf16.msra.mxu0 %v801
        %1086 = vmatprep.subr.bf16.mxu0 %v810
        %1087 = vmatpush1.bf16.msra.mxu0 %v809
        %1088 = vmatprep.subr.bf16.mxu0 0
        %1089 = vmatpush1.bf16.msra.mxu0 0
        %1090 = vmatprep.subr.bf16.mxu0 0
        %1091 = vmatpush1.bf16.msra.mxu0 0
        %1092 = vmatprep.subr.bf16.mxu0 0
        %1093 = vmatpush1.bf16.msra.mxu0 0
        %1094 = vmatprep.subr.bf16.mxu0 0
        %1095 = vmatpush1.bf16.msra.mxu0 0
        %1096 = vmatprep.subr.bf16.mxu0 0
        %1097 = vmatpush1.bf16.msra.mxu0 0
        %1098 = vmatprep.subr.bf16.mxu0 0
        %1099 = vmatpush1.bf16.msra.mxu0 0
        %1100 = vmatprep.subr.bf16.mxu0 0
        %1101 = vmatpush1.bf16.msra.mxu0 0
        %1102 = vmatprep.subr.bf16.mxu0 0
        %1103 = vmatpush1.bf16.msra.mxu0 0
        %1104 = vmatprep.mubr.bf16.mxu0 0
        %1105 = vmatmul.mubr.bf16.gmra.mrb[0].mxu0 %v527
        %v1106 = vpop.f32.mrb[0].mxu0
        %v1107 = vadd.f32 %v434, %v1106
        %v1108 = vpop.f32.mrb[0].mxu0
        %v1109 = vadd.f32 %v438, %v1108
        %v1110 = vpop.f32.mrb[0].mxu0
        %v1111 = vadd.f32 %v434, %v1110
        %v1112 = vpop.f32.mrb[0].mxu0
        %v1113 = vadd.f32 %v438, %v1112
        %1114 = vmatprep.mubr.bf16.mxu0 0
        %1115 = vmatmul.mubr.bf16.gmra.mrb[0].mxu0 %v528
        %v1116 = vpop.f32.mrb[0].mxu0
        %v1117 = vadd.f32 %v434, %v1116
        %v1118 = vpop.f32.mrb[0].mxu0
        %v1119 = vadd.f32 %v438, %v1118
        %v1120 = vpop.f32.mrb[0].mxu0
        %v1121 = vadd.f32 %v434, %v1120
        %v1122 = vpop.f32.mrb[0].mxu0
        %v1123 = vadd.f32 %v438, %v1122
        %1124 = vmatprep.mubr.bf16.mxu0 0
        %1125 = vmatmul.mubr.bf16.gmra.mrb[0].mxu0 %v529
        %v1126 = vpop.f32.mrb[0].mxu0
        %v1127 = vadd.f32 %v434, %v1126
        %v1128 = vpop.f32.mrb[0].mxu0
        %v1129 = vadd.f32 %v438, %v1128
        %v1130 = vpop.f32.mrb[0].mxu0
        %v1131 = vadd.f32 %v434, %v1130
        %v1132 = vpop.f32.mrb[0].mxu0
        %v1133 = vadd.f32 %v438, %v1132
        %1134 = vmatprep.mubr.bf16.mxu0 0
        %1135 = vmatmul.mubr.bf16.gmra.mrb[0].mxu0 %v530
        %v1136 = vpop.f32.mrb[0].mxu0
        %v1137 = vadd.f32 %v434, %v1136
        %v1138 = vpop.f32.mrb[0].mxu0
        %v1139 = vadd.f32 %v438, %v1138
        %v1140 = vpop.f32.mrb[0].mxu0
        %v1141 = vadd.f32 %v434, %v1140
        %v1142 = vpop.f32.mrb[0].mxu0
        %v1143 = vadd.f32 %v438, %v1142
        %1144 = vmatprep.mubr.bf16.mxu0 0
        %1145 = vmatmul.mubr.bf16.gmra.mrb[0].mxu0 %v531
        %v1146 = vpop.f32.mrb[0].mxu0
        %v1147 = vadd.f32 %v434, %v1146
        %v1148 = vpop.f32.mrb[0].mxu0
        %v1149 = vadd.f32 %v438, %v1148
        %v1150 = vpop.f32.mrb[0].mxu0
        %v1151 = vadd.f32 %v434, %v1150
        %v1152 = vpop.f32.mrb[0].mxu0
        %v1153 = vadd.f32 %v438, %v1152
        %1154 = vmatprep.mubr.bf16.mxu0 0
        %1155 = vmatmul.mubr.bf16.gmra.mrb[0].mxu0 %v532
        %v1156 = vpop.f32.mrb[0].mxu0
        %v1157 = vadd.f32 %v434, %v1156
        %v1158 = vpop.f32.mrb[0].mxu0
        %v1159 = vadd.f32 %v438, %v1158
        %v1160 = vpop.f32.mrb[0].mxu0
        %v1161 = vadd.f32 %v434, %v1160
        %v1162 = vpop.f32.mrb[0].mxu0
        %v1163 = vadd.f32 %v438, %v1162
        %1164 = vmatprep.mubr.bf16.mxu0 0
        %1165 = vmatmul.mubr.bf16.gmra.mrb[0].mxu0 %v533
        %v1166 = vpop.f32.mrb[0].mxu0
        %v1167 = vadd.f32 %v434, %v1166
        %v1168 = vpop.f32.mrb[0].mxu0
        %v1169 = vadd.f32 %v438, %v1168
        %v1170 = vpop.f32.mrb[0].mxu0
        %v1171 = vadd.f32 %v434, %v1170
        %v1172 = vpop.f32.mrb[0].mxu0
        %v1173 = vadd.f32 %v438, %v1172
        %1174 = vmatprep.mubr.bf16.mxu0 0
        %1175 = vmatmul.mubr.bf16.gmra.mrb[0].mxu0 %v534
        %v1176 = vpop.f32.mrb[0].mxu0
        %v1177 = vadd.f32 %v434, %v1176
        %v1178 = vpop.f32.mrb[0].mxu0
        %v1179 = vadd.f32 %v438, %v1178
        %v1180 = vpop.f32.mrb[0].mxu0
        %v1181 = vadd.f32 %v434, %v1180
        %v1182 = vpop.f32.mrb[0].mxu0
        %v1183 = vadd.f32 %v438, %v1182
        %1184 = vmatprep.mubr.bf16.mxu0 0
        %1185 = vmatmul.mubr.bf16.gmra.mrb[0].mxu0 %v535
        %v1186 = vpop.f32.mrb[0].mxu0
        %v1187 = vadd.f32 %v434, %v1186
        %v1188 = vpop.f32.mrb[0].mxu0
        %v1189 = vadd.f32 %v438, %v1188
        %v1190 = vpop.f32.mrb[0].mxu0
        %v1191 = vadd.f32 %v434, %v1190
        %v1192 = vpop.f32.mrb[0].mxu0
        %v1193 = vadd.f32 %v438, %v1192
        %1194 = vmatprep.mubr.bf16.mxu0 0
        %1195 = vmatmul.mubr.bf16.gmra.mrb[0].mxu0 %v536
        %v1196 = vpop.f32.mrb[0].mxu0
        %v1197 = vadd.f32 %v434, %v1196
        %v1198 = vpop.f32.mrb[0].mxu0
        %v1199 = vadd.f32 %v438, %v1198
        %v1200 = vpop.f32.mrb[0].mxu0
        %v1201 = vadd.f32 %v434, %v1200
        %v1202 = vpop.f32.mrb[0].mxu0
        %v1203 = vadd.f32 %v438, %v1202
        %1204 = vmatprep.mubr.bf16.mxu0 0
        %1205 = vmatmul.mubr.bf16.gmra.mrb[0].mxu0 %v537
        %v1206 = vpop.f32.mrb[0].mxu0
        %v1207 = vadd.f32 %v434, %v1206
        %v1208 = vpop.f32.mrb[0].mxu0
        %v1209 = vadd.f32 %v438, %v1208
        %v1210 = vpop.f32.mrb[0].mxu0
        %v1211 = vadd.f32 %v434, %v1210
        %v1212 = vpop.f32.mrb[0].mxu0
        %v1213 = vadd.f32 %v438, %v1212
        %1214 = vmatprep.mubr.bf16.mxu0 0
        %1215 = vmatmul.mubr.bf16.gmra.mrb[0].mxu0 %v538
        %v1216 = vpop.f32.mrb[0].mxu0
        %v1217 = vadd.f32 %v434, %v1216
        %v1218 = vpop.f32.mrb[0].mxu0
        %v1219 = vadd.f32 %v438, %v1218
        %v1220 = vpop.f32.mrb[0].mxu0
        %v1221 = vadd.f32 %v434, %v1220
        %v1222 = vpop.f32.mrb[0].mxu0
        %v1223 = vadd.f32 %v438, %v1222
        %1224 = vmatprep.mubr.bf16.mxu0 0
        %1225 = vmatmul.mubr.bf16.gmra.mrb[0].mxu0 %v539
        %v1226 = vpop.f32.mrb[0].mxu0
        %v1227 = vadd.f32 %v434, %v1226
        %v1228 = vpop.f32.mrb[0].mxu0
        %v1229 = vadd.f32 %v438, %v1228
        %v1230 = vpop.f32.mrb[0].mxu0
        %v1231 = vadd.f32 %v434, %v1230
        %v1232 = vpop.f32.mrb[0].mxu0
        %v1233 = vadd.f32 %v438, %v1232
        %1234 = vmatprep.mubr.bf16.mxu0 0
        %1235 = vmatmul.mubr.bf16.gmra.mrb[0].mxu0 %v540
        %v1236 = vpop.f32.mrb[0].mxu0
        %v1237 = vadd.f32 %v434, %v1236
        %v1238 = vpop.f32.mrb[0].mxu0
        %v1239 = vadd.f32 %v438, %v1238
        %v1240 = vpop.f32.mrb[0].mxu0
        %v1241 = vadd.f32 %v434, %v1240
        %v1242 = vpop.f32.mrb[0].mxu0
        %v1243 = vadd.f32 %v438, %v1242
        %1244 = vmatprep.mubr.bf16.mxu0 0
        %1245 = vmatmul.mubr.bf16.gmra.mrb[0].mxu0 %v541
        %v1246 = vpop.f32.mrb[0].mxu0
        %v1247 = vadd.f32 %v434, %v1246
        %v1248 = vpop.f32.mrb[0].mxu0
        %v1249 = vadd.f32 %v438, %v1248
        %v1250 = vpop.f32.mrb[0].mxu0
        %v1251 = vadd.f32 %v434, %v1250
        %v1252 = vpop.f32.mrb[0].mxu0
        %v1253 = vadd.f32 %v438, %v1252
        %1254 = vmatprep.mubr.bf16.mxu0 0
        %1255 = vmatmul.mubr.bf16.gmra.mrb[0].mxu0 %v542
        %v1256 = vpop.f32.mrb[0].mxu0
        %v1257 = vadd.f32 %v434, %v1256
        %v1258 = vpop.f32.mrb[0].mxu0
        %v1259 = vadd.f32 %v438, %v1258
        %v1260 = vpop.f32.mrb[0].mxu0
        %v1261 = vadd.f32 %v434, %v1260
        %v1262 = vpop.f32.mrb[0].mxu0
        %v1263 = vadd.f32 %v438, %v1262
        %1264 = vdwg.mxu0
        %1265 = vmatprep.subr.bf16.mxu0 %v756
        %1266 = vmatpush1.bf16.msra.mxu0 %v755
        %1267 = vmatprep.subr.bf16.mxu0 %v764
        %1268 = vmatpush1.bf16.msra.mxu0 %v763
        %1269 = vmatprep.subr.bf16.mxu0 %v772
        %1270 = vmatpush1.bf16.msra.mxu0 %v771
        %1271 = vmatprep.subr.bf16.mxu0 %v780
        %1272 = vmatpush1.bf16.msra.mxu0 %v779
        %1273 = vmatprep.subr.bf16.mxu0 %v788
        %1274 = vmatpush1.bf16.msra.mxu0 %v787
        %1275 = vmatprep.subr.bf16.mxu0 %v796
        %1276 = vmatpush1.bf16.msra.mxu0 %v795
        %1277 = vmatprep.subr.bf16.mxu0 %v804
        %1278 = vmatpush1.bf16.msra.mxu0 %v803
        %1279 = vmatprep.subr.bf16.mxu0 %v812
        %1280 = vmatpush1.bf16.msra.mxu0 %v811
        %1281 = vmatprep.subr.bf16.mxu0 0
        %1282 = vmatpush1.bf16.msra.mxu0 0
        %1283 = vmatprep.subr.bf16.mxu0 0
        %1284 = vmatpush1.bf16.msra.mxu0 0
        %1285 = vmatprep.subr.bf16.mxu0 0
        %1286 = vmatpush1.bf16.msra.mxu0 0
        %1287 = vmatprep.subr.bf16.mxu0 0
        %1288 = vmatpush1.bf16.msra.mxu0 0
        %1289 = vmatprep.subr.bf16.mxu0 0
        %1290 = vmatpush1.bf16.msra.mxu0 0
        %1291 = vmatprep.subr.bf16.mxu0 0
        %1292 = vmatpush1.bf16.msra.mxu0 0
        %1293 = vmatprep.subr.bf16.mxu0 0
        %1294 = vmatpush1.bf16.msra.mxu0 0
        %1295 = vmatprep.subr.bf16.mxu0 0
        %1296 = vmatpush1.bf16.msra.mxu0 0
        %1297 = vmatprep.mubr.bf16.mxu0 0
        %1298 = vmatmul.mubr.bf16.gmra.mrb[0].mxu0 %v527
        %v1299 = vpop.f32.mrb[0].mxu0
        %v1300 = vadd.f32 %v442, %v1299
        %v1301 = vpop.f32.mrb[0].mxu0
        %v1302 = vadd.f32 %v446, %v1301
        %v1303 = vpop.f32.mrb[0].mxu0
        %v1304 = vadd.f32 %v442, %v1303
        %v1305 = vpop.f32.mrb[0].mxu0
        %v1306 = vadd.f32 %v446, %v1305
        %1307 = vmatprep.mubr.bf16.mxu0 0
        %1308 = vmatmul.mubr.bf16.gmra.mrb[0].mxu0 %v528
        %v1309 = vpop.f32.mrb[0].mxu0
        %v1310 = vadd.f32 %v442, %v1309
        %v1311 = vpop.f32.mrb[0].mxu0
        %v1312 = vadd.f32 %v446, %v1311
        %v1313 = vpop.f32.mrb[0].mxu0
        %v1314 = vadd.f32 %v442, %v1313
        %v1315 = vpop.f32.mrb[0].mxu0
        %v1316 = vadd.f32 %v446, %v1315
        %1317 = vmatprep.mubr.bf16.mxu0 0
        %1318 = vmatmul.mubr.bf16.gmra.mrb[0].mxu0 %v529
        %v1319 = vpop.f32.mrb[0].mxu0
        %v1320 = vadd.f32 %v442, %v1319
        %v1321 = vpop.f32.mrb[0].mxu0
        %v1322 = vadd.f32 %v446, %v1321
        %v1323 = vpop.f32.mrb[0].mxu0
        %v1324 = vadd.f32 %v442, %v1323
        %v1325 = vpop.f32.mrb[0].mxu0
        %v1326 = vadd.f32 %v446, %v1325
        %1327 = vmatprep.mubr.bf16.mxu0 0
        %1328 = vmatmul.mubr.bf16.gmra.mrb[0].mxu0 %v530
        %v1329 = vpop.f32.mrb[0].mxu0
        %v1330 = vadd.f32 %v442, %v1329
        %v1331 = vpop.f32.mrb[0].mxu0
        %v1332 = vadd.f32 %v446, %v1331
        %v1333 = vpop.f32.mrb[0].mxu0
        %v1334 = vadd.f32 %v442, %v1333
        %v1335 = vpop.f32.mrb[0].mxu0
        %v1336 = vadd.f32 %v446, %v1335
        %1337 = vmatprep.mubr.bf16.mxu0 0
        %1338 = vmatmul.mubr.bf16.gmra.mrb[0].mxu0 %v531
        %v1339 = vpop.f32.mrb[0].mxu0
        %v1340 = vadd.f32 %v442, %v1339
        %v1341 = vpop.f32.mrb[0].mxu0
        %v1342 = vadd.f32 %v446, %v1341
        %v1343 = vpop.f32.mrb[0].mxu0
        %v1344 = vadd.f32 %v442, %v1343
        %v1345 = vpop.f32.mrb[0].mxu0
        %v1346 = vadd.f32 %v446, %v1345
        %1347 = vmatprep.mubr.bf16.mxu0 0
        %1348 = vmatmul.mubr.bf16.gmra.mrb[0].mxu0 %v532
        %v1349 = vpop.f32.mrb[0].mxu0
        %v1350 = vadd.f32 %v442, %v1349
        %v1351 = vpop.f32.mrb[0].mxu0
        %v1352 = vadd.f32 %v446, %v1351
        %v1353 = vpop.f32.mrb[0].mxu0
        %v1354 = vadd.f32 %v442, %v1353
        %v1355 = vpop.f32.mrb[0].mxu0
        %v1356 = vadd.f32 %v446, %v1355
        %1357 = vmatprep.mubr.bf16.mxu0 0
        %1358 = vmatmul.mubr.bf16.gmra.mrb[0].mxu0 %v533
        %v1359 = vpop.f32.mrb[0].mxu0
        %v1360 = vadd.f32 %v442, %v1359
        %v1361 = vpop.f32.mrb[0].mxu0
        %v1362 = vadd.f32 %v446, %v1361
        %v1363 = vpop.f32.mrb[0].mxu0
        %v1364 = vadd.f32 %v442, %v1363
        %v1365 = vpop.f32.mrb[0].mxu0
        %v1366 = vadd.f32 %v446, %v1365
        %1367 = vmatprep.mubr.bf16.mxu0 0
        %1368 = vmatmul.mubr.bf16.gmra.mrb[0].mxu0 %v534
        %v1369 = vpop.f32.mrb[0].mxu0
        %v1370 = vadd.f32 %v442, %v1369
        %v1371 = vpop.f32.mrb[0].mxu0
        %v1372 = vadd.f32 %v446, %v1371
        %v1373 = vpop.f32.mrb[0].mxu0
        %v1374 = vadd.f32 %v442, %v1373
        %v1375 = vpop.f32.mrb[0].mxu0
        %v1376 = vadd.f32 %v446, %v1375
        %1377 = vmatprep.mubr.bf16.mxu0 0
        %1378 = vmatmul.mubr.bf16.gmra.mrb[0].mxu0 %v535
        %v1379 = vpop.f32.mrb[0].mxu0
        %v1380 = vadd.f32 %v442, %v1379
        %v1381 = vpop.f32.mrb[0].mxu0
        %v1382 = vadd.f32 %v446, %v1381
        %v1383 = vpop.f32.mrb[0].mxu0
        %v1384 = vadd.f32 %v442, %v1383
        %v1385 = vpop.f32.mrb[0].mxu0
        %v1386 = vadd.f32 %v446, %v1385
        %1387 = vmatprep.mubr.bf16.mxu0 0
        %1388 = vmatmul.mubr.bf16.gmra.mrb[0].mxu0 %v536
        %v1389 = vpop.f32.mrb[0].mxu0
        %v1390 = vadd.f32 %v442, %v1389
        %v1391 = vpop.f32.mrb[0].mxu0
        %v1392 = vadd.f32 %v446, %v1391
        %v1393 = vpop.f32.mrb[0].mxu0
        %v1394 = vadd.f32 %v442, %v1393
        %v1395 = vpop.f32.mrb[0].mxu0
        %v1396 = vadd.f32 %v446, %v1395
        %1397 = vmatprep.mubr.bf16.mxu0 0
        %1398 = vmatmul.mubr.bf16.gmra.mrb[0].mxu0 %v537
        %v1399 = vpop.f32.mrb[0].mxu0
        %v1400 = vadd.f32 %v442, %v1399
        %v1401 = vpop.f32.mrb[0].mxu0
        %v1402 = vadd.f32 %v446, %v1401
        %v1403 = vpop.f32.mrb[0].mxu0
        %v1404 = vadd.f32 %v442, %v1403
        %v1405 = vpop.f32.mrb[0].mxu0
        %v1406 = vadd.f32 %v446, %v1405
        %1407 = vmatprep.mubr.bf16.mxu0 0
        %1408 = vmatmul.mubr.bf16.gmra.mrb[0].mxu0 %v538
        %v1409 = vpop.f32.mrb[0].mxu0
        %v1410 = vadd.f32 %v442, %v1409
        %v1411 = vpop.f32.mrb[0].mxu0
        %v1412 = vadd.f32 %v446, %v1411
        %v1413 = vpop.f32.mrb[0].mxu0
        %v1414 = vadd.f32 %v442, %v1413
        %v1415 = vpop.f32.mrb[0].mxu0
        %v1416 = vadd.f32 %v446, %v1415
        %1417 = vmatprep.mubr.bf16.mxu0 0
        %1418 = vmatmul.mubr.bf16.gmra.mrb[0].mxu0 %v539
        %v1419 = vpop.f32.mrb[0].mxu0
        %v1420 = vadd.f32 %v442, %v1419
        %v1421 = vpop.f32.mrb[0].mxu0
        %v1422 = vadd.f32 %v446, %v1421
        %v1423 = vpop.f32.mrb[0].mxu0
        %v1424 = vadd.f32 %v442, %v1423
        %v1425 = vpop.f32.mrb[0].mxu0
        %v1426 = vadd.f32 %v446, %v1425
        %1427 = vmatprep.mubr.bf16.mxu0 0
        %1428 = vmatmul.mubr.bf16.gmra.mrb[0].mxu0 %v540
        %v1429 = vpop.f32.mrb[0].mxu0
        %v1430 = vadd.f32 %v442, %v1429
        %v1431 = vpop.f32.mrb[0].mxu0
        %v1432 = vadd.f32 %v446, %v1431
        %v1433 = vpop.f32.mrb[0].mxu0
        %v1434 = vadd.f32 %v442, %v1433
        %v1435 = vpop.f32.mrb[0].mxu0
        %v1436 = vadd.f32 %v446, %v1435
        %1437 = vmatprep.mubr.bf16.mxu0 0
        %1438 = vmatmul.mubr.bf16.gmra.mrb[0].mxu0 %v541
        %v1439 = vpop.f32.mrb[0].mxu0
        %v1440 = vadd.f32 %v442, %v1439
        %v1441 = vpop.f32.mrb[0].mxu0
        %v1442 = vadd.f32 %v446, %v1441
        %v1443 = vpop.f32.mrb[0].mxu0
        %v1444 = vadd.f32 %v442, %v1443
        %v1445 = vpop.f32.mrb[0].mxu0
        %v1446 = vadd.f32 %v446, %v1445
        %1447 = vmatprep.mubr.bf16.mxu0 0
        %1448 = vmatmul.mubr.bf16.gmra.mrb[0].mxu0 %v542
        %v1449 = vpop.f32.mrb[0].mxu0
        %v1450 = vadd.f32 %v442, %v1449
        %v1451 = vpop.f32.mrb[0].mxu0
        %v1452 = vadd.f32 %v446, %v1451
        %v1453 = vpop.f32.mrb[0].mxu0
        %v1454 = vadd.f32 %v442, %v1453
        %v1455 = vpop.f32.mrb[0].mxu0
        %v1456 = vadd.f32 %v446, %v1455
        %1457 = vdwg.mxu0
        %1458 = vmatprep.subr.bf16.mxu0 %v758
        %1459 = vmatpush1.bf16.msra.mxu0 %v757
        %1460 = vmatprep.subr.bf16.mxu0 %v766
        %1461 = vmatpush1.bf16.msra.mxu0 %v765
        %1462 = vmatprep.subr.bf16.mxu0 %v774
        %1463 = vmatpush1.bf16.msra.mxu0 %v773
        %1464 = vmatprep.subr.bf16.mxu0 %v782
        %1465 = vmatpush1.bf16.msra.mxu0 %v781
        %1466 = vmatprep.subr.bf16.mxu0 %v790
        %1467 = vmatpush1.bf16.msra.mxu0 %v789
        %1468 = vmatprep.subr.bf16.mxu0 %v798
        %1469 = vmatpush1.bf16.msra.mxu0 %v797
        %1470 = vmatprep.subr.bf16.mxu0 %v806
        %1471 = vmatpush1.bf16.msra.mxu0 %v805
        %1472 = vmatprep.subr.bf16.mxu0 %v814
        %1473 = vmatpush1.bf16.msra.mxu0 %v813
        %1474 = vmatprep.subr.bf16.mxu0 0
        %1475 = vmatpush1.bf16.msra.mxu0 0
        %1476 = vmatprep.subr.bf16.mxu0 0
        %1477 = vmatpush1.bf16.msra.mxu0 0
        %1478 = vmatprep.subr.bf16.mxu0 0
        %1479 = vmatpush1.bf16.msra.mxu0 0
        %1480 = vmatprep.subr.bf16.mxu0 0
        %1481 = vmatpush1.bf16.msra.mxu0 0
        %1482 = vmatprep.subr.bf16.mxu0 0
        %1483 = vmatpush1.bf16.msra.mxu0 0
        %1484 = vmatprep.subr.bf16.mxu0 0
        %1485 = vmatpush1.bf16.msra.mxu0 0
        %1486 = vmatprep.subr.bf16.mxu0 0
        %1487 = vmatpush1.bf16.msra.mxu0 0
        %1488 = vmatprep.subr.bf16.mxu0 0
        %1489 = vmatpush1.bf16.msra.mxu0 0
        %1490 = vmatprep.mubr.bf16.mxu0 0
        %1491 = vmatmul.mubr.bf16.gmra.mrb[0].mxu0 %v527
        %v1492 = vpop.f32.mrb[0].mxu0
        %v1493 = vadd.f32 %v450, %v1492
        %v1494 = vpop.f32.mrb[0].mxu0
        %v1495 = vadd.f32 %v454, %v1494
        %v1496 = vpop.f32.mrb[0].mxu0
        %v1497 = vadd.f32 %v450, %v1496
        %v1498 = vpop.f32.mrb[0].mxu0
        %v1499 = vadd.f32 %v454, %v1498
        %1500 = vmatprep.mubr.bf16.mxu0 0
        %1501 = vmatmul.mubr.bf16.gmra.mrb[0].mxu0 %v528
        %v1502 = vpop.f32.mrb[0].mxu0
        %v1503 = vadd.f32 %v450, %v1502
        %v1504 = vpop.f32.mrb[0].mxu0
        %v1505 = vadd.f32 %v454, %v1504
        %v1506 = vpop.f32.mrb[0].mxu0
        %v1507 = vadd.f32 %v450, %v1506
        %v1508 = vpop.f32.mrb[0].mxu0
        %v1509 = vadd.f32 %v454, %v1508
        %1510 = vmatprep.mubr.bf16.mxu0 0
        %1511 = vmatmul.mubr.bf16.gmra.mrb[0].mxu0 %v529
        %v1512 = vpop.f32.mrb[0].mxu0
        %v1513 = vadd.f32 %v450, %v1512
        %v1514 = vpop.f32.mrb[0].mxu0
        %v1515 = vadd.f32 %v454, %v1514
        %v1516 = vpop.f32.mrb[0].mxu0
        %v1517 = vadd.f32 %v450, %v1516
        %v1518 = vpop.f32.mrb[0].mxu0
        %v1519 = vadd.f32 %v454, %v1518
        %1520 = vmatprep.mubr.bf16.mxu0 0
        %1521 = vmatmul.mubr.bf16.gmra.mrb[0].mxu0 %v530
        %v1522 = vpop.f32.mrb[0].mxu0
        %v1523 = vadd.f32 %v450, %v1522
        %v1524 = vpop.f32.mrb[0].mxu0
        %v1525 = vadd.f32 %v454, %v1524
        %v1526 = vpop.f32.mrb[0].mxu0
        %v1527 = vadd.f32 %v450, %v1526
        %v1528 = vpop.f32.mrb[0].mxu0
        %v1529 = vadd.f32 %v454, %v1528
        %1530 = vmatprep.mubr.bf16.mxu0 0
        %1531 = vmatmul.mubr.bf16.gmra.mrb[0].mxu0 %v531
        %v1532 = vpop.f32.mrb[0].mxu0
        %v1533 = vadd.f32 %v450, %v1532
        %v1534 = vpop.f32.mrb[0].mxu0
        %v1535 = vadd.f32 %v454, %v1534
        %v1536 = vpop.f32.mrb[0].mxu0
        %v1537 = vadd.f32 %v450, %v1536
        %v1538 = vpop.f32.mrb[0].mxu0
        %v1539 = vadd.f32 %v454, %v1538
        %1540 = vmatprep.mubr.bf16.mxu0 0
        %1541 = vmatmul.mubr.bf16.gmra.mrb[0].mxu0 %v532
        %v1542 = vpop.f32.mrb[0].mxu0
        %v1543 = vadd.f32 %v450, %v1542
        %v1544 = vpop.f32.mrb[0].mxu0
        %v1545 = vadd.f32 %v454, %v1544
        %v1546 = vpop.f32.mrb[0].mxu0
        %v1547 = vadd.f32 %v450, %v1546
        %v1548 = vpop.f32.mrb[0].mxu0
        %v1549 = vadd.f32 %v454, %v1548
        %1550 = vmatprep.mubr.bf16.mxu0 0
        %1551 = vmatmul.mubr.bf16.gmra.mrb[0].mxu0 %v533
        %v1552 = vpop.f32.mrb[0].mxu0
        %v1553 = vadd.f32 %v450, %v1552
        %v1554 = vpop.f32.mrb[0].mxu0
        %v1555 = vadd.f32 %v454, %v1554
        %v1556 = vpop.f32.mrb[0].mxu0
        %v1557 = vadd.f32 %v450, %v1556
        %v1558 = vpop.f32.mrb[0].mxu0
        %v1559 = vadd.f32 %v454, %v1558
        %1560 = vmatprep.mubr.bf16.mxu0 0
        %1561 = vmatmul.mubr.bf16.gmra.mrb[0].mxu0 %v534
        %v1562 = vpop.f32.mrb[0].mxu0
        %v1563 = vadd.f32 %v450, %v1562
        %v1564 = vpop.f32.mrb[0].mxu0
        %v1565 = vadd.f32 %v454, %v1564
        %v1566 = vpop.f32.mrb[0].mxu0
        %v1567 = vadd.f32 %v450, %v1566
        %v1568 = vpop.f32.mrb[0].mxu0
        %v1569 = vadd.f32 %v454, %v1568
        %1570 = vmatprep.mubr.bf16.mxu0 0
        %1571 = vmatmul.mubr.bf16.gmra.mrb[0].mxu0 %v535
        %v1572 = vpop.f32.mrb[0].mxu0
        %v1573 = vadd.f32 %v450, %v1572
        %v1574 = vpop.f32.mrb[0].mxu0
        %v1575 = vadd.f32 %v454, %v1574
        %v1576 = vpop.f32.mrb[0].mxu0
        %v1577 = vadd.f32 %v450, %v1576
        %v1578 = vpop.f32.mrb[0].mxu0
        %v1579 = vadd.f32 %v454, %v1578
        %1580 = vmatprep.mubr.bf16.mxu0 0
        %1581 = vmatmul.mubr.bf16.gmra.mrb[0].mxu0 %v536
        %v1582 = vpop.f32.mrb[0].mxu0
        %v1583 = vadd.f32 %v450, %v1582
        %v1584 = vpop.f32.mrb[0].mxu0
        %v1585 = vadd.f32 %v454, %v1584
        %v1586 = vpop.f32.mrb[0].mxu0
        %v1587 = vadd.f32 %v450, %v1586
        %v1588 = vpop.f32.mrb[0].mxu0
        %v1589 = vadd.f32 %v454, %v1588
        %1590 = vmatprep.mubr.bf16.mxu0 0
        %1591 = vmatmul.mubr.bf16.gmra.mrb[0].mxu0 %v537
        %v1592 = vpop.f32.mrb[0].mxu0
        %v1593 = vadd.f32 %v450, %v1592
        %v1594 = vpop.f32.mrb[0].mxu0
        %v1595 = vadd.f32 %v454, %v1594
        %v1596 = vpop.f32.mrb[0].mxu0
        %v1597 = vadd.f32 %v450, %v1596
        %v1598 = vpop.f32.mrb[0].mxu0
        %v1599 = vadd.f32 %v454, %v1598
        %1600 = vmatprep.mubr.bf16.mxu0 0
        %1601 = vmatmul.mubr.bf16.gmra.mrb[0].mxu0 %v538
        %v1602 = vpop.f32.mrb[0].mxu0
        %v1603 = vadd.f32 %v450, %v1602
        %v1604 = vpop.f32.mrb[0].mxu0
        %v1605 = vadd.f32 %v454, %v1604
        %v1606 = vpop.f32.mrb[0].mxu0
        %v1607 = vadd.f32 %v450, %v1606
        %v1608 = vpop.f32.mrb[0].mxu0
        %v1609 = vadd.f32 %v454, %v1608
        %1610 = vmatprep.mubr.bf16.mxu0 0
        %1611 = vmatmul.mubr.bf16.gmra.mrb[0].mxu0 %v539
        %v1612 = vpop.f32.mrb[0].mxu0
        %v1613 = vadd.f32 %v450, %v1612
        %v1614 = vpop.f32.mrb[0].mxu0
        %v1615 = vadd.f32 %v454, %v1614
        %v1616 = vpop.f32.mrb[0].mxu0
        %v1617 = vadd.f32 %v450, %v1616
        %v1618 = vpop.f32.mrb[0].mxu0
        %v1619 = vadd.f32 %v454, %v1618
        %1620 = vmatprep.mubr.bf16.mxu0 0
        %1621 = vmatmul.mubr.bf16.gmra.mrb[0].mxu0 %v540
        %v1622 = vpop.f32.mrb[0].mxu0
        %v1623 = vadd.f32 %v450, %v1622
        %v1624 = vpop.f32.mrb[0].mxu0
        %v1625 = vadd.f32 %v454, %v1624
        %v1626 = vpop.f32.mrb[0].mxu0
        %v1627 = vadd.f32 %v450, %v1626
        %v1628 = vpop.f32.mrb[0].mxu0
        %v1629 = vadd.f32 %v454, %v1628
        %1630 = vmatprep.mubr.bf16.mxu0 0
        %1631 = vmatmul.mubr.bf16.gmra.mrb[0].mxu0 %v541
        %v1632 = vpop.f32.mrb[0].mxu0
        %v1633 = vadd.f32 %v450, %v1632
        %v1634 = vpop.f32.mrb[0].mxu0
        %v1635 = vadd.f32 %v454, %v1634
        %v1636 = vpop.f32.mrb[0].mxu0
        %v1637 = vadd.f32 %v450, %v1636
        %v1638 = vpop.f32.mrb[0].mxu0
        %v1639 = vadd.f32 %v454, %v1638
        %1640 = vmatprep.mubr.bf16.mxu0 0
        %1641 = vmatmul.mubr.bf16.gmra.mrb[0].mxu0 %v542
        %v1642 = vpop.f32.mrb[0].mxu0
        %v1643 = vadd.f32 %v450, %v1642
        %v1644 = vpop.f32.mrb[0].mxu0
        %v1645 = vadd.f32 %v454, %v1644
        %v1646 = vpop.f32.mrb[0].mxu0
        %v1647 = vadd.f32 %v450, %v1646
        %v1648 = vpop.f32.mrb[0].mxu0
        %v1649 = vadd.f32 %v454, %v1648
        %1650 = vdwg.mxu0
        %v1651 = vpack.c.bf16 %v918, %v914
        %v1652 = vpack.c.bf16 %v920, %v916
        %v1653 = vpack.c.bf16 %v1111, %v1107
        %v1654 = vpack.c.bf16 %v1113, %v1109
        %v1655 = vpack.c.bf16 %v1304, %v1300
        %v1656 = vpack.c.bf16 %v1306, %v1302
        %v1657 = vpack.c.bf16 %v1497, %v1493
        %v1658 = vpack.c.bf16 %v1499, %v1495
        %v1659 = vpack.c.bf16 %v928, %v924
        %v1660 = vpack.c.bf16 %v930, %v926
        %v1661 = vpack.c.bf16 %v1121, %v1117
        %v1662 = vpack.c.bf16 %v1123, %v1119
        %v1663 = vpack.c.bf16 %v1314, %v1310
        %v1664 = vpack.c.bf16 %v1316, %v1312
        %v1665 = vpack.c.bf16 %v1507, %v1503
        %v1666 = vpack.c.bf16 %v1509, %v1505
        %v1667 = vpack.c.bf16 %v938, %v934
        %v1668 = vpack.c.bf16 %v940, %v936
        %v1669 = vpack.c.bf16 %v1131, %v1127
        %v1670 = vpack.c.bf16 %v1133, %v1129
        %v1671 = vpack.c.bf16 %v1324, %v1320
        %v1672 = vpack.c.bf16 %v1326, %v1322
        %v1673 = vpack.c.bf16 %v1517, %v1513
        %v1674 = vpack.c.bf16 %v1519, %v1515
        %v1675 = vpack.c.bf16 %v948, %v944
        %v1676 = vpack.c.bf16 %v950, %v946
        %v1677 = vpack.c.bf16 %v1141, %v1137
        %v1678 = vpack.c.bf16 %v1143, %v1139
        %v1679 = vpack.c.bf16 %v1334, %v1330
        %v1680 = vpack.c.bf16 %v1336, %v1332
        %v1681 = vpack.c.bf16 %v1527, %v1523
        %v1682 = vpack.c.bf16 %v1529, %v1525
        %v1683 = vpack.c.bf16 %v958, %v954
        %v1684 = vpack.c.bf16 %v960, %v956
        %v1685 = vpack.c.bf16 %v1151, %v1147
        %v1686 = vpack.c.bf16 %v1153, %v1149
        %v1687 = vpack.c.bf16 %v1344, %v1340
        %v1688 = vpack.c.bf16 %v1346, %v1342
        %v1689 = vpack.c.bf16 %v1537, %v1533
        %v1690 = vpack.c.bf16 %v1539, %v1535
        %v1691 = vpack.c.bf16 %v968, %v964
        %v1692 = vpack.c.bf16 %v970, %v966
        %v1693 = vpack.c.bf16 %v1161, %v1157
        %v1694 = vpack.c.bf16 %v1163, %v1159
        %v1695 = vpack.c.bf16 %v1354, %v1350
        %v1696 = vpack.c.bf16 %v1356, %v1352
        %v1697 = vpack.c.bf16 %v1547, %v1543
        %v1698 = vpack.c.bf16 %v1549, %v1545
        %v1699 = vpack.c.bf16 %v978, %v974
        %v1700 = vpack.c.bf16 %v980, %v976
        %v1701 = vpack.c.bf16 %v1171, %v1167
        %v1702 = vpack.c.bf16 %v1173, %v1169
        %v1703 = vpack.c.bf16 %v1364, %v1360
        %v1704 = vpack.c.bf16 %v1366, %v1362
        %v1705 = vpack.c.bf16 %v1557, %v1553
        %v1706 = vpack.c.bf16 %v1559, %v1555
        %v1707 = vpack.c.bf16 %v988, %v984
        %v1708 = vpack.c.bf16 %v990, %v986
        %v1709 = vpack.c.bf16 %v1181, %v1177
        %v1710 = vpack.c.bf16 %v1183, %v1179
        %v1711 = vpack.c.bf16 %v1374, %v1370
        %v1712 = vpack.c.bf16 %v1376, %v1372
        %v1713 = vpack.c.bf16 %v1567, %v1563
        %v1714 = vpack.c.bf16 %v1569, %v1565
        %v1715 = vpack.c.bf16 %v998, %v994
        %v1716 = vpack.c.bf16 %v1000, %v996
        %v1717 = vpack.c.bf16 %v1191, %v1187
        %v1718 = vpack.c.bf16 %v1193, %v1189
        %v1719 = vpack.c.bf16 %v1384, %v1380
        %v1720 = vpack.c.bf16 %v1386, %v1382
        %v1721 = vpack.c.bf16 %v1577, %v1573
        %v1722 = vpack.c.bf16 %v1579, %v1575
        %v1723 = vpack.c.bf16 %v1008, %v1004
        %v1724 = vpack.c.bf16 %v1010, %v1006
        %v1725 = vpack.c.bf16 %v1201, %v1197
        %v1726 = vpack.c.bf16 %v1203, %v1199
        %v1727 = vpack.c.bf16 %v1394, %v1390
        %v1728 = vpack.c.bf16 %v1396, %v1392
        %v1729 = vpack.c.bf16 %v1587, %v1583
        %v1730 = vpack.c.bf16 %v1589, %v1585
        %v1731 = vpack.c.bf16 %v1018, %v1014
        %v1732 = vpack.c.bf16 %v1020, %v1016
        %v1733 = vpack.c.bf16 %v1211, %v1207
        %v1734 = vpack.c.bf16 %v1213, %v1209
        %v1735 = vpack.c.bf16 %v1404, %v1400
        %v1736 = vpack.c.bf16 %v1406, %v1402
        %v1737 = vpack.c.bf16 %v1597, %v1593
        %v1738 = vpack.c.bf16 %v1599, %v1595
        %v1739 = vpack.c.bf16 %v1028, %v1024
        %v1740 = vpack.c.bf16 %v1030, %v1026
        %v1741 = vpack.c.bf16 %v1221, %v1217
        %v1742 = vpack.c.bf16 %v1223, %v1219
        %v1743 = vpack.c.bf16 %v1414, %v1410
        %v1744 = vpack.c.bf16 %v1416, %v1412
        %v1745 = vpack.c.bf16 %v1607, %v1603
        %v1746 = vpack.c.bf16 %v1609, %v1605
        %v1747 = vpack.c.bf16 %v1038, %v1034
        %v1748 = vpack.c.bf16 %v1040, %v1036
        %v1749 = vpack.c.bf16 %v1231, %v1227
        %v1750 = vpack.c.bf16 %v1233, %v1229
        %v1751 = vpack.c.bf16 %v1424, %v1420
        %v1752 = vpack.c.bf16 %v1426, %v1422
        %v1753 = vpack.c.bf16 %v1617, %v1613
        %v1754 = vpack.c.bf16 %v1619, %v1615
        %v1755 = vpack.c.bf16 %v1048, %v1044
        %v1756 = vpack.c.bf16 %v1050, %v1046
        %v1757 = vpack.c.bf16 %v1241, %v1237
        %v1758 = vpack.c.bf16 %v1243, %v1239
        %v1759 = vpack.c.bf16 %v1434, %v1430
        %v1760 = vpack.c.bf16 %v1436, %v1432
        %v1761 = vpack.c.bf16 %v1627, %v1623
        %v1762 = vpack.c.bf16 %v1629, %v1625
        %v1763 = vpack.c.bf16 %v1058, %v1054
        %v1764 = vpack.c.bf16 %v1060, %v1056
        %v1765 = vpack.c.bf16 %v1251, %v1247
        %v1766 = vpack.c.bf16 %v1253, %v1249
        %v1767 = vpack.c.bf16 %v1444, %v1440
        %v1768 = vpack.c.bf16 %v1446, %v1442
        %v1769 = vpack.c.bf16 %v1637, %v1633
        %v1770 = vpack.c.bf16 %v1639, %v1635
        %v1771 = vpack.c.bf16 %v1068, %v1064
        %v1772 = vpack.c.bf16 %v1070, %v1066
        %v1773 = vpack.c.bf16 %v1261, %v1257
        %v1774 = vpack.c.bf16 %v1263, %v1259
        %v1775 = vpack.c.bf16 %v1454, %v1450
        %v1776 = vpack.c.bf16 %v1456, %v1452
        %v1777 = vpack.c.bf16 %v1647, %v1643
        %v1778 = vpack.c.bf16 %v1649, %v1645
        %s1779 = smul.u32 0, 8
        %s1780 = smul.addr %s1779, 8
        %s1781 = scalar_lea.vmem [#allocation2], %s1780
        %1782 = vst [vmem:[%s1781] sm:$0xff] %v1651
        %1783 = vst [vmem:[%s1781 + $0x8] sm:$0xff] %v1652
        %1784 = vst [vmem:[%s1781 + $0x10] sm:$0xff] %v1653
        %1785 = vst [vmem:[%s1781 + $0x18] sm:$0xff] %v1654
        %1786 = vst [vmem:[%s1781 + $0x20] sm:$0xff] %v1655
        %1787 = vst [vmem:[%s1781 + $0x28] sm:$0xff] %v1656
        %1788 = vst [vmem:[%s1781 + $0x30] sm:$0xff] %v1657
        %1789 = vst [vmem:[%s1781 + $0x38] sm:$0xff] %v1658
        %1790 = vst [vmem:[%s1781 + $0x40] sm:$0xff] %v1659
        %1791 = vst [vmem:[%s1781 + $0x48] sm:$0xff] %v1660
        %1792 = vst [vmem:[%s1781 + $0x50] sm:$0xff] %v1661
        %1793 = vst [vmem:[%s1781 + $0x58] sm:$0xff] %v1662
        %1794 = vst [vmem:[%s1781 + $0x60] sm:$0xff] %v1663
        %1795 = vst [vmem:[%s1781 + $0x68] sm:$0xff] %v1664
        %1796 = vst [vmem:[%s1781 + $0x70] sm:$0xff] %v1665
        %1797 = vst [vmem:[%s1781 + $0x78] sm:$0xff] %v1666
        %1798 = vst [vmem:[%s1781 + $0x80] sm:$0xff] %v1667
        %1799 = vst [vmem:[%s1781 + $0x88] sm:$0xff] %v1668
        %1800 = vst [vmem:[%s1781 + $0x90] sm:$0xff] %v1669
        %1801 = vst [vmem:[%s1781 + $0x98] sm:$0xff] %v1670
        %1802 = vst [vmem:[%s1781 + $0xa0] sm:$0xff] %v1671
        %1803 = vst [vmem:[%s1781 + $0xa8] sm:$0xff] %v1672
        %1804 = vst [vmem:[%s1781 + $0xb0] sm:$0xff] %v1673
        %1805 = vst [vmem:[%s1781 + $0xb8] sm:$0xff] %v1674
        %1806 = vst [vmem:[%s1781 + $0xc0] sm:$0xff] %v1675
        %1807 = vst [vmem:[%s1781 + $0xc8] sm:$0xff] %v1676
        %1808 = vst [vmem:[%s1781 + $0xd0] sm:$0xff] %v1677
        %1809 = vst [vmem:[%s1781 + $0xd8] sm:$0xff] %v1678
        %1810 = vst [vmem:[%s1781 + $0xe0] sm:$0xff] %v1679
        %1811 = vst [vmem:[%s1781 + $0xe8] sm:$0xff] %v1680
        %1812 = vst [vmem:[%s1781 + $0xf0] sm:$0xff] %v1681
        %1813 = vst [vmem:[%s1781 + $0xf8] sm:$0xff] %v1682
        %1814 = vst [vmem:[%s1781 + $0x100] sm:$0xff] %v1683
        %1815 = vst [vmem:[%s1781 + $0x108] sm:$0xff] %v1684
        %1816 = vst [vmem:[%s1781 + $0x110] sm:$0xff] %v1685
        %1817 = vst [vmem:[%s1781 + $0x118] sm:$0xff] %v1686
        %1818 = vst [vmem:[%s1781 + $0x120] sm:$0xff] %v1687
        %1819 = vst [vmem:[%s1781 + $0x128] sm:$0xff] %v1688
        %1820 = vst [vmem:[%s1781 + $0x130] sm:$0xff] %v1689
        %1821 = vst [vmem:[%s1781 + $0x138] sm:$0xff] %v1690
        %1822 = vst [vmem:[%s1781 + $0x140] sm:$0xff] %v1691
        %1823 = vst [vmem:[%s1781 + $0x148] sm:$0xff] %v1692
        %1824 = vst [vmem:[%s1781 + $0x150] sm:$0xff] %v1693
        %1825 = vst [vmem:[%s1781 + $0x158] sm:$0xff] %v1694
        %1826 = vst [vmem:[%s1781 + $0x160] sm:$0xff] %v1695
        %1827 = vst [vmem:[%s1781 + $0x168] sm:$0xff] %v1696
        %1828 = vst [vmem:[%s1781 + $0x170] sm:$0xff] %v1697
        %1829 = vst [vmem:[%s1781 + $0x178] sm:$0xff] %v1698
        %1830 = vst [vmem:[%s1781 + $0x180] sm:$0xff] %v1699
        %1831 = vst [vmem:[%s1781 + $0x188] sm:$0xff] %v1700
        %1832 = vst [vmem:[%s1781 + $0x190] sm:$0xff] %v1701
        %1833 = vst [vmem:[%s1781 + $0x198] sm:$0xff] %v1702
        %1834 = vst [vmem:[%s1781 + $0x1a0] sm:$0xff] %v1703
        %1835 = vst [vmem:[%s1781 + $0x1a8] sm:$0xff] %v1704
        %1836 = vst [vmem:[%s1781 + $0x1b0] sm:$0xff] %v1705
        %1837 = vst [vmem:[%s1781 + $0x1b8] sm:$0xff] %v1706
        %1838 = vst [vmem:[%s1781 + $0x1c0] sm:$0xff] %v1707
        %1839 = vst [vmem:[%s1781 + $0x1c8] sm:$0xff] %v1708
        %1840 = vst [vmem:[%s1781 + $0x1d0] sm:$0xff] %v1709
        %1841 = vst [vmem:[%s1781 + $0x1d8] sm:$0xff] %v1710
        %1842 = vst [vmem:[%s1781 + $0x1e0] sm:$0xff] %v1711
        %1843 = vst [vmem:[%s1781 + $0x1e8] sm:$0xff] %v1712
        %1844 = vst [vmem:[%s1781 + $0x1f0] sm:$0xff] %v1713
        %1845 = vst [vmem:[%s1781 + $0x1f8] sm:$0xff] %v1714
        %1846 = vst [vmem:[%s1781 + $0x200] sm:$0xff] %v1715
        %1847 = vst [vmem:[%s1781 + $0x208] sm:$0xff] %v1716
        %1848 = vst [vmem:[%s1781 + $0x210] sm:$0xff] %v1717
        %1849 = vst [vmem:[%s1781 + $0x218] sm:$0xff] %v1718
        %1850 = vst [vmem:[%s1781 + $0x220] sm:$0xff] %v1719
        %1851 = vst [vmem:[%s1781 + $0x228] sm:$0xff] %v1720
        %1852 = vst [vmem:[%s1781 + $0x230] sm:$0xff] %v1721
        %1853 = vst [vmem:[%s1781 + $0x238] sm:$0xff] %v1722
        %1854 = vst [vmem:[%s1781 + $0x240] sm:$0xff] %v1723
        %1855 = vst [vmem:[%s1781 + $0x248] sm:$0xff] %v1724
        %1856 = vst [vmem:[%s1781 + $0x250] sm:$0xff] %v1725
        %1857 = vst [vmem:[%s1781 + $0x258] sm:$0xff] %v1726
        %1858 = vst [vmem:[%s1781 + $0x260] sm:$0xff] %v1727
        %1859 = vst [vmem:[%s1781 + $0x268] sm:$0xff] %v1728
        %1860 = vst [vmem:[%s1781 + $0x270] sm:$0xff] %v1729
        %1861 = vst [vmem:[%s1781 + $0x278] sm:$0xff] %v1730
        %1862 = vst [vmem:[%s1781 + $0x280] sm:$0xff] %v1731
        %1863 = vst [vmem:[%s1781 + $0x288] sm:$0xff] %v1732
        %1864 = vst [vmem:[%s1781 + $0x290] sm:$0xff] %v1733
        %1865 = vst [vmem:[%s1781 + $0x298] sm:$0xff] %v1734
        %1866 = vst [vmem:[%s1781 + $0x2a0] sm:$0xff] %v1735
        %1867 = vst [vmem:[%s1781 + $0x2a8] sm:$0xff] %v1736
        %1868 = vst [vmem:[%s1781 + $0x2b0] sm:$0xff] %v1737
        %1869 = vst [vmem:[%s1781 + $0x2b8] sm:$0xff] %v1738
        %1870 = vst [vmem:[%s1781 + $0x2c0] sm:$0xff] %v1739
        %1871 = vst [vmem:[%s1781 + $0x2c8] sm:$0xff] %v1740
        %1872 = vst [vmem:[%s1781 + $0x2d0] sm:$0xff] %v1741
        %1873 = vst [vmem:[%s1781 + $0x2d8] sm:$0xff] %v1742
        %1874 = vst [vmem:[%s1781 + $0x2e0] sm:$0xff] %v1743
        %1875 = vst [vmem:[%s1781 + $0x2e8] sm:$0xff] %v1744
        %1876 = vst [vmem:[%s1781 + $0x2f0] sm:$0xff] %v1745
        %1877 = vst [vmem:[%s1781 + $0x2f8] sm:$0xff] %v1746
        %1878 = vst [vmem:[%s1781 + $0x300] sm:$0xff] %v1747
        %1879 = vst [vmem:[%s1781 + $0x308] sm:$0xff] %v1748
        %1880 = vst [vmem:[%s1781 + $0x310] sm:$0xff] %v1749
        %1881 = vst [vmem:[%s1781 + $0x318] sm:$0xff] %v1750
        %1882 = vst [vmem:[%s1781 + $0x320] sm:$0xff] %v1751
        %1883 = vst [vmem:[%s1781 + $0x328] sm:$0xff] %v1752
        %1884 = vst [vmem:[%s1781 + $0x330] sm:$0xff] %v1753
        %1885 = vst [vmem:[%s1781 + $0x338] sm:$0xff] %v1754
        %1886 = vst [vmem:[%s1781 + $0x340] sm:$0xff] %v1755
        %1887 = vst [vmem:[%s1781 + $0x348] sm:$0xff] %v1756
        %1888 = vst [vmem:[%s1781 + $0x350] sm:$0xff] %v1757
        %1889 = vst [vmem:[%s1781 + $0x358] sm:$0xff] %v1758
        %1890 = vst [vmem:[%s1781 + $0x360] sm:$0xff] %v1759
        %1891 = vst [vmem:[%s1781 + $0x368] sm:$0xff] %v1760
        %1892 = vst [vmem:[%s1781 + $0x370] sm:$0xff] %v1761
        %1893 = vst [vmem:[%s1781 + $0x378] sm:$0xff] %v1762
        %1894 = vst [vmem:[%s1781 + $0x380] sm:$0xff] %v1763
        %1895 = vst [vmem:[%s1781 + $0x388] sm:$0xff] %v1764
        %1896 = vst [vmem:[%s1781 + $0x390] sm:$0xff] %v1765
        %1897 = vst [vmem:[%s1781 + $0x398] sm:$0xff] %v1766
        %1898 = vst [vmem:[%s1781 + $0x3a0] sm:$0xff] %v1767
        %1899 = vst [vmem:[%s1781 + $0x3a8] sm:$0xff] %v1768
        %1900 = vst [vmem:[%s1781 + $0x3b0] sm:$0xff] %v1769
        %1901 = vst [vmem:[%s1781 + $0x3b8] sm:$0xff] %v1770
        %1902 = vst [vmem:[%s1781 + $0x3c0] sm:$0xff] %v1771
        %1903 = vst [vmem:[%s1781 + $0x3c8] sm:$0xff] %v1772
        %1904 = vst [vmem:[%s1781 + $0x3d0] sm:$0xff] %v1773
        %1905 = vst [vmem:[%s1781 + $0x3d8] sm:$0xff] %v1774
        %1906 = vst [vmem:[%s1781 + $0x3e0] sm:$0xff] %v1775
        %1907 = vst [vmem:[%s1781 + $0x3e8] sm:$0xff] %v1776
        %1908 = vst [vmem:[%s1781 + $0x3f0] sm:$0xff] %v1777
        %1909 = vst [vmem:[%s1781 + $0x3f8] sm:$0xff] %v1778
        %v1910 = vld [vmem:[%s317] sm:$0xff]
        %v1911 = vld [vmem:[%s317 + $0x8] sm:$0xff]
        %v1912 = vld [vmem:[#allocation2] sm:$0xff]
        %v1913 = vld [vmem:[#allocation2 + $0x8] sm:$0xff]
        %v1914 = vld [vmem:[#allocation2 + $0x10] sm:$0xff]
        %v1915 = vld [vmem:[#allocation2 + $0x18] sm:$0xff]
        %s1916 = scalar_lea.vmem [#allocation2], 960
        %v1917 = vld [vmem:[%s1916 + $0x20] sm:$0xff]
        %v1918 = vld [vmem:[%s1916 + $0x28] sm:$0xff]
        %v1919 = vld [vmem:[%s1916 + $0x30] sm:$0xff]
        %v1920 = vld [vmem:[%s1916 + $0x38] sm:$0xff]
        %v1921 = vpack.c.bf16 0.0, 0.0
        %v1922 = vld [vmem:[#allocation8] sm:$0xff]
        %v1923 = vld [vmem:[#allocation8 + $0x8] sm:$0xff]
        %v1924 = vld [vmem:[#allocation8 + $0x10] sm:$0xff]
        %v1925 = vld [vmem:[#allocation8 + $0x18] sm:$0xff]
        %v1926 = vld [vmem:[#allocation8 + $0x20] sm:$0xff]
        %v1927 = vld [vmem:[#allocation8 + $0x28] sm:$0xff]
        %v1928 = vld [vmem:[#allocation8 + $0x30] sm:$0xff]
        %v1929 = vld [vmem:[#allocation8 + $0x38] sm:$0xff]
        %v1930 = vld [vmem:[#allocation8 + $0x40] sm:$0xff]
        %v1931 = vld [vmem:[#allocation8 + $0x48] sm:$0xff]
        %v1932 = vld [vmem:[#allocation8 + $0x50] sm:$0xff]
        %v1933 = vld [vmem:[#allocation8 + $0x58] sm:$0xff]
        %v1934 = vld [vmem:[#allocation8 + $0x60] sm:$0xff]
        %v1935 = vld [vmem:[#allocation8 + $0x68] sm:$0xff]
        %v1936 = vld [vmem:[#allocation8 + $0x70] sm:$0xff]
        %v1937 = vld [vmem:[#allocation8 + $0x78] sm:$0xff]
        %v1938 = vld [vmem:[#allocation8 + $0x80] sm:$0xff]
        %v1939 = vld [vmem:[#allocation8 + $0x88] sm:$0xff]
        %v1940 = vld [vmem:[#allocation8 + $0x90] sm:$0xff]
        %v1941 = vld [vmem:[#allocation8 + $0x98] sm:$0xff]
        %v1942 = vld [vmem:[#allocation8 + $0xa0] sm:$0xff]
        %v1943 = vld [vmem:[#allocation8 + $0xa8] sm:$0xff]
        %v1944 = vld [vmem:[#allocation8 + $0xb0] sm:$0xff]
        %v1945 = vld [vmem:[#allocation8 + $0xb8] sm:$0xff]
        %v1946 = vld [vmem:[#allocation8 + $0xc0] sm:$0xff]
        %v1947 = vld [vmem:[#allocation8 + $0xc8] sm:$0xff]
        %v1948 = vld [vmem:[#allocation8 + $0xd0] sm:$0xff]
        %v1949 = vld [vmem:[#allocation8 + $0xd8] sm:$0xff]
        %v1950 = vld [vmem:[#allocation8 + $0xe0] sm:$0xff]
        %v1951 = vld [vmem:[#allocation8 + $0xe8] sm:$0xff]
        %v1952 = vld [vmem:[#allocation8 + $0xf0] sm:$0xff]
        %v1953 = vld [vmem:[#allocation8 + $0xf8] sm:$0xff]
        %v1954 = vld [vmem:[#allocation8 + $0x100] sm:$0xff]
        %v1955 = vld [vmem:[#allocation8 + $0x108] sm:$0xff]
        %v1956 = vld [vmem:[#allocation8 + $0x110] sm:$0xff]
        %v1957 = vld [vmem:[#allocation8 + $0x118] sm:$0xff]
        %v1958 = vld [vmem:[#allocation8 + $0x120] sm:$0xff]
        %v1959 = vld [vmem:[#allocation8 + $0x128] sm:$0xff]
        %v1960 = vld [vmem:[#allocation8 + $0x130] sm:$0xff]
        %v1961 = vld [vmem:[#allocation8 + $0x138] sm:$0xff]
        %v1962 = vld [vmem:[#allocation8 + $0x140] sm:$0xff]
        %v1963 = vld [vmem:[#allocation8 + $0x148] sm:$0xff]
        %v1964 = vld [vmem:[#allocation8 + $0x150] sm:$0xff]
        %v1965 = vld [vmem:[#allocation8 + $0x158] sm:$0xff]
        %v1966 = vld [vmem:[#allocation8 + $0x160] sm:$0xff]
        %v1967 = vld [vmem:[#allocation8 + $0x168] sm:$0xff]
        %v1968 = vld [vmem:[#allocation8 + $0x170] sm:$0xff]
        %v1969 = vld [vmem:[#allocation8 + $0x178] sm:$0xff]
        %v1970 = vld [vmem:[#allocation8 + $0x180] sm:$0xff]
        %v1971 = vld [vmem:[#allocation8 + $0x188] sm:$0xff]
        %v1972 = vld [vmem:[#allocation8 + $0x190] sm:$0xff]
        %v1973 = vld [vmem:[#allocation8 + $0x198] sm:$0xff]
        %v1974 = vld [vmem:[#allocation8 + $0x1a0] sm:$0xff]
        %v1975 = vld [vmem:[#allocation8 + $0x1a8] sm:$0xff]
        %v1976 = vld [vmem:[#allocation8 + $0x1b0] sm:$0xff]
        %v1977 = vld [vmem:[#allocation8 + $0x1b8] sm:$0xff]
        %v1978 = vld [vmem:[#allocation8 + $0x1c0] sm:$0xff]
        %v1979 = vld [vmem:[#allocation8 + $0x1c8] sm:$0xff]
        %v1980 = vld [vmem:[#allocation8 + $0x1d0] sm:$0xff]
        %v1981 = vld [vmem:[#allocation8 + $0x1d8] sm:$0xff]
        %v1982 = vld [vmem:[#allocation8 + $0x1e0] sm:$0xff]
        %v1983 = vld [vmem:[#allocation8 + $0x1e8] sm:$0xff]
        %v1984 = vld [vmem:[#allocation8 + $0x1f0] sm:$0xff]
        %v1985 = vld [vmem:[#allocation8 + $0x1f8] sm:$0xff]
        %v1986 = vld [vmem:[#allocation8 + $0x200] sm:$0xff]
        %v1987 = vld [vmem:[#allocation8 + $0x208] sm:$0xff]
        %v1988 = vld [vmem:[#allocation8 + $0x210] sm:$0xff]
        %v1989 = vld [vmem:[#allocation8 + $0x218] sm:$0xff]
        %v1990 = vld [vmem:[#allocation8 + $0x220] sm:$0xff]
        %v1991 = vld [vmem:[#allocation8 + $0x228] sm:$0xff]
        %v1992 = vld [vmem:[#allocation8 + $0x230] sm:$0xff]
        %v1993 = vld [vmem:[#allocation8 + $0x238] sm:$0xff]
        %v1994 = vld [vmem:[#allocation8 + $0x240] sm:$0xff]
        %v1995 = vld [vmem:[#allocation8 + $0x248] sm:$0xff]
        %v1996 = vld [vmem:[#allocation8 + $0x250] sm:$0xff]
        %v1997 = vld [vmem:[#allocation8 + $0x258] sm:$0xff]
        %v1998 = vld [vmem:[#allocation8 + $0x260] sm:$0xff]
        %v1999 = vld [vmem:[#allocation8 + $0x268] sm:$0xff]
        %v2000 = vld [vmem:[#allocation8 + $0x270] sm:$0xff]
        %v2001 = vld [vmem:[#allocation8 + $0x278] sm:$0xff]
        %v2002 = vld [vmem:[#allocation8 + $0x280] sm:$0xff]
        %v2003 = vld [vmem:[#allocation8 + $0x288] sm:$0xff]
        %v2004 = vld [vmem:[#allocation8 + $0x290] sm:$0xff]
        %v2005 = vld [vmem:[#allocation8 + $0x298] sm:$0xff]
        %v2006 = vld [vmem:[#allocation8 + $0x2a0] sm:$0xff]
        %v2007 = vld [vmem:[#allocation8 + $0x2a8] sm:$0xff]
        %v2008 = vld [vmem:[#allocation8 + $0x2b0] sm:$0xff]
        %v2009 = vld [vmem:[#allocation8 + $0x2b8] sm:$0xff]
        %v2010 = vld [vmem:[#allocation8 + $0x2c0] sm:$0xff]
        %v2011 = vld [vmem:[#allocation8 + $0x2c8] sm:$0xff]
        %v2012 = vld [vmem:[#allocation8 + $0x2d0] sm:$0xff]
        %v2013 = vld [vmem:[#allocation8 + $0x2d8] sm:$0xff]
        %v2014 = vld [vmem:[#allocation8 + $0x2e0] sm:$0xff]
        %v2015 = vld [vmem:[#allocation8 + $0x2e8] sm:$0xff]
        %v2016 = vld [vmem:[#allocation8 + $0x2f0] sm:$0xff]
        %v2017 = vld [vmem:[#allocation8 + $0x2f8] sm:$0xff]
        %v2018 = vld [vmem:[#allocation8 + $0x300] sm:$0xff]
        %v2019 = vld [vmem:[#allocation8 + $0x308] sm:$0xff]
        %v2020 = vld [vmem:[#allocation8 + $0x310] sm:$0xff]
        %v2021 = vld [vmem:[#allocation8 + $0x318] sm:$0xff]
        %v2022 = vld [vmem:[#allocation8 + $0x320] sm:$0xff]
        %v2023 = vld [vmem:[#allocation8 + $0x328] sm:$0xff]
        %v2024 = vld [vmem:[#allocation8 + $0x330] sm:$0xff]
        %v2025 = vld [vmem:[#allocation8 + $0x338] sm:$0xff]
        %v2026 = vld [vmem:[#allocation8 + $0x340] sm:$0xff]
        %v2027 = vld [vmem:[#allocation8 + $0x348] sm:$0xff]
        %v2028 = vld [vmem:[#allocation8 + $0x350] sm:$0xff]
        %v2029 = vld [vmem:[#allocation8 + $0x358] sm:$0xff]
        %v2030 = vld [vmem:[#allocation8 + $0x360] sm:$0xff]
        %v2031 = vld [vmem:[#allocation8 + $0x368] sm:$0xff]
        %v2032 = vld [vmem:[#allocation8 + $0x370] sm:$0xff]
        %v2033 = vld [vmem:[#allocation8 + $0x378] sm:$0xff]
        %v2034 = vld [vmem:[#allocation8 + $0x380] sm:$0xff]
        %v2035 = vld [vmem:[#allocation8 + $0x388] sm:$0xff]
        %v2036 = vld [vmem:[#allocation8 + $0x390] sm:$0xff]
        %v2037 = vld [vmem:[#allocation8 + $0x398] sm:$0xff]
        %v2038 = vld [vmem:[#allocation8 + $0x3a0] sm:$0xff]
        %v2039 = vld [vmem:[#allocation8 + $0x3a8] sm:$0xff]
        %v2040 = vld [vmem:[#allocation8 + $0x3b0] sm:$0xff]
        %v2041 = vld [vmem:[#allocation8 + $0x3b8] sm:$0xff]
        %v2042 = vld [vmem:[#allocation8 + $0x3c0] sm:$0xff]
        %v2043 = vld [vmem:[#allocation8 + $0x3c8] sm:$0xff]
        %v2044 = vld [vmem:[#allocation8 + $0x3d0] sm:$0xff]
        %v2045 = vld [vmem:[#allocation8 + $0x3d8] sm:$0xff]
        %v2046 = vld [vmem:[#allocation8 + $0x3e0] sm:$0xff]
        %v2047 = vld [vmem:[#allocation8 + $0x3e8] sm:$0xff]
        %v2048 = vld [vmem:[#allocation8 + $0x3f0] sm:$0xff]
        %v2049 = vld [vmem:[#allocation8 + $0x3f8] sm:$0xff]
        %v2178 = vunpack.c.l.b16 %v1922
        %v2179 = vunpack.c.h.b16 %v1922
        %v2180 = vunpack.c.l.b16 %v1923
        %v2181 = vunpack.c.h.b16 %v1923
        %v2182 = vunpack.c.l.b16 %v1924
        %v2183 = vunpack.c.h.b16 %v1924
        %v2184 = vunpack.c.l.b16 %v1925
        %v2185 = vunpack.c.h.b16 %v1925
        %v2186 = vunpack.c.l.b16 %v1926
        %v2187 = vunpack.c.h.b16 %v1926
        %v2188 = vunpack.c.l.b16 %v1927
        %v2189 = vunpack.c.h.b16 %v1927
        %v2190 = vunpack.c.l.b16 %v1928
        %v2191 = vunpack.c.h.b16 %v1928
        %v2192 = vunpack.c.l.b16 %v1929
        %v2193 = vunpack.c.h.b16 %v1929
        %v2194 = vunpack.c.l.b16 %v1930
        %v2195 = vunpack.c.h.b16 %v1930
        %v2196 = vunpack.c.l.b16 %v1931
        %v2197 = vunpack.c.h.b16 %v1931
        %v2198 = vunpack.c.l.b16 %v1932
        %v2199 = vunpack.c.h.b16 %v1932
        %v2200 = vunpack.c.l.b16 %v1933
        %v2201 = vunpack.c.h.b16 %v1933
        %v2202 = vunpack.c.l.b16 %v1934
        %v2203 = vunpack.c.h.b16 %v1934
        %v2204 = vunpack.c.l.b16 %v1935
        %v2205 = vunpack.c.h.b16 %v1935
        %v2206 = vunpack.c.l.b16 %v1936
        %v2207 = vunpack.c.h.b16 %v1936
        %v2208 = vunpack.c.l.b16 %v1937
        %v2209 = vunpack.c.h.b16 %v1937
        %v2210 = vunpack.c.l.b16 %v1938
        %v2211 = vunpack.c.h.b16 %v1938
        %v2212 = vunpack.c.l.b16 %v1939
        %v2213 = vunpack.c.h.b16 %v1939
        %v2214 = vunpack.c.l.b16 %v1940
        %v2215 = vunpack.c.h.b16 %v1940
        %v2216 = vunpack.c.l.b16 %v1941
        %v2217 = vunpack.c.h.b16 %v1941
        %v2218 = vunpack.c.l.b16 %v1942
        %v2219 = vunpack.c.h.b16 %v1942
        %v2220 = vunpack.c.l.b16 %v1943
        %v2221 = vunpack.c.h.b16 %v1943
        %v2222 = vunpack.c.l.b16 %v1944
        %v2223 = vunpack.c.h.b16 %v1944
        %v2224 = vunpack.c.l.b16 %v1945
        %v2225 = vunpack.c.h.b16 %v1945
        %v2226 = vunpack.c.l.b16 %v1946
        %v2227 = vunpack.c.h.b16 %v1946
        %v2228 = vunpack.c.l.b16 %v1947
        %v2229 = vunpack.c.h.b16 %v1947
        %v2230 = vunpack.c.l.b16 %v1948
        %v2231 = vunpack.c.h.b16 %v1948
        %v2232 = vunpack.c.l.b16 %v1949
        %v2233 = vunpack.c.h.b16 %v1949
        %v2234 = vunpack.c.l.b16 %v1950
        %v2235 = vunpack.c.h.b16 %v1950
        %v2236 = vunpack.c.l.b16 %v1951
        %v2237 = vunpack.c.h.b16 %v1951
        %v2238 = vunpack.c.l.b16 %v1952
        %v2239 = vunpack.c.h.b16 %v1952
        %v2240 = vunpack.c.l.b16 %v1953
        %v2241 = vunpack.c.h.b16 %v1953
        %v2242 = vunpack.c.l.b16 %v1954
        %v2243 = vunpack.c.h.b16 %v1954
        %v2244 = vunpack.c.l.b16 %v1955
        %v2245 = vunpack.c.h.b16 %v1955
        %v2246 = vunpack.c.l.b16 %v1956
        %v2247 = vunpack.c.h.b16 %v1956
        %v2248 = vunpack.c.l.b16 %v1957
        %v2249 = vunpack.c.h.b16 %v1957
        %v2250 = vunpack.c.l.b16 %v1958
        %v2251 = vunpack.c.h.b16 %v1958
        %v2252 = vunpack.c.l.b16 %v1959
        %v2253 = vunpack.c.h.b16 %v1959
        %v2254 = vunpack.c.l.b16 %v1960
        %v2255 = vunpack.c.h.b16 %v1960
        %v2256 = vunpack.c.l.b16 %v1961
        %v2257 = vunpack.c.h.b16 %v1961
        %v2258 = vunpack.c.l.b16 %v1962
        %v2259 = vunpack.c.h.b16 %v1962
        %v2260 = vunpack.c.l.b16 %v1963
        %v2261 = vunpack.c.h.b16 %v1963
        %v2262 = vunpack.c.l.b16 %v1964
        %v2263 = vunpack.c.h.b16 %v1964
        %v2264 = vunpack.c.l.b16 %v1965
        %v2265 = vunpack.c.h.b16 %v1965
        %v2266 = vunpack.c.l.b16 %v1966
        %v2267 = vunpack.c.h.b16 %v1966
        %v2268 = vunpack.c.l.b16 %v1967
        %v2269 = vunpack.c.h.b16 %v1967
        %v2270 = vunpack.c.l.b16 %v1968
        %v2271 = vunpack.c.h.b16 %v1968
        %v2272 = vunpack.c.l.b16 %v1969
        %v2273 = vunpack.c.h.b16 %v1969
        %v2274 = vunpack.c.l.b16 %v1970
        %v2275 = vunpack.c.h.b16 %v1970
        %v2276 = vunpack.c.l.b16 %v1971
        %v2277 = vunpack.c.h.b16 %v1971
        %v2278 = vunpack.c.l.b16 %v1972
        %v2279 = vunpack.c.h.b16 %v1972
        %v2280 = vunpack.c.l.b16 %v1973
        %v2281 = vunpack.c.h.b16 %v1973
        %v2282 = vunpack.c.l.b16 %v1974
        %v2283 = vunpack.c.h.b16 %v1974
        %v2284 = vunpack.c.l.b16 %v1975
        %v2285 = vunpack.c.h.b16 %v1975
        %v2286 = vunpack.c.l.b16 %v1976
        %v2287 = vunpack.c.h.b16 %v1976
        %v2288 = vunpack.c.l.b16 %v1977
        %v2289 = vunpack.c.h.b16 %v1977
        %v2290 = vunpack.c.l.b16 %v1978
        %v2291 = vunpack.c.h.b16 %v1978
        %v2292 = vunpack.c.l.b16 %v1979
        %v2293 = vunpack.c.h.b16 %v1979
        %v2294 = vunpack.c.l.b16 %v1980
        %v2295 = vunpack.c.h.b16 %v1980
        %v2296 = vunpack.c.l.b16 %v1981
        %v2297 = vunpack.c.h.b16 %v1981
        %v2298 = vunpack.c.l.b16 %v1982
        %v2299 = vunpack.c.h.b16 %v1982
        %v2300 = vunpack.c.l.b16 %v1983
        %v2301 = vunpack.c.h.b16 %v1983
        %v2302 = vunpack.c.l.b16 %v1984
        %v2303 = vunpack.c.h.b16 %v1984
        %v2304 = vunpack.c.l.b16 %v1985
        %v2305 = vunpack.c.h.b16 %v1985
        %v2306 = vunpack.c.l.b16 %v1986
        %v2307 = vunpack.c.h.b16 %v1986
        %v2308 = vunpack.c.l.b16 %v1987
        %v2309 = vunpack.c.h.b16 %v1987
        %v2310 = vunpack.c.l.b16 %v1988
        %v2311 = vunpack.c.h.b16 %v1988
        %v2312 = vunpack.c.l.b16 %v1989
        %v2313 = vunpack.c.h.b16 %v1989
        %v2314 = vunpack.c.l.b16 %v1990
        %v2315 = vunpack.c.h.b16 %v1990
        %v2316 = vunpack.c.l.b16 %v1991
        %v2317 = vunpack.c.h.b16 %v1991
        %v2318 = vunpack.c.l.b16 %v1992
        %v2319 = vunpack.c.h.b16 %v1992
        %v2320 = vunpack.c.l.b16 %v1993
        %v2321 = vunpack.c.h.b16 %v1993
        %v2322 = vunpack.c.l.b16 %v1994
        %v2323 = vunpack.c.h.b16 %v1994
        %v2324 = vunpack.c.l.b16 %v1995
        %v2325 = vunpack.c.h.b16 %v1995
        %v2326 = vunpack.c.l.b16 %v1996
        %v2327 = vunpack.c.h.b16 %v1996
        %v2328 = vunpack.c.l.b16 %v1997
        %v2329 = vunpack.c.h.b16 %v1997
        %v2330 = vunpack.c.l.b16 %v1998
        %v2331 = vunpack.c.h.b16 %v1998
        %v2332 = vunpack.c.l.b16 %v1999
        %v2333 = vunpack.c.h.b16 %v1999
        %v2334 = vunpack.c.l.b16 %v2000
        %v2335 = vunpack.c.h.b16 %v2000
        %v2336 = vunpack.c.l.b16 %v2001
        %v2337 = vunpack.c.h.b16 %v2001
        %v2338 = vunpack.c.l.b16 %v2002
        %v2339 = vunpack.c.h.b16 %v2002
        %v2340 = vunpack.c.l.b16 %v2003
        %v2341 = vunpack.c.h.b16 %v2003
        %v2342 = vunpack.c.l.b16 %v2004
        %v2343 = vunpack.c.h.b16 %v2004
        %v2344 = vunpack.c.l.b16 %v2005
        %v2345 = vunpack.c.h.b16 %v2005
        %v2346 = vunpack.c.l.b16 %v2006
        %v2347 = vunpack.c.h.b16 %v2006
        %v2348 = vunpack.c.l.b16 %v2007
        %v2349 = vunpack.c.h.b16 %v2007
        %v2350 = vunpack.c.l.b16 %v2008
        %v2351 = vunpack.c.h.b16 %v2008
        %v2352 = vunpack.c.l.b16 %v2009
        %v2353 = vunpack.c.h.b16 %v2009
        %v2354 = vunpack.c.l.b16 %v2010
        %v2355 = vunpack.c.h.b16 %v2010
        %v2356 = vunpack.c.l.b16 %v2011
        %v2357 = vunpack.c.h.b16 %v2011
        %v2358 = vunpack.c.l.b16 %v2012
        %v2359 = vunpack.c.h.b16 %v2012
        %v2360 = vunpack.c.l.b16 %v2013
        %v2361 = vunpack.c.h.b16 %v2013
        %v2362 = vunpack.c.l.b16 %v2014
        %v2363 = vunpack.c.h.b16 %v2014
        %v2364 = vunpack.c.l.b16 %v2015
        %v2365 = vunpack.c.h.b16 %v2015
        %v2366 = vunpack.c.l.b16 %v2016
        %v2367 = vunpack.c.h.b16 %v2016
        %v2368 = vunpack.c.l.b16 %v2017
        %v2369 = vunpack.c.h.b16 %v2017
        %v2370 = vunpack.c.l.b16 %v2018
        %v2371 = vunpack.c.h.b16 %v2018
        %v2372 = vunpack.c.l.b16 %v2019
        %v2373 = vunpack.c.h.b16 %v2019
        %v2374 = vunpack.c.l.b16 %v2020
        %v2375 = vunpack.c.h.b16 %v2020
        %v2376 = vunpack.c.l.b16 %v2021
        %v2377 = vunpack.c.h.b16 %v2021
        %v2378 = vunpack.c.l.b16 %v2022
        %v2379 = vunpack.c.h.b16 %v2022
        %v2380 = vunpack.c.l.b16 %v2023
        %v2381 = vunpack.c.h.b16 %v2023
        %v2382 = vunpack.c.l.b16 %v2024
        %v2383 = vunpack.c.h.b16 %v2024
        %v2384 = vunpack.c.l.b16 %v2025
        %v2385 = vunpack.c.h.b16 %v2025
        %v2386 = vunpack.c.l.b16 %v2026
        %v2387 = vunpack.c.h.b16 %v2026
        %v2388 = vunpack.c.l.b16 %v2027
        %v2389 = vunpack.c.h.b16 %v2027
        %v2390 = vunpack.c.l.b16 %v2028
        %v2391 = vunpack.c.h.b16 %v2028
        %v2392 = vunpack.c.l.b16 %v2029
        %v2393 = vunpack.c.h.b16 %v2029
        %v2394 = vunpack.c.l.b16 %v2030
        %v2395 = vunpack.c.h.b16 %v2030
        %v2396 = vunpack.c.l.b16 %v2031
        %v2397 = vunpack.c.h.b16 %v2031
        %v2398 = vunpack.c.l.b16 %v2032
        %v2399 = vunpack.c.h.b16 %v2032
        %v2400 = vunpack.c.l.b16 %v2033
        %v2401 = vunpack.c.h.b16 %v2033
        %v2402 = vunpack.c.l.b16 %v2034
        %v2403 = vunpack.c.h.b16 %v2034
        %v2404 = vunpack.c.l.b16 %v2035
        %v2405 = vunpack.c.h.b16 %v2035
        %v2406 = vunpack.c.l.b16 %v2036
        %v2407 = vunpack.c.h.b16 %v2036
        %v2408 = vunpack.c.l.b16 %v2037
        %v2409 = vunpack.c.h.b16 %v2037
        %v2410 = vunpack.c.l.b16 %v2038
        %v2411 = vunpack.c.h.b16 %v2038
        %v2412 = vunpack.c.l.b16 %v2039
        %v2413 = vunpack.c.h.b16 %v2039
        %v2414 = vunpack.c.l.b16 %v2040
        %v2415 = vunpack.c.h.b16 %v2040
        %v2416 = vunpack.c.l.b16 %v2041
        %v2417 = vunpack.c.h.b16 %v2041
        %v2418 = vunpack.c.l.b16 %v2042
        %v2419 = vunpack.c.h.b16 %v2042
        %v2420 = vunpack.c.l.b16 %v2043
        %v2421 = vunpack.c.h.b16 %v2043
        %v2422 = vunpack.c.l.b16 %v2044
        %v2423 = vunpack.c.h.b16 %v2044
        %v2424 = vunpack.c.l.b16 %v2045
        %v2425 = vunpack.c.h.b16 %v2045
        %v2426 = vunpack.c.l.b16 %v2046
        %v2427 = vunpack.c.h.b16 %v2046
        %v2428 = vunpack.c.l.b16 %v2047
        %v2429 = vunpack.c.h.b16 %v2047
        %v2430 = vunpack.c.l.b16 %v2048
        %v2431 = vunpack.c.h.b16 %v2048
        %v2432 = vunpack.c.l.b16 %v2049
        %v2433 = vunpack.c.h.b16 %v2049
        %v2434 = vpack.c.b16 %v2186, %v2178
        %v2435 = vpack.c.b16 %v2187, %v2179
        %v2436 = vpack.c.b16 %v2188, %v2180
        %v2437 = vpack.c.b16 %v2189, %v2181
        %v2438 = vpack.c.b16 %v2190, %v2182
        %v2439 = vpack.c.b16 %v2191, %v2183
        %v2440 = vpack.c.b16 %v2192, %v2184
        %v2441 = vpack.c.b16 %v2193, %v2185
        %v2442 = vpack.c.b16 %v2202, %v2194
        %v2443 = vpack.c.b16 %v2203, %v2195
        %v2444 = vpack.c.b16 %v2204, %v2196
        %v2445 = vpack.c.b16 %v2205, %v2197
        %v2446 = vpack.c.b16 %v2206, %v2198
        %v2447 = vpack.c.b16 %v2207, %v2199
        %v2448 = vpack.c.b16 %v2208, %v2200
        %v2449 = vpack.c.b16 %v2209, %v2201
        %v2450 = vpack.c.b16 %v2218, %v2210
        %v2451 = vpack.c.b16 %v2219, %v2211
        %v2452 = vpack.c.b16 %v2220, %v2212
        %v2453 = vpack.c.b16 %v2221, %v2213
        %v2454 = vpack.c.b16 %v2222, %v2214
        %v2455 = vpack.c.b16 %v2223, %v2215
        %v2456 = vpack.c.b16 %v2224, %v2216
        %v2457 = vpack.c.b16 %v2225, %v2217
        %v2458 = vpack.c.b16 %v2234, %v2226
        %v2459 = vpack.c.b16 %v2235, %v2227
        %v2460 = vpack.c.b16 %v2236, %v2228
        %v2461 = vpack.c.b16 %v2237, %v2229
        %v2462 = vpack.c.b16 %v2238, %v2230
        %v2463 = vpack.c.b16 %v2239, %v2231
        %v2464 = vpack.c.b16 %v2240, %v2232
        %v2465 = vpack.c.b16 %v2241, %v2233
        %v2466 = vpack.c.b16 %v2250, %v2242
        %v2467 = vpack.c.b16 %v2251, %v2243
        %v2468 = vpack.c.b16 %v2252, %v2244
        %v2469 = vpack.c.b16 %v2253, %v2245
        %v2470 = vpack.c.b16 %v2254, %v2246
        %v2471 = vpack.c.b16 %v2255, %v2247
        %v2472 = vpack.c.b16 %v2256, %v2248
        %v2473 = vpack.c.b16 %v2257, %v2249
        %v2474 = vpack.c.b16 %v2266, %v2258
        %v2475 = vpack.c.b16 %v2267, %v2259
        %v2476 = vpack.c.b16 %v2268, %v2260
        %v2477 = vpack.c.b16 %v2269, %v2261
        %v2478 = vpack.c.b16 %v2270, %v2262
        %v2479 = vpack.c.b16 %v2271, %v2263
        %v2480 = vpack.c.b16 %v2272, %v2264
        %v2481 = vpack.c.b16 %v2273, %v2265
        %v2482 = vpack.c.b16 %v2282, %v2274
        %v2483 = vpack.c.b16 %v2283, %v2275
        %v2484 = vpack.c.b16 %v2284, %v2276
        %v2485 = vpack.c.b16 %v2285, %v2277
        %v2486 = vpack.c.b16 %v2286, %v2278
        %v2487 = vpack.c.b16 %v2287, %v2279
        %v2488 = vpack.c.b16 %v2288, %v2280
        %v2489 = vpack.c.b16 %v2289, %v2281
        %v2490 = vpack.c.b16 %v2298, %v2290
        %v2491 = vpack.c.b16 %v2299, %v2291
        %v2492 = vpack.c.b16 %v2300, %v2292
        %v2493 = vpack.c.b16 %v2301, %v2293
        %v2494 = vpack.c.b16 %v2302, %v2294
        %v2495 = vpack.c.b16 %v2303, %v2295
        %v2496 = vpack.c.b16 %v2304, %v2296
        %v2497 = vpack.c.b16 %v2305, %v2297
        %v2498 = vpack.c.b16 %v2314, %v2306
        %v2499 = vpack.c.b16 %v2315, %v2307
        %v2500 = vpack.c.b16 %v2316, %v2308
        %v2501 = vpack.c.b16 %v2317, %v2309
        %v2502 = vpack.c.b16 %v2318, %v2310
        %v2503 = vpack.c.b16 %v2319, %v2311
        %v2504 = vpack.c.b16 %v2320, %v2312
        %v2505 = vpack.c.b16 %v2321, %v2313
        %v2506 = vpack.c.b16 %v2330, %v2322
        %v2507 = vpack.c.b16 %v2331, %v2323
        %v2508 = vpack.c.b16 %v2332, %v2324
        %v2509 = vpack.c.b16 %v2333, %v2325
        %v2510 = vpack.c.b16 %v2334, %v2326
        %v2511 = vpack.c.b16 %v2335, %v2327
        %v2512 = vpack.c.b16 %v2336, %v2328
        %v2513 = vpack.c.b16 %v2337, %v2329
        %v2514 = vpack.c.b16 %v2346, %v2338
        %v2515 = vpack.c.b16 %v2347, %v2339
        %v2516 = vpack.c.b16 %v2348, %v2340
        %v2517 = vpack.c.b16 %v2349, %v2341
        %v2518 = vpack.c.b16 %v2350, %v2342
        %v2519 = vpack.c.b16 %v2351, %v2343
        %v2520 = vpack.c.b16 %v2352, %v2344
        %v2521 = vpack.c.b16 %v2353, %v2345
        %v2522 = vpack.c.b16 %v2362, %v2354
        %v2523 = vpack.c.b16 %v2363, %v2355
        %v2524 = vpack.c.b16 %v2364, %v2356
        %v2525 = vpack.c.b16 %v2365, %v2357
        %v2526 = vpack.c.b16 %v2366, %v2358
        %v2527 = vpack.c.b16 %v2367, %v2359
        %v2528 = vpack.c.b16 %v2368, %v2360
        %v2529 = vpack.c.b16 %v2369, %v2361
        %v2530 = vpack.c.b16 %v2378, %v2370
        %v2531 = vpack.c.b16 %v2379, %v2371
        %v2532 = vpack.c.b16 %v2380, %v2372
        %v2533 = vpack.c.b16 %v2381, %v2373
        %v2534 = vpack.c.b16 %v2382, %v2374
        %v2535 = vpack.c.b16 %v2383, %v2375
        %v2536 = vpack.c.b16 %v2384, %v2376
        %v2537 = vpack.c.b16 %v2385, %v2377
        %v2538 = vpack.c.b16 %v2394, %v2386
        %v2539 = vpack.c.b16 %v2395, %v2387
        %v2540 = vpack.c.b16 %v2396, %v2388
        %v2541 = vpack.c.b16 %v2397, %v2389
        %v2542 = vpack.c.b16 %v2398, %v2390
        %v2543 = vpack.c.b16 %v2399, %v2391
        %v2544 = vpack.c.b16 %v2400, %v2392
        %v2545 = vpack.c.b16 %v2401, %v2393
        %v2546 = vpack.c.b16 %v2410, %v2402
        %v2547 = vpack.c.b16 %v2411, %v2403
        %v2548 = vpack.c.b16 %v2412, %v2404
        %v2549 = vpack.c.b16 %v2413, %v2405
        %v2550 = vpack.c.b16 %v2414, %v2406
        %v2551 = vpack.c.b16 %v2415, %v2407
        %v2552 = vpack.c.b16 %v2416, %v2408
        %v2553 = vpack.c.b16 %v2417, %v2409
        %v2554 = vpack.c.b16 %v2426, %v2418
        %v2555 = vpack.c.b16 %v2427, %v2419
        %v2556 = vpack.c.b16 %v2428, %v2420
        %v2557 = vpack.c.b16 %v2429, %v2421
        %v2558 = vpack.c.b16 %v2430, %v2422
        %v2559 = vpack.c.b16 %v2431, %v2423
        %v2560 = vpack.c.b16 %v2432, %v2424
        %v2561 = vpack.c.b16 %v2433, %v2425
        %2690 = vmatprep.subr.bf16.mxu0 %v2435
        %2691 = vmatpush1.bf16.msra.mxu0 %v2434
        %2692 = vmatprep.subr.bf16.mxu0 %v2443
        %2693 = vmatpush1.bf16.msra.mxu0 %v2442
        %2694 = vmatprep.subr.bf16.mxu0 %v2451
        %2695 = vmatpush1.bf16.msra.mxu0 %v2450
        %2696 = vmatprep.subr.bf16.mxu0 %v2459
        %2697 = vmatpush1.bf16.msra.mxu0 %v2458
        %2698 = vmatprep.subr.bf16.mxu0 %v2467
        %2699 = vmatpush1.bf16.msra.mxu0 %v2466
        %2700 = vmatprep.subr.bf16.mxu0 %v2475
        %2701 = vmatpush1.bf16.msra.mxu0 %v2474
        %2702 = vmatprep.subr.bf16.mxu0 %v2483
        %2703 = vmatpush1.bf16.msra.mxu0 %v2482
        %2704 = vmatprep.subr.bf16.mxu0 %v2491
        %2705 = vmatpush1.bf16.msra.mxu0 %v2490
        %2706 = vmatprep.subr.bf16.mxu0 %v2499
        %2707 = vmatpush1.bf16.msra.mxu0 %v2498
        %2708 = vmatprep.subr.bf16.mxu0 %v2507
        %2709 = vmatpush1.bf16.msra.mxu0 %v2506
        %2710 = vmatprep.subr.bf16.mxu0 %v2515
        %2711 = vmatpush1.bf16.msra.mxu0 %v2514
        %2712 = vmatprep.subr.bf16.mxu0 %v2523
        %2713 = vmatpush1.bf16.msra.mxu0 %v2522
        %2714 = vmatprep.subr.bf16.mxu0 %v2531
        %2715 = vmatpush1.bf16.msra.mxu0 %v2530
        %2716 = vmatprep.subr.bf16.mxu0 %v2539
        %2717 = vmatpush1.bf16.msra.mxu0 %v2538
        %2718 = vmatprep.subr.bf16.mxu0 %v2547
        %2719 = vmatpush1.bf16.msra.mxu0 %v2546
        %2720 = vmatprep.subr.bf16.mxu0 %v2555
        %2721 = vmatpush1.bf16.msra.mxu0 %v2554
        %2722 = vmatprep.mubr.bf16.mxu0 %v1921
        %2723 = vmatmul.mubr.bf16.gmra.mrb[0].mxu0 %v1921
        %v2724 = vpop.f32.mrb[0].mxu0
        %v2725 = vadd.f32 0.0, %v2724
        %v2726 = vpop.f32.mrb[0].mxu0
        %v2727 = vadd.f32 0.0, %v2726
        %v2728 = vpop.f32.mrb[0].mxu0
        %v2729 = vadd.f32 0.0, %v2728
        %v2730 = vpop.f32.mrb[0].mxu0
        %v2731 = vadd.f32 0.0, %v2730
        %2732 = vdwg.mxu0
        %2733 = vmatprep.subr.bf16.mxu0 %v2437
        %2734 = vmatpush1.bf16.msra.mxu0 %v2436
        %2735 = vmatprep.subr.bf16.mxu0 %v2445
        %2736 = vmatpush1.bf16.msra.mxu0 %v2444
        %2737 = vmatprep.subr.bf16.mxu0 %v2453
        %2738 = vmatpush1.bf16.msra.mxu0 %v2452
        %2739 = vmatprep.subr.bf16.mxu0 %v2461
        %2740 = vmatpush1.bf16.msra.mxu0 %v2460
        %2741 = vmatprep.subr.bf16.mxu0 %v2469
        %2742 = vmatpush1.bf16.msra.mxu0 %v2468
        %2743 = vmatprep.subr.bf16.mxu0 %v2477
        %2744 = vmatpush1.bf16.msra.mxu0 %v2476
        %2745 = vmatprep.subr.bf16.mxu0 %v2485
        %2746 = vmatpush1.bf16.msra.mxu0 %v2484
        %2747 = vmatprep.subr.bf16.mxu0 %v2493
        %2748 = vmatpush1.bf16.msra.mxu0 %v2492
        %2749 = vmatprep.subr.bf16.mxu0 %v2501
        %2750 = vmatpush1.bf16.msra.mxu0 %v2500
        %2751 = vmatprep.subr.bf16.mxu0 %v2509
        %2752 = vmatpush1.bf16.msra.mxu0 %v2508
        %2753 = vmatprep.subr.bf16.mxu0 %v2517
        %2754 = vmatpush1.bf16.msra.mxu0 %v2516
        %2755 = vmatprep.subr.bf16.mxu0 %v2525
        %2756 = vmatpush1.bf16.msra.mxu0 %v2524
        %2757 = vmatprep.subr.bf16.mxu0 %v2533
        %2758 = vmatpush1.bf16.msra.mxu0 %v2532
        %2759 = vmatprep.subr.bf16.mxu0 %v2541
        %2760 = vmatpush1.bf16.msra.mxu0 %v2540
        %2761 = vmatprep.subr.bf16.mxu0 %v2549
        %2762 = vmatpush1.bf16.msra.mxu0 %v2548
        %2763 = vmatprep.subr.bf16.mxu0 %v2557
        %2764 = vmatpush1.bf16.msra.mxu0 %v2556
        %2765 = vmatprep.mubr.bf16.mxu0 %v1921
        %2766 = vmatmul.mubr.bf16.gmra.mrb[0].mxu0 %v1921
        %v2767 = vpop.f32.mrb[0].mxu0
        %v2768 = vadd.f32 0.0, %v2767
        %v2769 = vpop.f32.mrb[0].mxu0
        %v2770 = vadd.f32 0.0, %v2769
        %v2771 = vpop.f32.mrb[0].mxu0
        %v2772 = vadd.f32 0.0, %v2771
        %v2773 = vpop.f32.mrb[0].mxu0
        %v2774 = vadd.f32 0.0, %v2773
        %2775 = vdwg.mxu0
        %2776 = vmatprep.subr.bf16.mxu0 %v2439
        %2777 = vmatpush1.bf16.msra.mxu0 %v2438
        %2778 = vmatprep.subr.bf16.mxu0 %v2447
        %2779 = vmatpush1.bf16.msra.mxu0 %v2446
        %2780 = vmatprep.subr.bf16.mxu0 %v2455
        %2781 = vmatpush1.bf16.msra.mxu0 %v2454
        %2782 = vmatprep.subr.bf16.mxu0 %v2463
        %2783 = vmatpush1.bf16.msra.mxu0 %v2462
        %2784 = vmatprep.subr.bf16.mxu0 %v2471
        %2785 = vmatpush1.bf16.msra.mxu0 %v2470
        %2786 = vmatprep.subr.bf16.mxu0 %v2479
        %2787 = vmatpush1.bf16.msra.mxu0 %v2478
        %2788 = vmatprep.subr.bf16.mxu0 %v2487
        %2789 = vmatpush1.bf16.msra.mxu0 %v2486
        %2790 = vmatprep.subr.bf16.mxu0 %v2495
        %2791 = vmatpush1.bf16.msra.mxu0 %v2494
        %2792 = vmatprep.subr.bf16.mxu0 %v2503
        %2793 = vmatpush1.bf16.msra.mxu0 %v2502
        %2794 = vmatprep.subr.bf16.mxu0 %v2511
        %2795 = vmatpush1.bf16.msra.mxu0 %v2510
        %2796 = vmatprep.subr.bf16.mxu0 %v2519
        %2797 = vmatpush1.bf16.msra.mxu0 %v2518
        %2798 = vmatprep.subr.bf16.mxu0 %v2527
        %2799 = vmatpush1.bf16.msra.mxu0 %v2526
        %2800 = vmatprep.subr.bf16.mxu0 %v2535
        %2801 = vmatpush1.bf16.msra.mxu0 %v2534
        %2802 = vmatprep.subr.bf16.mxu0 %v2543
        %2803 = vmatpush1.bf16.msra.mxu0 %v2542
        %2804 = vmatprep.subr.bf16.mxu0 %v2551
        %2805 = vmatpush1.bf16.msra.mxu0 %v2550
        %2806 = vmatprep.subr.bf16.mxu0 %v2559
        %2807 = vmatpush1.bf16.msra.mxu0 %v2558
        %2808 = vmatprep.mubr.bf16.mxu0 %v1921
        %2809 = vmatmul.mubr.bf16.gmra.mrb[0].mxu0 %v1921
        %v2810 = vpop.f32.mrb[0].mxu0
        %v2811 = vadd.f32 0.0, %v2810
        %v2812 = vpop.f32.mrb[0].mxu0
        %v2813 = vadd.f32 0.0, %v2812
        %v2814 = vpop.f32.mrb[0].mxu0
        %v2815 = vadd.f32 0.0, %v2814
        %v2816 = vpop.f32.mrb[0].mxu0
        %v2817 = vadd.f32 0.0, %v2816
        %2818 = vdwg.mxu0
        %2819 = vmatprep.subr.bf16.mxu0 %v2441
        %2820 = vmatpush1.bf16.msra.mxu0 %v2440
        %2821 = vmatprep.subr.bf16.mxu0 %v2449
        %2822 = vmatpush1.bf16.msra.mxu0 %v2448
        %2823 = vmatprep.subr.bf16.mxu0 %v2457
        %2824 = vmatpush1.bf16.msra.mxu0 %v2456
        %2825 = vmatprep.subr.bf16.mxu0 %v2465
        %2826 = vmatpush1.bf16.msra.mxu0 %v2464
        %2827 = vmatprep.subr.bf16.mxu0 %v2473
        %2828 = vmatpush1.bf16.msra.mxu0 %v2472
        %2829 = vmatprep.subr.bf16.mxu0 %v2481
        %2830 = vmatpush1.bf16.msra.mxu0 %v2480
        %2831 = vmatprep.subr.bf16.mxu0 %v2489
        %2832 = vmatpush1.bf16.msra.mxu0 %v2488
        %2833 = vmatprep.subr.bf16.mxu0 %v2497
        %2834 = vmatpush1.bf16.msra.mxu0 %v2496
        %2835 = vmatprep.subr.bf16.mxu0 %v2505
        %2836 = vmatpush1.bf16.msra.mxu0 %v2504
        %2837 = vmatprep.subr.bf16.mxu0 %v2513
        %2838 = vmatpush1.bf16.msra.mxu0 %v2512
        %2839 = vmatprep.subr.bf16.mxu0 %v2521
        %2840 = vmatpush1.bf16.msra.mxu0 %v2520
        %2841 = vmatprep.subr.bf16.mxu0 %v2529
        %2842 = vmatpush1.bf16.msra.mxu0 %v2528
        %2843 = vmatprep.subr.bf16.mxu0 %v2537
        %2844 = vmatpush1.bf16.msra.mxu0 %v2536
        %2845 = vmatprep.subr.bf16.mxu0 %v2545
        %2846 = vmatpush1.bf16.msra.mxu0 %v2544
        %2847 = vmatprep.subr.bf16.mxu0 %v2553
        %2848 = vmatpush1.bf16.msra.mxu0 %v2552
        %2849 = vmatprep.subr.bf16.mxu0 %v2561
        %2850 = vmatpush1.bf16.msra.mxu0 %v2560
        %2851 = vmatprep.mubr.bf16.mxu0 %v1921
        %2852 = vmatmul.mubr.bf16.gmra.mrb[0].mxu0 %v1921
        %v2853 = vpop.f32.mrb[0].mxu0
        %v2854 = vadd.f32 0.0, %v2853
        %v2855 = vpop.f32.mrb[0].mxu0
        %v2856 = vadd.f32 0.0, %v2855
        %v2857 = vpop.f32.mrb[0].mxu0
        %v2858 = vadd.f32 0.0, %v2857
        %v2859 = vpop.f32.mrb[0].mxu0
        %v2860 = vadd.f32 0.0, %v2859
        %2861 = vdwg.mxu0
        %v2862 = vunpack.c.l.bf16 %v1912
        %v2863 = vunpack.c.l.bf16 %v1913
        %v2864 = vunpack.c.l.bf16 %v1914
        %v2865 = vunpack.c.l.bf16 %v1915
        %v2866 = vunpack.c.h.bf16 %v1912
        %v2867 = vunpack.c.h.bf16 %v1913
        %v2868 = vunpack.c.h.bf16 %v1914
        %v2869 = vunpack.c.h.bf16 %v1915
        %v2870 = vadd.f32 %v2862, %v2725
        %v2871 = vadd.f32 %v2863, %v2727
        %v2872 = vadd.f32 %v2864, %v2768
        %v2873 = vadd.f32 %v2865, %v2770
        %v2874 = vadd.f32 %v2866, %v2729
        %v2875 = vadd.f32 %v2867, %v2731
        %v2876 = vadd.f32 %v2868, %v2772
        %v2877 = vadd.f32 %v2869, %v2774
        %v2878 = vunpack.c.l.bf16 %v1917
        %v2879 = vunpack.c.l.bf16 %v1918
        %v2880 = vunpack.c.l.bf16 %v1919
        %v2881 = vunpack.c.l.bf16 %v1920
        %v2882 = vunpack.c.h.bf16 %v1917
        %v2883 = vunpack.c.h.bf16 %v1918
        %v2884 = vunpack.c.h.bf16 %v1919
        %v2885 = vunpack.c.h.bf16 %v1920
        %v2886 = vadd.f32 %v2878, %v2811
        %v2887 = vadd.f32 %v2879, %v2813
        %v2888 = vadd.f32 %v2880, %v2854
        %v2889 = vadd.f32 %v2881, %v2856
        %v2890 = vadd.f32 %v2882, %v2815
        %v2891 = vadd.f32 %v2883, %v2817
        %v2892 = vadd.f32 %v2884, %v2858
        %v2893 = vadd.f32 %v2885, %v2860
        %v2894 = vxor.u32 %v2870, 2147483648
        %v2895 = vxor.u32 %v2874, 2147483648
        %v2896 = vmul.f32 %v2894, 1.442695
        %v2897 = vpow.pop %v2896
        %v2898 = vmul.f32 %v2895, 1.442695
        %v2899 = vpow.pop %v2898
        %v2900 = vadd.f32 %v2897, 1.0
        %v2901 = vadd.f32 %v2899, 1.0
        %v2902 = vrcp.pop %v2900
        %v2903 = vmul.f32 1.0, %v2902
        %v2904 = vrcp.pop %v2901
        %v2905 = vmul.f32 1.0, %v2904
        %v2906 = vxor.u32 %v2871, 2147483648
        %v2907 = vxor.u32 %v2875, 2147483648
        %v2908 = vmul.f32 %v2906, 1.442695
        %v2909 = vpow.pop %v2908
        %v2910 = vmul.f32 %v2907, 1.442695
        %v2911 = vpow.pop %v2910
        %v2912 = vadd.f32 %v2909, 1.0
        %v2913 = vadd.f32 %v2911, 1.0
        %v2914 = vrcp.pop %v2912
        %v2915 = vmul.f32 1.0, %v2914
        %v2916 = vrcp.pop %v2913
        %v2917 = vmul.f32 1.0, %v2916
        %v2918 = vtanh.pop %v2872
        %v2919 = vtanh.pop %v2876
        %v2920 = vxor.u32 %v2873, 2147483648
        %v2921 = vxor.u32 %v2877, 2147483648
        %v2922 = vmul.f32 %v2920, 1.442695
        %v2923 = vpow.pop %v2922
        %v2924 = vmul.f32 %v2921, 1.442695
        %v2925 = vpow.pop %v2924
        %v2926 = vadd.f32 %v2923, 1.0
        %v2927 = vadd.f32 %v2925, 1.0
        %v2928 = vrcp.pop %v2926
        %v2929 = vmul.f32 1.0, %v2928
        %v2930 = vrcp.pop %v2927
        %v2931 = vmul.f32 1.0, %v2930
        %v2932 = vmul.f32 %v2915, 0.0
        %v2933 = vmul.f32 %v2917, 0.0
        %v2934 = vmul.f32 %v2903, %v2918
        %v2935 = vmul.f32 %v2905, %v2919
        %v2936 = vadd.f32 %v2932, %v2934
        %v2937 = vadd.f32 %v2933, %v2935
        %v2938 = vtanh.pop %v2936
        %v2939 = vtanh.pop %v2937
        %v2940 = vmul.f32 %v2929, %v2938
        %v2941 = vmul.f32 %v2931, %v2939
        %v2942 = vxor.u32 %v2886, 2147483648
        %v2943 = vxor.u32 %v2890, 2147483648
        %v2944 = vmul.f32 %v2942, 1.442695
        %v2945 = vpow.pop %v2944
        %v2946 = vmul.f32 %v2943, 1.442695
        %v2947 = vpow.pop %v2946
        %v2948 = vadd.f32 %v2945, 1.0
        %v2949 = vadd.f32 %v2947, 1.0
        %v2950 = vrcp.pop %v2948
        %v2951 = vmul.f32 1.0, %v2950
        %v2952 = vrcp.pop %v2949
        %v2953 = vmul.f32 1.0, %v2952
        %v2954 = vxor.u32 %v2887, 2147483648
        %v2955 = vxor.u32 %v2891, 2147483648
        %v2956 = vmul.f32 %v2954, 1.442695
        %v2957 = vpow.pop %v2956
        %v2958 = vmul.f32 %v2955, 1.442695
        %v2959 = vpow.pop %v2958
        %v2960 = vadd.f32 %v2957, 1.0
        %v2961 = vadd.f32 %v2959, 1.0
        %v2962 = vrcp.pop %v2960
        %v2963 = vmul.f32 1.0, %v2962
        %v2964 = vrcp.pop %v2961
        %v2965 = vmul.f32 1.0, %v2964
        %v2966 = vtanh.pop %v2888
        %v2967 = vtanh.pop %v2892
        %v2968 = vxor.u32 %v2889, 2147483648
        %v2969 = vxor.u32 %v2893, 2147483648
        %v2970 = vmul.f32 %v2968, 1.442695
        %v2971 = vpow.pop %v2970
        %v2972 = vmul.f32 %v2969, 1.442695
        %v2973 = vpow.pop %v2972
        %v2974 = vadd.f32 %v2971, 1.0
        %v2975 = vadd.f32 %v2973, 1.0
        %v2976 = vrcp.pop %v2974
        %v2977 = vmul.f32 1.0, %v2976
        %v2978 = vrcp.pop %v2975
        %v2979 = vmul.f32 1.0, %v2978
        %v2980 = vmul.f32 %v2963, 0.0
        %v2981 = vmul.f32 %v2965, 0.0
        %v2982 = vmul.f32 %v2951, %v2966
        %v2983 = vmul.f32 %v2953, %v2967
        %v2984 = vadd.f32 %v2980, %v2982
        %v2985 = vadd.f32 %v2981, %v2983
        %v2986 = vtanh.pop %v2984
        %v2987 = vtanh.pop %v2985
        %v2988 = vmul.f32 %v2977, %v2986
        %v2989 = vmul.f32 %v2979, %v2987
        %vm2990 = vcmp.gt.s32.totalorder %v1910, 0
        %vm2991 = vcmp.gt.s32.totalorder %v1911, 0
        %vm2992 = vcmp.gt.s32.totalorder %v1910, 15
        %vm2993 = vcmp.gt.s32.totalorder %v1911, 15
        %v2994 = vsel %vm2990, 1, 0
        %v2995 = vsel %vm2991, 1, 0
        %2996 = vset.pattern.permute.xlu0 0
        %2997 = vperm.xlu0 %2996, %v2994
        %v2998 = vpop.permute.xlu0 %2997
        %2999 = vset.pattern.permute.xlu0 0
        %3000 = vperm.xlu0 %2999, %v2995
        %v3001 = vpop.permute.xlu0 %3000
        %vm3002 = vcmp.eq.s32.totalorder %v2998, 1
        %vm3003 = vcmp.eq.s32.totalorder %v3001, 1
        %v3004 = vsel %vm3002, %v2940, 0.0
        %v3005 = vsel %vm3003, %v2941, 0.0
        %v3006 = vsel %vm3002, %v2936, 0.0
        %v3007 = vsel %vm3003, %v2937, 0.0
        %v3008 = vsel %vm2992, 1, 0
        %v3009 = vsel %vm2993, 1, 0
        %3010 = vset.pattern.permute.xlu0 0
        %3011 = vperm.xlu0 %3010, %v3008
        %v3012 = vpop.permute.xlu0 %3011
        %3013 = vset.pattern.permute.xlu0 0
        %3014 = vperm.xlu0 %3013, %v3009
        %v3015 = vpop.permute.xlu0 %3014
        %vm3016 = vcmp.eq.s32.totalorder %v3012, 1
        %vm3017 = vcmp.eq.s32.totalorder %v3015, 1
        %v3018 = vsel %vm3016, %v2988, 0.0
        %v3019 = vsel %vm3017, %v2989, 0.0
        %v3020 = vsel %vm3016, %v2984, 0.0
        %v3021 = vsel %vm3017, %v2985, 0.0
        %v3022 = vmax.f32 %v3004, -1e+30
        %v3023 = vmax.f32 %v3005, -1e+30
        %v3024 = vsel %vm3016, %v2988, -1e+30
        %v3025 = vsel %vm3017, %v2989, -1e+30
        %v3026 = vmax.f32 %v3024, -1e+30
        %v3027 = vmax.f32 %v3025, -1e+30
        %s3028 = scalar_lea.vmem [#allocation2], 64
        %v3029 = vld [vmem:[%s3028] sm:$0xff]
        %v3030 = vld [vmem:[%s3028 + $0x8] sm:$0xff]
        %v3031 = vld [vmem:[%s3028 + $0x10] sm:$0xff]
        %v3032 = vld [vmem:[%s3028 + $0x18] sm:$0xff]
        %s3033 = scalar_lea.vmem [#allocation2], 896
        %v3034 = vld [vmem:[%s3033 + $0x20] sm:$0xff]
        %v3035 = vld [vmem:[%s3033 + $0x28] sm:$0xff]
        %v3036 = vld [vmem:[%s3033 + $0x30] sm:$0xff]
        %v3037 = vld [vmem:[%s3033 + $0x38] sm:$0xff]
        %v3038 = vpack.c.bf16 %v3005, %v3004
        %v3039 = vpack.c.bf16 %v3019, %v3018
        %3040 = vmatprep.subr.bf16.mxu0 %v2435
        %3041 = vmatpush1.bf16.msra.mxu0 %v2434
        %3042 = vmatprep.subr.bf16.mxu0 %v2443
        %3043 = vmatpush1.bf16.msra.mxu0 %v2442
        %3044 = vmatprep.subr.bf16.mxu0 %v2451
        %3045 = vmatpush1.bf16.msra.mxu0 %v2450
        %3046 = vmatprep.subr.bf16.mxu0 %v2459
        %3047 = vmatpush1.bf16.msra.mxu0 %v2458
        %3048 = vmatprep.subr.bf16.mxu0 %v2467
        %3049 = vmatpush1.bf16.msra.mxu0 %v2466
        %3050 = vmatprep.subr.bf16.mxu0 %v2475
        %3051 = vmatpush1.bf16.msra.mxu0 %v2474
        %3052 = vmatprep.subr.bf16.mxu0 %v2483
        %3053 = vmatpush1.bf16.msra.mxu0 %v2482
        %3054 = vmatprep.subr.bf16.mxu0 %v2491
        %3055 = vmatpush1.bf16.msra.mxu0 %v2490
        %3056 = vmatprep.subr.bf16.mxu0 %v2499
        %3057 = vmatpush1.bf16.msra.mxu0 %v2498
        %3058 = vmatprep.subr.bf16.mxu0 %v2507
        %3059 = vmatpush1.bf16.msra.mxu0 %v2506
        %3060 = vmatprep.subr.bf16.mxu0 %v2515
        %3061 = vmatpush1.bf16.msra.mxu0 %v2514
        %3062 = vmatprep.subr.bf16.mxu0 %v2523
        %3063 = vmatpush1.bf16.msra.mxu0 %v2522
        %3064 = vmatprep.subr.bf16.mxu0 %v2531
        %3065 = vmatpush1.bf16.msra.mxu0 %v2530
        %3066 = vmatprep.subr.bf16.mxu0 %v2539
        %3067 = vmatpush1.bf16.msra.mxu0 %v2538
        %3068 = vmatprep.subr.bf16.mxu0 %v2547
        %3069 = vmatpush1.bf16.msra.mxu0 %v2546
        %3070 = vmatprep.subr.bf16.mxu0 %v2555
        %3071 = vmatpush1.bf16.msra.mxu0 %v2554
        %3072 = vmatprep.mubr.bf16.mxu0 %v3039
        %3073 = vmatmul.mubr.bf16.gmra.mrb[0].mxu0 %v3038
        %v3074 = vpop.f32.mrb[0].mxu0
        %v3075 = vadd.f32 0.0, %v3074
        %v3076 = vpop.f32.mrb[0].mxu0
        %v3077 = vadd.f32 0.0, %v3076
        %v3078 = vpop.f32.mrb[0].mxu0
        %v3079 = vadd.f32 0.0, %v3078
        %v3080 = vpop.f32.mrb[0].mxu0
        %v3081 = vadd.f32 0.0, %v3080
        %3082 = vdwg.mxu0
        %3083 = vmatprep.subr.bf16.mxu0 %v2437
        %3084 = vmatpush1.bf16.msra.mxu0 %v2436
        %3085 = vmatprep.subr.bf16.mxu0 %v2445
        %3086 = vmatpush1.bf16.msra.mxu0 %v2444
        %3087 = vmatprep.subr.bf16.mxu0 %v2453
        %3088 = vmatpush1.bf16.msra.mxu0 %v2452
        %3089 = vmatprep.subr.bf16.mxu0 %v2461
        %3090 = vmatpush1.bf16.msra.mxu0 %v2460
        %3091 = vmatprep.subr.bf16.mxu0 %v2469
        %3092 = vmatpush1.bf16.msra.mxu0 %v2468
        %3093 = vmatprep.subr.bf16.mxu0 %v2477
        %3094 = vmatpush1.bf16.msra.mxu0 %v2476
        %3095 = vmatprep.subr.bf16.mxu0 %v2485
        %3096 = vmatpush1.bf16.msra.mxu0 %v2484
        %3097 = vmatprep.subr.bf16.mxu0 %v2493
        %3098 = vmatpush1.bf16.msra.mxu0 %v2492
        %3099 = vmatprep.subr.bf16.mxu0 %v2501
        %3100 = vmatpush1.bf16.msra.mxu0 %v2500
        %3101 = vmatprep.subr.bf16.mxu0 %v2509
        %3102 = vmatpush1.bf16.msra.mxu0 %v2508
        %3103 = vmatprep.subr.bf16.mxu0 %v2517
        %3104 = vmatpush1.bf16.msra.mxu0 %v2516
        %3105 = vmatprep.subr.bf16.mxu0 %v2525
        %3106 = vmatpush1.bf16.msra.mxu0 %v2524
        %3107 = vmatprep.subr.bf16.mxu0 %v2533
        %3108 = vmatpush1.bf16.msra.mxu0 %v2532
        %3109 = vmatprep.subr.bf16.mxu0 %v2541
        %3110 = vmatpush1.bf16.msra.mxu0 %v2540
        %3111 = vmatprep.subr.bf16.mxu0 %v2549
        %3112 = vmatpush1.bf16.msra.mxu0 %v2548
        %3113 = vmatprep.subr.bf16.mxu0 %v2557
        %3114 = vmatpush1.bf16.msra.mxu0 %v2556
        %3115 = vmatprep.mubr.bf16.mxu0 %v3039
        %3116 = vmatmul.mubr.bf16.gmra.mrb[0].mxu0 %v3038
        %v3117 = vpop.f32.mrb[0].mxu0
        %v3118 = vadd.f32 0.0, %v3117
        %v3119 = vpop.f32.mrb[0].mxu0
        %v3120 = vadd.f32 0.0, %v3119
        %v3121 = vpop.f32.mrb[0].mxu0
        %v3122 = vadd.f32 0.0, %v3121
        %v3123 = vpop.f32.mrb[0].mxu0
        %v3124 = vadd.f32 0.0, %v3123
        %3125 = vdwg.mxu0
        %3126 = vmatprep.subr.bf16.mxu0 %v2439
        %3127 = vmatpush1.bf16.msra.mxu0 %v2438
        %3128 = vmatprep.subr.bf16.mxu0 %v2447
        %3129 = vmatpush1.bf16.msra.mxu0 %v2446
        %3130 = vmatprep.subr.bf16.mxu0 %v2455
        %3131 = vmatpush1.bf16.msra.mxu0 %v2454
        %3132 = vmatprep.subr.bf16.mxu0 %v2463
        %3133 = vmatpush1.bf16.msra.mxu0 %v2462
        %3134 = vmatprep.subr.bf16.mxu0 %v2471
        %3135 = vmatpush1.bf16.msra.mxu0 %v2470
        %3136 = vmatprep.subr.bf16.mxu0 %v2479
        %3137 = vmatpush1.bf16.msra.mxu0 %v2478
        %3138 = vmatprep.subr.bf16.mxu0 %v2487
        %3139 = vmatpush1.bf16.msra.mxu0 %v2486
        %3140 = vmatprep.subr.bf16.mxu0 %v2495
        %3141 = vmatpush1.bf16.msra.mxu0 %v2494
        %3142 = vmatprep.subr.bf16.mxu0 %v2503
        %3143 = vmatpush1.bf16.msra.mxu0 %v2502
        %3144 = vmatprep.subr.bf16.mxu0 %v2511
        %3145 = vmatpush1.bf16.msra.mxu0 %v2510
        %3146 = vmatprep.subr.bf16.mxu0 %v2519
        %3147 = vmatpush1.bf16.msra.mxu0 %v2518
        %3148 = vmatprep.subr.bf16.mxu0 %v2527
        %3149 = vmatpush1.bf16.msra.mxu0 %v2526
        %3150 = vmatprep.subr.bf16.mxu0 %v2535
        %3151 = vmatpush1.bf16.msra.mxu0 %v2534
        %3152 = vmatprep.subr.bf16.mxu0 %v2543
        %3153 = vmatpush1.bf16.msra.mxu0 %v2542
        %3154 = vmatprep.subr.bf16.mxu0 %v2551
        %3155 = vmatpush1.bf16.msra.mxu0 %v2550
        %3156 = vmatprep.subr.bf16.mxu0 %v2559
        %3157 = vmatpush1.bf16.msra.mxu0 %v2558
        %3158 = vmatprep.mubr.bf16.mxu0 %v3039
        %3159 = vmatmul.mubr.bf16.gmra.mrb[0].mxu0 %v3038
        %v3160 = vpop.f32.mrb[0].mxu0
        %v3161 = vadd.f32 0.0, %v3160
        %v3162 = vpop.f32.mrb[0].mxu0
        %v3163 = vadd.f32 0.0, %v3162
        %v3164 = vpop.f32.mrb[0].mxu0
        %v3165 = vadd.f32 0.0, %v3164
        %v3166 = vpop.f32.mrb[0].mxu0
        %v3167 = vadd.f32 0.0, %v3166
        %3168 = vdwg.mxu0
        %3169 = vmatprep.subr.bf16.mxu0 %v2441
        %3170 = vmatpush1.bf16.msra.mxu0 %v2440
        %3171 = vmatprep.subr.bf16.mxu0 %v2449
        %3172 = vmatpush1.bf16.msra.mxu0 %v2448
        %3173 = vmatprep.subr.bf16.mxu0 %v2457
        %3174 = vmatpush1.bf16.msra.mxu0 %v2456
        %3175 = vmatprep.subr.bf16.mxu0 %v2465
        %3176 = vmatpush1.bf16.msra.mxu0 %v2464
        %3177 = vmatprep.subr.bf16.mxu0 %v2473
        %3178 = vmatpush1.bf16.msra.mxu0 %v2472
        %3179 = vmatprep.subr.bf16.mxu0 %v2481
        %3180 = vmatpush1.bf16.msra.mxu0 %v2480
        %3181 = vmatprep.subr.bf16.mxu0 %v2489
        %3182 = vmatpush1.bf16.msra.mxu0 %v2488
        %3183 = vmatprep.subr.bf16.mxu0 %v2497
        %3184 = vmatpush1.bf16.msra.mxu0 %v2496
        %3185 = vmatprep.subr.bf16.mxu0 %v2505
        %3186 = vmatpush1.bf16.msra.mxu0 %v2504
        %3187 = vmatprep.subr.bf16.mxu0 %v2513
        %3188 = vmatpush1.bf16.msra.mxu0 %v2512
        %3189 = vmatprep.subr.bf16.mxu0 %v2521
        %3190 = vmatpush1.bf16.msra.mxu0 %v2520
        %3191 = vmatprep.subr.bf16.mxu0 %v2529
        %3192 = vmatpush1.bf16.msra.mxu0 %v2528
        %3193 = vmatprep.subr.bf16.mxu0 %v2537
        %3194 = vmatpush1.bf16.msra.mxu0 %v2536
        %3195 = vmatprep.subr.bf16.mxu0 %v2545
        %3196 = vmatpush1.bf16.msra.mxu0 %v2544
        %3197 = vmatprep.subr.bf16.mxu0 %v2553
        %3198 = vmatpush1.bf16.msra.mxu0 %v2552
        %3199 = vmatprep.subr.bf16.mxu0 %v2561
        %3200 = vmatpush1.bf16.msra.mxu0 %v2560
        %3201 = vmatprep.mubr.bf16.mxu0 %v3039
        %3202 = vmatmul.mubr.bf16.gmra.mrb[0].mxu0 %v3038
        %v3203 = vpop.f32.mrb[0].mxu0
        %v3204 = vadd.f32 0.0, %v3203
        %v3205 = vpop.f32.mrb[0].mxu0
        %v3206 = vadd.f32 0.0, %v3205
        %v3207 = vpop.f32.mrb[0].mxu0
        %v3208 = vadd.f32 0.0, %v3207
        %v3209 = vpop.f32.mrb[0].mxu0
        %v3210 = vadd.f32 0.0, %v3209
        %3211 = vdwg.mxu0
        %v3212 = vunpack.c.l.bf16 %v3029
        %v3213 = vunpack.c.l.bf16 %v3030
        %v3214 = vunpack.c.l.bf16 %v3031
        %v3215 = vunpack.c.l.bf16 %v3032
        %v3216 = vunpack.c.h.bf16 %v3029
        %v3217 = vunpack.c.h.bf16 %v3030
        %v3218 = vunpack.c.h.bf16 %v3031
        %v3219 = vunpack.c.h.bf16 %v3032
        %v3220 = vadd.f32 %v3212, %v3075
        %v3221 = vadd.f32 %v3213, %v3077
        %v3222 = vadd.f32 %v3214, %v3118
        %v3223 = vadd.f32 %v3215, %v3120
        %v3224 = vadd.f32 %v3216, %v3079
        %v3225 = vadd.f32 %v3217, %v3081
        %v3226 = vadd.f32 %v3218, %v3122
        %v3227 = vadd.f32 %v3219, %v3124
        %v3228 = vunpack.c.l.bf16 %v3034
        %v3229 = vunpack.c.l.bf16 %v3035
        %v3230 = vunpack.c.l.bf16 %v3036
        %v3231 = vunpack.c.l.bf16 %v3037
        %v3232 = vunpack.c.h.bf16 %v3034
        %v3233 = vunpack.c.h.bf16 %v3035
        %v3234 = vunpack.c.h.bf16 %v3036
        %v3235 = vunpack.c.h.bf16 %v3037
        %v3236 = vadd.f32 %v3228, %v3161
        %v3237 = vadd.f32 %v3229, %v3163
        %v3238 = vadd.f32 %v3230, %v3204
        %v3239 = vadd.f32 %v3231, %v3206
        %v3240 = vadd.f32 %v3232, %v3165
        %v3241 = vadd.f32 %v3233, %v3167
        %v3242 = vadd.f32 %v3234, %v3208
        %v3243 = vadd.f32 %v3235, %v3210
        %v3244 = vxor.u32 %v3220, 2147483648
        %v3245 = vxor.u32 %v3224, 2147483648
        %v3246 = vmul.f32 %v3244, 1.442695
        %v3247 = vpow.pop %v3246
        %v3248 = vmul.f32 %v3245, 1.442695
        %v3249 = vpow.pop %v3248
        %v3250 = vadd.f32 %v3247, 1.0
        %v3251 = vadd.f32 %v3249, 1.0
        %v3252 = vrcp.pop %v3250
        %v3253 = vmul.f32 1.0, %v3252
        %v3254 = vrcp.pop %v3251
        %v3255 = vmul.f32 1.0, %v3254
        %v3256 = vxor.u32 %v3221, 2147483648
        %v3257 = vxor.u32 %v3225, 2147483648
        %v3258 = vmul.f32 %v3256, 1.442695
        %v3259 = vpow.pop %v3258
        %v3260 = vmul.f32 %v3257, 1.442695
        %v3261 = vpow.pop %v3260
        %v3262 = vadd.f32 %v3259, 1.0
        %v3263 = vadd.f32 %v3261, 1.0
        %v3264 = vrcp.pop %v3262
        %v3265 = vmul.f32 1.0, %v3264
        %v3266 = vrcp.pop %v3263
        %v3267 = vmul.f32 1.0, %v3266
        %v3268 = vtanh.pop %v3222
        %v3269 = vtanh.pop %v3226
        %v3270 = vxor.u32 %v3223, 2147483648
        %v3271 = vxor.u32 %v3227, 2147483648
        %v3272 = vmul.f32 %v3270, 1.442695
        %v3273 = vpow.pop %v3272
        %v3274 = vmul.f32 %v3271, 1.442695
        %v3275 = vpow.pop %v3274
        %v3276 = vadd.f32 %v3273, 1.0
        %v3277 = vadd.f32 %v3275, 1.0
        %v3278 = vrcp.pop %v3276
        %v3279 = vmul.f32 1.0, %v3278
        %v3280 = vrcp.pop %v3277
        %v3281 = vmul.f32 1.0, %v3280
        %v3282 = vmul.f32 %v3265, %v3006
        %v3283 = vmul.f32 %v3267, %v3007
        %v3284 = vmul.f32 %v3253, %v3268
        %v3285 = vmul.f32 %v3255, %v3269
        %v3286 = vadd.f32 %v3282, %v3284
        %v3287 = vadd.f32 %v3283, %v3285
        %v3288 = vtanh.pop %v3286
        %v3289 = vtanh.pop %v3287
        %v3290 = vmul.f32 %v3279, %v3288
        %v3291 = vmul.f32 %v3281, %v3289
        %v3292 = vxor.u32 %v3236, 2147483648
        %v3293 = vxor.u32 %v3240, 2147483648
        %v3294 = vmul.f32 %v3292, 1.442695
        %v3295 = vpow.pop %v3294
        %v3296 = vmul.f32 %v3293, 1.442695
        %v3297 = vpow.pop %v3296
        %v3298 = vadd.f32 %v3295, 1.0
        %v3299 = vadd.f32 %v3297, 1.0
        %v3300 = vrcp.pop %v3298
        %v3301 = vmul.f32 1.0, %v3300
        %v3302 = vrcp.pop %v3299
        %v3303 = vmul.f32 1.0, %v3302
        %v3304 = vxor.u32 %v3237, 2147483648
        %v3305 = vxor.u32 %v3241, 2147483648
        %v3306 = vmul.f32 %v3304, 1.442695
        %v3307 = vpow.pop %v3306
        %v3308 = vmul.f32 %v3305, 1.442695
        %v3309 = vpow.pop %v3308
        %v3310 = vadd.f32 %v3307, 1.0
        %v3311 = vadd.f32 %v3309, 1.0
        %v3312 = vrcp.pop %v3310
        %v3313 = vmul.f32 1.0, %v3312
        %v3314 = vrcp.pop %v3311
        %v3315 = vmul.f32 1.0, %v3314
        %v3316 = vtanh.pop %v3238
        %v3317 = vtanh.pop %v3242
        %v3318 = vxor.u32 %v3239, 2147483648
        %v3319 = vxor.u32 %v3243, 2147483648
        %v3320 = vmul.f32 %v3318, 1.442695
        %v3321 = vpow.pop %v3320
        %v3322 = vmul.f32 %v3319, 1.442695
        %v3323 = vpow.pop %v3322
        %v3324 = vadd.f32 %v3321, 1.0
        %v3325 = vadd.f32 %v3323, 1.0
        %v3326 = vrcp.pop %v3324
        %v3327 = vmul.f32 1.0, %v3326
        %v3328 = vrcp.pop %v3325
        %v3329 = vmul.f32 1.0, %v3328
        %v3330 = vmul.f32 %v3313, %v3020
        %v3331 = vmul.f32 %v3315, %v3021
        %v3332 = vmul.f32 %v3301, %v3316
        %v3333 = vmul.f32 %v3303, %v3317
        %v3334 = vadd.f32 %v3330, %v3332
        %v3335 = vadd.f32 %v3331, %v3333
        %v3336 = vtanh.pop %v3334
        %v3337 = vtanh.pop %v3335
        %v3338 = vmul.f32 %v3327, %v3336
        %v3339 = vmul.f32 %v3329, %v3337
        %vm3340 = vcmp.gt.s32.totalorder %v1910, 1
        %vm3341 = vcmp.gt.s32.totalorder %v1911, 1
        %vm3342 = vcmp.gt.s32.totalorder %v1910, 14
        %vm3343 = vcmp.gt.s32.totalorder %v1911, 14
        %v3344 = vsel %vm3340, 1, 0
        %v3345 = vsel %vm3341, 1, 0
        %3346 = vset.pattern.permute.xlu0 0
        %3347 = vperm.xlu0 %3346, %v3344
        %v3348 = vpop.permute.xlu0 %3347
        %3349 = vset.pattern.permute.xlu0 0
        %3350 = vperm.xlu0 %3349, %v3345
        %v3351 = vpop.permute.xlu0 %3350
        %vm3352 = vcmp.eq.s32.totalorder %v3348, 1
        %vm3353 = vcmp.eq.s32.totalorder %v3351, 1
        %v3354 = vsel %vm3352, %v3290, %v3004
        %v3355 = vsel %vm3353, %v3291, %v3005
        %v3356 = vsel %vm3352, %v3286, %v3006
        %v3357 = vsel %vm3353, %v3287, %v3007
        %v3358 = vsel %vm3342, 1, 0
        %v3359 = vsel %vm3343, 1, 0
        %3360 = vset.pattern.permute.xlu0 0
        %3361 = vperm.xlu0 %3360, %v3358
        %v3362 = vpop.permute.xlu0 %3361
        %3363 = vset.pattern.permute.xlu0 0
        %3364 = vperm.xlu0 %3363, %v3359
        %v3365 = vpop.permute.xlu0 %3364
        %vm3366 = vcmp.eq.s32.totalorder %v3362, 1
        %vm3367 = vcmp.eq.s32.totalorder %v3365, 1
        %v3368 = vsel %vm3366, %v3338, %v3018
        %v3369 = vsel %vm3367, %v3339, %v3019
        %v3370 = vsel %vm3366, %v3334, %v3020
        %v3371 = vsel %vm3367, %v3335, %v3021
        %v3372 = vmax.f32 %v3022, %v3354
        %v3373 = vmax.f32 %v3023, %v3355
        %v3374 = vsel %vm3366, %v3338, -1e+30
        %v3375 = vsel %vm3367, %v3339, -1e+30
        %v3376 = vmax.f32 %v3026, %v3374
        %v3377 = vmax.f32 %v3027, %v3375
        %s3378 = scalar_lea.vmem [#allocation2], 128
        %v3379 = vld [vmem:[%s3378] sm:$0xff]
        %v3380 = vld [vmem:[%s3378 + $0x8] sm:$0xff]
        %v3381 = vld [vmem:[%s3378 + $0x10] sm:$0xff]
        %v3382 = vld [vmem:[%s3378 + $0x18] sm:$0xff]
        %s3383 = scalar_lea.vmem [#allocation2], 832
        %v3384 = vld [vmem:[%s3383 + $0x20] sm:$0xff]
        %v3385 = vld [vmem:[%s3383 + $0x28] sm:$0xff]
        %v3386 = vld [vmem:[%s3383 + $0x30] sm:$0xff]
        %v3387 = vld [vmem:[%s3383 + $0x38] sm:$0xff]
        %v3388 = vpack.c.bf16 %v3355, %v3354
        %v3389 = vpack.c.bf16 %v3369, %v3368
        %3390 = vmatprep.subr.bf16.mxu0 %v2435
        %3391 = vmatpush1.bf16.msra.mxu0 %v2434
        %3392 = vmatprep.subr.bf16.mxu0 %v2443
        %3393 = vmatpush1.bf16.msra.mxu0 %v2442
        %3394 = vmatprep.subr.bf16.mxu0 %v2451
        %3395 = vmatpush1.bf16.msra.mxu0 %v2450
        %3396 = vmatprep.subr.bf16.mxu0 %v2459
        %3397 = vmatpush1.bf16.msra.mxu0 %v2458
        %3398 = vmatprep.subr.bf16.mxu0 %v2467
        %3399 = vmatpush1.bf16.msra.mxu0 %v2466
        %3400 = vmatprep.subr.bf16.mxu0 %v2475
        %3401 = vmatpush1.bf16.msra.mxu0 %v2474
        %3402 = vmatprep.subr.bf16.mxu0 %v2483
        %3403 = vmatpush1.bf16.msra.mxu0 %v2482
        %3404 = vmatprep.subr.bf16.mxu0 %v2491
        %3405 = vmatpush1.bf16.msra.mxu0 %v2490
        %3406 = vmatprep.subr.bf16.mxu0 %v2499
        %3407 = vmatpush1.bf16.msra.mxu0 %v2498
        %3408 = vmatprep.subr.bf16.mxu0 %v2507
        %3409 = vmatpush1.bf16.msra.mxu0 %v2506
        %3410 = vmatprep.subr.bf16.mxu0 %v2515
        %3411 = vmatpush1.bf16.msra.mxu0 %v2514
        %3412 = vmatprep.subr.bf16.mxu0 %v2523
        %3413 = vmatpush1.bf16.msra.mxu0 %v2522
        %3414 = vmatprep.subr.bf16.mxu0 %v2531
        %3415 = vmatpush1.bf16.msra.mxu0 %v2530
        %3416 = vmatprep.subr.bf16.mxu0 %v2539
        %3417 = vmatpush1.bf16.msra.mxu0 %v2538
        %3418 = vmatprep.subr.bf16.mxu0 %v2547
        %3419 = vmatpush1.bf16.msra.mxu0 %v2546
        %3420 = vmatprep.subr.bf16.mxu0 %v2555
        %3421 = vmatpush1.bf16.msra.mxu0 %v2554
        %3422 = vmatprep.mubr.bf16.mxu0 %v3389
        %3423 = vmatmul.mubr.bf16.gmra.mrb[0].mxu0 %v3388
        %v3424 = vpop.f32.mrb[0].mxu0
        %v3425 = vadd.f32 0.0, %v3424
        %v3426 = vpop.f32.mrb[0].mxu0
        %v3427 = vadd.f32 0.0, %v3426
        %v3428 = vpop.f32.mrb[0].mxu0
        %v3429 = vadd.f32 0.0, %v3428
        %v3430 = vpop.f32.mrb[0].mxu0
        %v3431 = vadd.f32 0.0, %v3430
        %3432 = vdwg.mxu0
        %3433 = vmatprep.subr.bf16.mxu0 %v2437
        %3434 = vmatpush1.bf16.msra.mxu0 %v2436
        %3435 = vmatprep.subr.bf16.mxu0 %v2445
        %3436 = vmatpush1.bf16.msra.mxu0 %v2444
        %3437 = vmatprep.subr.bf16.mxu0 %v2453
        %3438 = vmatpush1.bf16.msra.mxu0 %v2452
        %3439 = vmatprep.subr.bf16.mxu0 %v2461
        %3440 = vmatpush1.bf16.msra.mxu0 %v2460
        %3441 = vmatprep.subr.bf16.mxu0 %v2469
        %3442 = vmatpush1.bf16.msra.mxu0 %v2468
        %3443 = vmatprep.subr.bf16.mxu0 %v2477
        %3444 = vmatpush1.bf16.msra.mxu0 %v2476
        %3445 = vmatprep.subr.bf16.mxu0 %v2485
        %3446 = vmatpush1.bf16.msra.mxu0 %v2484
        %3447 = vmatprep.subr.bf16.mxu0 %v2493
        %3448 = vmatpush1.bf16.msra.mxu0 %v2492
        %3449 = vmatprep.subr.bf16.mxu0 %v2501
        %3450 = vmatpush1.bf16.msra.mxu0 %v2500
        %3451 = vmatprep.subr.bf16.mxu0 %v2509
        %3452 = vmatpush1.bf16.msra.mxu0 %v2508
        %3453 = vmatprep.subr.bf16.mxu0 %v2517
        %3454 = vmatpush1.bf16.msra.mxu0 %v2516
        %3455 = vmatprep.subr.bf16.mxu0 %v2525
        %3456 = vmatpush1.bf16.msra.mxu0 %v2524
        %3457 = vmatprep.subr.bf16.mxu0 %v2533
        %3458 = vmatpush1.bf16.msra.mxu0 %v2532
        %3459 = vmatprep.subr.bf16.mxu0 %v2541
        %3460 = vmatpush1.bf16.msra.mxu0 %v2540
        %3461 = vmatprep.subr.bf16.mxu0 %v2549
        %3462 = vmatpush1.bf16.msra.mxu0 %v2548
        %3463 = vmatprep.subr.bf16.mxu0 %v2557
        %3464 = vmatpush1.bf16.msra.mxu0 %v2556
        %3465 = vmatprep.mubr.bf16.mxu0 %v3389
        %3466 = vmatmul.mubr.bf16.gmra.mrb[0].mxu0 %v3388
        %v3467 = vpop.f32.mrb[0].mxu0
        %v3468 = vadd.f32 0.0, %v3467
        %v3469 = vpop.f32.mrb[0].mxu0
        %v3470 = vadd.f32 0.0, %v3469
        %v3471 = vpop.f32.mrb[0].mxu0
        %v3472 = vadd.f32 0.0, %v3471
        %v3473 = vpop.f32.mrb[0].mxu0
        %v3474 = vadd.f32 0.0, %v3473
        %3475 = vdwg.mxu0
        %3476 = vmatprep.subr.bf16.mxu0 %v2439
        %3477 = vmatpush1.bf16.msra.mxu0 %v2438
        %3478 = vmatprep.subr.bf16.mxu0 %v2447
        %3479 = vmatpush1.bf16.msra.mxu0 %v2446
        %3480 = vmatprep.subr.bf16.mxu0 %v2455
        %3481 = vmatpush1.bf16.msra.mxu0 %v2454
        %3482 = vmatprep.subr.bf16.mxu0 %v2463
        %3483 = vmatpush1.bf16.msra.mxu0 %v2462
        %3484 = vmatprep.subr.bf16.mxu0 %v2471
        %3485 = vmatpush1.bf16.msra.mxu0 %v2470
        %3486 = vmatprep.subr.bf16.mxu0 %v2479
        %3487 = vmatpush1.bf16.msra.mxu0 %v2478
        %3488 = vmatprep.subr.bf16.mxu0 %v2487
        %3489 = vmatpush1.bf16.msra.mxu0 %v2486
        %3490 = vmatprep.subr.bf16.mxu0 %v2495
        %3491 = vmatpush1.bf16.msra.mxu0 %v2494
        %3492 = vmatprep.subr.bf16.mxu0 %v2503
        %3493 = vmatpush1.bf16.msra.mxu0 %v2502
        %3494 = vmatprep.subr.bf16.mxu0 %v2511
        %3495 = vmatpush1.bf16.msra.mxu0 %v2510
        %3496 = vmatprep.subr.bf16.mxu0 %v2519
        %3497 = vmatpush1.bf16.msra.mxu0 %v2518
        %3498 = vmatprep.subr.bf16.mxu0 %v2527
        %3499 = vmatpush1.bf16.msra.mxu0 %v2526
        %3500 = vmatprep.subr.bf16.mxu0 %v2535
        %3501 = vmatpush1.bf16.msra.mxu0 %v2534
        %3502 = vmatprep.subr.bf16.mxu0 %v2543
        %3503 = vmatpush1.bf16.msra.mxu0 %v2542
        %3504 = vmatprep.subr.bf16.mxu0 %v2551
        %3505 = vmatpush1.bf16.msra.mxu0 %v2550
        %3506 = vmatprep.subr.bf16.mxu0 %v2559
        %3507 = vmatpush1.bf16.msra.mxu0 %v2558
        %3508 = vmatprep.mubr.bf16.mxu0 %v3389
        %3509 = vmatmul.mubr.bf16.gmra.mrb[0].mxu0 %v3388
        %v3510 = vpop.f32.mrb[0].mxu0
        %v3511 = vadd.f32 0.0, %v3510
        %v3512 = vpop.f32.mrb[0].mxu0
        %v3513 = vadd.f32 0.0, %v3512
        %v3514 = vpop.f32.mrb[0].mxu0
        %v3515 = vadd.f32 0.0, %v3514
        %v3516 = vpop.f32.mrb[0].mxu0
        %v3517 = vadd.f32 0.0, %v3516
        %3518 = vdwg.mxu0
        %3519 = vmatprep.subr.bf16.mxu0 %v2441
        %3520 = vmatpush1.bf16.msra.mxu0 %v2440
        %3521 = vmatprep.subr.bf16.mxu0 %v2449
        %3522 = vmatpush1.bf16.msra.mxu0 %v2448
        %3523 = vmatprep.subr.bf16.mxu0 %v2457
        %3524 = vmatpush1.bf16.msra.mxu0 %v2456
        %3525 = vmatprep.subr.bf16.mxu0 %v2465
        %3526 = vmatpush1.bf16.msra.mxu0 %v2464
        %3527 = vmatprep.subr.bf16.mxu0 %v2473
        %3528 = vmatpush1.bf16.msra.mxu0 %v2472
        %3529 = vmatprep.subr.bf16.mxu0 %v2481
        %3530 = vmatpush1.bf16.msra.mxu0 %v2480
        %3531 = vmatprep.subr.bf16.mxu0 %v2489
        %3532 = vmatpush1.bf16.msra.mxu0 %v2488
        %3533 = vmatprep.subr.bf16.mxu0 %v2497
        %3534 = vmatpush1.bf16.msra.mxu0 %v2496
        %3535 = vmatprep.subr.bf16.mxu0 %v2505
        %3536 = vmatpush1.bf16.msra.mxu0 %v2504
        %3537 = vmatprep.subr.bf16.mxu0 %v2513
        %3538 = vmatpush1.bf16.msra.mxu0 %v2512
        %3539 = vmatprep.subr.bf16.mxu0 %v2521
        %3540 = vmatpush1.bf16.msra.mxu0 %v2520
        %3541 = vmatprep.subr.bf16.mxu0 %v2529
        %3542 = vmatpush1.bf16.msra.mxu0 %v2528
        %3543 = vmatprep.subr.bf16.mxu0 %v2537
        %3544 = vmatpush1.bf16.msra.mxu0 %v2536
        %3545 = vmatprep.subr.bf16.mxu0 %v2545
        %3546 = vmatpush1.bf16.msra.mxu0 %v2544
        %3547 = vmatprep.subr.bf16.mxu0 %v2553
        %3548 = vmatpush1.bf16.msra.mxu0 %v2552
        %3549 = vmatprep.subr.bf16.mxu0 %v2561
        %3550 = vmatpush1.bf16.msra.mxu0 %v2560
        %3551 = vmatprep.mubr.bf16.mxu0 %v3389
        %3552 = vmatmul.mubr.bf16.gmra.mrb[0].mxu0 %v3388
        %v3553 = vpop.f32.mrb[0].mxu0
        %v3554 = vadd.f32 0.0, %v3553
        %v3555 = vpop.f32.mrb[0].mxu0
        %v3556 = vadd.f32 0.0, %v3555
        %v3557 = vpop.f32.mrb[0].mxu0
        %v3558 = vadd.f32 0.0, %v3557
        %v3559 = vpop.f32.mrb[0].mxu0
        %v3560 = vadd.f32 0.0, %v3559
        %3561 = vdwg.mxu0
        %v3562 = vunpack.c.l.bf16 %v3379
        %v3563 = vunpack.c.l.bf16 %v3380
        %v3564 = vunpack.c.l.bf16 %v3381
        %v3565 = vunpack.c.l.bf16 %v3382
        %v3566 = vunpack.c.h.bf16 %v3379
        %v3567 = vunpack.c.h.bf16 %v3380
        %v3568 = vunpack.c.h.bf16 %v3381
        %v3569 = vunpack.c.h.bf16 %v3382
        %v3570 = vadd.f32 %v3562, %v3425
        %v3571 = vadd.f32 %v3563, %v3427
        %v3572 = vadd.f32 %v3564, %v3468
        %v3573 = vadd.f32 %v3565, %v3470
        %v3574 = vadd.f32 %v3566, %v3429
        %v3575 = vadd.f32 %v3567, %v3431
        %v3576 = vadd.f32 %v3568, %v3472
        %v3577 = vadd.f32 %v3569, %v3474
        %v3578 = vunpack.c.l.bf16 %v3384
        %v3579 = vunpack.c.l.bf16 %v3385
        %v3580 = vunpack.c.l.bf16 %v3386
        %v3581 = vunpack.c.l.bf16 %v3387
        %v3582 = vunpack.c.h.bf16 %v3384
        %v3583 = vunpack.c.h.bf16 %v3385
        %v3584 = vunpack.c.h.bf16 %v3386
        %v3585 = vunpack.c.h.bf16 %v3387
        %v3586 = vadd.f32 %v3578, %v3511
        %v3587 = vadd.f32 %v3579, %v3513
        %v3588 = vadd.f32 %v3580, %v3554
        %v3589 = vadd.f32 %v3581, %v3556
        %v3590 = vadd.f32 %v3582, %v3515
        %v3591 = vadd.f32 %v3583, %v3517
        %v3592 = vadd.f32 %v3584, %v3558
        %v3593 = vadd.f32 %v3585, %v3560
        %v3594 = vxor.u32 %v3570, 2147483648
        %v3595 = vxor.u32 %v3574, 2147483648
        %v3596 = vmul.f32 %v3594, 1.442695
        %v3597 = vpow.pop %v3596
        %v3598 = vmul.f32 %v3595, 1.442695
        %v3599 = vpow.pop %v3598
        %v3600 = vadd.f32 %v3597, 1.0
        %v3601 = vadd.f32 %v3599, 1.0
        %v3602 = vrcp.pop %v3600
        %v3603 = vmul.f32 1.0, %v3602
        %v3604 = vrcp.pop %v3601
        %v3605 = vmul.f32 1.0, %v3604
        %v3606 = vxor.u32 %v3571, 2147483648
        %v3607 = vxor.u32 %v3575, 2147483648
        %v3608 = vmul.f32 %v3606, 1.442695
        %v3609 = vpow.pop %v3608
        %v3610 = vmul.f32 %v3607, 1.442695
        %v3611 = vpow.pop %v3610
        %v3612 = vadd.f32 %v3609, 1.0
        %v3613 = vadd.f32 %v3611, 1.0
        %v3614 = vrcp.pop %v3612
        %v3615 = vmul.f32 1.0, %v3614
        %v3616 = vrcp.pop %v3613
        %v3617 = vmul.f32 1.0, %v3616
        %v3618 = vtanh.pop %v3572
        %v3619 = vtanh.pop %v3576
        %v3620 = vxor.u32 %v3573, 2147483648
        %v3621 = vxor.u32 %v3577, 2147483648
        %v3622 = vmul.f32 %v3620, 1.442695
        %v3623 = vpow.pop %v3622
        %v3624 = vmul.f32 %v3621, 1.442695
        %v3625 = vpow.pop %v3624
        %v3626 = vadd.f32 %v3623, 1.0
        %v3627 = vadd.f32 %v3625, 1.0
        %v3628 = vrcp.pop %v3626
        %v3629 = vmul.f32 1.0, %v3628
        %v3630 = vrcp.pop %v3627
        %v3631 = vmul.f32 1.0, %v3630
        %v3632 = vmul.f32 %v3615, %v3356
        %v3633 = vmul.f32 %v3617, %v3357
        %v3634 = vmul.f32 %v3603, %v3618
        %v3635 = vmul.f32 %v3605, %v3619
        %v3636 = vadd.f32 %v3632, %v3634
        %v3637 = vadd.f32 %v3633, %v3635
        %v3638 = vtanh.pop %v3636
        %v3639 = vtanh.pop %v3637
        %v3640 = vmul.f32 %v3629, %v3638
        %v3641 = vmul.f32 %v3631, %v3639
        %v3642 = vxor.u32 %v3586, 2147483648
        %v3643 = vxor.u32 %v3590, 2147483648
        %v3644 = vmul.f32 %v3642, 1.442695
        %v3645 = vpow.pop %v3644
        %v3646 = vmul.f32 %v3643, 1.442695
        %v3647 = vpow.pop %v3646
        %v3648 = vadd.f32 %v3645, 1.0
        %v3649 = vadd.f32 %v3647, 1.0
        %v3650 = vrcp.pop %v3648
        %v3651 = vmul.f32 1.0, %v3650
        %v3652 = vrcp.pop %v3649
        %v3653 = vmul.f32 1.0, %v3652
        %v3654 = vxor.u32 %v3587, 2147483648
        %v3655 = vxor.u32 %v3591, 2147483648
        %v3656 = vmul.f32 %v3654, 1.442695
        %v3657 = vpow.pop %v3656
        %v3658 = vmul.f32 %v3655, 1.442695
        %v3659 = vpow.pop %v3658
        %v3660 = vadd.f32 %v3657, 1.0
        %v3661 = vadd.f32 %v3659, 1.0
        %v3662 = vrcp.pop %v3660
        %v3663 = vmul.f32 1.0, %v3662
        %v3664 = vrcp.pop %v3661
        %v3665 = vmul.f32 1.0, %v3664
        %v3666 = vtanh.pop %v3588
        %v3667 = vtanh.pop %v3592
        %v3668 = vxor.u32 %v3589, 2147483648
        %v3669 = vxor.u32 %v3593, 2147483648
        %v3670 = vmul.f32 %v3668, 1.442695
        %v3671 = vpow.pop %v3670
        %v3672 = vmul.f32 %v3669, 1.442695
        %v3673 = vpow.pop %v3672
        %v3674 = vadd.f32 %v3671, 1.0
        %v3675 = vadd.f32 %v3673, 1.0
        %v3676 = vrcp.pop %v3674
        %v3677 = vmul.f32 1.0, %v3676
        %v3678 = vrcp.pop %v3675
        %v3679 = vmul.f32 1.0, %v3678
        %v3680 = vmul.f32 %v3663, %v3370
        %v3681 = vmul.f32 %v3665, %v3371
        %v3682 = vmul.f32 %v3651, %v3666
        %v3683 = vmul.f32 %v3653, %v3667
        %v3684 = vadd.f32 %v3680, %v3682
        %v3685 = vadd.f32 %v3681, %v3683
        %v3686 = vtanh.pop %v3684
        %v3687 = vtanh.pop %v3685
        %v3688 = vmul.f32 %v3677, %v3686
        %v3689 = vmul.f32 %v3679, %v3687
        %vm3690 = vcmp.gt.s32.totalorder %v1910, 2
        %vm3691 = vcmp.gt.s32.totalorder %v1911, 2
        %vm3692 = vcmp.gt.s32.totalorder %v1910, 13
        %vm3693 = vcmp.gt.s32.totalorder %v1911, 13
        %v3694 = vsel %vm3690, 1, 0
        %v3695 = vsel %vm3691, 1, 0
        %3696 = vset.pattern.permute.xlu0 0
        %3697 = vperm.xlu0 %3696, %v3694
        %v3698 = vpop.permute.xlu0 %3697
        %3699 = vset.pattern.permute.xlu0 0
        %3700 = vperm.xlu0 %3699, %v3695
        %v3701 = vpop.permute.xlu0 %3700
        %vm3702 = vcmp.eq.s32.totalorder %v3698, 1
        %vm3703 = vcmp.eq.s32.totalorder %v3701, 1
        %v3704 = vsel %vm3702, %v3640, %v3354
        %v3705 = vsel %vm3703, %v3641, %v3355
        %v3706 = vsel %vm3702, %v3636, %v3356
        %v3707 = vsel %vm3703, %v3637, %v3357
        %v3708 = vsel %vm3692, 1, 0
        %v3709 = vsel %vm3693, 1, 0
        %3710 = vset.pattern.permute.xlu0 0
        %3711 = vperm.xlu0 %3710, %v3708
        %v3712 = vpop.permute.xlu0 %3711
        %3713 = vset.pattern.permute.xlu0 0
        %3714 = vperm.xlu0 %3713, %v3709
        %v3715 = vpop.permute.xlu0 %3714
        %vm3716 = vcmp.eq.s32.totalorder %v3712, 1
        %vm3717 = vcmp.eq.s32.totalorder %v3715, 1
        %v3718 = vsel %vm3716, %v3688, %v3368
        %v3719 = vsel %vm3717, %v3689, %v3369
        %v3720 = vsel %vm3716, %v3684, %v3370
        %v3721 = vsel %vm3717, %v3685, %v3371
        %v3722 = vmax.f32 %v3372, %v3704
        %v3723 = vmax.f32 %v3373, %v3705
        %v3724 = vsel %vm3716, %v3688, -1e+30
        %v3725 = vsel %vm3717, %v3689, -1e+30
        %v3726 = vmax.f32 %v3376, %v3724
        %v3727 = vmax.f32 %v3377, %v3725
        %s3728 = scalar_lea.vmem [#allocation2], 192
        %v3729 = vld [vmem:[%s3728] sm:$0xff]
        %v3730 = vld [vmem:[%s3728 + $0x8] sm:$0xff]
        %v3731 = vld [vmem:[%s3728 + $0x10] sm:$0xff]
        %v3732 = vld [vmem:[%s3728 + $0x18] sm:$0xff]
        %s3733 = scalar_lea.vmem [#allocation2], 768
        %v3734 = vld [vmem:[%s3733 + $0x20] sm:$0xff]
        %v3735 = vld [vmem:[%s3733 + $0x28] sm:$0xff]
        %v3736 = vld [vmem:[%s3733 + $0x30] sm:$0xff]
        %v3737 = vld [vmem:[%s3733 + $0x38] sm:$0xff]
        %v3738 = vpack.c.bf16 %v3705, %v3704
        %v3739 = vpack.c.bf16 %v3719, %v3718
        %3740 = vmatprep.subr.bf16.mxu0 %v2435
        %3741 = vmatpush1.bf16.msra.mxu0 %v2434
        %3742 = vmatprep.subr.bf16.mxu0 %v2443
        %3743 = vmatpush1.bf16.msra.mxu0 %v2442
        %3744 = vmatprep.subr.bf16.mxu0 %v2451
        %3745 = vmatpush1.bf16.msra.mxu0 %v2450
        %3746 = vmatprep.subr.bf16.mxu0 %v2459
        %3747 = vmatpush1.bf16.msra.mxu0 %v2458
        %3748 = vmatprep.subr.bf16.mxu0 %v2467
        %3749 = vmatpush1.bf16.msra.mxu0 %v2466
        %3750 = vmatprep.subr.bf16.mxu0 %v2475
        %3751 = vmatpush1.bf16.msra.mxu0 %v2474
        %3752 = vmatprep.subr.bf16.mxu0 %v2483
        %3753 = vmatpush1.bf16.msra.mxu0 %v2482
        %3754 = vmatprep.subr.bf16.mxu0 %v2491
        %3755 = vmatpush1.bf16.msra.mxu0 %v2490
        %3756 = vmatprep.subr.bf16.mxu0 %v2499
        %3757 = vmatpush1.bf16.msra.mxu0 %v2498
        %3758 = vmatprep.subr.bf16.mxu0 %v2507
        %3759 = vmatpush1.bf16.msra.mxu0 %v2506
        %3760 = vmatprep.subr.bf16.mxu0 %v2515
        %3761 = vmatpush1.bf16.msra.mxu0 %v2514
        %3762 = vmatprep.subr.bf16.mxu0 %v2523
        %3763 = vmatpush1.bf16.msra.mxu0 %v2522
        %3764 = vmatprep.subr.bf16.mxu0 %v2531
        %3765 = vmatpush1.bf16.msra.mxu0 %v2530
        %3766 = vmatprep.subr.bf16.mxu0 %v2539
        %3767 = vmatpush1.bf16.msra.mxu0 %v2538
        %3768 = vmatprep.subr.bf16.mxu0 %v2547
        %3769 = vmatpush1.bf16.msra.mxu0 %v2546
        %3770 = vmatprep.subr.bf16.mxu0 %v2555
        %3771 = vmatpush1.bf16.msra.mxu0 %v2554
        %3772 = vmatprep.mubr.bf16.mxu0 %v3739
        %3773 = vmatmul.mubr.bf16.gmra.mrb[0].mxu0 %v3738
        %v3774 = vpop.f32.mrb[0].mxu0
        %v3775 = vadd.f32 0.0, %v3774
        %v3776 = vpop.f32.mrb[0].mxu0
        %v3777 = vadd.f32 0.0, %v3776
        %v3778 = vpop.f32.mrb[0].mxu0
        %v3779 = vadd.f32 0.0, %v3778
        %v3780 = vpop.f32.mrb[0].mxu0
        %v3781 = vadd.f32 0.0, %v3780
        %3782 = vdwg.mxu0
        %3783 = vmatprep.subr.bf16.mxu0 %v2437
        %3784 = vmatpush1.bf16.msra.mxu0 %v2436
        %3785 = vmatprep.subr.bf16.mxu0 %v2445
        %3786 = vmatpush1.bf16.msra.mxu0 %v2444
        %3787 = vmatprep.subr.bf16.mxu0 %v2453
        %3788 = vmatpush1.bf16.msra.mxu0 %v2452
        %3789 = vmatprep.subr.bf16.mxu0 %v2461
        %3790 = vmatpush1.bf16.msra.mxu0 %v2460
        %3791 = vmatprep.subr.bf16.mxu0 %v2469
        %3792 = vmatpush1.bf16.msra.mxu0 %v2468
        %3793 = vmatprep.subr.bf16.mxu0 %v2477
        %3794 = vmatpush1.bf16.msra.mxu0 %v2476
        %3795 = vmatprep.subr.bf16.mxu0 %v2485
        %3796 = vmatpush1.bf16.msra.mxu0 %v2484
        %3797 = vmatprep.subr.bf16.mxu0 %v2493
        %3798 = vmatpush1.bf16.msra.mxu0 %v2492
        %3799 = vmatprep.subr.bf16.mxu0 %v2501
        %3800 = vmatpush1.bf16.msra.mxu0 %v2500
        %3801 = vmatprep.subr.bf16.mxu0 %v2509
        %3802 = vmatpush1.bf16.msra.mxu0 %v2508
        %3803 = vmatprep.subr.bf16.mxu0 %v2517
        %3804 = vmatpush1.bf16.msra.mxu0 %v2516
        %3805 = vmatprep.subr.bf16.mxu0 %v2525
        %3806 = vmatpush1.bf16.msra.mxu0 %v2524
        %3807 = vmatprep.subr.bf16.mxu0 %v2533
        %3808 = vmatpush1.bf16.msra.mxu0 %v2532
        %3809 = vmatprep.subr.bf16.mxu0 %v2541
        %3810 = vmatpush1.bf16.msra.mxu0 %v2540
        %3811 = vmatprep.subr.bf16.mxu0 %v2549
        %3812 = vmatpush1.bf16.msra.mxu0 %v2548
        %3813 = vmatprep.subr.bf16.mxu0 %v2557
        %3814 = vmatpush1.bf16.msra.mxu0 %v2556
        %3815 = vmatprep.mubr.bf16.mxu0 %v3739
        %3816 = vmatmul.mubr.bf16.gmra.mrb[0].mxu0 %v3738
        %v3817 = vpop.f32.mrb[0].mxu0
        %v3818 = vadd.f32 0.0, %v3817
        %v3819 = vpop.f32.mrb[0].mxu0
        %v3820 = vadd.f32 0.0, %v3819
        %v3821 = vpop.f32.mrb[0].mxu0
        %v3822 = vadd.f32 0.0, %v3821
        %v3823 = vpop.f32.mrb[0].mxu0
        %v3824 = vadd.f32 0.0, %v3823
        %3825 = vdwg.mxu0
        %3826 = vmatprep.subr.bf16.mxu0 %v2439
        %3827 = vmatpush1.bf16.msra.mxu0 %v2438
        %3828 = vmatprep.subr.bf16.mxu0 %v2447
        %3829 = vmatpush1.bf16.msra.mxu0 %v2446
        %3830 = vmatprep.subr.bf16.mxu0 %v2455
        %3831 = vmatpush1.bf16.msra.mxu0 %v2454
        %3832 = vmatprep.subr.bf16.mxu0 %v2463
        %3833 = vmatpush1.bf16.msra.mxu0 %v2462
        %3834 = vmatprep.subr.bf16.mxu0 %v2471
        %3835 = vmatpush1.bf16.msra.mxu0 %v2470
        %3836 = vmatprep.subr.bf16.mxu0 %v2479
        %3837 = vmatpush1.bf16.msra.mxu0 %v2478
        %3838 = vmatprep.subr.bf16.mxu0 %v2487
        %3839 = vmatpush1.bf16.msra.mxu0 %v2486
        %3840 = vmatprep.subr.bf16.mxu0 %v2495
        %3841 = vmatpush1.bf16.msra.mxu0 %v2494
        %3842 = vmatprep.subr.bf16.mxu0 %v2503
        %3843 = vmatpush1.bf16.msra.mxu0 %v2502
        %3844 = vmatprep.subr.bf16.mxu0 %v2511
        %3845 = vmatpush1.bf16.msra.mxu0 %v2510
        %3846 = vmatprep.subr.bf16.mxu0 %v2519
        %3847 = vmatpush1.bf16.msra.mxu0 %v2518
        %3848 = vmatprep.subr.bf16.mxu0 %v2527
        %3849 = vmatpush1.bf16.msra.mxu0 %v2526
        %3850 = vmatprep.subr.bf16.mxu0 %v2535
        %3851 = vmatpush1.bf16.msra.mxu0 %v2534
        %3852 = vmatprep.subr.bf16.mxu0 %v2543
        %3853 = vmatpush1.bf16.msra.mxu0 %v2542
        %3854 = vmatprep.subr.bf16.mxu0 %v2551
        %3855 = vmatpush1.bf16.msra.mxu0 %v2550
        %3856 = vmatprep.subr.bf16.mxu0 %v2559
        %3857 = vmatpush1.bf16.msra.mxu0 %v2558
        %3858 = vmatprep.mubr.bf16.mxu0 %v3739
        %3859 = vmatmul.mubr.bf16.gmra.mrb[0].mxu0 %v3738
        %v3860 = vpop.f32.mrb[0].mxu0
        %v3861 = vadd.f32 0.0, %v3860
        %v3862 = vpop.f32.mrb[0].mxu0
        %v3863 = vadd.f32 0.0, %v3862
        %v3864 = vpop.f32.mrb[0].mxu0
        %v3865 = vadd.f32 0.0, %v3864
        %v3866 = vpop.f32.mrb[0].mxu0
        %v3867 = vadd.f32 0.0, %v3866
        %3868 = vdwg.mxu0
        %3869 = vmatprep.subr.bf16.mxu0 %v2441
        %3870 = vmatpush1.bf16.msra.mxu0 %v2440
        %3871 = vmatprep.subr.bf16.mxu0 %v2449
        %3872 = vmatpush1.bf16.msra.mxu0 %v2448
        %3873 = vmatprep.subr.bf16.mxu0 %v2457
        %3874 = vmatpush1.bf16.msra.mxu0 %v2456
        %3875 = vmatprep.subr.bf16.mxu0 %v2465
        %3876 = vmatpush1.bf16.msra.mxu0 %v2464
        %3877 = vmatprep.subr.bf16.mxu0 %v2473
        %3878 = vmatpush1.bf16.msra.mxu0 %v2472
        %3879 = vmatprep.subr.bf16.mxu0 %v2481
        %3880 = vmatpush1.bf16.msra.mxu0 %v2480
        %3881 = vmatprep.subr.bf16.mxu0 %v2489
        %3882 = vmatpush1.bf16.msra.mxu0 %v2488
        %3883 = vmatprep.subr.bf16.mxu0 %v2497
        %3884 = vmatpush1.bf16.msra.mxu0 %v2496
        %3885 = vmatprep.subr.bf16.mxu0 %v2505
        %3886 = vmatpush1.bf16.msra.mxu0 %v2504
        %3887 = vmatprep.subr.bf16.mxu0 %v2513
        %3888 = vmatpush1.bf16.msra.mxu0 %v2512
        %3889 = vmatprep.subr.bf16.mxu0 %v2521
        %3890 = vmatpush1.bf16.msra.mxu0 %v2520
        %3891 = vmatprep.subr.bf16.mxu0 %v2529
        %3892 = vmatpush1.bf16.msra.mxu0 %v2528
        %3893 = vmatprep.subr.bf16.mxu0 %v2537
        %3894 = vmatpush1.bf16.msra.mxu0 %v2536
        %3895 = vmatprep.subr.bf16.mxu0 %v2545
        %3896 = vmatpush1.bf16.msra.mxu0 %v2544
        %3897 = vmatprep.subr.bf16.mxu0 %v2553
        %3898 = vmatpush1.bf16.msra.mxu0 %v2552
        %3899 = vmatprep.subr.bf16.mxu0 %v2561
        %3900 = vmatpush1.bf16.msra.mxu0 %v2560
        %3901 = vmatprep.mubr.bf16.mxu0 %v3739
        %3902 = vmatmul.mubr.bf16.gmra.mrb[0].mxu0 %v3738
        %v3903 = vpop.f32.mrb[0].mxu0
        %v3904 = vadd.f32 0.0, %v3903
        %v3905 = vpop.f32.mrb[0].mxu0
        %v3906 = vadd.f32 0.0, %v3905
        %v3907 = vpop.f32.mrb[0].mxu0
        %v3908 = vadd.f32 0.0, %v3907
        %v3909 = vpop.f32.mrb[0].mxu0
        %v3910 = vadd.f32 0.0, %v3909
        %3911 = vdwg.mxu0
        %v3912 = vunpack.c.l.bf16 %v3729
        %v3913 = vunpack.c.l.bf16 %v3730
        %v3914 = vunpack.c.l.bf16 %v3731
        %v3915 = vunpack.c.l.bf16 %v3732
        %v3916 = vunpack.c.h.bf16 %v3729
        %v3917 = vunpack.c.h.bf16 %v3730
        %v3918 = vunpack.c.h.bf16 %v3731
        %v3919 = vunpack.c.h.bf16 %v3732
        %v3920 = vadd.f32 %v3912, %v3775
        %v3921 = vadd.f32 %v3913, %v3777
        %v3922 = vadd.f32 %v3914, %v3818
        %v3923 = vadd.f32 %v3915, %v3820
        %v3924 = vadd.f32 %v3916, %v3779
        %v3925 = vadd.f32 %v3917, %v3781
        %v3926 = vadd.f32 %v3918, %v3822
        %v3927 = vadd.f32 %v3919, %v3824
        %v3928 = vunpack.c.l.bf16 %v3734
        %v3929 = vunpack.c.l.bf16 %v3735
        %v3930 = vunpack.c.l.bf16 %v3736
        %v3931 = vunpack.c.l.bf16 %v3737
        %v3932 = vunpack.c.h.bf16 %v3734
        %v3933 = vunpack.c.h.bf16 %v3735
        %v3934 = vunpack.c.h.bf16 %v3736
        %v3935 = vunpack.c.h.bf16 %v3737
        %v3936 = vadd.f32 %v3928, %v3861
        %v3937 = vadd.f32 %v3929, %v3863
        %v3938 = vadd.f32 %v3930, %v3904
        %v3939 = vadd.f32 %v3931, %v3906
        %v3940 = vadd.f32 %v3932, %v3865
        %v3941 = vadd.f32 %v3933, %v3867
        %v3942 = vadd.f32 %v3934, %v3908
        %v3943 = vadd.f32 %v3935, %v3910
        %v3944 = vxor.u32 %v3920, 2147483648
        %v3945 = vxor.u32 %v3924, 2147483648
        %v3946 = vmul.f32 %v3944, 1.442695
        %v3947 = vpow.pop %v3946
        %v3948 = vmul.f32 %v3945, 1.442695
        %v3949 = vpow.pop %v3948
        %v3950 = vadd.f32 %v3947, 1.0
        %v3951 = vadd.f32 %v3949, 1.0
        %v3952 = vrcp.pop %v3950
        %v3953 = vmul.f32 1.0, %v3952
        %v3954 = vrcp.pop %v3951
        %v3955 = vmul.f32 1.0, %v3954
        %v3956 = vxor.u32 %v3921, 2147483648
        %v3957 = vxor.u32 %v3925, 2147483648
        %v3958 = vmul.f32 %v3956, 1.442695
        %v3959 = vpow.pop %v3958
        %v3960 = vmul.f32 %v3957, 1.442695
        %v3961 = vpow.pop %v3960
        %v3962 = vadd.f32 %v3959, 1.0
        %v3963 = vadd.f32 %v3961, 1.0
        %v3964 = vrcp.pop %v3962
        %v3965 = vmul.f32 1.0, %v3964
        %v3966 = vrcp.pop %v3963
        %v3967 = vmul.f32 1.0, %v3966
        %v3968 = vtanh.pop %v3922
        %v3969 = vtanh.pop %v3926
        %v3970 = vxor.u32 %v3923, 2147483648
        %v3971 = vxor.u32 %v3927, 2147483648
        %v3972 = vmul.f32 %v3970, 1.442695
        %v3973 = vpow.pop %v3972
        %v3974 = vmul.f32 %v3971, 1.442695
        %v3975 = vpow.pop %v3974
        %v3976 = vadd.f32 %v3973, 1.0
        %v3977 = vadd.f32 %v3975, 1.0
        %v3978 = vrcp.pop %v3976
        %v3979 = vmul.f32 1.0, %v3978
        %v3980 = vrcp.pop %v3977
        %v3981 = vmul.f32 1.0, %v3980
        %v3982 = vmul.f32 %v3965, %v3706
        %v3983 = vmul.f32 %v3967, %v3707
        %v3984 = vmul.f32 %v3953, %v3968
        %v3985 = vmul.f32 %v3955, %v3969
        %v3986 = vadd.f32 %v3982, %v3984
        %v3987 = vadd.f32 %v3983, %v3985
        %v3988 = vtanh.pop %v3986
        %v3989 = vtanh.pop %v3987
        %v3990 = vmul.f32 %v3979, %v3988
        %v3991 = vmul.f32 %v3981, %v3989
        %v3992 = vxor.u32 %v3936, 2147483648
        %v3993 = vxor.u32 %v3940, 2147483648
        %v3994 = vmul.f32 %v3992, 1.442695
        %v3995 = vpow.pop %v3994
        %v3996 = vmul.f32 %v3993, 1.442695
        %v3997 = vpow.pop %v3996
        %v3998 = vadd.f32 %v3995, 1.0
        %v3999 = vadd.f32 %v3997, 1.0
        %v4000 = vrcp.pop %v3998
        %v4001 = vmul.f32 1.0, %v4000
        %v4002 = vrcp.pop %v3999
        %v4003 = vmul.f32 1.0, %v4002
        %v4004 = vxor.u32 %v3937, 2147483648
        %v4005 = vxor.u32 %v3941, 2147483648
        %v4006 = vmul.f32 %v4004, 1.442695
        %v4007 = vpow.pop %v4006
        %v4008 = vmul.f32 %v4005, 1.442695
        %v4009 = vpow.pop %v4008
        %v4010 = vadd.f32 %v4007, 1.0
        %v4011 = vadd.f32 %v4009, 1.0
        %v4012 = vrcp.pop %v4010
        %v4013 = vmul.f32 1.0, %v4012
        %v4014 = vrcp.pop %v4011
        %v4015 = vmul.f32 1.0, %v4014
        %v4016 = vtanh.pop %v3938
        %v4017 = vtanh.pop %v3942
        %v4018 = vxor.u32 %v3939, 2147483648
        %v4019 = vxor.u32 %v3943, 2147483648
        %v4020 = vmul.f32 %v4018, 1.442695
        %v4021 = vpow.pop %v4020
        %v4022 = vmul.f32 %v4019, 1.442695
        %v4023 = vpow.pop %v4022
        %v4024 = vadd.f32 %v4021, 1.0
        %v4025 = vadd.f32 %v4023, 1.0
        %v4026 = vrcp.pop %v4024
        %v4027 = vmul.f32 1.0, %v4026
        %v4028 = vrcp.pop %v4025
        %v4029 = vmul.f32 1.0, %v4028
        %v4030 = vmul.f32 %v4013, %v3720
        %v4031 = vmul.f32 %v4015, %v3721
        %v4032 = vmul.f32 %v4001, %v4016
        %v4033 = vmul.f32 %v4003, %v4017
        %v4034 = vadd.f32 %v4030, %v4032
        %v4035 = vadd.f32 %v4031, %v4033
        %v4036 = vtanh.pop %v4034
        %v4037 = vtanh.pop %v4035
        %v4038 = vmul.f32 %v4027, %v4036
        %v4039 = vmul.f32 %v4029, %v4037
        %vm4040 = vcmp.gt.s32.totalorder %v1910, 3
        %vm4041 = vcmp.gt.s32.totalorder %v1911, 3
        %vm4042 = vcmp.gt.s32.totalorder %v1910, 12
        %vm4043 = vcmp.gt.s32.totalorder %v1911, 12
        %v4044 = vsel %vm4040, 1, 0
        %v4045 = vsel %vm4041, 1, 0
        %4046 = vset.pattern.permute.xlu0 0
        %4047 = vperm.xlu0 %4046, %v4044
        %v4048 = vpop.permute.xlu0 %4047
        %4049 = vset.pattern.permute.xlu0 0
        %4050 = vperm.xlu0 %4049, %v4045
        %v4051 = vpop.permute.xlu0 %4050
        %vm4052 = vcmp.eq.s32.totalorder %v4048, 1
        %vm4053 = vcmp.eq.s32.totalorder %v4051, 1
        %v4054 = vsel %vm4052, %v3990, %v3704
        %v4055 = vsel %vm4053, %v3991, %v3705
        %v4056 = vsel %vm4052, %v3986, %v3706
        %v4057 = vsel %vm4053, %v3987, %v3707
        %v4058 = vsel %vm4042, 1, 0
        %v4059 = vsel %vm4043, 1, 0
        %4060 = vset.pattern.permute.xlu0 0
        %4061 = vperm.xlu0 %4060, %v4058
        %v4062 = vpop.permute.xlu0 %4061
        %4063 = vset.pattern.permute.xlu0 0
        %4064 = vperm.xlu0 %4063, %v4059
        %v4065 = vpop.permute.xlu0 %4064
        %vm4066 = vcmp.eq.s32.totalorder %v4062, 1
        %vm4067 = vcmp.eq.s32.totalorder %v4065, 1
        %v4068 = vsel %vm4066, %v4038, %v3718
        %v4069 = vsel %vm4067, %v4039, %v3719
        %v4070 = vsel %vm4066, %v4034, %v3720
        %v4071 = vsel %vm4067, %v4035, %v3721
        %v4072 = vmax.f32 %v3722, %v4054
        %v4073 = vmax.f32 %v3723, %v4055
        %v4074 = vsel %vm4066, %v4038, -1e+30
        %v4075 = vsel %vm4067, %v4039, -1e+30
        %v4076 = vmax.f32 %v3726, %v4074
        %v4077 = vmax.f32 %v3727, %v4075
        %s4078 = scalar_lea.vmem [#allocation2], 256
        %v4079 = vld [vmem:[%s4078] sm:$0xff]
        %v4080 = vld [vmem:[%s4078 + $0x8] sm:$0xff]
        %v4081 = vld [vmem:[%s4078 + $0x10] sm:$0xff]
        %v4082 = vld [vmem:[%s4078 + $0x18] sm:$0xff]
        %s4083 = scalar_lea.vmem [#allocation2], 704
        %v4084 = vld [vmem:[%s4083 + $0x20] sm:$0xff]
        %v4085 = vld [vmem:[%s4083 + $0x28] sm:$0xff]
        %v4086 = vld [vmem:[%s4083 + $0x30] sm:$0xff]
        %v4087 = vld [vmem:[%s4083 + $0x38] sm:$0xff]
        %v4088 = vpack.c.bf16 %v4055, %v4054
        %v4089 = vpack.c.bf16 %v4069, %v4068
        %4090 = vmatprep.subr.bf16.mxu0 %v2435
        %4091 = vmatpush1.bf16.msra.mxu0 %v2434
        %4092 = vmatprep.subr.bf16.mxu0 %v2443
        %4093 = vmatpush1.bf16.msra.mxu0 %v2442
        %4094 = vmatprep.subr.bf16.mxu0 %v2451
        %4095 = vmatpush1.bf16.msra.mxu0 %v2450
        %4096 = vmatprep.subr.bf16.mxu0 %v2459
        %4097 = vmatpush1.bf16.msra.mxu0 %v2458
        %4098 = vmatprep.subr.bf16.mxu0 %v2467
        %4099 = vmatpush1.bf16.msra.mxu0 %v2466
        %4100 = vmatprep.subr.bf16.mxu0 %v2475
        %4101 = vmatpush1.bf16.msra.mxu0 %v2474
        %4102 = vmatprep.subr.bf16.mxu0 %v2483
        %4103 = vmatpush1.bf16.msra.mxu0 %v2482
        %4104 = vmatprep.subr.bf16.mxu0 %v2491
        %4105 = vmatpush1.bf16.msra.mxu0 %v2490
        %4106 = vmatprep.subr.bf16.mxu0 %v2499
        %4107 = vmatpush1.bf16.msra.mxu0 %v2498
        %4108 = vmatprep.subr.bf16.mxu0 %v2507
        %4109 = vmatpush1.bf16.msra.mxu0 %v2506
        %4110 = vmatprep.subr.bf16.mxu0 %v2515
        %4111 = vmatpush1.bf16.msra.mxu0 %v2514
        %4112 = vmatprep.subr.bf16.mxu0 %v2523
        %4113 = vmatpush1.bf16.msra.mxu0 %v2522
        %4114 = vmatprep.subr.bf16.mxu0 %v2531
        %4115 = vmatpush1.bf16.msra.mxu0 %v2530
        %4116 = vmatprep.subr.bf16.mxu0 %v2539
        %4117 = vmatpush1.bf16.msra.mxu0 %v2538
        %4118 = vmatprep.subr.bf16.mxu0 %v2547
        %4119 = vmatpush1.bf16.msra.mxu0 %v2546
        %4120 = vmatprep.subr.bf16.mxu0 %v2555
        %4121 = vmatpush1.bf16.msra.mxu0 %v2554
        %4122 = vmatprep.mubr.bf16.mxu0 %v4089
        %4123 = vmatmul.mubr.bf16.gmra.mrb[0].mxu0 %v4088
        %v4124 = vpop.f32.mrb[0].mxu0
        %v4125 = vadd.f32 0.0, %v4124
        %v4126 = vpop.f32.mrb[0].mxu0
        %v4127 = vadd.f32 0.0, %v4126
        %v4128 = vpop.f32.mrb[0].mxu0
        %v4129 = vadd.f32 0.0, %v4128
        %v4130 = vpop.f32.mrb[0].mxu0
        %v4131 = vadd.f32 0.0, %v4130
        %4132 = vdwg.mxu0
        %4133 = vmatprep.subr.bf16.mxu0 %v2437
        %4134 = vmatpush1.bf16.msra.mxu0 %v2436
        %4135 = vmatprep.subr.bf16.mxu0 %v2445
        %4136 = vmatpush1.bf16.msra.mxu0 %v2444
        %4137 = vmatprep.subr.bf16.mxu0 %v2453
        %4138 = vmatpush1.bf16.msra.mxu0 %v2452
        %4139 = vmatprep.subr.bf16.mxu0 %v2461
        %4140 = vmatpush1.bf16.msra.mxu0 %v2460
        %4141 = vmatprep.subr.bf16.mxu0 %v2469
        %4142 = vmatpush1.bf16.msra.mxu0 %v2468
        %4143 = vmatprep.subr.bf16.mxu0 %v2477
        %4144 = vmatpush1.bf16.msra.mxu0 %v2476
        %4145 = vmatprep.subr.bf16.mxu0 %v2485
        %4146 = vmatpush1.bf16.msra.mxu0 %v2484
        %4147 = vmatprep.subr.bf16.mxu0 %v2493
        %4148 = vmatpush1.bf16.msra.mxu0 %v2492
        %4149 = vmatprep.subr.bf16.mxu0 %v2501
        %4150 = vmatpush1.bf16.msra.mxu0 %v2500
        %4151 = vmatprep.subr.bf16.mxu0 %v2509
        %4152 = vmatpush1.bf16.msra.mxu0 %v2508
        %4153 = vmatprep.subr.bf16.mxu0 %v2517
        %4154 = vmatpush1.bf16.msra.mxu0 %v2516
        %4155 = vmatprep.subr.bf16.mxu0 %v2525
        %4156 = vmatpush1.bf16.msra.mxu0 %v2524
        %4157 = vmatprep.subr.bf16.mxu0 %v2533
        %4158 = vmatpush1.bf16.msra.mxu0 %v2532
        %4159 = vmatprep.subr.bf16.mxu0 %v2541
        %4160 = vmatpush1.bf16.msra.mxu0 %v2540
        %4161 = vmatprep.subr.bf16.mxu0 %v2549
        %4162 = vmatpush1.bf16.msra.mxu0 %v2548
        %4163 = vmatprep.subr.bf16.mxu0 %v2557
        %4164 = vmatpush1.bf16.msra.mxu0 %v2556
        %4165 = vmatprep.mubr.bf16.mxu0 %v4089
        %4166 = vmatmul.mubr.bf16.gmra.mrb[0].mxu0 %v4088
        %v4167 = vpop.f32.mrb[0].mxu0
        %v4168 = vadd.f32 0.0, %v4167
        %v4169 = vpop.f32.mrb[0].mxu0
        %v4170 = vadd.f32 0.0, %v4169
        %v4171 = vpop.f32.mrb[0].mxu0
        %v4172 = vadd.f32 0.0, %v4171
        %v4173 = vpop.f32.mrb[0].mxu0
        %v4174 = vadd.f32 0.0, %v4173
        %4175 = vdwg.mxu0
        %4176 = vmatprep.subr.bf16.mxu0 %v2439
        %4177 = vmatpush1.bf16.msra.mxu0 %v2438
        %4178 = vmatprep.subr.bf16.mxu0 %v2447
        %4179 = vmatpush1.bf16.msra.mxu0 %v2446
        %4180 = vmatprep.subr.bf16.mxu0 %v2455
        %4181 = vmatpush1.bf16.msra.mxu0 %v2454
        %4182 = vmatprep.subr.bf16.mxu0 %v2463
        %4183 = vmatpush1.bf16.msra.mxu0 %v2462
        %4184 = vmatprep.subr.bf16.mxu0 %v2471
        %4185 = vmatpush1.bf16.msra.mxu0 %v2470
        %4186 = vmatprep.subr.bf16.mxu0 %v2479
        %4187 = vmatpush1.bf16.msra.mxu0 %v2478
        %4188 = vmatprep.subr.bf16.mxu0 %v2487
        %4189 = vmatpush1.bf16.msra.mxu0 %v2486
        %4190 = vmatprep.subr.bf16.mxu0 %v2495
        %4191 = vmatpush1.bf16.msra.mxu0 %v2494
        %4192 = vmatprep.subr.bf16.mxu0 %v2503
        %4193 = vmatpush1.bf16.msra.mxu0 %v2502
        %4194 = vmatprep.subr.bf16.mxu0 %v2511
        %4195 = vmatpush1.bf16.msra.mxu0 %v2510
        %4196 = vmatprep.subr.bf16.mxu0 %v2519
        %4197 = vmatpush1.bf16.msra.mxu0 %v2518
        %4198 = vmatprep.subr.bf16.mxu0 %v2527
        %4199 = vmatpush1.bf16.msra.mxu0 %v2526
        %4200 = vmatprep.subr.bf16.mxu0 %v2535
        %4201 = vmatpush1.bf16.msra.mxu0 %v2534
        %4202 = vmatprep.subr.bf16.mxu0 %v2543
        %4203 = vmatpush1.bf16.msra.mxu0 %v2542
        %4204 = vmatprep.subr.bf16.mxu0 %v2551
        %4205 = vmatpush1.bf16.msra.mxu0 %v2550
        %4206 = vmatprep.subr.bf16.mxu0 %v2559
        %4207 = vmatpush1.bf16.msra.mxu0 %v2558
        %4208 = vmatprep.mubr.bf16.mxu0 %v4089
        %4209 = vmatmul.mubr.bf16.gmra.mrb[0].mxu0 %v4088
        %v4210 = vpop.f32.mrb[0].mxu0
        %v4211 = vadd.f32 0.0, %v4210
        %v4212 = vpop.f32.mrb[0].mxu0
        %v4213 = vadd.f32 0.0, %v4212
        %v4214 = vpop.f32.mrb[0].mxu0
        %v4215 = vadd.f32 0.0, %v4214
        %v4216 = vpop.f32.mrb[0].mxu0
        %v4217 = vadd.f32 0.0, %v4216
        %4218 = vdwg.mxu0
        %4219 = vmatprep.subr.bf16.mxu0 %v2441
        %4220 = vmatpush1.bf16.msra.mxu0 %v2440
        %4221 = vmatprep.subr.bf16.mxu0 %v2449
        %4222 = vmatpush1.bf16.msra.mxu0 %v2448
        %4223 = vmatprep.subr.bf16.mxu0 %v2457
        %4224 = vmatpush1.bf16.msra.mxu0 %v2456
        %4225 = vmatprep.subr.bf16.mxu0 %v2465
        %4226 = vmatpush1.bf16.msra.mxu0 %v2464
        %4227 = vmatprep.subr.bf16.mxu0 %v2473
        %4228 = vmatpush1.bf16.msra.mxu0 %v2472
        %4229 = vmatprep.subr.bf16.mxu0 %v2481
        %4230 = vmatpush1.bf16.msra.mxu0 %v2480
        %4231 = vmatprep.subr.bf16.mxu0 %v2489
        %4232 = vmatpush1.bf16.msra.mxu0 %v2488
        %4233 = vmatprep.subr.bf16.mxu0 %v2497
        %4234 = vmatpush1.bf16.msra.mxu0 %v2496
        %4235 = vmatprep.subr.bf16.mxu0 %v2505
        %4236 = vmatpush1.bf16.msra.mxu0 %v2504
        %4237 = vmatprep.subr.bf16.mxu0 %v2513
        %4238 = vmatpush1.bf16.msra.mxu0 %v2512
        %4239 = vmatprep.subr.bf16.mxu0 %v2521
        %4240 = vmatpush1.bf16.msra.mxu0 %v2520
        %4241 = vmatprep.subr.bf16.mxu0 %v2529
        %4242 = vmatpush1.bf16.msra.mxu0 %v2528
        %4243 = vmatprep.subr.bf16.mxu0 %v2537
        %4244 = vmatpush1.bf16.msra.mxu0 %v2536
        %4245 = vmatprep.subr.bf16.mxu0 %v2545
        %4246 = vmatpush1.bf16.msra.mxu0 %v2544
        %4247 = vmatprep.subr.bf16.mxu0 %v2553
        %4248 = vmatpush1.bf16.msra.mxu0 %v2552
        %4249 = vmatprep.subr.bf16.mxu0 %v2561
        %4250 = vmatpush1.bf16.msra.mxu0 %v2560
        %4251 = vmatprep.mubr.bf16.mxu0 %v4089
        %4252 = vmatmul.mubr.bf16.gmra.mrb[0].mxu0 %v4088
        %v4253 = vpop.f32.mrb[0].mxu0
        %v4254 = vadd.f32 0.0, %v4253
        %v4255 = vpop.f32.mrb[0].mxu0
        %v4256 = vadd.f32 0.0, %v4255
        %v4257 = vpop.f32.mrb[0].mxu0
        %v4258 = vadd.f32 0.0, %v4257
        %v4259 = vpop.f32.mrb[0].mxu0
        %v4260 = vadd.f32 0.0, %v4259
        %4261 = vdwg.mxu0
        %v4262 = vunpack.c.l.bf16 %v4079
        %v4263 = vunpack.c.l.bf16 %v4080
        %v4264 = vunpack.c.l.bf16 %v4081
        %v4265 = vunpack.c.l.bf16 %v4082
        %v4266 = vunpack.c.h.bf16 %v4079
        %v4267 = vunpack.c.h.bf16 %v4080
        %v4268 = vunpack.c.h.bf16 %v4081
        %v4269 = vunpack.c.h.bf16 %v4082
        %v4270 = vadd.f32 %v4262, %v4125
        %v4271 = vadd.f32 %v4263, %v4127
        %v4272 = vadd.f32 %v4264, %v4168
        %v4273 = vadd.f32 %v4265, %v4170
        %v4274 = vadd.f32 %v4266, %v4129
        %v4275 = vadd.f32 %v4267, %v4131
        %v4276 = vadd.f32 %v4268, %v4172
        %v4277 = vadd.f32 %v4269, %v4174
        %v4278 = vunpack.c.l.bf16 %v4084
        %v4279 = vunpack.c.l.bf16 %v4085
        %v4280 = vunpack.c.l.bf16 %v4086
        %v4281 = vunpack.c.l.bf16 %v4087
        %v4282 = vunpack.c.h.bf16 %v4084
        %v4283 = vunpack.c.h.bf16 %v4085
        %v4284 = vunpack.c.h.bf16 %v4086
        %v4285 = vunpack.c.h.bf16 %v4087
        %v4286 = vadd.f32 %v4278, %v4211
        %v4287 = vadd.f32 %v4279, %v4213
        %v4288 = vadd.f32 %v4280, %v4254
        %v4289 = vadd.f32 %v4281, %v4256
        %v4290 = vadd.f32 %v4282, %v4215
        %v4291 = vadd.f32 %v4283, %v4217
        %v4292 = vadd.f32 %v4284, %v4258
        %v4293 = vadd.f32 %v4285, %v4260
        %v4294 = vxor.u32 %v4270, 2147483648
        %v4295 = vxor.u32 %v4274, 2147483648
        %v4296 = vmul.f32 %v4294, 1.442695
        %v4297 = vpow.pop %v4296
        %v4298 = vmul.f32 %v4295, 1.442695
        %v4299 = vpow.pop %v4298
        %v4300 = vadd.f32 %v4297, 1.0
        %v4301 = vadd.f32 %v4299, 1.0
        %v4302 = vrcp.pop %v4300
        %v4303 = vmul.f32 1.0, %v4302
        %v4304 = vrcp.pop %v4301
        %v4305 = vmul.f32 1.0, %v4304
        %v4306 = vxor.u32 %v4271, 2147483648
        %v4307 = vxor.u32 %v4275, 2147483648
        %v4308 = vmul.f32 %v4306, 1.442695
        %v4309 = vpow.pop %v4308
        %v4310 = vmul.f32 %v4307, 1.442695
        %v4311 = vpow.pop %v4310
        %v4312 = vadd.f32 %v4309, 1.0
        %v4313 = vadd.f32 %v4311, 1.0
        %v4314 = vrcp.pop %v4312
        %v4315 = vmul.f32 1.0, %v4314
        %v4316 = vrcp.pop %v4313
        %v4317 = vmul.f32 1.0, %v4316
        %v4318 = vtanh.pop %v4272
        %v4319 = vtanh.pop %v4276
        %v4320 = vxor.u32 %v4273, 2147483648
        %v4321 = vxor.u32 %v4277, 2147483648
        %v4322 = vmul.f32 %v4320, 1.442695
        %v4323 = vpow.pop %v4322
        %v4324 = vmul.f32 %v4321, 1.442695
        %v4325 = vpow.pop %v4324
        %v4326 = vadd.f32 %v4323, 1.0
        %v4327 = vadd.f32 %v4325, 1.0
        %v4328 = vrcp.pop %v4326
        %v4329 = vmul.f32 1.0, %v4328
        %v4330 = vrcp.pop %v4327
        %v4331 = vmul.f32 1.0, %v4330
        %v4332 = vmul.f32 %v4315, %v4056
        %v4333 = vmul.f32 %v4317, %v4057
        %v4334 = vmul.f32 %v4303, %v4318
        %v4335 = vmul.f32 %v4305, %v4319
        %v4336 = vadd.f32 %v4332, %v4334
        %v4337 = vadd.f32 %v4333, %v4335
        %v4338 = vtanh.pop %v4336
        %v4339 = vtanh.pop %v4337
        %v4340 = vmul.f32 %v4329, %v4338
        %v4341 = vmul.f32 %v4331, %v4339
        %v4342 = vxor.u32 %v4286, 2147483648
        %v4343 = vxor.u32 %v4290, 2147483648
        %v4344 = vmul.f32 %v4342, 1.442695
        %v4345 = vpow.pop %v4344
        %v4346 = vmul.f32 %v4343, 1.442695
        %v4347 = vpow.pop %v4346
        %v4348 = vadd.f32 %v4345, 1.0
        %v4349 = vadd.f32 %v4347, 1.0
        %v4350 = vrcp.pop %v4348
        %v4351 = vmul.f32 1.0, %v4350
        %v4352 = vrcp.pop %v4349
        %v4353 = vmul.f32 1.0, %v4352
        %v4354 = vxor.u32 %v4287, 2147483648
        %v4355 = vxor.u32 %v4291, 2147483648
        %v4356 = vmul.f32 %v4354, 1.442695
        %v4357 = vpow.pop %v4356
        %v4358 = vmul.f32 %v4355, 1.442695
        %v4359 = vpow.pop %v4358
        %v4360 = vadd.f32 %v4357, 1.0
        %v4361 = vadd.f32 %v4359, 1.0
        %v4362 = vrcp.pop %v4360
        %v4363 = vmul.f32 1.0, %v4362
        %v4364 = vrcp.pop %v4361
        %v4365 = vmul.f32 1.0, %v4364
        %v4366 = vtanh.pop %v4288
        %v4367 = vtanh.pop %v4292
        %v4368 = vxor.u32 %v4289, 2147483648
        %v4369 = vxor.u32 %v4293, 2147483648
        %v4370 = vmul.f32 %v4368, 1.442695
        %v4371 = vpow.pop %v4370
        %v4372 = vmul.f32 %v4369, 1.442695
        %v4373 = vpow.pop %v4372
        %v4374 = vadd.f32 %v4371, 1.0
        %v4375 = vadd.f32 %v4373, 1.0
        %v4376 = vrcp.pop %v4374
        %v4377 = vmul.f32 1.0, %v4376
        %v4378 = vrcp.pop %v4375
        %v4379 = vmul.f32 1.0, %v4378
        %v4380 = vmul.f32 %v4363, %v4070
        %v4381 = vmul.f32 %v4365, %v4071
        %v4382 = vmul.f32 %v4351, %v4366
        %v4383 = vmul.f32 %v4353, %v4367
        %v4384 = vadd.f32 %v4380, %v4382
        %v4385 = vadd.f32 %v4381, %v4383
        %v4386 = vtanh.pop %v4384
        %v4387 = vtanh.pop %v4385
        %v4388 = vmul.f32 %v4377, %v4386
        %v4389 = vmul.f32 %v4379, %v4387
        %vm4390 = vcmp.gt.s32.totalorder %v1910, 4
        %vm4391 = vcmp.gt.s32.totalorder %v1911, 4
        %vm4392 = vcmp.gt.s32.totalorder %v1910, 11
        %vm4393 = vcmp.gt.s32.totalorder %v1911, 11
        %v4394 = vsel %vm4390, 1, 0
        %v4395 = vsel %vm4391, 1, 0
        %4396 = vset.pattern.permute.xlu0 0
        %4397 = vperm.xlu0 %4396, %v4394
        %v4398 = vpop.permute.xlu0 %4397
        %4399 = vset.pattern.permute.xlu0 0
        %4400 = vperm.xlu0 %4399, %v4395
        %v4401 = vpop.permute.xlu0 %4400
        %vm4402 = vcmp.eq.s32.totalorder %v4398, 1
        %vm4403 = vcmp.eq.s32.totalorder %v4401, 1
        %v4404 = vsel %vm4402, %v4340, %v4054
        %v4405 = vsel %vm4403, %v4341, %v4055
        %v4406 = vsel %vm4402, %v4336, %v4056
        %v4407 = vsel %vm4403, %v4337, %v4057
        %v4408 = vsel %vm4392, 1, 0
        %v4409 = vsel %vm4393, 1, 0
        %4410 = vset.pattern.permute.xlu0 0
        %4411 = vperm.xlu0 %4410, %v4408
        %v4412 = vpop.permute.xlu0 %4411
        %4413 = vset.pattern.permute.xlu0 0
        %4414 = vperm.xlu0 %4413, %v4409
        %v4415 = vpop.permute.xlu0 %4414
        %vm4416 = vcmp.eq.s32.totalorder %v4412, 1
        %vm4417 = vcmp.eq.s32.totalorder %v4415, 1
        %v4418 = vsel %vm4416, %v4388, %v4068
        %v4419 = vsel %vm4417, %v4389, %v4069
        %v4420 = vsel %vm4416, %v4384, %v4070
        %v4421 = vsel %vm4417, %v4385, %v4071
        %v4422 = vmax.f32 %v4072, %v4404
        %v4423 = vmax.f32 %v4073, %v4405
        %v4424 = vsel %vm4416, %v4388, -1e+30
        %v4425 = vsel %vm4417, %v4389, -1e+30
        %v4426 = vmax.f32 %v4076, %v4424
        %v4427 = vmax.f32 %v4077, %v4425
        %s4428 = scalar_lea.vmem [#allocation2], 320
        %v4429 = vld [vmem:[%s4428] sm:$0xff]
        %v4430 = vld [vmem:[%s4428 + $0x8] sm:$0xff]
        %v4431 = vld [vmem:[%s4428 + $0x10] sm:$0xff]
        %v4432 = vld [vmem:[%s4428 + $0x18] sm:$0xff]
        %s4433 = scalar_lea.vmem [#allocation2], 640
        %v4434 = vld [vmem:[%s4433 + $0x20] sm:$0xff]
        %v4435 = vld [vmem:[%s4433 + $0x28] sm:$0xff]
        %v4436 = vld [vmem:[%s4433 + $0x30] sm:$0xff]
        %v4437 = vld [vmem:[%s4433 + $0x38] sm:$0xff]
        %v4438 = vpack.c.bf16 %v4405, %v4404
        %v4439 = vpack.c.bf16 %v4419, %v4418
        %4440 = vmatprep.subr.bf16.mxu0 %v2435
        %4441 = vmatpush1.bf16.msra.mxu0 %v2434
        %4442 = vmatprep.subr.bf16.mxu0 %v2443
        %4443 = vmatpush1.bf16.msra.mxu0 %v2442
        %4444 = vmatprep.subr.bf16.mxu0 %v2451
        %4445 = vmatpush1.bf16.msra.mxu0 %v2450
        %4446 = vmatprep.subr.bf16.mxu0 %v2459
        %4447 = vmatpush1.bf16.msra.mxu0 %v2458
        %4448 = vmatprep.subr.bf16.mxu0 %v2467
        %4449 = vmatpush1.bf16.msra.mxu0 %v2466
        %4450 = vmatprep.subr.bf16.mxu0 %v2475
        %4451 = vmatpush1.bf16.msra.mxu0 %v2474
        %4452 = vmatprep.subr.bf16.mxu0 %v2483
        %4453 = vmatpush1.bf16.msra.mxu0 %v2482
        %4454 = vmatprep.subr.bf16.mxu0 %v2491
        %4455 = vmatpush1.bf16.msra.mxu0 %v2490
        %4456 = vmatprep.subr.bf16.mxu0 %v2499
        %4457 = vmatpush1.bf16.msra.mxu0 %v2498
        %4458 = vmatprep.subr.bf16.mxu0 %v2507
        %4459 = vmatpush1.bf16.msra.mxu0 %v2506
        %4460 = vmatprep.subr.bf16.mxu0 %v2515
        %4461 = vmatpush1.bf16.msra.mxu0 %v2514
        %4462 = vmatprep.subr.bf16.mxu0 %v2523
        %4463 = vmatpush1.bf16.msra.mxu0 %v2522
        %4464 = vmatprep.subr.bf16.mxu0 %v2531
        %4465 = vmatpush1.bf16.msra.mxu0 %v2530
        %4466 = vmatprep.subr.bf16.mxu0 %v2539
        %4467 = vmatpush1.bf16.msra.mxu0 %v2538
        %4468 = vmatprep.subr.bf16.mxu0 %v2547
        %4469 = vmatpush1.bf16.msra.mxu0 %v2546
        %4470 = vmatprep.subr.bf16.mxu0 %v2555
        %4471 = vmatpush1.bf16.msra.mxu0 %v2554
        %4472 = vmatprep.mubr.bf16.mxu0 %v4439
        %4473 = vmatmul.mubr.bf16.gmra.mrb[0].mxu0 %v4438
        %v4474 = vpop.f32.mrb[0].mxu0
        %v4475 = vadd.f32 0.0, %v4474
        %v4476 = vpop.f32.mrb[0].mxu0
        %v4477 = vadd.f32 0.0, %v4476
        %v4478 = vpop.f32.mrb[0].mxu0
        %v4479 = vadd.f32 0.0, %v4478
        %v4480 = vpop.f32.mrb[0].mxu0
        %v4481 = vadd.f32 0.0, %v4480
        %4482 = vdwg.mxu0
        %4483 = vmatprep.subr.bf16.mxu0 %v2437
        %4484 = vmatpush1.bf16.msra.mxu0 %v2436
        %4485 = vmatprep.subr.bf16.mxu0 %v2445
        %4486 = vmatpush1.bf16.msra.mxu0 %v2444
        %4487 = vmatprep.subr.bf16.mxu0 %v2453
        %4488 = vmatpush1.bf16.msra.mxu0 %v2452
        %4489 = vmatprep.subr.bf16.mxu0 %v2461
        %4490 = vmatpush1.bf16.msra.mxu0 %v2460
        %4491 = vmatprep.subr.bf16.mxu0 %v2469
        %4492 = vmatpush1.bf16.msra.mxu0 %v2468
        %4493 = vmatprep.subr.bf16.mxu0 %v2477
        %4494 = vmatpush1.bf16.msra.mxu0 %v2476
        %4495 = vmatprep.subr.bf16.mxu0 %v2485
        %4496 = vmatpush1.bf16.msra.mxu0 %v2484
        %4497 = vmatprep.subr.bf16.mxu0 %v2493
        %4498 = vmatpush1.bf16.msra.mxu0 %v2492
        %4499 = vmatprep.subr.bf16.mxu0 %v2501
        %4500 = vmatpush1.bf16.msra.mxu0 %v2500
        %4501 = vmatprep.subr.bf16.mxu0 %v2509
        %4502 = vmatpush1.bf16.msra.mxu0 %v2508
        %4503 = vmatprep.subr.bf16.mxu0 %v2517
        %4504 = vmatpush1.bf16.msra.mxu0 %v2516
        %4505 = vmatprep.subr.bf16.mxu0 %v2525
        %4506 = vmatpush1.bf16.msra.mxu0 %v2524
        %4507 = vmatprep.subr.bf16.mxu0 %v2533
        %4508 = vmatpush1.bf16.msra.mxu0 %v2532
        %4509 = vmatprep.subr.bf16.mxu0 %v2541
        %4510 = vmatpush1.bf16.msra.mxu0 %v2540
        %4511 = vmatprep.subr.bf16.mxu0 %v2549
        %4512 = vmatpush1.bf16.msra.mxu0 %v2548
        %4513 = vmatprep.subr.bf16.mxu0 %v2557
        %4514 = vmatpush1.bf16.msra.mxu0 %v2556
        %4515 = vmatprep.mubr.bf16.mxu0 %v4439
        %4516 = vmatmul.mubr.bf16.gmra.mrb[0].mxu0 %v4438
        %v4517 = vpop.f32.mrb[0].mxu0
        %v4518 = vadd.f32 0.0, %v4517
        %v4519 = vpop.f32.mrb[0].mxu0
        %v4520 = vadd.f32 0.0, %v4519
        %v4521 = vpop.f32.mrb[0].mxu0
        %v4522 = vadd.f32 0.0, %v4521
        %v4523 = vpop.f32.mrb[0].mxu0
        %v4524 = vadd.f32 0.0, %v4523
        %4525 = vdwg.mxu0
        %4526 = vmatprep.subr.bf16.mxu0 %v2439
        %4527 = vmatpush1.bf16.msra.mxu0 %v2438
        %4528 = vmatprep.subr.bf16.mxu0 %v2447
        %4529 = vmatpush1.bf16.msra.mxu0 %v2446
        %4530 = vmatprep.subr.bf16.mxu0 %v2455
        %4531 = vmatpush1.bf16.msra.mxu0 %v2454
        %4532 = vmatprep.subr.bf16.mxu0 %v2463
        %4533 = vmatpush1.bf16.msra.mxu0 %v2462
        %4534 = vmatprep.subr.bf16.mxu0 %v2471
        %4535 = vmatpush1.bf16.msra.mxu0 %v2470
        %4536 = vmatprep.subr.bf16.mxu0 %v2479
        %4537 = vmatpush1.bf16.msra.mxu0 %v2478
        %4538 = vmatprep.subr.bf16.mxu0 %v2487
        %4539 = vmatpush1.bf16.msra.mxu0 %v2486
        %4540 = vmatprep.subr.bf16.mxu0 %v2495
        %4541 = vmatpush1.bf16.msra.mxu0 %v2494
        %4542 = vmatprep.subr.bf16.mxu0 %v2503
        %4543 = vmatpush1.bf16.msra.mxu0 %v2502
        %4544 = vmatprep.subr.bf16.mxu0 %v2511
        %4545 = vmatpush1.bf16.msra.mxu0 %v2510
        %4546 = vmatprep.subr.bf16.mxu0 %v2519
        %4547 = vmatpush1.bf16.msra.mxu0 %v2518
        %4548 = vmatprep.subr.bf16.mxu0 %v2527
        %4549 = vmatpush1.bf16.msra.mxu0 %v2526
        %4550 = vmatprep.subr.bf16.mxu0 %v2535
        %4551 = vmatpush1.bf16.msra.mxu0 %v2534
        %4552 = vmatprep.subr.bf16.mxu0 %v2543
        %4553 = vmatpush1.bf16.msra.mxu0 %v2542
        %4554 = vmatprep.subr.bf16.mxu0 %v2551
        %4555 = vmatpush1.bf16.msra.mxu0 %v2550
        %4556 = vmatprep.subr.bf16.mxu0 %v2559
        %4557 = vmatpush1.bf16.msra.mxu0 %v2558
        %4558 = vmatprep.mubr.bf16.mxu0 %v4439
        %4559 = vmatmul.mubr.bf16.gmra.mrb[0].mxu0 %v4438
        %v4560 = vpop.f32.mrb[0].mxu0
        %v4561 = vadd.f32 0.0, %v4560
        %v4562 = vpop.f32.mrb[0].mxu0
        %v4563 = vadd.f32 0.0, %v4562
        %v4564 = vpop.f32.mrb[0].mxu0
        %v4565 = vadd.f32 0.0, %v4564
        %v4566 = vpop.f32.mrb[0].mxu0
        %v4567 = vadd.f32 0.0, %v4566
        %4568 = vdwg.mxu0
        %4569 = vmatprep.subr.bf16.mxu0 %v2441
        %4570 = vmatpush1.bf16.msra.mxu0 %v2440
        %4571 = vmatprep.subr.bf16.mxu0 %v2449
        %4572 = vmatpush1.bf16.msra.mxu0 %v2448
        %4573 = vmatprep.subr.bf16.mxu0 %v2457
        %4574 = vmatpush1.bf16.msra.mxu0 %v2456
        %4575 = vmatprep.subr.bf16.mxu0 %v2465
        %4576 = vmatpush1.bf16.msra.mxu0 %v2464
        %4577 = vmatprep.subr.bf16.mxu0 %v2473
        %4578 = vmatpush1.bf16.msra.mxu0 %v2472
        %4579 = vmatprep.subr.bf16.mxu0 %v2481
        %4580 = vmatpush1.bf16.msra.mxu0 %v2480
        %4581 = vmatprep.subr.bf16.mxu0 %v2489
        %4582 = vmatpush1.bf16.msra.mxu0 %v2488
        %4583 = vmatprep.subr.bf16.mxu0 %v2497
        %4584 = vmatpush1.bf16.msra.mxu0 %v2496
        %4585 = vmatprep.subr.bf16.mxu0 %v2505
        %4586 = vmatpush1.bf16.msra.mxu0 %v2504
        %4587 = vmatprep.subr.bf16.mxu0 %v2513
        %4588 = vmatpush1.bf16.msra.mxu0 %v2512
        %4589 = vmatprep.subr.bf16.mxu0 %v2521
        %4590 = vmatpush1.bf16.msra.mxu0 %v2520
        %4591 = vmatprep.subr.bf16.mxu0 %v2529
        %4592 = vmatpush1.bf16.msra.mxu0 %v2528
        %4593 = vmatprep.subr.bf16.mxu0 %v2537
        %4594 = vmatpush1.bf16.msra.mxu0 %v2536
        %4595 = vmatprep.subr.bf16.mxu0 %v2545
        %4596 = vmatpush1.bf16.msra.mxu0 %v2544
        %4597 = vmatprep.subr.bf16.mxu0 %v2553
        %4598 = vmatpush1.bf16.msra.mxu0 %v2552
        %4599 = vmatprep.subr.bf16.mxu0 %v2561
        %4600 = vmatpush1.bf16.msra.mxu0 %v2560
        %4601 = vmatprep.mubr.bf16.mxu0 %v4439
        %4602 = vmatmul.mubr.bf16.gmra.mrb[0].mxu0 %v4438
        %v4603 = vpop.f32.mrb[0].mxu0
        %v4604 = vadd.f32 0.0, %v4603
        %v4605 = vpop.f32.mrb[0].mxu0
        %v4606 = vadd.f32 0.0, %v4605
        %v4607 = vpop.f32.mrb[0].mxu0
        %v4608 = vadd.f32 0.0, %v4607
        %v4609 = vpop.f32.mrb[0].mxu0
        %v4610 = vadd.f32 0.0, %v4609
        %4611 = vdwg.mxu0
        %v4612 = vunpack.c.l.bf16 %v4429
        %v4613 = vunpack.c.l.bf16 %v4430
        %v4614 = vunpack.c.l.bf16 %v4431
        %v4615 = vunpack.c.l.bf16 %v4432
        %v4616 = vunpack.c.h.bf16 %v4429
        %v4617 = vunpack.c.h.bf16 %v4430
        %v4618 = vunpack.c.h.bf16 %v4431
        %v4619 = vunpack.c.h.bf16 %v4432
        %v4620 = vadd.f32 %v4612, %v4475
        %v4621 = vadd.f32 %v4613, %v4477
        %v4622 = vadd.f32 %v4614, %v4518
        %v4623 = vadd.f32 %v4615, %v4520
        %v4624 = vadd.f32 %v4616, %v4479
        %v4625 = vadd.f32 %v4617, %v4481
        %v4626 = vadd.f32 %v4618, %v4522
        %v4627 = vadd.f32 %v4619, %v4524
        %v4628 = vunpack.c.l.bf16 %v4434
        %v4629 = vunpack.c.l.bf16 %v4435
        %v4630 = vunpack.c.l.bf16 %v4436
        %v4631 = vunpack.c.l.bf16 %v4437
        %v4632 = vunpack.c.h.bf16 %v4434
        %v4633 = vunpack.c.h.bf16 %v4435
        %v4634 = vunpack.c.h.bf16 %v4436
        %v4635 = vunpack.c.h.bf16 %v4437
        %v4636 = vadd.f32 %v4628, %v4561
        %v4637 = vadd.f32 %v4629, %v4563
        %v4638 = vadd.f32 %v4630, %v4604
        %v4639 = vadd.f32 %v4631, %v4606
        %v4640 = vadd.f32 %v4632, %v4565
        %v4641 = vadd.f32 %v4633, %v4567
        %v4642 = vadd.f32 %v4634, %v4608
        %v4643 = vadd.f32 %v4635, %v4610
        %v4644 = vxor.u32 %v4620, 2147483648
        %v4645 = vxor.u32 %v4624, 2147483648
        %v4646 = vmul.f32 %v4644, 1.442695
        %v4647 = vpow.pop %v4646
        %v4648 = vmul.f32 %v4645, 1.442695
        %v4649 = vpow.pop %v4648
        %v4650 = vadd.f32 %v4647, 1.0
        %v4651 = vadd.f32 %v4649, 1.0
        %v4652 = vrcp.pop %v4650
        %v4653 = vmul.f32 1.0, %v4652
        %v4654 = vrcp.pop %v4651
        %v4655 = vmul.f32 1.0, %v4654
        %v4656 = vxor.u32 %v4621, 2147483648
        %v4657 = vxor.u32 %v4625, 2147483648
        %v4658 = vmul.f32 %v4656, 1.442695
        %v4659 = vpow.pop %v4658
        %v4660 = vmul.f32 %v4657, 1.442695
        %v4661 = vpow.pop %v4660
        %v4662 = vadd.f32 %v4659, 1.0
        %v4663 = vadd.f32 %v4661, 1.0
        %v4664 = vrcp.pop %v4662
        %v4665 = vmul.f32 1.0, %v4664
        %v4666 = vrcp.pop %v4663
        %v4667 = vmul.f32 1.0, %v4666
        %v4668 = vtanh.pop %v4622
        %v4669 = vtanh.pop %v4626
        %v4670 = vxor.u32 %v4623, 2147483648
        %v4671 = vxor.u32 %v4627, 2147483648
        %v4672 = vmul.f32 %v4670, 1.442695
        %v4673 = vpow.pop %v4672
        %v4674 = vmul.f32 %v4671, 1.442695
        %v4675 = vpow.pop %v4674
        %v4676 = vadd.f32 %v4673, 1.0
        %v4677 = vadd.f32 %v4675, 1.0
        %v4678 = vrcp.pop %v4676
        %v4679 = vmul.f32 1.0, %v4678
        %v4680 = vrcp.pop %v4677
        %v4681 = vmul.f32 1.0, %v4680
        %v4682 = vmul.f32 %v4665, %v4406
        %v4683 = vmul.f32 %v4667, %v4407
        %v4684 = vmul.f32 %v4653, %v4668
        %v4685 = vmul.f32 %v4655, %v4669
        %v4686 = vadd.f32 %v4682, %v4684
        %v4687 = vadd.f32 %v4683, %v4685
        %v4688 = vtanh.pop %v4686
        %v4689 = vtanh.pop %v4687
        %v4690 = vmul.f32 %v4679, %v4688
        %v4691 = vmul.f32 %v4681, %v4689
        %v4692 = vxor.u32 %v4636, 2147483648
        %v4693 = vxor.u32 %v4640, 2147483648
        %v4694 = vmul.f32 %v4692, 1.442695
        %v4695 = vpow.pop %v4694
        %v4696 = vmul.f32 %v4693, 1.442695
        %v4697 = vpow.pop %v4696
        %v4698 = vadd.f32 %v4695, 1.0
        %v4699 = vadd.f32 %v4697, 1.0
        %v4700 = vrcp.pop %v4698
        %v4701 = vmul.f32 1.0, %v4700
        %v4702 = vrcp.pop %v4699
        %v4703 = vmul.f32 1.0, %v4702
        %v4704 = vxor.u32 %v4637, 2147483648
        %v4705 = vxor.u32 %v4641, 2147483648
        %v4706 = vmul.f32 %v4704, 1.442695
        %v4707 = vpow.pop %v4706
        %v4708 = vmul.f32 %v4705, 1.442695
        %v4709 = vpow.pop %v4708
        %v4710 = vadd.f32 %v4707, 1.0
        %v4711 = vadd.f32 %v4709, 1.0
        %v4712 = vrcp.pop %v4710
        %v4713 = vmul.f32 1.0, %v4712
        %v4714 = vrcp.pop %v4711
        %v4715 = vmul.f32 1.0, %v4714
        %v4716 = vtanh.pop %v4638
        %v4717 = vtanh.pop %v4642
        %v4718 = vxor.u32 %v4639, 2147483648
        %v4719 = vxor.u32 %v4643, 2147483648
        %v4720 = vmul.f32 %v4718, 1.442695
        %v4721 = vpow.pop %v4720
        %v4722 = vmul.f32 %v4719, 1.442695
        %v4723 = vpow.pop %v4722
        %v4724 = vadd.f32 %v4721, 1.0
        %v4725 = vadd.f32 %v4723, 1.0
        %v4726 = vrcp.pop %v4724
        %v4727 = vmul.f32 1.0, %v4726
        %v4728 = vrcp.pop %v4725
        %v4729 = vmul.f32 1.0, %v4728
        %v4730 = vmul.f32 %v4713, %v4420
        %v4731 = vmul.f32 %v4715, %v4421
        %v4732 = vmul.f32 %v4701, %v4716
        %v4733 = vmul.f32 %v4703, %v4717
        %v4734 = vadd.f32 %v4730, %v4732
        %v4735 = vadd.f32 %v4731, %v4733
        %v4736 = vtanh.pop %v4734
        %v4737 = vtanh.pop %v4735
        %v4738 = vmul.f32 %v4727, %v4736
        %v4739 = vmul.f32 %v4729, %v4737
        %vm4740 = vcmp.gt.s32.totalorder %v1910, 5
        %vm4741 = vcmp.gt.s32.totalorder %v1911, 5
        %vm4742 = vcmp.gt.s32.totalorder %v1910, 10
        %vm4743 = vcmp.gt.s32.totalorder %v1911, 10
        %v4744 = vsel %vm4740, 1, 0
        %v4745 = vsel %vm4741, 1, 0
        %4746 = vset.pattern.permute.xlu0 0
        %4747 = vperm.xlu0 %4746, %v4744
        %v4748 = vpop.permute.xlu0 %4747
        %4749 = vset.pattern.permute.xlu0 0
        %4750 = vperm.xlu0 %4749, %v4745
        %v4751 = vpop.permute.xlu0 %4750
        %vm4752 = vcmp.eq.s32.totalorder %v4748, 1
        %vm4753 = vcmp.eq.s32.totalorder %v4751, 1
        %v4754 = vsel %vm4752, %v4690, %v4404
        %v4755 = vsel %vm4753, %v4691, %v4405
        %v4756 = vsel %vm4752, %v4686, %v4406
        %v4757 = vsel %vm4753, %v4687, %v4407
        %v4758 = vsel %vm4742, 1, 0
        %v4759 = vsel %vm4743, 1, 0
        %4760 = vset.pattern.permute.xlu0 0
        %4761 = vperm.xlu0 %4760, %v4758
        %v4762 = vpop.permute.xlu0 %4761
        %4763 = vset.pattern.permute.xlu0 0
        %4764 = vperm.xlu0 %4763, %v4759
        %v4765 = vpop.permute.xlu0 %4764
        %vm4766 = vcmp.eq.s32.totalorder %v4762, 1
        %vm4767 = vcmp.eq.s32.totalorder %v4765, 1
        %v4768 = vsel %vm4766, %v4738, %v4418
        %v4769 = vsel %vm4767, %v4739, %v4419
        %v4770 = vsel %vm4766, %v4734, %v4420
        %v4771 = vsel %vm4767, %v4735, %v4421
        %v4772 = vmax.f32 %v4422, %v4754
        %v4773 = vmax.f32 %v4423, %v4755
        %v4774 = vsel %vm4766, %v4738, -1e+30
        %v4775 = vsel %vm4767, %v4739, -1e+30
        %v4776 = vmax.f32 %v4426, %v4774
        %v4777 = vmax.f32 %v4427, %v4775
        %s4778 = scalar_lea.vmem [#allocation2], 384
        %v4779 = vld [vmem:[%s4778] sm:$0xff]
        %v4780 = vld [vmem:[%s4778 + $0x8] sm:$0xff]
        %v4781 = vld [vmem:[%s4778 + $0x10] sm:$0xff]
        %v4782 = vld [vmem:[%s4778 + $0x18] sm:$0xff]
        %s4783 = scalar_lea.vmem [#allocation2], 576
        %v4784 = vld [vmem:[%s4783 + $0x20] sm:$0xff]
        %v4785 = vld [vmem:[%s4783 + $0x28] sm:$0xff]
        %v4786 = vld [vmem:[%s4783 + $0x30] sm:$0xff]
        %v4787 = vld [vmem:[%s4783 + $0x38] sm:$0xff]
        %v4788 = vpack.c.bf16 %v4755, %v4754
        %v4789 = vpack.c.bf16 %v4769, %v4768
        %4790 = vmatprep.subr.bf16.mxu0 %v2435
        %4791 = vmatpush1.bf16.msra.mxu0 %v2434
        %4792 = vmatprep.subr.bf16.mxu0 %v2443
        %4793 = vmatpush1.bf16.msra.mxu0 %v2442
        %4794 = vmatprep.subr.bf16.mxu0 %v2451
        %4795 = vmatpush1.bf16.msra.mxu0 %v2450
        %4796 = vmatprep.subr.bf16.mxu0 %v2459
        %4797 = vmatpush1.bf16.msra.mxu0 %v2458
        %4798 = vmatprep.subr.bf16.mxu0 %v2467
        %4799 = vmatpush1.bf16.msra.mxu0 %v2466
        %4800 = vmatprep.subr.bf16.mxu0 %v2475
        %4801 = vmatpush1.bf16.msra.mxu0 %v2474
        %4802 = vmatprep.subr.bf16.mxu0 %v2483
        %4803 = vmatpush1.bf16.msra.mxu0 %v2482
        %4804 = vmatprep.subr.bf16.mxu0 %v2491
        %4805 = vmatpush1.bf16.msra.mxu0 %v2490
        %4806 = vmatprep.subr.bf16.mxu0 %v2499
        %4807 = vmatpush1.bf16.msra.mxu0 %v2498
        %4808 = vmatprep.subr.bf16.mxu0 %v2507
        %4809 = vmatpush1.bf16.msra.mxu0 %v2506
        %4810 = vmatprep.subr.bf16.mxu0 %v2515
        %4811 = vmatpush1.bf16.msra.mxu0 %v2514
        %4812 = vmatprep.subr.bf16.mxu0 %v2523
        %4813 = vmatpush1.bf16.msra.mxu0 %v2522
        %4814 = vmatprep.subr.bf16.mxu0 %v2531
        %4815 = vmatpush1.bf16.msra.mxu0 %v2530
        %4816 = vmatprep.subr.bf16.mxu0 %v2539
        %4817 = vmatpush1.bf16.msra.mxu0 %v2538
        %4818 = vmatprep.subr.bf16.mxu0 %v2547
        %4819 = vmatpush1.bf16.msra.mxu0 %v2546
        %4820 = vmatprep.subr.bf16.mxu0 %v2555
        %4821 = vmatpush1.bf16.msra.mxu0 %v2554
        %4822 = vmatprep.mubr.bf16.mxu0 %v4789
        %4823 = vmatmul.mubr.bf16.gmra.mrb[0].mxu0 %v4788
        %v4824 = vpop.f32.mrb[0].mxu0
        %v4825 = vadd.f32 0.0, %v4824
        %v4826 = vpop.f32.mrb[0].mxu0
        %v4827 = vadd.f32 0.0, %v4826
        %v4828 = vpop.f32.mrb[0].mxu0
        %v4829 = vadd.f32 0.0, %v4828
        %v4830 = vpop.f32.mrb[0].mxu0
        %v4831 = vadd.f32 0.0, %v4830
        %4832 = vdwg.mxu0
        %4833 = vmatprep.subr.bf16.mxu0 %v2437
        %4834 = vmatpush1.bf16.msra.mxu0 %v2436
        %4835 = vmatprep.subr.bf16.mxu0 %v2445
        %4836 = vmatpush1.bf16.msra.mxu0 %v2444
        %4837 = vmatprep.subr.bf16.mxu0 %v2453
        %4838 = vmatpush1.bf16.msra.mxu0 %v2452
        %4839 = vmatprep.subr.bf16.mxu0 %v2461
        %4840 = vmatpush1.bf16.msra.mxu0 %v2460
        %4841 = vmatprep.subr.bf16.mxu0 %v2469
        %4842 = vmatpush1.bf16.msra.mxu0 %v2468
        %4843 = vmatprep.subr.bf16.mxu0 %v2477
        %4844 = vmatpush1.bf16.msra.mxu0 %v2476
        %4845 = vmatprep.subr.bf16.mxu0 %v2485
        %4846 = vmatpush1.bf16.msra.mxu0 %v2484
        %4847 = vmatprep.subr.bf16.mxu0 %v2493
        %4848 = vmatpush1.bf16.msra.mxu0 %v2492
        %4849 = vmatprep.subr.bf16.mxu0 %v2501
        %4850 = vmatpush1.bf16.msra.mxu0 %v2500
        %4851 = vmatprep.subr.bf16.mxu0 %v2509
        %4852 = vmatpush1.bf16.msra.mxu0 %v2508
        %4853 = vmatprep.subr.bf16.mxu0 %v2517
        %4854 = vmatpush1.bf16.msra.mxu0 %v2516
        %4855 = vmatprep.subr.bf16.mxu0 %v2525
        %4856 = vmatpush1.bf16.msra.mxu0 %v2524
        %4857 = vmatprep.subr.bf16.mxu0 %v2533
        %4858 = vmatpush1.bf16.msra.mxu0 %v2532
        %4859 = vmatprep.subr.bf16.mxu0 %v2541
        %4860 = vmatpush1.bf16.msra.mxu0 %v2540
        %4861 = vmatprep.subr.bf16.mxu0 %v2549
        %4862 = vmatpush1.bf16.msra.mxu0 %v2548
        %4863 = vmatprep.subr.bf16.mxu0 %v2557
        %4864 = vmatpush1.bf16.msra.mxu0 %v2556
        %4865 = vmatprep.mubr.bf16.mxu0 %v4789
        %4866 = vmatmul.mubr.bf16.gmra.mrb[0].mxu0 %v4788
        %v4867 = vpop.f32.mrb[0].mxu0
        %v4868 = vadd.f32 0.0, %v4867
        %v4869 = vpop.f32.mrb[0].mxu0
        %v4870 = vadd.f32 0.0, %v4869
        %v4871 = vpop.f32.mrb[0].mxu0
        %v4872 = vadd.f32 0.0, %v4871
        %v4873 = vpop.f32.mrb[0].mxu0
        %v4874 = vadd.f32 0.0, %v4873
        %4875 = vdwg.mxu0
        %4876 = vmatprep.subr.bf16.mxu0 %v2439
        %4877 = vmatpush1.bf16.msra.mxu0 %v2438
        %4878 = vmatprep.subr.bf16.mxu0 %v2447
        %4879 = vmatpush1.bf16.msra.mxu0 %v2446
        %4880 = vmatprep.subr.bf16.mxu0 %v2455
        %4881 = vmatpush1.bf16.msra.mxu0 %v2454
        %4882 = vmatprep.subr.bf16.mxu0 %v2463
        %4883 = vmatpush1.bf16.msra.mxu0 %v2462
        %4884 = vmatprep.subr.bf16.mxu0 %v2471
        %4885 = vmatpush1.bf16.msra.mxu0 %v2470
        %4886 = vmatprep.subr.bf16.mxu0 %v2479
        %4887 = vmatpush1.bf16.msra.mxu0 %v2478
        %4888 = vmatprep.subr.bf16.mxu0 %v2487
        %4889 = vmatpush1.bf16.msra.mxu0 %v2486
        %4890 = vmatprep.subr.bf16.mxu0 %v2495
        %4891 = vmatpush1.bf16.msra.mxu0 %v2494
        %4892 = vmatprep.subr.bf16.mxu0 %v2503
        %4893 = vmatpush1.bf16.msra.mxu0 %v2502
        %4894 = vmatprep.subr.bf16.mxu0 %v2511
        %4895 = vmatpush1.bf16.msra.mxu0 %v2510
        %4896 = vmatprep.subr.bf16.mxu0 %v2519
        %4897 = vmatpush1.bf16.msra.mxu0 %v2518
        %4898 = vmatprep.subr.bf16.mxu0 %v2527
        %4899 = vmatpush1.bf16.msra.mxu0 %v2526
        %4900 = vmatprep.subr.bf16.mxu0 %v2535
        %4901 = vmatpush1.bf16.msra.mxu0 %v2534
        %4902 = vmatprep.subr.bf16.mxu0 %v2543
        %4903 = vmatpush1.bf16.msra.mxu0 %v2542
        %4904 = vmatprep.subr.bf16.mxu0 %v2551
        %4905 = vmatpush1.bf16.msra.mxu0 %v2550
        %4906 = vmatprep.subr.bf16.mxu0 %v2559
        %4907 = vmatpush1.bf16.msra.mxu0 %v2558
        %4908 = vmatprep.mubr.bf16.mxu0 %v4789
        %4909 = vmatmul.mubr.bf16.gmra.mrb[0].mxu0 %v4788
        %v4910 = vpop.f32.mrb[0].mxu0
        %v4911 = vadd.f32 0.0, %v4910
        %v4912 = vpop.f32.mrb[0].mxu0
        %v4913 = vadd.f32 0.0, %v4912
        %v4914 = vpop.f32.mrb[0].mxu0
        %v4915 = vadd.f32 0.0, %v4914
        %v4916 = vpop.f32.mrb[0].mxu0
        %v4917 = vadd.f32 0.0, %v4916
        %4918 = vdwg.mxu0
        %4919 = vmatprep.subr.bf16.mxu0 %v2441
        %4920 = vmatpush1.bf16.msra.mxu0 %v2440
        %4921 = vmatprep.subr.bf16.mxu0 %v2449
        %4922 = vmatpush1.bf16.msra.mxu0 %v2448
        %4923 = vmatprep.subr.bf16.mxu0 %v2457
        %4924 = vmatpush1.bf16.msra.mxu0 %v2456
        %4925 = vmatprep.subr.bf16.mxu0 %v2465
        %4926 = vmatpush1.bf16.msra.mxu0 %v2464
        %4927 = vmatprep.subr.bf16.mxu0 %v2473
        %4928 = vmatpush1.bf16.msra.mxu0 %v2472
        %4929 = vmatprep.subr.bf16.mxu0 %v2481
        %4930 = vmatpush1.bf16.msra.mxu0 %v2480
        %4931 = vmatprep.subr.bf16.mxu0 %v2489
        %4932 = vmatpush1.bf16.msra.mxu0 %v2488
        %4933 = vmatprep.subr.bf16.mxu0 %v2497
        %4934 = vmatpush1.bf16.msra.mxu0 %v2496
        %4935 = vmatprep.subr.bf16.mxu0 %v2505
        %4936 = vmatpush1.bf16.msra.mxu0 %v2504
        %4937 = vmatprep.subr.bf16.mxu0 %v2513
        %4938 = vmatpush1.bf16.msra.mxu0 %v2512
        %4939 = vmatprep.subr.bf16.mxu0 %v2521
        %4940 = vmatpush1.bf16.msra.mxu0 %v2520
        %4941 = vmatprep.subr.bf16.mxu0 %v2529
        %4942 = vmatpush1.bf16.msra.mxu0 %v2528
        %4943 = vmatprep.subr.bf16.mxu0 %v2537
        %4944 = vmatpush1.bf16.msra.mxu0 %v2536
        %4945 = vmatprep.subr.bf16.mxu0 %v2545
        %4946 = vmatpush1.bf16.msra.mxu0 %v2544
        %4947 = vmatprep.subr.bf16.mxu0 %v2553
        %4948 = vmatpush1.bf16.msra.mxu0 %v2552
        %4949 = vmatprep.subr.bf16.mxu0 %v2561
        %4950 = vmatpush1.bf16.msra.mxu0 %v2560
        %4951 = vmatprep.mubr.bf16.mxu0 %v4789
        %4952 = vmatmul.mubr.bf16.gmra.mrb[0].mxu0 %v4788
        %v4953 = vpop.f32.mrb[0].mxu0
        %v4954 = vadd.f32 0.0, %v4953
        %v4955 = vpop.f32.mrb[0].mxu0
        %v4956 = vadd.f32 0.0, %v4955
        %v4957 = vpop.f32.mrb[0].mxu0
        %v4958 = vadd.f32 0.0, %v4957
        %v4959 = vpop.f32.mrb[0].mxu0
        %v4960 = vadd.f32 0.0, %v4959
        %4961 = vdwg.mxu0
        %v4962 = vunpack.c.l.bf16 %v4779
        %v4963 = vunpack.c.l.bf16 %v4780
        %v4964 = vunpack.c.l.bf16 %v4781
        %v4965 = vunpack.c.l.bf16 %v4782
        %v4966 = vunpack.c.h.bf16 %v4779
        %v4967 = vunpack.c.h.bf16 %v4780
        %v4968 = vunpack.c.h.bf16 %v4781
        %v4969 = vunpack.c.h.bf16 %v4782
        %v4970 = vadd.f32 %v4962, %v4825
        %v4971 = vadd.f32 %v4963, %v4827
        %v4972 = vadd.f32 %v4964, %v4868
        %v4973 = vadd.f32 %v4965, %v4870
        %v4974 = vadd.f32 %v4966, %v4829
        %v4975 = vadd.f32 %v4967, %v4831
        %v4976 = vadd.f32 %v4968, %v4872
        %v4977 = vadd.f32 %v4969, %v4874
        %v4978 = vunpack.c.l.bf16 %v4784
        %v4979 = vunpack.c.l.bf16 %v4785
        %v4980 = vunpack.c.l.bf16 %v4786
        %v4981 = vunpack.c.l.bf16 %v4787
        %v4982 = vunpack.c.h.bf16 %v4784
        %v4983 = vunpack.c.h.bf16 %v4785
        %v4984 = vunpack.c.h.bf16 %v4786
        %v4985 = vunpack.c.h.bf16 %v4787
        %v4986 = vadd.f32 %v4978, %v4911
        %v4987 = vadd.f32 %v4979, %v4913
        %v4988 = vadd.f32 %v4980, %v4954
        %v4989 = vadd.f32 %v4981, %v4956
        %v4990 = vadd.f32 %v4982, %v4915
        %v4991 = vadd.f32 %v4983, %v4917
        %v4992 = vadd.f32 %v4984, %v4958
        %v4993 = vadd.f32 %v4985, %v4960
        %v4994 = vxor.u32 %v4970, 2147483648
        %v4995 = vxor.u32 %v4974, 2147483648
        %v4996 = vmul.f32 %v4994, 1.442695
        %v4997 = vpow.pop %v4996
        %v4998 = vmul.f32 %v4995, 1.442695
        %v4999 = vpow.pop %v4998
        %v5000 = vadd.f32 %v4997, 1.0
        %v5001 = vadd.f32 %v4999, 1.0
        %v5002 = vrcp.pop %v5000
        %v5003 = vmul.f32 1.0, %v5002
        %v5004 = vrcp.pop %v5001
        %v5005 = vmul.f32 1.0, %v5004
        %v5006 = vxor.u32 %v4971, 2147483648
        %v5007 = vxor.u32 %v4975, 2147483648
        %v5008 = vmul.f32 %v5006, 1.442695
        %v5009 = vpow.pop %v5008
        %v5010 = vmul.f32 %v5007, 1.442695
        %v5011 = vpow.pop %v5010
        %v5012 = vadd.f32 %v5009, 1.0
        %v5013 = vadd.f32 %v5011, 1.0
        %v5014 = vrcp.pop %v5012
        %v5015 = vmul.f32 1.0, %v5014
        %v5016 = vrcp.pop %v5013
        %v5017 = vmul.f32 1.0, %v5016
        %v5018 = vtanh.pop %v4972
        %v5019 = vtanh.pop %v4976
        %v5020 = vxor.u32 %v4973, 2147483648
        %v5021 = vxor.u32 %v4977, 2147483648
        %v5022 = vmul.f32 %v5020, 1.442695
        %v5023 = vpow.pop %v5022
        %v5024 = vmul.f32 %v5021, 1.442695
        %v5025 = vpow.pop %v5024
        %v5026 = vadd.f32 %v5023, 1.0
        %v5027 = vadd.f32 %v5025, 1.0
        %v5028 = vrcp.pop %v5026
        %v5029 = vmul.f32 1.0, %v5028
        %v5030 = vrcp.pop %v5027
        %v5031 = vmul.f32 1.0, %v5030
        %v5032 = vmul.f32 %v5015, %v4756
        %v5033 = vmul.f32 %v5017, %v4757
        %v5034 = vmul.f32 %v5003, %v5018
        %v5035 = vmul.f32 %v5005, %v5019
        %v5036 = vadd.f32 %v5032, %v5034
        %v5037 = vadd.f32 %v5033, %v5035
        %v5038 = vtanh.pop %v5036
        %v5039 = vtanh.pop %v5037
        %v5040 = vmul.f32 %v5029, %v5038
        %v5041 = vmul.f32 %v5031, %v5039
        %v5042 = vxor.u32 %v4986, 2147483648
        %v5043 = vxor.u32 %v4990, 2147483648
        %v5044 = vmul.f32 %v5042, 1.442695
        %v5045 = vpow.pop %v5044
        %v5046 = vmul.f32 %v5043, 1.442695
        %v5047 = vpow.pop %v5046
        %v5048 = vadd.f32 %v5045, 1.0
        %v5049 = vadd.f32 %v5047, 1.0
        %v5050 = vrcp.pop %v5048
        %v5051 = vmul.f32 1.0, %v5050
        %v5052 = vrcp.pop %v5049
        %v5053 = vmul.f32 1.0, %v5052
        %v5054 = vxor.u32 %v4987, 2147483648
        %v5055 = vxor.u32 %v4991, 2147483648
        %v5056 = vmul.f32 %v5054, 1.442695
        %v5057 = vpow.pop %v5056
        %v5058 = vmul.f32 %v5055, 1.442695
        %v5059 = vpow.pop %v5058
        %v5060 = vadd.f32 %v5057, 1.0
        %v5061 = vadd.f32 %v5059, 1.0
        %v5062 = vrcp.pop %v5060
        %v5063 = vmul.f32 1.0, %v5062
        %v5064 = vrcp.pop %v5061
        %v5065 = vmul.f32 1.0, %v5064
        %v5066 = vtanh.pop %v4988
        %v5067 = vtanh.pop %v4992
        %v5068 = vxor.u32 %v4989, 2147483648
        %v5069 = vxor.u32 %v4993, 2147483648
        %v5070 = vmul.f32 %v5068, 1.442695
        %v5071 = vpow.pop %v5070
        %v5072 = vmul.f32 %v5069, 1.442695
        %v5073 = vpow.pop %v5072
        %v5074 = vadd.f32 %v5071, 1.0
        %v5075 = vadd.f32 %v5073, 1.0
        %v5076 = vrcp.pop %v5074
        %v5077 = vmul.f32 1.0, %v5076
        %v5078 = vrcp.pop %v5075
        %v5079 = vmul.f32 1.0, %v5078
        %v5080 = vmul.f32 %v5063, %v4770
        %v5081 = vmul.f32 %v5065, %v4771
        %v5082 = vmul.f32 %v5051, %v5066
        %v5083 = vmul.f32 %v5053, %v5067
        %v5084 = vadd.f32 %v5080, %v5082
        %v5085 = vadd.f32 %v5081, %v5083
        %v5086 = vtanh.pop %v5084
        %v5087 = vtanh.pop %v5085
        %v5088 = vmul.f32 %v5077, %v5086
        %v5089 = vmul.f32 %v5079, %v5087
        %vm5090 = vcmp.gt.s32.totalorder %v1910, 6
        %vm5091 = vcmp.gt.s32.totalorder %v1911, 6
        %vm5092 = vcmp.gt.s32.totalorder %v1910, 9
        %vm5093 = vcmp.gt.s32.totalorder %v1911, 9
        %v5094 = vsel %vm5090, 1, 0
        %v5095 = vsel %vm5091, 1, 0
        %5096 = vset.pattern.permute.xlu0 0
        %5097 = vperm.xlu0 %5096, %v5094
        %v5098 = vpop.permute.xlu0 %5097
        %5099 = vset.pattern.permute.xlu0 0
        %5100 = vperm.xlu0 %5099, %v5095
        %v5101 = vpop.permute.xlu0 %5100
        %vm5102 = vcmp.eq.s32.totalorder %v5098, 1
        %vm5103 = vcmp.eq.s32.totalorder %v5101, 1
        %v5104 = vsel %vm5102, %v5040, %v4754
        %v5105 = vsel %vm5103, %v5041, %v4755
        %v5106 = vsel %vm5102, %v5036, %v4756
        %v5107 = vsel %vm5103, %v5037, %v4757
        %v5108 = vsel %vm5092, 1, 0
        %v5109 = vsel %vm5093, 1, 0
        %5110 = vset.pattern.permute.xlu0 0
        %5111 = vperm.xlu0 %5110, %v5108
        %v5112 = vpop.permute.xlu0 %5111
        %5113 = vset.pattern.permute.xlu0 0
        %5114 = vperm.xlu0 %5113, %v5109
        %v5115 = vpop.permute.xlu0 %5114
        %vm5116 = vcmp.eq.s32.totalorder %v5112, 1
        %vm5117 = vcmp.eq.s32.totalorder %v5115, 1
        %v5118 = vsel %vm5116, %v5088, %v4768
        %v5119 = vsel %vm5117, %v5089, %v4769
        %v5120 = vsel %vm5116, %v5084, %v4770
        %v5121 = vsel %vm5117, %v5085, %v4771
        %v5122 = vmax.f32 %v4772, %v5104
        %v5123 = vmax.f32 %v4773, %v5105
        %v5124 = vsel %vm5116, %v5088, -1e+30
        %v5125 = vsel %vm5117, %v5089, -1e+30
        %v5126 = vmax.f32 %v4776, %v5124
        %v5127 = vmax.f32 %v4777, %v5125
        %s5128 = scalar_lea.vmem [#allocation2], 448
        %v5129 = vld [vmem:[%s5128] sm:$0xff]
        %v5130 = vld [vmem:[%s5128 + $0x8] sm:$0xff]
        %v5131 = vld [vmem:[%s5128 + $0x10] sm:$0xff]
        %v5132 = vld [vmem:[%s5128 + $0x18] sm:$0xff]
        %s5133 = scalar_lea.vmem [#allocation2], 512
        %v5134 = vld [vmem:[%s5133 + $0x20] sm:$0xff]
        %v5135 = vld [vmem:[%s5133 + $0x28] sm:$0xff]
        %v5136 = vld [vmem:[%s5133 + $0x30] sm:$0xff]
        %v5137 = vld [vmem:[%s5133 + $0x38] sm:$0xff]
        %v5138 = vpack.c.bf16 %v5105, %v5104
        %v5139 = vpack.c.bf16 %v5119, %v5118
        %5140 = vmatprep.subr.bf16.mxu0 %v2435
        %5141 = vmatpush1.bf16.msra.mxu0 %v2434
        %5142 = vmatprep.subr.bf16.mxu0 %v2443
        %5143 = vmatpush1.bf16.msra.mxu0 %v2442
        %5144 = vmatprep.subr.bf16.mxu0 %v2451
        %5145 = vmatpush1.bf16.msra.mxu0 %v2450
        %5146 = vmatprep.subr.bf16.mxu0 %v2459
        %5147 = vmatpush1.bf16.msra.mxu0 %v2458
        %5148 = vmatprep.subr.bf16.mxu0 %v2467
        %5149 = vmatpush1.bf16.msra.mxu0 %v2466
        %5150 = vmatprep.subr.bf16.mxu0 %v2475
        %5151 = vmatpush1.bf16.msra.mxu0 %v2474
        %5152 = vmatprep.subr.bf16.mxu0 %v2483
        %5153 = vmatpush1.bf16.msra.mxu0 %v2482
        %5154 = vmatprep.subr.bf16.mxu0 %v2491
        %5155 = vmatpush1.bf16.msra.mxu0 %v2490
        %5156 = vmatprep.subr.bf16.mxu0 %v2499
        %5157 = vmatpush1.bf16.msra.mxu0 %v2498
        %5158 = vmatprep.subr.bf16.mxu0 %v2507
        %5159 = vmatpush1.bf16.msra.mxu0 %v2506
        %5160 = vmatprep.subr.bf16.mxu0 %v2515
        %5161 = vmatpush1.bf16.msra.mxu0 %v2514
        %5162 = vmatprep.subr.bf16.mxu0 %v2523
        %5163 = vmatpush1.bf16.msra.mxu0 %v2522
        %5164 = vmatprep.subr.bf16.mxu0 %v2531
        %5165 = vmatpush1.bf16.msra.mxu0 %v2530
        %5166 = vmatprep.subr.bf16.mxu0 %v2539
        %5167 = vmatpush1.bf16.msra.mxu0 %v2538
        %5168 = vmatprep.subr.bf16.mxu0 %v2547
        %5169 = vmatpush1.bf16.msra.mxu0 %v2546
        %5170 = vmatprep.subr.bf16.mxu0 %v2555
        %5171 = vmatpush1.bf16.msra.mxu0 %v2554
        %5172 = vmatprep.mubr.bf16.mxu0 %v5139
        %5173 = vmatmul.mubr.bf16.gmra.mrb[0].mxu0 %v5138
        %v5174 = vpop.f32.mrb[0].mxu0
        %v5175 = vadd.f32 0.0, %v5174
        %v5176 = vpop.f32.mrb[0].mxu0
        %v5177 = vadd.f32 0.0, %v5176
        %v5178 = vpop.f32.mrb[0].mxu0
        %v5179 = vadd.f32 0.0, %v5178
        %v5180 = vpop.f32.mrb[0].mxu0
        %v5181 = vadd.f32 0.0, %v5180
        %5182 = vdwg.mxu0
        %5183 = vmatprep.subr.bf16.mxu0 %v2437
        %5184 = vmatpush1.bf16.msra.mxu0 %v2436
        %5185 = vmatprep.subr.bf16.mxu0 %v2445
        %5186 = vmatpush1.bf16.msra.mxu0 %v2444
        %5187 = vmatprep.subr.bf16.mxu0 %v2453
        %5188 = vmatpush1.bf16.msra.mxu0 %v2452
        %5189 = vmatprep.subr.bf16.mxu0 %v2461
        %5190 = vmatpush1.bf16.msra.mxu0 %v2460
        %5191 = vmatprep.subr.bf16.mxu0 %v2469
        %5192 = vmatpush1.bf16.msra.mxu0 %v2468
        %5193 = vmatprep.subr.bf16.mxu0 %v2477
        %5194 = vmatpush1.bf16.msra.mxu0 %v2476
        %5195 = vmatprep.subr.bf16.mxu0 %v2485
        %5196 = vmatpush1.bf16.msra.mxu0 %v2484
        %5197 = vmatprep.subr.bf16.mxu0 %v2493
        %5198 = vmatpush1.bf16.msra.mxu0 %v2492
        %5199 = vmatprep.subr.bf16.mxu0 %v2501
        %5200 = vmatpush1.bf16.msra.mxu0 %v2500
        %5201 = vmatprep.subr.bf16.mxu0 %v2509
        %5202 = vmatpush1.bf16.msra.mxu0 %v2508
        %5203 = vmatprep.subr.bf16.mxu0 %v2517
        %5204 = vmatpush1.bf16.msra.mxu0 %v2516
        %5205 = vmatprep.subr.bf16.mxu0 %v2525
        %5206 = vmatpush1.bf16.msra.mxu0 %v2524
        %5207 = vmatprep.subr.bf16.mxu0 %v2533
        %5208 = vmatpush1.bf16.msra.mxu0 %v2532
        %5209 = vmatprep.subr.bf16.mxu0 %v2541
        %5210 = vmatpush1.bf16.msra.mxu0 %v2540
        %5211 = vmatprep.subr.bf16.mxu0 %v2549
        %5212 = vmatpush1.bf16.msra.mxu0 %v2548
        %5213 = vmatprep.subr.bf16.mxu0 %v2557
        %5214 = vmatpush1.bf16.msra.mxu0 %v2556
        %5215 = vmatprep.mubr.bf16.mxu0 %v5139
        %5216 = vmatmul.mubr.bf16.gmra.mrb[0].mxu0 %v5138
        %v5217 = vpop.f32.mrb[0].mxu0
        %v5218 = vadd.f32 0.0, %v5217
        %v5219 = vpop.f32.mrb[0].mxu0
        %v5220 = vadd.f32 0.0, %v5219
        %v5221 = vpop.f32.mrb[0].mxu0
        %v5222 = vadd.f32 0.0, %v5221
        %v5223 = vpop.f32.mrb[0].mxu0
        %v5224 = vadd.f32 0.0, %v5223
        %5225 = vdwg.mxu0
        %5226 = vmatprep.subr.bf16.mxu0 %v2439
        %5227 = vmatpush1.bf16.msra.mxu0 %v2438
        %5228 = vmatprep.subr.bf16.mxu0 %v2447
        %5229 = vmatpush1.bf16.msra.mxu0 %v2446
        %5230 = vmatprep.subr.bf16.mxu0 %v2455
        %5231 = vmatpush1.bf16.msra.mxu0 %v2454
        %5232 = vmatprep.subr.bf16.mxu0 %v2463
        %5233 = vmatpush1.bf16.msra.mxu0 %v2462
        %5234 = vmatprep.subr.bf16.mxu0 %v2471
        %5235 = vmatpush1.bf16.msra.mxu0 %v2470
        %5236 = vmatprep.subr.bf16.mxu0 %v2479
        %5237 = vmatpush1.bf16.msra.mxu0 %v2478
        %5238 = vmatprep.subr.bf16.mxu0 %v2487
        %5239 = vmatpush1.bf16.msra.mxu0 %v2486
        %5240 = vmatprep.subr.bf16.mxu0 %v2495
        %5241 = vmatpush1.bf16.msra.mxu0 %v2494
        %5242 = vmatprep.subr.bf16.mxu0 %v2503
        %5243 = vmatpush1.bf16.msra.mxu0 %v2502
        %5244 = vmatprep.subr.bf16.mxu0 %v2511
        %5245 = vmatpush1.bf16.msra.mxu0 %v2510
        %5246 = vmatprep.subr.bf16.mxu0 %v2519
        %5247 = vmatpush1.bf16.msra.mxu0 %v2518
        %5248 = vmatprep.subr.bf16.mxu0 %v2527
        %5249 = vmatpush1.bf16.msra.mxu0 %v2526
        %5250 = vmatprep.subr.bf16.mxu0 %v2535
        %5251 = vmatpush1.bf16.msra.mxu0 %v2534
        %5252 = vmatprep.subr.bf16.mxu0 %v2543
        %5253 = vmatpush1.bf16.msra.mxu0 %v2542
        %5254 = vmatprep.subr.bf16.mxu0 %v2551
        %5255 = vmatpush1.bf16.msra.mxu0 %v2550
        %5256 = vmatprep.subr.bf16.mxu0 %v2559
        %5257 = vmatpush1.bf16.msra.mxu0 %v2558
        %5258 = vmatprep.mubr.bf16.mxu0 %v5139
        %5259 = vmatmul.mubr.bf16.gmra.mrb[0].mxu0 %v5138
        %v5260 = vpop.f32.mrb[0].mxu0
        %v5261 = vadd.f32 0.0, %v5260
        %v5262 = vpop.f32.mrb[0].mxu0
        %v5263 = vadd.f32 0.0, %v5262
        %v5264 = vpop.f32.mrb[0].mxu0
        %v5265 = vadd.f32 0.0, %v5264
        %v5266 = vpop.f32.mrb[0].mxu0
        %v5267 = vadd.f32 0.0, %v5266
        %5268 = vdwg.mxu0
        %5269 = vmatprep.subr.bf16.mxu0 %v2441
        %5270 = vmatpush1.bf16.msra.mxu0 %v2440
        %5271 = vmatprep.subr.bf16.mxu0 %v2449
        %5272 = vmatpush1.bf16.msra.mxu0 %v2448
        %5273 = vmatprep.subr.bf16.mxu0 %v2457
        %5274 = vmatpush1.bf16.msra.mxu0 %v2456
        %5275 = vmatprep.subr.bf16.mxu0 %v2465
        %5276 = vmatpush1.bf16.msra.mxu0 %v2464
        %5277 = vmatprep.subr.bf16.mxu0 %v2473
        %5278 = vmatpush1.bf16.msra.mxu0 %v2472
        %5279 = vmatprep.subr.bf16.mxu0 %v2481
        %5280 = vmatpush1.bf16.msra.mxu0 %v2480
        %5281 = vmatprep.subr.bf16.mxu0 %v2489
        %5282 = vmatpush1.bf16.msra.mxu0 %v2488
        %5283 = vmatprep.subr.bf16.mxu0 %v2497
        %5284 = vmatpush1.bf16.msra.mxu0 %v2496
        %5285 = vmatprep.subr.bf16.mxu0 %v2505
        %5286 = vmatpush1.bf16.msra.mxu0 %v2504
        %5287 = vmatprep.subr.bf16.mxu0 %v2513
        %5288 = vmatpush1.bf16.msra.mxu0 %v2512
        %5289 = vmatprep.subr.bf16.mxu0 %v2521
        %5290 = vmatpush1.bf16.msra.mxu0 %v2520
        %5291 = vmatprep.subr.bf16.mxu0 %v2529
        %5292 = vmatpush1.bf16.msra.mxu0 %v2528
        %5293 = vmatprep.subr.bf16.mxu0 %v2537
        %5294 = vmatpush1.bf16.msra.mxu0 %v2536
        %5295 = vmatprep.subr.bf16.mxu0 %v2545
        %5296 = vmatpush1.bf16.msra.mxu0 %v2544
        %5297 = vmatprep.subr.bf16.mxu0 %v2553
        %5298 = vmatpush1.bf16.msra.mxu0 %v2552
        %5299 = vmatprep.subr.bf16.mxu0 %v2561
        %5300 = vmatpush1.bf16.msra.mxu0 %v2560
        %5301 = vmatprep.mubr.bf16.mxu0 %v5139
        %5302 = vmatmul.mubr.bf16.gmra.mrb[0].mxu0 %v5138
        %v5303 = vpop.f32.mrb[0].mxu0
        %v5304 = vadd.f32 0.0, %v5303
        %v5305 = vpop.f32.mrb[0].mxu0
        %v5306 = vadd.f32 0.0, %v5305
        %v5307 = vpop.f32.mrb[0].mxu0
        %v5308 = vadd.f32 0.0, %v5307
        %v5309 = vpop.f32.mrb[0].mxu0
        %v5310 = vadd.f32 0.0, %v5309
        %5311 = vdwg.mxu0
        %v5312 = vunpack.c.l.bf16 %v5129
        %v5313 = vunpack.c.l.bf16 %v5130
        %v5314 = vunpack.c.l.bf16 %v5131
        %v5315 = vunpack.c.l.bf16 %v5132
        %v5316 = vunpack.c.h.bf16 %v5129
        %v5317 = vunpack.c.h.bf16 %v5130
        %v5318 = vunpack.c.h.bf16 %v5131
        %v5319 = vunpack.c.h.bf16 %v5132
        %v5320 = vadd.f32 %v5312, %v5175
        %v5321 = vadd.f32 %v5313, %v5177
        %v5322 = vadd.f32 %v5314, %v5218
        %v5323 = vadd.f32 %v5315, %v5220
        %v5324 = vadd.f32 %v5316, %v5179
        %v5325 = vadd.f32 %v5317, %v5181
        %v5326 = vadd.f32 %v5318, %v5222
        %v5327 = vadd.f32 %v5319, %v5224
        %v5328 = vunpack.c.l.bf16 %v5134
        %v5329 = vunpack.c.l.bf16 %v5135
        %v5330 = vunpack.c.l.bf16 %v5136
        %v5331 = vunpack.c.l.bf16 %v5137
        %v5332 = vunpack.c.h.bf16 %v5134
        %v5333 = vunpack.c.h.bf16 %v5135
        %v5334 = vunpack.c.h.bf16 %v5136
        %v5335 = vunpack.c.h.bf16 %v5137
        %v5336 = vadd.f32 %v5328, %v5261
        %v5337 = vadd.f32 %v5329, %v5263
        %v5338 = vadd.f32 %v5330, %v5304
        %v5339 = vadd.f32 %v5331, %v5306
        %v5340 = vadd.f32 %v5332, %v5265
        %v5341 = vadd.f32 %v5333, %v5267
        %v5342 = vadd.f32 %v5334, %v5308
        %v5343 = vadd.f32 %v5335, %v5310
        %v5344 = vxor.u32 %v5320, 2147483648
        %v5345 = vxor.u32 %v5324, 2147483648
        %v5346 = vmul.f32 %v5344, 1.442695
        %v5347 = vpow.pop %v5346
        %v5348 = vmul.f32 %v5345, 1.442695
        %v5349 = vpow.pop %v5348
        %v5350 = vadd.f32 %v5347, 1.0
        %v5351 = vadd.f32 %v5349, 1.0
        %v5352 = vrcp.pop %v5350
        %v5353 = vmul.f32 1.0, %v5352
        %v5354 = vrcp.pop %v5351
        %v5355 = vmul.f32 1.0, %v5354
        %v5356 = vxor.u32 %v5321, 2147483648
        %v5357 = vxor.u32 %v5325, 2147483648
        %v5358 = vmul.f32 %v5356, 1.442695
        %v5359 = vpow.pop %v5358
        %v5360 = vmul.f32 %v5357, 1.442695
        %v5361 = vpow.pop %v5360
        %v5362 = vadd.f32 %v5359, 1.0
        %v5363 = vadd.f32 %v5361, 1.0
        %v5364 = vrcp.pop %v5362
        %v5365 = vmul.f32 1.0, %v5364
        %v5366 = vrcp.pop %v5363
        %v5367 = vmul.f32 1.0, %v5366
        %v5368 = vtanh.pop %v5322
        %v5369 = vtanh.pop %v5326
        %v5370 = vxor.u32 %v5323, 2147483648
        %v5371 = vxor.u32 %v5327, 2147483648
        %v5372 = vmul.f32 %v5370, 1.442695
        %v5373 = vpow.pop %v5372
        %v5374 = vmul.f32 %v5371, 1.442695
        %v5375 = vpow.pop %v5374
        %v5376 = vadd.f32 %v5373, 1.0
        %v5377 = vadd.f32 %v5375, 1.0
        %v5378 = vrcp.pop %v5376
        %v5379 = vmul.f32 1.0, %v5378
        %v5380 = vrcp.pop %v5377
        %v5381 = vmul.f32 1.0, %v5380
        %v5382 = vmul.f32 %v5365, %v5106
        %v5383 = vmul.f32 %v5367, %v5107
        %v5384 = vmul.f32 %v5353, %v5368
        %v5385 = vmul.f32 %v5355, %v5369
        %v5386 = vadd.f32 %v5382, %v5384
        %v5387 = vadd.f32 %v5383, %v5385
        %v5388 = vtanh.pop %v5386
        %v5389 = vtanh.pop %v5387
        %v5390 = vmul.f32 %v5379, %v5388
        %v5391 = vmul.f32 %v5381, %v5389
        %v5392 = vxor.u32 %v5336, 2147483648
        %v5393 = vxor.u32 %v5340, 2147483648
        %v5394 = vmul.f32 %v5392, 1.442695
        %v5395 = vpow.pop %v5394
        %v5396 = vmul.f32 %v5393, 1.442695
        %v5397 = vpow.pop %v5396
        %v5398 = vadd.f32 %v5395, 1.0
        %v5399 = vadd.f32 %v5397, 1.0
        %v5400 = vrcp.pop %v5398
        %v5401 = vmul.f32 1.0, %v5400
        %v5402 = vrcp.pop %v5399
        %v5403 = vmul.f32 1.0, %v5402
        %v5404 = vxor.u32 %v5337, 2147483648
        %v5405 = vxor.u32 %v5341, 2147483648
        %v5406 = vmul.f32 %v5404, 1.442695
        %v5407 = vpow.pop %v5406
        %v5408 = vmul.f32 %v5405, 1.442695
        %v5409 = vpow.pop %v5408
        %v5410 = vadd.f32 %v5407, 1.0
        %v5411 = vadd.f32 %v5409, 1.0
        %v5412 = vrcp.pop %v5410
        %v5413 = vmul.f32 1.0, %v5412
        %v5414 = vrcp.pop %v5411
        %v5415 = vmul.f32 1.0, %v5414
        %v5416 = vtanh.pop %v5338
        %v5417 = vtanh.pop %v5342
        %v5418 = vxor.u32 %v5339, 2147483648
        %v5419 = vxor.u32 %v5343, 2147483648
        %v5420 = vmul.f32 %v5418, 1.442695
        %v5421 = vpow.pop %v5420
        %v5422 = vmul.f32 %v5419, 1.442695
        %v5423 = vpow.pop %v5422
        %v5424 = vadd.f32 %v5421, 1.0
        %v5425 = vadd.f32 %v5423, 1.0
        %v5426 = vrcp.pop %v5424
        %v5427 = vmul.f32 1.0, %v5426
        %v5428 = vrcp.pop %v5425
        %v5429 = vmul.f32 1.0, %v5428
        %v5430 = vmul.f32 %v5413, %v5120
        %v5431 = vmul.f32 %v5415, %v5121
        %v5432 = vmul.f32 %v5401, %v5416
        %v5433 = vmul.f32 %v5403, %v5417
        %v5434 = vadd.f32 %v5430, %v5432
        %v5435 = vadd.f32 %v5431, %v5433
        %v5436 = vtanh.pop %v5434
        %v5437 = vtanh.pop %v5435
        %v5438 = vmul.f32 %v5427, %v5436
        %v5439 = vmul.f32 %v5429, %v5437
        %vm5440 = vcmp.gt.s32.totalorder %v1910, 7
        %vm5441 = vcmp.gt.s32.totalorder %v1911, 7
        %vm5442 = vcmp.gt.s32.totalorder %v1910, 8
        %vm5443 = vcmp.gt.s32.totalorder %v1911, 8
        %v5444 = vsel %vm5440, 1, 0
        %v5445 = vsel %vm5441, 1, 0
        %5446 = vset.pattern.permute.xlu0 0
        %5447 = vperm.xlu0 %5446, %v5444
        %v5448 = vpop.permute.xlu0 %5447
        %5449 = vset.pattern.permute.xlu0 0
        %5450 = vperm.xlu0 %5449, %v5445
        %v5451 = vpop.permute.xlu0 %5450
        %vm5452 = vcmp.eq.s32.totalorder %v5448, 1
        %vm5453 = vcmp.eq.s32.totalorder %v5451, 1
        %v5454 = vsel %vm5452, %v5390, %v5104
        %v5455 = vsel %vm5453, %v5391, %v5105
        %v5456 = vsel %vm5452, %v5386, %v5106
        %v5457 = vsel %vm5453, %v5387, %v5107
        %v5458 = vsel %vm5442, 1, 0
        %v5459 = vsel %vm5443, 1, 0
        %5460 = vset.pattern.permute.xlu0 0
        %5461 = vperm.xlu0 %5460, %v5458
        %v5462 = vpop.permute.xlu0 %5461
        %5463 = vset.pattern.permute.xlu0 0
        %5464 = vperm.xlu0 %5463, %v5459
        %v5465 = vpop.permute.xlu0 %5464
        %vm5466 = vcmp.eq.s32.totalorder %v5462, 1
        %vm5467 = vcmp.eq.s32.totalorder %v5465, 1
        %v5468 = vsel %vm5466, %v5438, %v5118
        %v5469 = vsel %vm5467, %v5439, %v5119
        %v5470 = vsel %vm5466, %v5434, %v5120
        %v5471 = vsel %vm5467, %v5435, %v5121
        %v5472 = vmax.f32 %v5122, %v5454
        %v5473 = vmax.f32 %v5123, %v5455
        %v5474 = vsel %vm5466, %v5438, -1e+30
        %v5475 = vsel %vm5467, %v5439, -1e+30
        %v5476 = vmax.f32 %v5126, %v5474
        %v5477 = vmax.f32 %v5127, %v5475
        %v5478 = vld [vmem:[%s5133] sm:$0xff]
        %v5479 = vld [vmem:[%s5133 + $0x8] sm:$0xff]
        %v5480 = vld [vmem:[%s5133 + $0x10] sm:$0xff]
        %v5481 = vld [vmem:[%s5133 + $0x18] sm:$0xff]
        %v5482 = vld [vmem:[%s5128 + $0x20] sm:$0xff]
        %v5483 = vld [vmem:[%s5128 + $0x28] sm:$0xff]
        %v5484 = vld [vmem:[%s5128 + $0x30] sm:$0xff]
        %v5485 = vld [vmem:[%s5128 + $0x38] sm:$0xff]
        %v5486 = vpack.c.bf16 %v5455, %v5454
        %v5487 = vpack.c.bf16 %v5469, %v5468
        %5488 = vmatprep.subr.bf16.mxu0 %v2435
        %5489 = vmatpush1.bf16.msra.mxu0 %v2434
        %5490 = vmatprep.subr.bf16.mxu0 %v2443
        %5491 = vmatpush1.bf16.msra.mxu0 %v2442
        %5492 = vmatprep.subr.bf16.mxu0 %v2451
        %5493 = vmatpush1.bf16.msra.mxu0 %v2450
        %5494 = vmatprep.subr.bf16.mxu0 %v2459
        %5495 = vmatpush1.bf16.msra.mxu0 %v2458
        %5496 = vmatprep.subr.bf16.mxu0 %v2467
        %5497 = vmatpush1.bf16.msra.mxu0 %v2466
        %5498 = vmatprep.subr.bf16.mxu0 %v2475
        %5499 = vmatpush1.bf16.msra.mxu0 %v2474
        %5500 = vmatprep.subr.bf16.mxu0 %v2483
        %5501 = vmatpush1.bf16.msra.mxu0 %v2482
        %5502 = vmatprep.subr.bf16.mxu0 %v2491
        %5503 = vmatpush1.bf16.msra.mxu0 %v2490
        %5504 = vmatprep.subr.bf16.mxu0 %v2499
        %5505 = vmatpush1.bf16.msra.mxu0 %v2498
        %5506 = vmatprep.subr.bf16.mxu0 %v2507
        %5507 = vmatpush1.bf16.msra.mxu0 %v2506
        %5508 = vmatprep.subr.bf16.mxu0 %v2515
        %5509 = vmatpush1.bf16.msra.mxu0 %v2514
        %5510 = vmatprep.subr.bf16.mxu0 %v2523
        %5511 = vmatpush1.bf16.msra.mxu0 %v2522
        %5512 = vmatprep.subr.bf16.mxu0 %v2531
        %5513 = vmatpush1.bf16.msra.mxu0 %v2530
        %5514 = vmatprep.subr.bf16.mxu0 %v2539
        %5515 = vmatpush1.bf16.msra.mxu0 %v2538
        %5516 = vmatprep.subr.bf16.mxu0 %v2547
        %5517 = vmatpush1.bf16.msra.mxu0 %v2546
        %5518 = vmatprep.subr.bf16.mxu0 %v2555
        %5519 = vmatpush1.bf16.msra.mxu0 %v2554
        %5520 = vmatprep.mubr.bf16.mxu0 %v5487
        %5521 = vmatmul.mubr.bf16.gmra.mrb[0].mxu0 %v5486
        %v5522 = vpop.f32.mrb[0].mxu0
        %v5523 = vadd.f32 0.0, %v5522
        %v5524 = vpop.f32.mrb[0].mxu0
        %v5525 = vadd.f32 0.0, %v5524
        %v5526 = vpop.f32.mrb[0].mxu0
        %v5527 = vadd.f32 0.0, %v5526
        %v5528 = vpop.f32.mrb[0].mxu0
        %v5529 = vadd.f32 0.0, %v5528
        %5530 = vdwg.mxu0
        %5531 = vmatprep.subr.bf16.mxu0 %v2437
        %5532 = vmatpush1.bf16.msra.mxu0 %v2436
        %5533 = vmatprep.subr.bf16.mxu0 %v2445
        %5534 = vmatpush1.bf16.msra.mxu0 %v2444
        %5535 = vmatprep.subr.bf16.mxu0 %v2453
        %5536 = vmatpush1.bf16.msra.mxu0 %v2452
        %5537 = vmatprep.subr.bf16.mxu0 %v2461
        %5538 = vmatpush1.bf16.msra.mxu0 %v2460
        %5539 = vmatprep.subr.bf16.mxu0 %v2469
        %5540 = vmatpush1.bf16.msra.mxu0 %v2468
        %5541 = vmatprep.subr.bf16.mxu0 %v2477
        %5542 = vmatpush1.bf16.msra.mxu0 %v2476
        %5543 = vmatprep.subr.bf16.mxu0 %v2485
        %5544 = vmatpush1.bf16.msra.mxu0 %v2484
        %5545 = vmatprep.subr.bf16.mxu0 %v2493
        %5546 = vmatpush1.bf16.msra.mxu0 %v2492
        %5547 = vmatprep.subr.bf16.mxu0 %v2501
        %5548 = vmatpush1.bf16.msra.mxu0 %v2500
        %5549 = vmatprep.subr.bf16.mxu0 %v2509
        %5550 = vmatpush1.bf16.msra.mxu0 %v2508
        %5551 = vmatprep.subr.bf16.mxu0 %v2517
        %5552 = vmatpush1.bf16.msra.mxu0 %v2516
        %5553 = vmatprep.subr.bf16.mxu0 %v2525
        %5554 = vmatpush1.bf16.msra.mxu0 %v2524
        %5555 = vmatprep.subr.bf16.mxu0 %v2533
        %5556 = vmatpush1.bf16.msra.mxu0 %v2532
        %5557 = vmatprep.subr.bf16.mxu0 %v2541
        %5558 = vmatpush1.bf16.msra.mxu0 %v2540
        %5559 = vmatprep.subr.bf16.mxu0 %v2549
        %5560 = vmatpush1.bf16.msra.mxu0 %v2548
        %5561 = vmatprep.subr.bf16.mxu0 %v2557
        %5562 = vmatpush1.bf16.msra.mxu0 %v2556
        %5563 = vmatprep.mubr.bf16.mxu0 %v5487
        %5564 = vmatmul.mubr.bf16.gmra.mrb[0].mxu0 %v5486
        %v5565 = vpop.f32.mrb[0].mxu0
        %v5566 = vadd.f32 0.0, %v5565
        %v5567 = vpop.f32.mrb[0].mxu0
        %v5568 = vadd.f32 0.0, %v5567
        %v5569 = vpop.f32.mrb[0].mxu0
        %v5570 = vadd.f32 0.0, %v5569
        %v5571 = vpop.f32.mrb[0].mxu0
        %v5572 = vadd.f32 0.0, %v5571
        %5573 = vdwg.mxu0
        %5574 = vmatprep.subr.bf16.mxu0 %v2439
        %5575 = vmatpush1.bf16.msra.mxu0 %v2438
        %5576 = vmatprep.subr.bf16.mxu0 %v2447
        %5577 = vmatpush1.bf16.msra.mxu0 %v2446
        %5578 = vmatprep.subr.bf16.mxu0 %v2455
        %5579 = vmatpush1.bf16.msra.mxu0 %v2454
        %5580 = vmatprep.subr.bf16.mxu0 %v2463
        %5581 = vmatpush1.bf16.msra.mxu0 %v2462
        %5582 = vmatprep.subr.bf16.mxu0 %v2471
        %5583 = vmatpush1.bf16.msra.mxu0 %v2470
        %5584 = vmatprep.subr.bf16.mxu0 %v2479
        %5585 = vmatpush1.bf16.msra.mxu0 %v2478
        %5586 = vmatprep.subr.bf16.mxu0 %v2487
        %5587 = vmatpush1.bf16.msra.mxu0 %v2486
        %5588 = vmatprep.subr.bf16.mxu0 %v2495
        %5589 = vmatpush1.bf16.msra.mxu0 %v2494
        %5590 = vmatprep.subr.bf16.mxu0 %v2503
        %5591 = vmatpush1.bf16.msra.mxu0 %v2502
        %5592 = vmatprep.subr.bf16.mxu0 %v2511
        %5593 = vmatpush1.bf16.msra.mxu0 %v2510
        %5594 = vmatprep.subr.bf16.mxu0 %v2519
        %5595 = vmatpush1.bf16.msra.mxu0 %v2518
        %5596 = vmatprep.subr.bf16.mxu0 %v2527
        %5597 = vmatpush1.bf16.msra.mxu0 %v2526
        %5598 = vmatprep.subr.bf16.mxu0 %v2535
        %5599 = vmatpush1.bf16.msra.mxu0 %v2534
        %5600 = vmatprep.subr.bf16.mxu0 %v2543
        %5601 = vmatpush1.bf16.msra.mxu0 %v2542
        %5602 = vmatprep.subr.bf16.mxu0 %v2551
        %5603 = vmatpush1.bf16.msra.mxu0 %v2550
        %5604 = vmatprep.subr.bf16.mxu0 %v2559
        %5605 = vmatpush1.bf16.msra.mxu0 %v2558
        %5606 = vmatprep.mubr.bf16.mxu0 %v5487
        %5607 = vmatmul.mubr.bf16.gmra.mrb[0].mxu0 %v5486
        %v5608 = vpop.f32.mrb[0].mxu0
        %v5609 = vadd.f32 0.0, %v5608
        %v5610 = vpop.f32.mrb[0].mxu0
        %v5611 = vadd.f32 0.0, %v5610
        %v5612 = vpop.f32.mrb[0].mxu0
        %v5613 = vadd.f32 0.0, %v5612
        %v5614 = vpop.f32.mrb[0].mxu0
        %v5615 = vadd.f32 0.0, %v5614
        %5616 = vdwg.mxu0
        %5617 = vmatprep.subr.bf16.mxu0 %v2441
        %5618 = vmatpush1.bf16.msra.mxu0 %v2440
        %5619 = vmatprep.subr.bf16.mxu0 %v2449
        %5620 = vmatpush1.bf16.msra.mxu0 %v2448
        %5621 = vmatprep.subr.bf16.mxu0 %v2457
        %5622 = vmatpush1.bf16.msra.mxu0 %v2456
        %5623 = vmatprep.subr.bf16.mxu0 %v2465
        %5624 = vmatpush1.bf16.msra.mxu0 %v2464
        %5625 = vmatprep.subr.bf16.mxu0 %v2473
        %5626 = vmatpush1.bf16.msra.mxu0 %v2472
        %5627 = vmatprep.subr.bf16.mxu0 %v2481
        %5628 = vmatpush1.bf16.msra.mxu0 %v2480
        %5629 = vmatprep.subr.bf16.mxu0 %v2489
        %5630 = vmatpush1.bf16.msra.mxu0 %v2488
        %5631 = vmatprep.subr.bf16.mxu0 %v2497
        %5632 = vmatpush1.bf16.msra.mxu0 %v2496
        %5633 = vmatprep.subr.bf16.mxu0 %v2505
        %5634 = vmatpush1.bf16.msra.mxu0 %v2504
        %5635 = vmatprep.subr.bf16.mxu0 %v2513
        %5636 = vmatpush1.bf16.msra.mxu0 %v2512
        %5637 = vmatprep.subr.bf16.mxu0 %v2521
        %5638 = vmatpush1.bf16.msra.mxu0 %v2520
        %5639 = vmatprep.subr.bf16.mxu0 %v2529
        %5640 = vmatpush1.bf16.msra.mxu0 %v2528
        %5641 = vmatprep.subr.bf16.mxu0 %v2537
        %5642 = vmatpush1.bf16.msra.mxu0 %v2536
        %5643 = vmatprep.subr.bf16.mxu0 %v2545
        %5644 = vmatpush1.bf16.msra.mxu0 %v2544
        %5645 = vmatprep.subr.bf16.mxu0 %v2553
        %5646 = vmatpush1.bf16.msra.mxu0 %v2552
        %5647 = vmatprep.subr.bf16.mxu0 %v2561
        %5648 = vmatpush1.bf16.msra.mxu0 %v2560
        %5649 = vmatprep.mubr.bf16.mxu0 %v5487
        %5650 = vmatmul.mubr.bf16.gmra.mrb[0].mxu0 %v5486
        %v5651 = vpop.f32.mrb[0].mxu0
        %v5652 = vadd.f32 0.0, %v5651
        %v5653 = vpop.f32.mrb[0].mxu0
        %v5654 = vadd.f32 0.0, %v5653
        %v5655 = vpop.f32.mrb[0].mxu0
        %v5656 = vadd.f32 0.0, %v5655
        %v5657 = vpop.f32.mrb[0].mxu0
        %v5658 = vadd.f32 0.0, %v5657
        %5659 = vdwg.mxu0
        %v5660 = vunpack.c.l.bf16 %v5478
        %v5661 = vunpack.c.l.bf16 %v5479
        %v5662 = vunpack.c.l.bf16 %v5480
        %v5663 = vunpack.c.l.bf16 %v5481
        %v5664 = vunpack.c.h.bf16 %v5478
        %v5665 = vunpack.c.h.bf16 %v5479
        %v5666 = vunpack.c.h.bf16 %v5480
        %v5667 = vunpack.c.h.bf16 %v5481
        %v5668 = vadd.f32 %v5660, %v5523
        %v5669 = vadd.f32 %v5661, %v5525
        %v5670 = vadd.f32 %v5662, %v5566
        %v5671 = vadd.f32 %v5663, %v5568
        %v5672 = vadd.f32 %v5664, %v5527
        %v5673 = vadd.f32 %v5665, %v5529
        %v5674 = vadd.f32 %v5666, %v5570
        %v5675 = vadd.f32 %v5667, %v5572
        %v5676 = vunpack.c.l.bf16 %v5482
        %v5677 = vunpack.c.l.bf16 %v5483
        %v5678 = vunpack.c.l.bf16 %v5484
        %v5679 = vunpack.c.l.bf16 %v5485
        %v5680 = vunpack.c.h.bf16 %v5482
        %v5681 = vunpack.c.h.bf16 %v5483
        %v5682 = vunpack.c.h.bf16 %v5484
        %v5683 = vunpack.c.h.bf16 %v5485
        %v5684 = vadd.f32 %v5676, %v5609
        %v5685 = vadd.f32 %v5677, %v5611
        %v5686 = vadd.f32 %v5678, %v5652
        %v5687 = vadd.f32 %v5679, %v5654
        %v5688 = vadd.f32 %v5680, %v5613
        %v5689 = vadd.f32 %v5681, %v5615
        %v5690 = vadd.f32 %v5682, %v5656
        %v5691 = vadd.f32 %v5683, %v5658
        %v5692 = vxor.u32 %v5668, 2147483648
        %v5693 = vxor.u32 %v5672, 2147483648
        %v5694 = vmul.f32 %v5692, 1.442695
        %v5695 = vpow.pop %v5694
        %v5696 = vmul.f32 %v5693, 1.442695
        %v5697 = vpow.pop %v5696
        %v5698 = vadd.f32 %v5695, 1.0
        %v5699 = vadd.f32 %v5697, 1.0
        %v5700 = vrcp.pop %v5698
        %v5701 = vmul.f32 1.0, %v5700
        %v5702 = vrcp.pop %v5699
        %v5703 = vmul.f32 1.0, %v5702
        %v5704 = vxor.u32 %v5669, 2147483648
        %v5705 = vxor.u32 %v5673, 2147483648
        %v5706 = vmul.f32 %v5704, 1.442695
        %v5707 = vpow.pop %v5706
        %v5708 = vmul.f32 %v5705, 1.442695
        %v5709 = vpow.pop %v5708
        %v5710 = vadd.f32 %v5707, 1.0
        %v5711 = vadd.f32 %v5709, 1.0
        %v5712 = vrcp.pop %v5710
        %v5713 = vmul.f32 1.0, %v5712
        %v5714 = vrcp.pop %v5711
        %v5715 = vmul.f32 1.0, %v5714
        %v5716 = vtanh.pop %v5670
        %v5717 = vtanh.pop %v5674
        %v5718 = vxor.u32 %v5671, 2147483648
        %v5719 = vxor.u32 %v5675, 2147483648
        %v5720 = vmul.f32 %v5718, 1.442695
        %v5721 = vpow.pop %v5720
        %v5722 = vmul.f32 %v5719, 1.442695
        %v5723 = vpow.pop %v5722
        %v5724 = vadd.f32 %v5721, 1.0
        %v5725 = vadd.f32 %v5723, 1.0
        %v5726 = vrcp.pop %v5724
        %v5727 = vmul.f32 1.0, %v5726
        %v5728 = vrcp.pop %v5725
        %v5729 = vmul.f32 1.0, %v5728
        %v5730 = vmul.f32 %v5713, %v5456
        %v5731 = vmul.f32 %v5715, %v5457
        %v5732 = vmul.f32 %v5701, %v5716
        %v5733 = vmul.f32 %v5703, %v5717
        %v5734 = vadd.f32 %v5730, %v5732
        %v5735 = vadd.f32 %v5731, %v5733
        %v5736 = vtanh.pop %v5734
        %v5737 = vtanh.pop %v5735
        %v5738 = vmul.f32 %v5727, %v5736
        %v5739 = vmul.f32 %v5729, %v5737
        %v5740 = vxor.u32 %v5684, 2147483648
        %v5741 = vxor.u32 %v5688, 2147483648
        %v5742 = vmul.f32 %v5740, 1.442695
        %v5743 = vpow.pop %v5742
        %v5744 = vmul.f32 %v5741, 1.442695
        %v5745 = vpow.pop %v5744
        %v5746 = vadd.f32 %v5743, 1.0
        %v5747 = vadd.f32 %v5745, 1.0
        %v5748 = vrcp.pop %v5746
        %v5749 = vmul.f32 1.0, %v5748
        %v5750 = vrcp.pop %v5747
        %v5751 = vmul.f32 1.0, %v5750
        %v5752 = vxor.u32 %v5685, 2147483648
        %v5753 = vxor.u32 %v5689, 2147483648
        %v5754 = vmul.f32 %v5752, 1.442695
        %v5755 = vpow.pop %v5754
        %v5756 = vmul.f32 %v5753, 1.442695
        %v5757 = vpow.pop %v5756
        %v5758 = vadd.f32 %v5755, 1.0
        %v5759 = vadd.f32 %v5757, 1.0
        %v5760 = vrcp.pop %v5758
        %v5761 = vmul.f32 1.0, %v5760
        %v5762 = vrcp.pop %v5759
        %v5763 = vmul.f32 1.0, %v5762
        %v5764 = vtanh.pop %v5686
        %v5765 = vtanh.pop %v5690
        %v5766 = vxor.u32 %v5687, 2147483648
        %v5767 = vxor.u32 %v5691, 2147483648
        %v5768 = vmul.f32 %v5766, 1.442695
        %v5769 = vpow.pop %v5768
        %v5770 = vmul.f32 %v5767, 1.442695
        %v5771 = vpow.pop %v5770
        %v5772 = vadd.f32 %v5769, 1.0
        %v5773 = vadd.f32 %v5771, 1.0
        %v5774 = vrcp.pop %v5772
        %v5775 = vmul.f32 1.0, %v5774
        %v5776 = vrcp.pop %v5773
        %v5777 = vmul.f32 1.0, %v5776
        %v5778 = vmul.f32 %v5761, %v5470
        %v5779 = vmul.f32 %v5763, %v5471
        %v5780 = vmul.f32 %v5749, %v5764
        %v5781 = vmul.f32 %v5751, %v5765
        %v5782 = vadd.f32 %v5778, %v5780
        %v5783 = vadd.f32 %v5779, %v5781
        %v5784 = vtanh.pop %v5782
        %v5785 = vtanh.pop %v5783
        %v5786 = vmul.f32 %v5775, %v5784
        %v5787 = vmul.f32 %v5777, %v5785
        %v5788 = vsel %vm5466, %v5738, %v5454
        %v5789 = vsel %vm5467, %v5739, %v5455
        %v5790 = vsel %vm5466, %v5734, %v5456
        %v5791 = vsel %vm5467, %v5735, %v5457
        %v5792 = vsel %vm5452, %v5786, %v5468
        %v5793 = vsel %vm5453, %v5787, %v5469
        %v5794 = vsel %vm5452, %v5782, %v5470
        %v5795 = vsel %vm5453, %v5783, %v5471
        %v5796 = vmax.f32 %v5472, %v5788
        %v5797 = vmax.f32 %v5473, %v5789
        %v5798 = vsel %vm5452, %v5786, -1e+30
        %v5799 = vsel %vm5453, %v5787, -1e+30
        %v5800 = vmax.f32 %v5476, %v5798
        %v5801 = vmax.f32 %v5477, %v5799
        %v5802 = vld [vmem:[%s4783] sm:$0xff]
        %v5803 = vld [vmem:[%s4783 + $0x8] sm:$0xff]
        %v5804 = vld [vmem:[%s4783 + $0x10] sm:$0xff]
        %v5805 = vld [vmem:[%s4783 + $0x18] sm:$0xff]
        %v5806 = vld [vmem:[%s4778 + $0x20] sm:$0xff]
        %v5807 = vld [vmem:[%s4778 + $0x28] sm:$0xff]
        %v5808 = vld [vmem:[%s4778 + $0x30] sm:$0xff]
        %v5809 = vld [vmem:[%s4778 + $0x38] sm:$0xff]
        %v5810 = vpack.c.bf16 %v5789, %v5788
        %v5811 = vpack.c.bf16 %v5793, %v5792
        %5812 = vmatprep.subr.bf16.mxu0 %v2435
        %5813 = vmatpush1.bf16.msra.mxu0 %v2434
        %5814 = vmatprep.subr.bf16.mxu0 %v2443
        %5815 = vmatpush1.bf16.msra.mxu0 %v2442
        %5816 = vmatprep.subr.bf16.mxu0 %v2451
        %5817 = vmatpush1.bf16.msra.mxu0 %v2450
        %5818 = vmatprep.subr.bf16.mxu0 %v2459
        %5819 = vmatpush1.bf16.msra.mxu0 %v2458
        %5820 = vmatprep.subr.bf16.mxu0 %v2467
        %5821 = vmatpush1.bf16.msra.mxu0 %v2466
        %5822 = vmatprep.subr.bf16.mxu0 %v2475
        %5823 = vmatpush1.bf16.msra.mxu0 %v2474
        %5824 = vmatprep.subr.bf16.mxu0 %v2483
        %5825 = vmatpush1.bf16.msra.mxu0 %v2482
        %5826 = vmatprep.subr.bf16.mxu0 %v2491
        %5827 = vmatpush1.bf16.msra.mxu0 %v2490
        %5828 = vmatprep.subr.bf16.mxu0 %v2499
        %5829 = vmatpush1.bf16.msra.mxu0 %v2498
        %5830 = vmatprep.subr.bf16.mxu0 %v2507
        %5831 = vmatpush1.bf16.msra.mxu0 %v2506
        %5832 = vmatprep.subr.bf16.mxu0 %v2515
        %5833 = vmatpush1.bf16.msra.mxu0 %v2514
        %5834 = vmatprep.subr.bf16.mxu0 %v2523
        %5835 = vmatpush1.bf16.msra.mxu0 %v2522
        %5836 = vmatprep.subr.bf16.mxu0 %v2531
        %5837 = vmatpush1.bf16.msra.mxu0 %v2530
        %5838 = vmatprep.subr.bf16.mxu0 %v2539
        %5839 = vmatpush1.bf16.msra.mxu0 %v2538
        %5840 = vmatprep.subr.bf16.mxu0 %v2547
        %5841 = vmatpush1.bf16.msra.mxu0 %v2546
        %5842 = vmatprep.subr.bf16.mxu0 %v2555
        %5843 = vmatpush1.bf16.msra.mxu0 %v2554
        %5844 = vmatprep.mubr.bf16.mxu0 %v5811
        %5845 = vmatmul.mubr.bf16.gmra.mrb[0].mxu0 %v5810
        %v5846 = vpop.f32.mrb[0].mxu0
        %v5847 = vadd.f32 0.0, %v5846
        %v5848 = vpop.f32.mrb[0].mxu0
        %v5849 = vadd.f32 0.0, %v5848
        %v5850 = vpop.f32.mrb[0].mxu0
        %v5851 = vadd.f32 0.0, %v5850
        %v5852 = vpop.f32.mrb[0].mxu0
        %v5853 = vadd.f32 0.0, %v5852
        %5854 = vdwg.mxu0
        %5855 = vmatprep.subr.bf16.mxu0 %v2437
        %5856 = vmatpush1.bf16.msra.mxu0 %v2436
        %5857 = vmatprep.subr.bf16.mxu0 %v2445
        %5858 = vmatpush1.bf16.msra.mxu0 %v2444
        %5859 = vmatprep.subr.bf16.mxu0 %v2453
        %5860 = vmatpush1.bf16.msra.mxu0 %v2452
        %5861 = vmatprep.subr.bf16.mxu0 %v2461
        %5862 = vmatpush1.bf16.msra.mxu0 %v2460
        %5863 = vmatprep.subr.bf16.mxu0 %v2469
        %5864 = vmatpush1.bf16.msra.mxu0 %v2468
        %5865 = vmatprep.subr.bf16.mxu0 %v2477
        %5866 = vmatpush1.bf16.msra.mxu0 %v2476
        %5867 = vmatprep.subr.bf16.mxu0 %v2485
        %5868 = vmatpush1.bf16.msra.mxu0 %v2484
        %5869 = vmatprep.subr.bf16.mxu0 %v2493
        %5870 = vmatpush1.bf16.msra.mxu0 %v2492
        %5871 = vmatprep.subr.bf16.mxu0 %v2501
        %5872 = vmatpush1.bf16.msra.mxu0 %v2500
        %5873 = vmatprep.subr.bf16.mxu0 %v2509
        %5874 = vmatpush1.bf16.msra.mxu0 %v2508
        %5875 = vmatprep.subr.bf16.mxu0 %v2517
        %5876 = vmatpush1.bf16.msra.mxu0 %v2516
        %5877 = vmatprep.subr.bf16.mxu0 %v2525
        %5878 = vmatpush1.bf16.msra.mxu0 %v2524
        %5879 = vmatprep.subr.bf16.mxu0 %v2533
        %5880 = vmatpush1.bf16.msra.mxu0 %v2532
        %5881 = vmatprep.subr.bf16.mxu0 %v2541
        %5882 = vmatpush1.bf16.msra.mxu0 %v2540
        %5883 = vmatprep.subr.bf16.mxu0 %v2549
        %5884 = vmatpush1.bf16.msra.mxu0 %v2548
        %5885 = vmatprep.subr.bf16.mxu0 %v2557
        %5886 = vmatpush1.bf16.msra.mxu0 %v2556
        %5887 = vmatprep.mubr.bf16.mxu0 %v5811
        %5888 = vmatmul.mubr.bf16.gmra.mrb[0].mxu0 %v5810
        %v5889 = vpop.f32.mrb[0].mxu0
        %v5890 = vadd.f32 0.0, %v5889
        %v5891 = vpop.f32.mrb[0].mxu0
        %v5892 = vadd.f32 0.0, %v5891
        %v5893 = vpop.f32.mrb[0].mxu0
        %v5894 = vadd.f32 0.0, %v5893
        %v5895 = vpop.f32.mrb[0].mxu0
        %v5896 = vadd.f32 0.0, %v5895
        %5897 = vdwg.mxu0
        %5898 = vmatprep.subr.bf16.mxu0 %v2439
        %5899 = vmatpush1.bf16.msra.mxu0 %v2438
        %5900 = vmatprep.subr.bf16.mxu0 %v2447
        %5901 = vmatpush1.bf16.msra.mxu0 %v2446
        %5902 = vmatprep.subr.bf16.mxu0 %v2455
        %5903 = vmatpush1.bf16.msra.mxu0 %v2454
        %5904 = vmatprep.subr.bf16.mxu0 %v2463
        %5905 = vmatpush1.bf16.msra.mxu0 %v2462
        %5906 = vmatprep.subr.bf16.mxu0 %v2471
        %5907 = vmatpush1.bf16.msra.mxu0 %v2470
        %5908 = vmatprep.subr.bf16.mxu0 %v2479
        %5909 = vmatpush1.bf16.msra.mxu0 %v2478
        %5910 = vmatprep.subr.bf16.mxu0 %v2487
        %5911 = vmatpush1.bf16.msra.mxu0 %v2486
        %5912 = vmatprep.subr.bf16.mxu0 %v2495
        %5913 = vmatpush1.bf16.msra.mxu0 %v2494
        %5914 = vmatprep.subr.bf16.mxu0 %v2503
        %5915 = vmatpush1.bf16.msra.mxu0 %v2502
        %5916 = vmatprep.subr.bf16.mxu0 %v2511
        %5917 = vmatpush1.bf16.msra.mxu0 %v2510
        %5918 = vmatprep.subr.bf16.mxu0 %v2519
        %5919 = vmatpush1.bf16.msra.mxu0 %v2518
        %5920 = vmatprep.subr.bf16.mxu0 %v2527
        %5921 = vmatpush1.bf16.msra.mxu0 %v2526
        %5922 = vmatprep.subr.bf16.mxu0 %v2535
        %5923 = vmatpush1.bf16.msra.mxu0 %v2534
        %5924 = vmatprep.subr.bf16.mxu0 %v2543
        %5925 = vmatpush1.bf16.msra.mxu0 %v2542
        %5926 = vmatprep.subr.bf16.mxu0 %v2551
        %5927 = vmatpush1.bf16.msra.mxu0 %v2550
        %5928 = vmatprep.subr.bf16.mxu0 %v2559
        %5929 = vmatpush1.bf16.msra.mxu0 %v2558
        %5930 = vmatprep.mubr.bf16.mxu0 %v5811
        %5931 = vmatmul.mubr.bf16.gmra.mrb[0].mxu0 %v5810
        %v5932 = vpop.f32.mrb[0].mxu0
        %v5933 = vadd.f32 0.0, %v5932
        %v5934 = vpop.f32.mrb[0].mxu0
        %v5935 = vadd.f32 0.0, %v5934
        %v5936 = vpop.f32.mrb[0].mxu0
        %v5937 = vadd.f32 0.0, %v5936
        %v5938 = vpop.f32.mrb[0].mxu0
        %v5939 = vadd.f32 0.0, %v5938
        %5940 = vdwg.mxu0
        %5941 = vmatprep.subr.bf16.mxu0 %v2441
        %5942 = vmatpush1.bf16.msra.mxu0 %v2440
        %5943 = vmatprep.subr.bf16.mxu0 %v2449
        %5944 = vmatpush1.bf16.msra.mxu0 %v2448
        %5945 = vmatprep.subr.bf16.mxu0 %v2457
        %5946 = vmatpush1.bf16.msra.mxu0 %v2456
        %5947 = vmatprep.subr.bf16.mxu0 %v2465
        %5948 = vmatpush1.bf16.msra.mxu0 %v2464
        %5949 = vmatprep.subr.bf16.mxu0 %v2473
        %5950 = vmatpush1.bf16.msra.mxu0 %v2472
        %5951 = vmatprep.subr.bf16.mxu0 %v2481
        %5952 = vmatpush1.bf16.msra.mxu0 %v2480
        %5953 = vmatprep.subr.bf16.mxu0 %v2489
        %5954 = vmatpush1.bf16.msra.mxu0 %v2488
        %5955 = vmatprep.subr.bf16.mxu0 %v2497
        %5956 = vmatpush1.bf16.msra.mxu0 %v2496
        %5957 = vmatprep.subr.bf16.mxu0 %v2505
        %5958 = vmatpush1.bf16.msra.mxu0 %v2504
        %5959 = vmatprep.subr.bf16.mxu0 %v2513
        %5960 = vmatpush1.bf16.msra.mxu0 %v2512
        %5961 = vmatprep.subr.bf16.mxu0 %v2521
        %5962 = vmatpush1.bf16.msra.mxu0 %v2520
        %5963 = vmatprep.subr.bf16.mxu0 %v2529
        %5964 = vmatpush1.bf16.msra.mxu0 %v2528
        %5965 = vmatprep.subr.bf16.mxu0 %v2537
        %5966 = vmatpush1.bf16.msra.mxu0 %v2536
        %5967 = vmatprep.subr.bf16.mxu0 %v2545
        %5968 = vmatpush1.bf16.msra.mxu0 %v2544
        %5969 = vmatprep.subr.bf16.mxu0 %v2553
        %5970 = vmatpush1.bf16.msra.mxu0 %v2552
        %5971 = vmatprep.subr.bf16.mxu0 %v2561
        %5972 = vmatpush1.bf16.msra.mxu0 %v2560
        %5973 = vmatprep.mubr.bf16.mxu0 %v5811
        %5974 = vmatmul.mubr.bf16.gmra.mrb[0].mxu0 %v5810
        %v5975 = vpop.f32.mrb[0].mxu0
        %v5976 = vadd.f32 0.0, %v5975
        %v5977 = vpop.f32.mrb[0].mxu0
        %v5978 = vadd.f32 0.0, %v5977
        %v5979 = vpop.f32.mrb[0].mxu0
        %v5980 = vadd.f32 0.0, %v5979
        %v5981 = vpop.f32.mrb[0].mxu0
        %v5982 = vadd.f32 0.0, %v5981
        %5983 = vdwg.mxu0
        %v5984 = vunpack.c.l.bf16 %v5802
        %v5985 = vunpack.c.l.bf16 %v5803
        %v5986 = vunpack.c.l.bf16 %v5804
        %v5987 = vunpack.c.l.bf16 %v5805
        %v5988 = vunpack.c.h.bf16 %v5802
        %v5989 = vunpack.c.h.bf16 %v5803
        %v5990 = vunpack.c.h.bf16 %v5804
        %v5991 = vunpack.c.h.bf16 %v5805
        %v5992 = vadd.f32 %v5984, %v5847
        %v5993 = vadd.f32 %v5985, %v5849
        %v5994 = vadd.f32 %v5986, %v5890
        %v5995 = vadd.f32 %v5987, %v5892
        %v5996 = vadd.f32 %v5988, %v5851
        %v5997 = vadd.f32 %v5989, %v5853
        %v5998 = vadd.f32 %v5990, %v5894
        %v5999 = vadd.f32 %v5991, %v5896
        %v6000 = vunpack.c.l.bf16 %v5806
        %v6001 = vunpack.c.l.bf16 %v5807
        %v6002 = vunpack.c.l.bf16 %v5808
        %v6003 = vunpack.c.l.bf16 %v5809
        %v6004 = vunpack.c.h.bf16 %v5806
        %v6005 = vunpack.c.h.bf16 %v5807
        %v6006 = vunpack.c.h.bf16 %v5808
        %v6007 = vunpack.c.h.bf16 %v5809
        %v6008 = vadd.f32 %v6000, %v5933
        %v6009 = vadd.f32 %v6001, %v5935
        %v6010 = vadd.f32 %v6002, %v5976
        %v6011 = vadd.f32 %v6003, %v5978
        %v6012 = vadd.f32 %v6004, %v5937
        %v6013 = vadd.f32 %v6005, %v5939
        %v6014 = vadd.f32 %v6006, %v5980
        %v6015 = vadd.f32 %v6007, %v5982
        %v6016 = vxor.u32 %v5992, 2147483648
        %v6017 = vxor.u32 %v5996, 2147483648
        %v6018 = vmul.f32 %v6016, 1.442695
        %v6019 = vpow.pop %v6018
        %v6020 = vmul.f32 %v6017, 1.442695
        %v6021 = vpow.pop %v6020
        %v6022 = vadd.f32 %v6019, 1.0
        %v6023 = vadd.f32 %v6021, 1.0
        %v6024 = vrcp.pop %v6022
        %v6025 = vmul.f32 1.0, %v6024
        %v6026 = vrcp.pop %v6023
        %v6027 = vmul.f32 1.0, %v6026
        %v6028 = vxor.u32 %v5993, 2147483648
        %v6029 = vxor.u32 %v5997, 2147483648
        %v6030 = vmul.f32 %v6028, 1.442695
        %v6031 = vpow.pop %v6030
        %v6032 = vmul.f32 %v6029, 1.442695
        %v6033 = vpow.pop %v6032
        %v6034 = vadd.f32 %v6031, 1.0
        %v6035 = vadd.f32 %v6033, 1.0
        %v6036 = vrcp.pop %v6034
        %v6037 = vmul.f32 1.0, %v6036
        %v6038 = vrcp.pop %v6035
        %v6039 = vmul.f32 1.0, %v6038
        %v6040 = vtanh.pop %v5994
        %v6041 = vtanh.pop %v5998
        %v6042 = vxor.u32 %v5995, 2147483648
        %v6043 = vxor.u32 %v5999, 2147483648
        %v6044 = vmul.f32 %v6042, 1.442695
        %v6045 = vpow.pop %v6044
        %v6046 = vmul.f32 %v6043, 1.442695
        %v6047 = vpow.pop %v6046
        %v6048 = vadd.f32 %v6045, 1.0
        %v6049 = vadd.f32 %v6047, 1.0
        %v6050 = vrcp.pop %v6048
        %v6051 = vmul.f32 1.0, %v6050
        %v6052 = vrcp.pop %v6049
        %v6053 = vmul.f32 1.0, %v6052
        %v6054 = vmul.f32 %v6037, %v5790
        %v6055 = vmul.f32 %v6039, %v5791
        %v6056 = vmul.f32 %v6025, %v6040
        %v6057 = vmul.f32 %v6027, %v6041
        %v6058 = vadd.f32 %v6054, %v6056
        %v6059 = vadd.f32 %v6055, %v6057
        %v6060 = vtanh.pop %v6058
        %v6061 = vtanh.pop %v6059
        %v6062 = vmul.f32 %v6051, %v6060
        %v6063 = vmul.f32 %v6053, %v6061
        %v6064 = vxor.u32 %v6008, 2147483648
        %v6065 = vxor.u32 %v6012, 2147483648
        %v6066 = vmul.f32 %v6064, 1.442695
        %v6067 = vpow.pop %v6066
        %v6068 = vmul.f32 %v6065, 1.442695
        %v6069 = vpow.pop %v6068
        %v6070 = vadd.f32 %v6067, 1.0
        %v6071 = vadd.f32 %v6069, 1.0
        %v6072 = vrcp.pop %v6070
        %v6073 = vmul.f32 1.0, %v6072
        %v6074 = vrcp.pop %v6071
        %v6075 = vmul.f32 1.0, %v6074
        %v6076 = vxor.u32 %v6009, 2147483648
        %v6077 = vxor.u32 %v6013, 2147483648
        %v6078 = vmul.f32 %v6076, 1.442695
        %v6079 = vpow.pop %v6078
        %v6080 = vmul.f32 %v6077, 1.442695
        %v6081 = vpow.pop %v6080
        %v6082 = vadd.f32 %v6079, 1.0
        %v6083 = vadd.f32 %v6081, 1.0
        %v6084 = vrcp.pop %v6082
        %v6085 = vmul.f32 1.0, %v6084
        %v6086 = vrcp.pop %v6083
        %v6087 = vmul.f32 1.0, %v6086
        %v6088 = vtanh.pop %v6010
        %v6089 = vtanh.pop %v6014
        %v6090 = vxor.u32 %v6011, 2147483648
        %v6091 = vxor.u32 %v6015, 2147483648
        %v6092 = vmul.f32 %v6090, 1.442695
        %v6093 = vpow.pop %v6092
        %v6094 = vmul.f32 %v6091, 1.442695
        %v6095 = vpow.pop %v6094
        %v6096 = vadd.f32 %v6093, 1.0
        %v6097 = vadd.f32 %v6095, 1.0
        %v6098 = vrcp.pop %v6096
        %v6099 = vmul.f32 1.0, %v6098
        %v6100 = vrcp.pop %v6097
        %v6101 = vmul.f32 1.0, %v6100
        %v6102 = vmul.f32 %v6085, %v5794
        %v6103 = vmul.f32 %v6087, %v5795
        %v6104 = vmul.f32 %v6073, %v6088
        %v6105 = vmul.f32 %v6075, %v6089
        %v6106 = vadd.f32 %v6102, %v6104
        %v6107 = vadd.f32 %v6103, %v6105
        %v6108 = vtanh.pop %v6106
        %v6109 = vtanh.pop %v6107
        %v6110 = vmul.f32 %v6099, %v6108
        %v6111 = vmul.f32 %v6101, %v6109
        %v6112 = vsel %vm5116, %v6062, %v5788
        %v6113 = vsel %vm5117, %v6063, %v5789
        %v6114 = vsel %vm5116, %v6058, %v5790
        %v6115 = vsel %vm5117, %v6059, %v5791
        %v6116 = vsel %vm5102, %v6110, %v5792
        %v6117 = vsel %vm5103, %v6111, %v5793
        %v6118 = vsel %vm5102, %v6106, %v5794
        %v6119 = vsel %vm5103, %v6107, %v5795
        %v6120 = vmax.f32 %v5796, %v6112
        %v6121 = vmax.f32 %v5797, %v6113
        %v6122 = vsel %vm5102, %v6110, -1e+30
        %v6123 = vsel %vm5103, %v6111, -1e+30
        %v6124 = vmax.f32 %v5800, %v6122
        %v6125 = vmax.f32 %v5801, %v6123
        %v6126 = vld [vmem:[%s4433] sm:$0xff]
        %v6127 = vld [vmem:[%s4433 + $0x8] sm:$0xff]
        %v6128 = vld [vmem:[%s4433 + $0x10] sm:$0xff]
        %v6129 = vld [vmem:[%s4433 + $0x18] sm:$0xff]
        %v6130 = vld [vmem:[%s4428 + $0x20] sm:$0xff]
        %v6131 = vld [vmem:[%s4428 + $0x28] sm:$0xff]
        %v6132 = vld [vmem:[%s4428 + $0x30] sm:$0xff]
        %v6133 = vld [vmem:[%s4428 + $0x38] sm:$0xff]
        %v6134 = vpack.c.bf16 %v6113, %v6112
        %v6135 = vpack.c.bf16 %v6117, %v6116
        %6136 = vmatprep.subr.bf16.mxu0 %v2435
        %6137 = vmatpush1.bf16.msra.mxu0 %v2434
        %6138 = vmatprep.subr.bf16.mxu0 %v2443
        %6139 = vmatpush1.bf16.msra.mxu0 %v2442
        %6140 = vmatprep.subr.bf16.mxu0 %v2451
        %6141 = vmatpush1.bf16.msra.mxu0 %v2450
        %6142 = vmatprep.subr.bf16.mxu0 %v2459
        %6143 = vmatpush1.bf16.msra.mxu0 %v2458
        %6144 = vmatprep.subr.bf16.mxu0 %v2467
        %6145 = vmatpush1.bf16.msra.mxu0 %v2466
        %6146 = vmatprep.subr.bf16.mxu0 %v2475
        %6147 = vmatpush1.bf16.msra.mxu0 %v2474
        %6148 = vmatprep.subr.bf16.mxu0 %v2483
        %6149 = vmatpush1.bf16.msra.mxu0 %v2482
        %6150 = vmatprep.subr.bf16.mxu0 %v2491
        %6151 = vmatpush1.bf16.msra.mxu0 %v2490
        %6152 = vmatprep.subr.bf16.mxu0 %v2499
        %6153 = vmatpush1.bf16.msra.mxu0 %v2498
        %6154 = vmatprep.subr.bf16.mxu0 %v2507
        %6155 = vmatpush1.bf16.msra.mxu0 %v2506
        %6156 = vmatprep.subr.bf16.mxu0 %v2515
        %6157 = vmatpush1.bf16.msra.mxu0 %v2514
        %6158 = vmatprep.subr.bf16.mxu0 %v2523
        %6159 = vmatpush1.bf16.msra.mxu0 %v2522
        %6160 = vmatprep.subr.bf16.mxu0 %v2531
        %6161 = vmatpush1.bf16.msra.mxu0 %v2530
        %6162 = vmatprep.subr.bf16.mxu0 %v2539
        %6163 = vmatpush1.bf16.msra.mxu0 %v2538
        %6164 = vmatprep.subr.bf16.mxu0 %v2547
        %6165 = vmatpush1.bf16.msra.mxu0 %v2546
        %6166 = vmatprep.subr.bf16.mxu0 %v2555
        %6167 = vmatpush1.bf16.msra.mxu0 %v2554
        %6168 = vmatprep.mubr.bf16.mxu0 %v6135
        %6169 = vmatmul.mubr.bf16.gmra.mrb[0].mxu0 %v6134
        %v6170 = vpop.f32.mrb[0].mxu0
        %v6171 = vadd.f32 0.0, %v6170
        %v6172 = vpop.f32.mrb[0].mxu0
        %v6173 = vadd.f32 0.0, %v6172
        %v6174 = vpop.f32.mrb[0].mxu0
        %v6175 = vadd.f32 0.0, %v6174
        %v6176 = vpop.f32.mrb[0].mxu0
        %v6177 = vadd.f32 0.0, %v6176
        %6178 = vdwg.mxu0
        %6179 = vmatprep.subr.bf16.mxu0 %v2437
        %6180 = vmatpush1.bf16.msra.mxu0 %v2436
        %6181 = vmatprep.subr.bf16.mxu0 %v2445
        %6182 = vmatpush1.bf16.msra.mxu0 %v2444
        %6183 = vmatprep.subr.bf16.mxu0 %v2453
        %6184 = vmatpush1.bf16.msra.mxu0 %v2452
        %6185 = vmatprep.subr.bf16.mxu0 %v2461
        %6186 = vmatpush1.bf16.msra.mxu0 %v2460
        %6187 = vmatprep.subr.bf16.mxu0 %v2469
        %6188 = vmatpush1.bf16.msra.mxu0 %v2468
        %6189 = vmatprep.subr.bf16.mxu0 %v2477
        %6190 = vmatpush1.bf16.msra.mxu0 %v2476
        %6191 = vmatprep.subr.bf16.mxu0 %v2485
        %6192 = vmatpush1.bf16.msra.mxu0 %v2484
        %6193 = vmatprep.subr.bf16.mxu0 %v2493
        %6194 = vmatpush1.bf16.msra.mxu0 %v2492
        %6195 = vmatprep.subr.bf16.mxu0 %v2501
        %6196 = vmatpush1.bf16.msra.mxu0 %v2500
        %6197 = vmatprep.subr.bf16.mxu0 %v2509
        %6198 = vmatpush1.bf16.msra.mxu0 %v2508
        %6199 = vmatprep.subr.bf16.mxu0 %v2517
        %6200 = vmatpush1.bf16.msra.mxu0 %v2516
        %6201 = vmatprep.subr.bf16.mxu0 %v2525
        %6202 = vmatpush1.bf16.msra.mxu0 %v2524
        %6203 = vmatprep.subr.bf16.mxu0 %v2533
        %6204 = vmatpush1.bf16.msra.mxu0 %v2532
        %6205 = vmatprep.subr.bf16.mxu0 %v2541
        %6206 = vmatpush1.bf16.msra.mxu0 %v2540
        %6207 = vmatprep.subr.bf16.mxu0 %v2549
        %6208 = vmatpush1.bf16.msra.mxu0 %v2548
        %6209 = vmatprep.subr.bf16.mxu0 %v2557
        %6210 = vmatpush1.bf16.msra.mxu0 %v2556
        %6211 = vmatprep.mubr.bf16.mxu0 %v6135
        %6212 = vmatmul.mubr.bf16.gmra.mrb[0].mxu0 %v6134
        %v6213 = vpop.f32.mrb[0].mxu0
        %v6214 = vadd.f32 0.0, %v6213
        %v6215 = vpop.f32.mrb[0].mxu0
        %v6216 = vadd.f32 0.0, %v6215
        %v6217 = vpop.f32.mrb[0].mxu0
        %v6218 = vadd.f32 0.0, %v6217
        %v6219 = vpop.f32.mrb[0].mxu0
        %v6220 = vadd.f32 0.0, %v6219
        %6221 = vdwg.mxu0
        %6222 = vmatprep.subr.bf16.mxu0 %v2439
        %6223 = vmatpush1.bf16.msra.mxu0 %v2438
        %6224 = vmatprep.subr.bf16.mxu0 %v2447
        %6225 = vmatpush1.bf16.msra.mxu0 %v2446
        %6226 = vmatprep.subr.bf16.mxu0 %v2455
        %6227 = vmatpush1.bf16.msra.mxu0 %v2454
        %6228 = vmatprep.subr.bf16.mxu0 %v2463
        %6229 = vmatpush1.bf16.msra.mxu0 %v2462
        %6230 = vmatprep.subr.bf16.mxu0 %v2471
        %6231 = vmatpush1.bf16.msra.mxu0 %v2470
        %6232 = vmatprep.subr.bf16.mxu0 %v2479
        %6233 = vmatpush1.bf16.msra.mxu0 %v2478
        %6234 = vmatprep.subr.bf16.mxu0 %v2487
        %6235 = vmatpush1.bf16.msra.mxu0 %v2486
        %6236 = vmatprep.subr.bf16.mxu0 %v2495
        %6237 = vmatpush1.bf16.msra.mxu0 %v2494
        %6238 = vmatprep.subr.bf16.mxu0 %v2503
        %6239 = vmatpush1.bf16.msra.mxu0 %v2502
        %6240 = vmatprep.subr.bf16.mxu0 %v2511
        %6241 = vmatpush1.bf16.msra.mxu0 %v2510
        %6242 = vmatprep.subr.bf16.mxu0 %v2519
        %6243 = vmatpush1.bf16.msra.mxu0 %v2518
        %6244 = vmatprep.subr.bf16.mxu0 %v2527
        %6245 = vmatpush1.bf16.msra.mxu0 %v2526
        %6246 = vmatprep.subr.bf16.mxu0 %v2535
        %6247 = vmatpush1.bf16.msra.mxu0 %v2534
        %6248 = vmatprep.subr.bf16.mxu0 %v2543
        %6249 = vmatpush1.bf16.msra.mxu0 %v2542
        %6250 = vmatprep.subr.bf16.mxu0 %v2551
        %6251 = vmatpush1.bf16.msra.mxu0 %v2550
        %6252 = vmatprep.subr.bf16.mxu0 %v2559
        %6253 = vmatpush1.bf16.msra.mxu0 %v2558
        %6254 = vmatprep.mubr.bf16.mxu0 %v6135
        %6255 = vmatmul.mubr.bf16.gmra.mrb[0].mxu0 %v6134
        %v6256 = vpop.f32.mrb[0].mxu0
        %v6257 = vadd.f32 0.0, %v6256
        %v6258 = vpop.f32.mrb[0].mxu0
        %v6259 = vadd.f32 0.0, %v6258
        %v6260 = vpop.f32.mrb[0].mxu0
        %v6261 = vadd.f32 0.0, %v6260
        %v6262 = vpop.f32.mrb[0].mxu0
        %v6263 = vadd.f32 0.0, %v6262
        %6264 = vdwg.mxu0
        %6265 = vmatprep.subr.bf16.mxu0 %v2441
        %6266 = vmatpush1.bf16.msra.mxu0 %v2440
        %6267 = vmatprep.subr.bf16.mxu0 %v2449
        %6268 = vmatpush1.bf16.msra.mxu0 %v2448
        %6269 = vmatprep.subr.bf16.mxu0 %v2457
        %6270 = vmatpush1.bf16.msra.mxu0 %v2456
        %6271 = vmatprep.subr.bf16.mxu0 %v2465
        %6272 = vmatpush1.bf16.msra.mxu0 %v2464
        %6273 = vmatprep.subr.bf16.mxu0 %v2473
        %6274 = vmatpush1.bf16.msra.mxu0 %v2472
        %6275 = vmatprep.subr.bf16.mxu0 %v2481
        %6276 = vmatpush1.bf16.msra.mxu0 %v2480
        %6277 = vmatprep.subr.bf16.mxu0 %v2489
        %6278 = vmatpush1.bf16.msra.mxu0 %v2488
        %6279 = vmatprep.subr.bf16.mxu0 %v2497
        %6280 = vmatpush1.bf16.msra.mxu0 %v2496
        %6281 = vmatprep.subr.bf16.mxu0 %v2505
        %6282 = vmatpush1.bf16.msra.mxu0 %v2504
        %6283 = vmatprep.subr.bf16.mxu0 %v2513
        %6284 = vmatpush1.bf16.msra.mxu0 %v2512
        %6285 = vmatprep.subr.bf16.mxu0 %v2521
        %6286 = vmatpush1.bf16.msra.mxu0 %v2520
        %6287 = vmatprep.subr.bf16.mxu0 %v2529
        %6288 = vmatpush1.bf16.msra.mxu0 %v2528
        %6289 = vmatprep.subr.bf16.mxu0 %v2537
        %6290 = vmatpush1.bf16.msra.mxu0 %v2536
        %6291 = vmatprep.subr.bf16.mxu0 %v2545
        %6292 = vmatpush1.bf16.msra.mxu0 %v2544
        %6293 = vmatprep.subr.bf16.mxu0 %v2553
        %6294 = vmatpush1.bf16.msra.mxu0 %v2552
        %6295 = vmatprep.subr.bf16.mxu0 %v2561
        %6296 = vmatpush1.bf16.msra.mxu0 %v2560
        %6297 = vmatprep.mubr.bf16.mxu0 %v6135
        %6298 = vmatmul.mubr.bf16.gmra.mrb[0].mxu0 %v6134
        %v6299 = vpop.f32.mrb[0].mxu0
        %v6300 = vadd.f32 0.0, %v6299
        %v6301 = vpop.f32.mrb[0].mxu0
        %v6302 = vadd.f32 0.0, %v6301
        %v6303 = vpop.f32.mrb[0].mxu0
        %v6304 = vadd.f32 0.0, %v6303
        %v6305 = vpop.f32.mrb[0].mxu0
        %v6306 = vadd.f32 0.0, %v6305
        %6307 = vdwg.mxu0
        %v6308 = vunpack.c.l.bf16 %v6126
        %v6309 = vunpack.c.l.bf16 %v6127
        %v6310 = vunpack.c.l.bf16 %v6128
        %v6311 = vunpack.c.l.bf16 %v6129
        %v6312 = vunpack.c.h.bf16 %v6126
        %v6313 = vunpack.c.h.bf16 %v6127
        %v6314 = vunpack.c.h.bf16 %v6128
        %v6315 = vunpack.c.h.bf16 %v6129
        %v6316 = vadd.f32 %v6308, %v6171
        %v6317 = vadd.f32 %v6309, %v6173
        %v6318 = vadd.f32 %v6310, %v6214
        %v6319 = vadd.f32 %v6311, %v6216
        %v6320 = vadd.f32 %v6312, %v6175
        %v6321 = vadd.f32 %v6313, %v6177
        %v6322 = vadd.f32 %v6314, %v6218
        %v6323 = vadd.f32 %v6315, %v6220
        %v6324 = vunpack.c.l.bf16 %v6130
        %v6325 = vunpack.c.l.bf16 %v6131
        %v6326 = vunpack.c.l.bf16 %v6132
        %v6327 = vunpack.c.l.bf16 %v6133
        %v6328 = vunpack.c.h.bf16 %v6130
        %v6329 = vunpack.c.h.bf16 %v6131
        %v6330 = vunpack.c.h.bf16 %v6132
        %v6331 = vunpack.c.h.bf16 %v6133
        %v6332 = vadd.f32 %v6324, %v6257
        %v6333 = vadd.f32 %v6325, %v6259
        %v6334 = vadd.f32 %v6326, %v6300
        %v6335 = vadd.f32 %v6327, %v6302
        %v6336 = vadd.f32 %v6328, %v6261
        %v6337 = vadd.f32 %v6329, %v6263
        %v6338 = vadd.f32 %v6330, %v6304
        %v6339 = vadd.f32 %v6331, %v6306
        %v6340 = vxor.u32 %v6316, 2147483648
        %v6341 = vxor.u32 %v6320, 2147483648
        %v6342 = vmul.f32 %v6340, 1.442695
        %v6343 = vpow.pop %v6342
        %v6344 = vmul.f32 %v6341, 1.442695
        %v6345 = vpow.pop %v6344
        %v6346 = vadd.f32 %v6343, 1.0
        %v6347 = vadd.f32 %v6345, 1.0
        %v6348 = vrcp.pop %v6346
        %v6349 = vmul.f32 1.0, %v6348
        %v6350 = vrcp.pop %v6347
        %v6351 = vmul.f32 1.0, %v6350
        %v6352 = vxor.u32 %v6317, 2147483648
        %v6353 = vxor.u32 %v6321, 2147483648
        %v6354 = vmul.f32 %v6352, 1.442695
        %v6355 = vpow.pop %v6354
        %v6356 = vmul.f32 %v6353, 1.442695
        %v6357 = vpow.pop %v6356
        %v6358 = vadd.f32 %v6355, 1.0
        %v6359 = vadd.f32 %v6357, 1.0
        %v6360 = vrcp.pop %v6358
        %v6361 = vmul.f32 1.0, %v6360
        %v6362 = vrcp.pop %v6359
        %v6363 = vmul.f32 1.0, %v6362
        %v6364 = vtanh.pop %v6318
        %v6365 = vtanh.pop %v6322
        %v6366 = vxor.u32 %v6319, 2147483648
        %v6367 = vxor.u32 %v6323, 2147483648
        %v6368 = vmul.f32 %v6366, 1.442695
        %v6369 = vpow.pop %v6368
        %v6370 = vmul.f32 %v6367, 1.442695
        %v6371 = vpow.pop %v6370
        %v6372 = vadd.f32 %v6369, 1.0
        %v6373 = vadd.f32 %v6371, 1.0
        %v6374 = vrcp.pop %v6372
        %v6375 = vmul.f32 1.0, %v6374
        %v6376 = vrcp.pop %v6373
        %v6377 = vmul.f32 1.0, %v6376
        %v6378 = vmul.f32 %v6361, %v6114
        %v6379 = vmul.f32 %v6363, %v6115
        %v6380 = vmul.f32 %v6349, %v6364
        %v6381 = vmul.f32 %v6351, %v6365
        %v6382 = vadd.f32 %v6378, %v6380
        %v6383 = vadd.f32 %v6379, %v6381
        %v6384 = vtanh.pop %v6382
        %v6385 = vtanh.pop %v6383
        %v6386 = vmul.f32 %v6375, %v6384
        %v6387 = vmul.f32 %v6377, %v6385
        %v6388 = vxor.u32 %v6332, 2147483648
        %v6389 = vxor.u32 %v6336, 2147483648
        %v6390 = vmul.f32 %v6388, 1.442695
        %v6391 = vpow.pop %v6390
        %v6392 = vmul.f32 %v6389, 1.442695
        %v6393 = vpow.pop %v6392
        %v6394 = vadd.f32 %v6391, 1.0
        %v6395 = vadd.f32 %v6393, 1.0
        %v6396 = vrcp.pop %v6394
        %v6397 = vmul.f32 1.0, %v6396
        %v6398 = vrcp.pop %v6395
        %v6399 = vmul.f32 1.0, %v6398
        %v6400 = vxor.u32 %v6333, 2147483648
        %v6401 = vxor.u32 %v6337, 2147483648
        %v6402 = vmul.f32 %v6400, 1.442695
        %v6403 = vpow.pop %v6402
        %v6404 = vmul.f32 %v6401, 1.442695
        %v6405 = vpow.pop %v6404
        %v6406 = vadd.f32 %v6403, 1.0
        %v6407 = vadd.f32 %v6405, 1.0
        %v6408 = vrcp.pop %v6406
        %v6409 = vmul.f32 1.0, %v6408
        %v6410 = vrcp.pop %v6407
        %v6411 = vmul.f32 1.0, %v6410
        %v6412 = vtanh.pop %v6334
        %v6413 = vtanh.pop %v6338
        %v6414 = vxor.u32 %v6335, 2147483648
        %v6415 = vxor.u32 %v6339, 2147483648
        %v6416 = vmul.f32 %v6414, 1.442695
        %v6417 = vpow.pop %v6416
        %v6418 = vmul.f32 %v6415, 1.442695
        %v6419 = vpow.pop %v6418
        %v6420 = vadd.f32 %v6417, 1.0
        %v6421 = vadd.f32 %v6419, 1.0
        %v6422 = vrcp.pop %v6420
        %v6423 = vmul.f32 1.0, %v6422
        %v6424 = vrcp.pop %v6421
        %v6425 = vmul.f32 1.0, %v6424
        %v6426 = vmul.f32 %v6409, %v6118
        %v6427 = vmul.f32 %v6411, %v6119
        %v6428 = vmul.f32 %v6397, %v6412
        %v6429 = vmul.f32 %v6399, %v6413
        %v6430 = vadd.f32 %v6426, %v6428
        %v6431 = vadd.f32 %v6427, %v6429
        %v6432 = vtanh.pop %v6430
        %v6433 = vtanh.pop %v6431
        %v6434 = vmul.f32 %v6423, %v6432
        %v6435 = vmul.f32 %v6425, %v6433
        %v6436 = vsel %vm4766, %v6386, %v6112
        %v6437 = vsel %vm4767, %v6387, %v6113
        %v6438 = vsel %vm4766, %v6382, %v6114
        %v6439 = vsel %vm4767, %v6383, %v6115
        %v6440 = vsel %vm4752, %v6434, %v6116
        %v6441 = vsel %vm4753, %v6435, %v6117
        %v6442 = vsel %vm4752, %v6430, %v6118
        %v6443 = vsel %vm4753, %v6431, %v6119
        %v6444 = vmax.f32 %v6120, %v6436
        %v6445 = vmax.f32 %v6121, %v6437
        %v6446 = vsel %vm4752, %v6434, -1e+30
        %v6447 = vsel %vm4753, %v6435, -1e+30
        %v6448 = vmax.f32 %v6124, %v6446
        %v6449 = vmax.f32 %v6125, %v6447
        %v6450 = vld [vmem:[%s4083] sm:$0xff]
        %v6451 = vld [vmem:[%s4083 + $0x8] sm:$0xff]
        %v6452 = vld [vmem:[%s4083 + $0x10] sm:$0xff]
        %v6453 = vld [vmem:[%s4083 + $0x18] sm:$0xff]
        %v6454 = vld [vmem:[%s4078 + $0x20] sm:$0xff]
        %v6455 = vld [vmem:[%s4078 + $0x28] sm:$0xff]
        %v6456 = vld [vmem:[%s4078 + $0x30] sm:$0xff]
        %v6457 = vld [vmem:[%s4078 + $0x38] sm:$0xff]
        %v6458 = vpack.c.bf16 %v6437, %v6436
        %v6459 = vpack.c.bf16 %v6441, %v6440
        %6460 = vmatprep.subr.bf16.mxu0 %v2435
        %6461 = vmatpush1.bf16.msra.mxu0 %v2434
        %6462 = vmatprep.subr.bf16.mxu0 %v2443
        %6463 = vmatpush1.bf16.msra.mxu0 %v2442
        %6464 = vmatprep.subr.bf16.mxu0 %v2451
        %6465 = vmatpush1.bf16.msra.mxu0 %v2450
        %6466 = vmatprep.subr.bf16.mxu0 %v2459
        %6467 = vmatpush1.bf16.msra.mxu0 %v2458
        %6468 = vmatprep.subr.bf16.mxu0 %v2467
        %6469 = vmatpush1.bf16.msra.mxu0 %v2466
        %6470 = vmatprep.subr.bf16.mxu0 %v2475
        %6471 = vmatpush1.bf16.msra.mxu0 %v2474
        %6472 = vmatprep.subr.bf16.mxu0 %v2483
        %6473 = vmatpush1.bf16.msra.mxu0 %v2482
        %6474 = vmatprep.subr.bf16.mxu0 %v2491
        %6475 = vmatpush1.bf16.msra.mxu0 %v2490
        %6476 = vmatprep.subr.bf16.mxu0 %v2499
        %6477 = vmatpush1.bf16.msra.mxu0 %v2498
        %6478 = vmatprep.subr.bf16.mxu0 %v2507
        %6479 = vmatpush1.bf16.msra.mxu0 %v2506
        %6480 = vmatprep.subr.bf16.mxu0 %v2515
        %6481 = vmatpush1.bf16.msra.mxu0 %v2514
        %6482 = vmatprep.subr.bf16.mxu0 %v2523
        %6483 = vmatpush1.bf16.msra.mxu0 %v2522
        %6484 = vmatprep.subr.bf16.mxu0 %v2531
        %6485 = vmatpush1.bf16.msra.mxu0 %v2530
        %6486 = vmatprep.subr.bf16.mxu0 %v2539
        %6487 = vmatpush1.bf16.msra.mxu0 %v2538
        %6488 = vmatprep.subr.bf16.mxu0 %v2547
        %6489 = vmatpush1.bf16.msra.mxu0 %v2546
        %6490 = vmatprep.subr.bf16.mxu0 %v2555
        %6491 = vmatpush1.bf16.msra.mxu0 %v2554
        %6492 = vmatprep.mubr.bf16.mxu0 %v6459
        %6493 = vmatmul.mubr.bf16.gmra.mrb[0].mxu0 %v6458
        %v6494 = vpop.f32.mrb[0].mxu0
        %v6495 = vadd.f32 0.0, %v6494
        %v6496 = vpop.f32.mrb[0].mxu0
        %v6497 = vadd.f32 0.0, %v6496
        %v6498 = vpop.f32.mrb[0].mxu0
        %v6499 = vadd.f32 0.0, %v6498
        %v6500 = vpop.f32.mrb[0].mxu0
        %v6501 = vadd.f32 0.0, %v6500
        %6502 = vdwg.mxu0
        %6503 = vmatprep.subr.bf16.mxu0 %v2437
        %6504 = vmatpush1.bf16.msra.mxu0 %v2436
        %6505 = vmatprep.subr.bf16.mxu0 %v2445
        %6506 = vmatpush1.bf16.msra.mxu0 %v2444
        %6507 = vmatprep.subr.bf16.mxu0 %v2453
        %6508 = vmatpush1.bf16.msra.mxu0 %v2452
        %6509 = vmatprep.subr.bf16.mxu0 %v2461
        %6510 = vmatpush1.bf16.msra.mxu0 %v2460
        %6511 = vmatprep.subr.bf16.mxu0 %v2469
        %6512 = vmatpush1.bf16.msra.mxu0 %v2468
        %6513 = vmatprep.subr.bf16.mxu0 %v2477
        %6514 = vmatpush1.bf16.msra.mxu0 %v2476
        %6515 = vmatprep.subr.bf16.mxu0 %v2485
        %6516 = vmatpush1.bf16.msra.mxu0 %v2484
        %6517 = vmatprep.subr.bf16.mxu0 %v2493
        %6518 = vmatpush1.bf16.msra.mxu0 %v2492
        %6519 = vmatprep.subr.bf16.mxu0 %v2501
        %6520 = vmatpush1.bf16.msra.mxu0 %v2500
        %6521 = vmatprep.subr.bf16.mxu0 %v2509
        %6522 = vmatpush1.bf16.msra.mxu0 %v2508
        %6523 = vmatprep.subr.bf16.mxu0 %v2517
        %6524 = vmatpush1.bf16.msra.mxu0 %v2516
        %6525 = vmatprep.subr.bf16.mxu0 %v2525
        %6526 = vmatpush1.bf16.msra.mxu0 %v2524
        %6527 = vmatprep.subr.bf16.mxu0 %v2533
        %6528 = vmatpush1.bf16.msra.mxu0 %v2532
        %6529 = vmatprep.subr.bf16.mxu0 %v2541
        %6530 = vmatpush1.bf16.msra.mxu0 %v2540
        %6531 = vmatprep.subr.bf16.mxu0 %v2549
        %6532 = vmatpush1.bf16.msra.mxu0 %v2548
        %6533 = vmatprep.subr.bf16.mxu0 %v2557
        %6534 = vmatpush1.bf16.msra.mxu0 %v2556
        %6535 = vmatprep.mubr.bf16.mxu0 %v6459
        %6536 = vmatmul.mubr.bf16.gmra.mrb[0].mxu0 %v6458
        %v6537 = vpop.f32.mrb[0].mxu0
        %v6538 = vadd.f32 0.0, %v6537
        %v6539 = vpop.f32.mrb[0].mxu0
        %v6540 = vadd.f32 0.0, %v6539
        %v6541 = vpop.f32.mrb[0].mxu0
        %v6542 = vadd.f32 0.0, %v6541
        %v6543 = vpop.f32.mrb[0].mxu0
        %v6544 = vadd.f32 0.0, %v6543
        %6545 = vdwg.mxu0
        %6546 = vmatprep.subr.bf16.mxu0 %v2439
        %6547 = vmatpush1.bf16.msra.mxu0 %v2438
        %6548 = vmatprep.subr.bf16.mxu0 %v2447
        %6549 = vmatpush1.bf16.msra.mxu0 %v2446
        %6550 = vmatprep.subr.bf16.mxu0 %v2455
        %6551 = vmatpush1.bf16.msra.mxu0 %v2454
        %6552 = vmatprep.subr.bf16.mxu0 %v2463
        %6553 = vmatpush1.bf16.msra.mxu0 %v2462
        %6554 = vmatprep.subr.bf16.mxu0 %v2471
        %6555 = vmatpush1.bf16.msra.mxu0 %v2470
        %6556 = vmatprep.subr.bf16.mxu0 %v2479
        %6557 = vmatpush1.bf16.msra.mxu0 %v2478
        %6558 = vmatprep.subr.bf16.mxu0 %v2487
        %6559 = vmatpush1.bf16.msra.mxu0 %v2486
        %6560 = vmatprep.subr.bf16.mxu0 %v2495
        %6561 = vmatpush1.bf16.msra.mxu0 %v2494
        %6562 = vmatprep.subr.bf16.mxu0 %v2503
        %6563 = vmatpush1.bf16.msra.mxu0 %v2502
        %6564 = vmatprep.subr.bf16.mxu0 %v2511
        %6565 = vmatpush1.bf16.msra.mxu0 %v2510
        %6566 = vmatprep.subr.bf16.mxu0 %v2519
        %6567 = vmatpush1.bf16.msra.mxu0 %v2518
        %6568 = vmatprep.subr.bf16.mxu0 %v2527
        %6569 = vmatpush1.bf16.msra.mxu0 %v2526
        %6570 = vmatprep.subr.bf16.mxu0 %v2535
        %6571 = vmatpush1.bf16.msra.mxu0 %v2534
        %6572 = vmatprep.subr.bf16.mxu0 %v2543
        %6573 = vmatpush1.bf16.msra.mxu0 %v2542
        %6574 = vmatprep.subr.bf16.mxu0 %v2551
        %6575 = vmatpush1.bf16.msra.mxu0 %v2550
        %6576 = vmatprep.subr.bf16.mxu0 %v2559
        %6577 = vmatpush1.bf16.msra.mxu0 %v2558
        %6578 = vmatprep.mubr.bf16.mxu0 %v6459
        %6579 = vmatmul.mubr.bf16.gmra.mrb[0].mxu0 %v6458
        %v6580 = vpop.f32.mrb[0].mxu0
        %v6581 = vadd.f32 0.0, %v6580
        %v6582 = vpop.f32.mrb[0].mxu0
        %v6583 = vadd.f32 0.0, %v6582
        %v6584 = vpop.f32.mrb[0].mxu0
        %v6585 = vadd.f32 0.0, %v6584
        %v6586 = vpop.f32.mrb[0].mxu0
        %v6587 = vadd.f32 0.0, %v6586
        %6588 = vdwg.mxu0
        %6589 = vmatprep.subr.bf16.mxu0 %v2441
        %6590 = vmatpush1.bf16.msra.mxu0 %v2440
        %6591 = vmatprep.subr.bf16.mxu0 %v2449
        %6592 = vmatpush1.bf16.msra.mxu0 %v2448
        %6593 = vmatprep.subr.bf16.mxu0 %v2457
        %6594 = vmatpush1.bf16.msra.mxu0 %v2456
        %6595 = vmatprep.subr.bf16.mxu0 %v2465
        %6596 = vmatpush1.bf16.msra.mxu0 %v2464
        %6597 = vmatprep.subr.bf16.mxu0 %v2473
        %6598 = vmatpush1.bf16.msra.mxu0 %v2472
        %6599 = vmatprep.subr.bf16.mxu0 %v2481
        %6600 = vmatpush1.bf16.msra.mxu0 %v2480
        %6601 = vmatprep.subr.bf16.mxu0 %v2489
        %6602 = vmatpush1.bf16.msra.mxu0 %v2488
        %6603 = vmatprep.subr.bf16.mxu0 %v2497
        %6604 = vmatpush1.bf16.msra.mxu0 %v2496
        %6605 = vmatprep.subr.bf16.mxu0 %v2505
        %6606 = vmatpush1.bf16.msra.mxu0 %v2504
        %6607 = vmatprep.subr.bf16.mxu0 %v2513
        %6608 = vmatpush1.bf16.msra.mxu0 %v2512
        %6609 = vmatprep.subr.bf16.mxu0 %v2521
        %6610 = vmatpush1.bf16.msra.mxu0 %v2520
        %6611 = vmatprep.subr.bf16.mxu0 %v2529
        %6612 = vmatpush1.bf16.msra.mxu0 %v2528
        %6613 = vmatprep.subr.bf16.mxu0 %v2537
        %6614 = vmatpush1.bf16.msra.mxu0 %v2536
        %6615 = vmatprep.subr.bf16.mxu0 %v2545
        %6616 = vmatpush1.bf16.msra.mxu0 %v2544
        %6617 = vmatprep.subr.bf16.mxu0 %v2553
        %6618 = vmatpush1.bf16.msra.mxu0 %v2552
        %6619 = vmatprep.subr.bf16.mxu0 %v2561
        %6620 = vmatpush1.bf16.msra.mxu0 %v2560
        %6621 = vmatprep.mubr.bf16.mxu0 %v6459
        %6622 = vmatmul.mubr.bf16.gmra.mrb[0].mxu0 %v6458
        %v6623 = vpop.f32.mrb[0].mxu0
        %v6624 = vadd.f32 0.0, %v6623
        %v6625 = vpop.f32.mrb[0].mxu0
        %v6626 = vadd.f32 0.0, %v6625
        %v6627 = vpop.f32.mrb[0].mxu0
        %v6628 = vadd.f32 0.0, %v6627
        %v6629 = vpop.f32.mrb[0].mxu0
        %v6630 = vadd.f32 0.0, %v6629
        %6631 = vdwg.mxu0
        %v6632 = vunpack.c.l.bf16 %v6450
        %v6633 = vunpack.c.l.bf16 %v6451
        %v6634 = vunpack.c.l.bf16 %v6452
        %v6635 = vunpack.c.l.bf16 %v6453
        %v6636 = vunpack.c.h.bf16 %v6450
        %v6637 = vunpack.c.h.bf16 %v6451
        %v6638 = vunpack.c.h.bf16 %v6452
        %v6639 = vunpack.c.h.bf16 %v6453
        %v6640 = vadd.f32 %v6632, %v6495
        %v6641 = vadd.f32 %v6633, %v6497
        %v6642 = vadd.f32 %v6634, %v6538
        %v6643 = vadd.f32 %v6635, %v6540
        %v6644 = vadd.f32 %v6636, %v6499
        %v6645 = vadd.f32 %v6637, %v6501
        %v6646 = vadd.f32 %v6638, %v6542
        %v6647 = vadd.f32 %v6639, %v6544
        %v6648 = vunpack.c.l.bf16 %v6454
        %v6649 = vunpack.c.l.bf16 %v6455
        %v6650 = vunpack.c.l.bf16 %v6456
        %v6651 = vunpack.c.l.bf16 %v6457
        %v6652 = vunpack.c.h.bf16 %v6454
        %v6653 = vunpack.c.h.bf16 %v6455
        %v6654 = vunpack.c.h.bf16 %v6456
        %v6655 = vunpack.c.h.bf16 %v6457
        %v6656 = vadd.f32 %v6648, %v6581
        %v6657 = vadd.f32 %v6649, %v6583
        %v6658 = vadd.f32 %v6650, %v6624
        %v6659 = vadd.f32 %v6651, %v6626
        %v6660 = vadd.f32 %v6652, %v6585
        %v6661 = vadd.f32 %v6653, %v6587
        %v6662 = vadd.f32 %v6654, %v6628
        %v6663 = vadd.f32 %v6655, %v6630
        %v6664 = vxor.u32 %v6640, 2147483648
        %v6665 = vxor.u32 %v6644, 2147483648
        %v6666 = vmul.f32 %v6664, 1.442695
        %v6667 = vpow.pop %v6666
        %v6668 = vmul.f32 %v6665, 1.442695
        %v6669 = vpow.pop %v6668
        %v6670 = vadd.f32 %v6667, 1.0
        %v6671 = vadd.f32 %v6669, 1.0
        %v6672 = vrcp.pop %v6670
        %v6673 = vmul.f32 1.0, %v6672
        %v6674 = vrcp.pop %v6671
        %v6675 = vmul.f32 1.0, %v6674
        %v6676 = vxor.u32 %v6641, 2147483648
        %v6677 = vxor.u32 %v6645, 2147483648
        %v6678 = vmul.f32 %v6676, 1.442695
        %v6679 = vpow.pop %v6678
        %v6680 = vmul.f32 %v6677, 1.442695
        %v6681 = vpow.pop %v6680
        %v6682 = vadd.f32 %v6679, 1.0
        %v6683 = vadd.f32 %v6681, 1.0
        %v6684 = vrcp.pop %v6682
        %v6685 = vmul.f32 1.0, %v6684
        %v6686 = vrcp.pop %v6683
        %v6687 = vmul.f32 1.0, %v6686
        %v6688 = vtanh.pop %v6642
        %v6689 = vtanh.pop %v6646
        %v6690 = vxor.u32 %v6643, 2147483648
        %v6691 = vxor.u32 %v6647, 2147483648
        %v6692 = vmul.f32 %v6690, 1.442695
        %v6693 = vpow.pop %v6692
        %v6694 = vmul.f32 %v6691, 1.442695
        %v6695 = vpow.pop %v6694
        %v6696 = vadd.f32 %v6693, 1.0
        %v6697 = vadd.f32 %v6695, 1.0
        %v6698 = vrcp.pop %v6696
        %v6699 = vmul.f32 1.0, %v6698
        %v6700 = vrcp.pop %v6697
        %v6701 = vmul.f32 1.0, %v6700
        %v6702 = vmul.f32 %v6685, %v6438
        %v6703 = vmul.f32 %v6687, %v6439
        %v6704 = vmul.f32 %v6673, %v6688
        %v6705 = vmul.f32 %v6675, %v6689
        %v6706 = vadd.f32 %v6702, %v6704
        %v6707 = vadd.f32 %v6703, %v6705
        %v6708 = vtanh.pop %v6706
        %v6709 = vtanh.pop %v6707
        %v6710 = vmul.f32 %v6699, %v6708
        %v6711 = vmul.f32 %v6701, %v6709
        %v6712 = vxor.u32 %v6656, 2147483648
        %v6713 = vxor.u32 %v6660, 2147483648
        %v6714 = vmul.f32 %v6712, 1.442695
        %v6715 = vpow.pop %v6714
        %v6716 = vmul.f32 %v6713, 1.442695
        %v6717 = vpow.pop %v6716
        %v6718 = vadd.f32 %v6715, 1.0
        %v6719 = vadd.f32 %v6717, 1.0
        %v6720 = vrcp.pop %v6718
        %v6721 = vmul.f32 1.0, %v6720
        %v6722 = vrcp.pop %v6719
        %v6723 = vmul.f32 1.0, %v6722
        %v6724 = vxor.u32 %v6657, 2147483648
        %v6725 = vxor.u32 %v6661, 2147483648
        %v6726 = vmul.f32 %v6724, 1.442695
        %v6727 = vpow.pop %v6726
        %v6728 = vmul.f32 %v6725, 1.442695
        %v6729 = vpow.pop %v6728
        %v6730 = vadd.f32 %v6727, 1.0
        %v6731 = vadd.f32 %v6729, 1.0
        %v6732 = vrcp.pop %v6730
        %v6733 = vmul.f32 1.0, %v6732
        %v6734 = vrcp.pop %v6731
        %v6735 = vmul.f32 1.0, %v6734
        %v6736 = vtanh.pop %v6658
        %v6737 = vtanh.pop %v6662
        %v6738 = vxor.u32 %v6659, 2147483648
        %v6739 = vxor.u32 %v6663, 2147483648
        %v6740 = vmul.f32 %v6738, 1.442695
        %v6741 = vpow.pop %v6740
        %v6742 = vmul.f32 %v6739, 1.442695
        %v6743 = vpow.pop %v6742
        %v6744 = vadd.f32 %v6741, 1.0
        %v6745 = vadd.f32 %v6743, 1.0
        %v6746 = vrcp.pop %v6744
        %v6747 = vmul.f32 1.0, %v6746
        %v6748 = vrcp.pop %v6745
        %v6749 = vmul.f32 1.0, %v6748
        %v6750 = vmul.f32 %v6733, %v6442
        %v6751 = vmul.f32 %v6735, %v6443
        %v6752 = vmul.f32 %v6721, %v6736
        %v6753 = vmul.f32 %v6723, %v6737
        %v6754 = vadd.f32 %v6750, %v6752
        %v6755 = vadd.f32 %v6751, %v6753
        %v6756 = vtanh.pop %v6754
        %v6757 = vtanh.pop %v6755
        %v6758 = vmul.f32 %v6747, %v6756
        %v6759 = vmul.f32 %v6749, %v6757
        %v6760 = vsel %vm4416, %v6710, %v6436
        %v6761 = vsel %vm4417, %v6711, %v6437
        %v6762 = vsel %vm4416, %v6706, %v6438
        %v6763 = vsel %vm4417, %v6707, %v6439
        %v6764 = vsel %vm4402, %v6758, %v6440
        %v6765 = vsel %vm4403, %v6759, %v6441
        %v6766 = vsel %vm4402, %v6754, %v6442
        %v6767 = vsel %vm4403, %v6755, %v6443
        %v6768 = vmax.f32 %v6444, %v6760
        %v6769 = vmax.f32 %v6445, %v6761
        %v6770 = vsel %vm4402, %v6758, -1e+30
        %v6771 = vsel %vm4403, %v6759, -1e+30
        %v6772 = vmax.f32 %v6448, %v6770
        %v6773 = vmax.f32 %v6449, %v6771
        %v6774 = vld [vmem:[%s3733] sm:$0xff]
        %v6775 = vld [vmem:[%s3733 + $0x8] sm:$0xff]
        %v6776 = vld [vmem:[%s3733 + $0x10] sm:$0xff]
        %v6777 = vld [vmem:[%s3733 + $0x18] sm:$0xff]
        %v6778 = vld [vmem:[%s3728 + $0x20] sm:$0xff]
        %v6779 = vld [vmem:[%s3728 + $0x28] sm:$0xff]
        %v6780 = vld [vmem:[%s3728 + $0x30] sm:$0xff]
        %v6781 = vld [vmem:[%s3728 + $0x38] sm:$0xff]
        %v6782 = vpack.c.bf16 %v6761, %v6760
        %v6783 = vpack.c.bf16 %v6765, %v6764
        %6784 = vmatprep.subr.bf16.mxu0 %v2435
        %6785 = vmatpush1.bf16.msra.mxu0 %v2434
        %6786 = vmatprep.subr.bf16.mxu0 %v2443
        %6787 = vmatpush1.bf16.msra.mxu0 %v2442
        %6788 = vmatprep.subr.bf16.mxu0 %v2451
        %6789 = vmatpush1.bf16.msra.mxu0 %v2450
        %6790 = vmatprep.subr.bf16.mxu0 %v2459
        %6791 = vmatpush1.bf16.msra.mxu0 %v2458
        %6792 = vmatprep.subr.bf16.mxu0 %v2467
        %6793 = vmatpush1.bf16.msra.mxu0 %v2466
        %6794 = vmatprep.subr.bf16.mxu0 %v2475
        %6795 = vmatpush1.bf16.msra.mxu0 %v2474
        %6796 = vmatprep.subr.bf16.mxu0 %v2483
        %6797 = vmatpush1.bf16.msra.mxu0 %v2482
        %6798 = vmatprep.subr.bf16.mxu0 %v2491
        %6799 = vmatpush1.bf16.msra.mxu0 %v2490
        %6800 = vmatprep.subr.bf16.mxu0 %v2499
        %6801 = vmatpush1.bf16.msra.mxu0 %v2498
        %6802 = vmatprep.subr.bf16.mxu0 %v2507
        %6803 = vmatpush1.bf16.msra.mxu0 %v2506
        %6804 = vmatprep.subr.bf16.mxu0 %v2515
        %6805 = vmatpush1.bf16.msra.mxu0 %v2514
        %6806 = vmatprep.subr.bf16.mxu0 %v2523
        %6807 = vmatpush1.bf16.msra.mxu0 %v2522
        %6808 = vmatprep.subr.bf16.mxu0 %v2531
        %6809 = vmatpush1.bf16.msra.mxu0 %v2530
        %6810 = vmatprep.subr.bf16.mxu0 %v2539
        %6811 = vmatpush1.bf16.msra.mxu0 %v2538
        %6812 = vmatprep.subr.bf16.mxu0 %v2547
        %6813 = vmatpush1.bf16.msra.mxu0 %v2546
        %6814 = vmatprep.subr.bf16.mxu0 %v2555
        %6815 = vmatpush1.bf16.msra.mxu0 %v2554
        %6816 = vmatprep.mubr.bf16.mxu0 %v6783
        %6817 = vmatmul.mubr.bf16.gmra.mrb[0].mxu0 %v6782
        %v6818 = vpop.f32.mrb[0].mxu0
        %v6819 = vadd.f32 0.0, %v6818
        %v6820 = vpop.f32.mrb[0].mxu0
        %v6821 = vadd.f32 0.0, %v6820
        %v6822 = vpop.f32.mrb[0].mxu0
        %v6823 = vadd.f32 0.0, %v6822
        %v6824 = vpop.f32.mrb[0].mxu0
        %v6825 = vadd.f32 0.0, %v6824
        %6826 = vdwg.mxu0
        %6827 = vmatprep.subr.bf16.mxu0 %v2437
        %6828 = vmatpush1.bf16.msra.mxu0 %v2436
        %6829 = vmatprep.subr.bf16.mxu0 %v2445
        %6830 = vmatpush1.bf16.msra.mxu0 %v2444
        %6831 = vmatprep.subr.bf16.mxu0 %v2453
        %6832 = vmatpush1.bf16.msra.mxu0 %v2452
        %6833 = vmatprep.subr.bf16.mxu0 %v2461
        %6834 = vmatpush1.bf16.msra.mxu0 %v2460
        %6835 = vmatprep.subr.bf16.mxu0 %v2469
        %6836 = vmatpush1.bf16.msra.mxu0 %v2468
        %6837 = vmatprep.subr.bf16.mxu0 %v2477
        %6838 = vmatpush1.bf16.msra.mxu0 %v2476
        %6839 = vmatprep.subr.bf16.mxu0 %v2485
        %6840 = vmatpush1.bf16.msra.mxu0 %v2484
        %6841 = vmatprep.subr.bf16.mxu0 %v2493
        %6842 = vmatpush1.bf16.msra.mxu0 %v2492
        %6843 = vmatprep.subr.bf16.mxu0 %v2501
        %6844 = vmatpush1.bf16.msra.mxu0 %v2500
        %6845 = vmatprep.subr.bf16.mxu0 %v2509
        %6846 = vmatpush1.bf16.msra.mxu0 %v2508
        %6847 = vmatprep.subr.bf16.mxu0 %v2517
        %6848 = vmatpush1.bf16.msra.mxu0 %v2516
        %6849 = vmatprep.subr.bf16.mxu0 %v2525
        %6850 = vmatpush1.bf16.msra.mxu0 %v2524
        %6851 = vmatprep.subr.bf16.mxu0 %v2533
        %6852 = vmatpush1.bf16.msra.mxu0 %v2532
        %6853 = vmatprep.subr.bf16.mxu0 %v2541
        %6854 = vmatpush1.bf16.msra.mxu0 %v2540
        %6855 = vmatprep.subr.bf16.mxu0 %v2549
        %6856 = vmatpush1.bf16.msra.mxu0 %v2548
        %6857 = vmatprep.subr.bf16.mxu0 %v2557
        %6858 = vmatpush1.bf16.msra.mxu0 %v2556
        %6859 = vmatprep.mubr.bf16.mxu0 %v6783
        %6860 = vmatmul.mubr.bf16.gmra.mrb[0].mxu0 %v6782
        %v6861 = vpop.f32.mrb[0].mxu0
        %v6862 = vadd.f32 0.0, %v6861
        %v6863 = vpop.f32.mrb[0].mxu0
        %v6864 = vadd.f32 0.0, %v6863
        %v6865 = vpop.f32.mrb[0].mxu0
        %v6866 = vadd.f32 0.0, %v6865
        %v6867 = vpop.f32.mrb[0].mxu0
        %v6868 = vadd.f32 0.0, %v6867
        %6869 = vdwg.mxu0
        %6870 = vmatprep.subr.bf16.mxu0 %v2439
        %6871 = vmatpush1.bf16.msra.mxu0 %v2438
        %6872 = vmatprep.subr.bf16.mxu0 %v2447
        %6873 = vmatpush1.bf16.msra.mxu0 %v2446
        %6874 = vmatprep.subr.bf16.mxu0 %v2455
        %6875 = vmatpush1.bf16.msra.mxu0 %v2454
        %6876 = vmatprep.subr.bf16.mxu0 %v2463
        %6877 = vmatpush1.bf16.msra.mxu0 %v2462
        %6878 = vmatprep.subr.bf16.mxu0 %v2471
        %6879 = vmatpush1.bf16.msra.mxu0 %v2470
        %6880 = vmatprep.subr.bf16.mxu0 %v2479
        %6881 = vmatpush1.bf16.msra.mxu0 %v2478
        %6882 = vmatprep.subr.bf16.mxu0 %v2487
        %6883 = vmatpush1.bf16.msra.mxu0 %v2486
        %6884 = vmatprep.subr.bf16.mxu0 %v2495
        %6885 = vmatpush1.bf16.msra.mxu0 %v2494
        %6886 = vmatprep.subr.bf16.mxu0 %v2503
        %6887 = vmatpush1.bf16.msra.mxu0 %v2502
        %6888 = vmatprep.subr.bf16.mxu0 %v2511
        %6889 = vmatpush1.bf16.msra.mxu0 %v2510
        %6890 = vmatprep.subr.bf16.mxu0 %v2519
        %6891 = vmatpush1.bf16.msra.mxu0 %v2518
        %6892 = vmatprep.subr.bf16.mxu0 %v2527
        %6893 = vmatpush1.bf16.msra.mxu0 %v2526
        %6894 = vmatprep.subr.bf16.mxu0 %v2535
        %6895 = vmatpush1.bf16.msra.mxu0 %v2534
        %6896 = vmatprep.subr.bf16.mxu0 %v2543
        %6897 = vmatpush1.bf16.msra.mxu0 %v2542
        %6898 = vmatprep.subr.bf16.mxu0 %v2551
        %6899 = vmatpush1.bf16.msra.mxu0 %v2550
        %6900 = vmatprep.subr.bf16.mxu0 %v2559
        %6901 = vmatpush1.bf16.msra.mxu0 %v2558
        %6902 = vmatprep.mubr.bf16.mxu0 %v6783
        %6903 = vmatmul.mubr.bf16.gmra.mrb[0].mxu0 %v6782
        %v6904 = vpop.f32.mrb[0].mxu0
        %v6905 = vadd.f32 0.0, %v6904
        %v6906 = vpop.f32.mrb[0].mxu0
        %v6907 = vadd.f32 0.0, %v6906
        %v6908 = vpop.f32.mrb[0].mxu0
        %v6909 = vadd.f32 0.0, %v6908
        %v6910 = vpop.f32.mrb[0].mxu0
        %v6911 = vadd.f32 0.0, %v6910
        %6912 = vdwg.mxu0
        %6913 = vmatprep.subr.bf16.mxu0 %v2441
        %6914 = vmatpush1.bf16.msra.mxu0 %v2440
        %6915 = vmatprep.subr.bf16.mxu0 %v2449
        %6916 = vmatpush1.bf16.msra.mxu0 %v2448
        %6917 = vmatprep.subr.bf16.mxu0 %v2457
        %6918 = vmatpush1.bf16.msra.mxu0 %v2456
        %6919 = vmatprep.subr.bf16.mxu0 %v2465
        %6920 = vmatpush1.bf16.msra.mxu0 %v2464
        %6921 = vmatprep.subr.bf16.mxu0 %v2473
        %6922 = vmatpush1.bf16.msra.mxu0 %v2472
        %6923 = vmatprep.subr.bf16.mxu0 %v2481
        %6924 = vmatpush1.bf16.msra.mxu0 %v2480
        %6925 = vmatprep.subr.bf16.mxu0 %v2489
        %6926 = vmatpush1.bf16.msra.mxu0 %v2488
        %6927 = vmatprep.subr.bf16.mxu0 %v2497
        %6928 = vmatpush1.bf16.msra.mxu0 %v2496
        %6929 = vmatprep.subr.bf16.mxu0 %v2505
        %6930 = vmatpush1.bf16.msra.mxu0 %v2504
        %6931 = vmatprep.subr.bf16.mxu0 %v2513
        %6932 = vmatpush1.bf16.msra.mxu0 %v2512
        %6933 = vmatprep.subr.bf16.mxu0 %v2521
        %6934 = vmatpush1.bf16.msra.mxu0 %v2520
        %6935 = vmatprep.subr.bf16.mxu0 %v2529
        %6936 = vmatpush1.bf16.msra.mxu0 %v2528
        %6937 = vmatprep.subr.bf16.mxu0 %v2537
        %6938 = vmatpush1.bf16.msra.mxu0 %v2536
        %6939 = vmatprep.subr.bf16.mxu0 %v2545
        %6940 = vmatpush1.bf16.msra.mxu0 %v2544
        %6941 = vmatprep.subr.bf16.mxu0 %v2553
        %6942 = vmatpush1.bf16.msra.mxu0 %v2552
        %6943 = vmatprep.subr.bf16.mxu0 %v2561
        %6944 = vmatpush1.bf16.msra.mxu0 %v2560
        %6945 = vmatprep.mubr.bf16.mxu0 %v6783
        %6946 = vmatmul.mubr.bf16.gmra.mrb[0].mxu0 %v6782
        %v6947 = vpop.f32.mrb[0].mxu0
        %v6948 = vadd.f32 0.0, %v6947
        %v6949 = vpop.f32.mrb[0].mxu0
        %v6950 = vadd.f32 0.0, %v6949
        %v6951 = vpop.f32.mrb[0].mxu0
        %v6952 = vadd.f32 0.0, %v6951
        %v6953 = vpop.f32.mrb[0].mxu0
        %v6954 = vadd.f32 0.0, %v6953
        %6955 = vdwg.mxu0
        %v6956 = vunpack.c.l.bf16 %v6774
        %v6957 = vunpack.c.l.bf16 %v6775
        %v6958 = vunpack.c.l.bf16 %v6776
        %v6959 = vunpack.c.l.bf16 %v6777
        %v6960 = vunpack.c.h.bf16 %v6774
        %v6961 = vunpack.c.h.bf16 %v6775
        %v6962 = vunpack.c.h.bf16 %v6776
        %v6963 = vunpack.c.h.bf16 %v6777
        %v6964 = vadd.f32 %v6956, %v6819
        %v6965 = vadd.f32 %v6957, %v6821
        %v6966 = vadd.f32 %v6958, %v6862
        %v6967 = vadd.f32 %v6959, %v6864
        %v6968 = vadd.f32 %v6960, %v6823
        %v6969 = vadd.f32 %v6961, %v6825
        %v6970 = vadd.f32 %v6962, %v6866
        %v6971 = vadd.f32 %v6963, %v6868
        %v6972 = vunpack.c.l.bf16 %v6778
        %v6973 = vunpack.c.l.bf16 %v6779
        %v6974 = vunpack.c.l.bf16 %v6780
        %v6975 = vunpack.c.l.bf16 %v6781
        %v6976 = vunpack.c.h.bf16 %v6778
        %v6977 = vunpack.c.h.bf16 %v6779
        %v6978 = vunpack.c.h.bf16 %v6780
        %v6979 = vunpack.c.h.bf16 %v6781
        %v6980 = vadd.f32 %v6972, %v6905
        %v6981 = vadd.f32 %v6973, %v6907
        %v6982 = vadd.f32 %v6974, %v6948
        %v6983 = vadd.f32 %v6975, %v6950
        %v6984 = vadd.f32 %v6976, %v6909
        %v6985 = vadd.f32 %v6977, %v6911
        %v6986 = vadd.f32 %v6978, %v6952
        %v6987 = vadd.f32 %v6979, %v6954
        %v6988 = vxor.u32 %v6964, 2147483648
        %v6989 = vxor.u32 %v6968, 2147483648
        %v6990 = vmul.f32 %v6988, 1.442695
        %v6991 = vpow.pop %v6990
        %v6992 = vmul.f32 %v6989, 1.442695
        %v6993 = vpow.pop %v6992
        %v6994 = vadd.f32 %v6991, 1.0
        %v6995 = vadd.f32 %v6993, 1.0
        %v6996 = vrcp.pop %v6994
        %v6997 = vmul.f32 1.0, %v6996
        %v6998 = vrcp.pop %v6995
        %v6999 = vmul.f32 1.0, %v6998
        %v7000 = vxor.u32 %v6965, 2147483648
        %v7001 = vxor.u32 %v6969, 2147483648
        %v7002 = vmul.f32 %v7000, 1.442695
        %v7003 = vpow.pop %v7002
        %v7004 = vmul.f32 %v7001, 1.442695
        %v7005 = vpow.pop %v7004
        %v7006 = vadd.f32 %v7003, 1.0
        %v7007 = vadd.f32 %v7005, 1.0
        %v7008 = vrcp.pop %v7006
        %v7009 = vmul.f32 1.0, %v7008
        %v7010 = vrcp.pop %v7007
        %v7011 = vmul.f32 1.0, %v7010
        %v7012 = vtanh.pop %v6966
        %v7013 = vtanh.pop %v6970
        %v7014 = vxor.u32 %v6967, 2147483648
        %v7015 = vxor.u32 %v6971, 2147483648
        %v7016 = vmul.f32 %v7014, 1.442695
        %v7017 = vpow.pop %v7016
        %v7018 = vmul.f32 %v7015, 1.442695
        %v7019 = vpow.pop %v7018
        %v7020 = vadd.f32 %v7017, 1.0
        %v7021 = vadd.f32 %v7019, 1.0
        %v7022 = vrcp.pop %v7020
        %v7023 = vmul.f32 1.0, %v7022
        %v7024 = vrcp.pop %v7021
        %v7025 = vmul.f32 1.0, %v7024
        %v7026 = vmul.f32 %v7009, %v6762
        %v7027 = vmul.f32 %v7011, %v6763
        %v7028 = vmul.f32 %v6997, %v7012
        %v7029 = vmul.f32 %v6999, %v7013
        %v7030 = vadd.f32 %v7026, %v7028
        %v7031 = vadd.f32 %v7027, %v7029
        %v7032 = vtanh.pop %v7030
        %v7033 = vtanh.pop %v7031
        %v7034 = vmul.f32 %v7023, %v7032
        %v7035 = vmul.f32 %v7025, %v7033
        %v7036 = vxor.u32 %v6980, 2147483648
        %v7037 = vxor.u32 %v6984, 2147483648
        %v7038 = vmul.f32 %v7036, 1.442695
        %v7039 = vpow.pop %v7038
        %v7040 = vmul.f32 %v7037, 1.442695
        %v7041 = vpow.pop %v7040
        %v7042 = vadd.f32 %v7039, 1.0
        %v7043 = vadd.f32 %v7041, 1.0
        %v7044 = vrcp.pop %v7042
        %v7045 = vmul.f32 1.0, %v7044
        %v7046 = vrcp.pop %v7043
        %v7047 = vmul.f32 1.0, %v7046
        %v7048 = vxor.u32 %v6981, 2147483648
        %v7049 = vxor.u32 %v6985, 2147483648
        %v7050 = vmul.f32 %v7048, 1.442695
        %v7051 = vpow.pop %v7050
        %v7052 = vmul.f32 %v7049, 1.442695
        %v7053 = vpow.pop %v7052
        %v7054 = vadd.f32 %v7051, 1.0
        %v7055 = vadd.f32 %v7053, 1.0
        %v7056 = vrcp.pop %v7054
        %v7057 = vmul.f32 1.0, %v7056
        %v7058 = vrcp.pop %v7055
        %v7059 = vmul.f32 1.0, %v7058
        %v7060 = vtanh.pop %v6982
        %v7061 = vtanh.pop %v6986
        %v7062 = vxor.u32 %v6983, 2147483648
        %v7063 = vxor.u32 %v6987, 2147483648
        %v7064 = vmul.f32 %v7062, 1.442695
        %v7065 = vpow.pop %v7064
        %v7066 = vmul.f32 %v7063, 1.442695
        %v7067 = vpow.pop %v7066
        %v7068 = vadd.f32 %v7065, 1.0
        %v7069 = vadd.f32 %v7067, 1.0
        %v7070 = vrcp.pop %v7068
        %v7071 = vmul.f32 1.0, %v7070
        %v7072 = vrcp.pop %v7069
        %v7073 = vmul.f32 1.0, %v7072
        %v7074 = vmul.f32 %v7057, %v6766
        %v7075 = vmul.f32 %v7059, %v6767
        %v7076 = vmul.f32 %v7045, %v7060
        %v7077 = vmul.f32 %v7047, %v7061
        %v7078 = vadd.f32 %v7074, %v7076
        %v7079 = vadd.f32 %v7075, %v7077
        %v7080 = vtanh.pop %v7078
        %v7081 = vtanh.pop %v7079
        %v7082 = vmul.f32 %v7071, %v7080
        %v7083 = vmul.f32 %v7073, %v7081
        %v7084 = vsel %vm4066, %v7034, %v6760
        %v7085 = vsel %vm4067, %v7035, %v6761
        %v7086 = vsel %vm4066, %v7030, %v6762
        %v7087 = vsel %vm4067, %v7031, %v6763
        %v7088 = vsel %vm4052, %v7082, %v6764
        %v7089 = vsel %vm4053, %v7083, %v6765
        %v7090 = vsel %vm4052, %v7078, %v6766
        %v7091 = vsel %vm4053, %v7079, %v6767
        %v7092 = vmax.f32 %v6768, %v7084
        %v7093 = vmax.f32 %v6769, %v7085
        %v7094 = vsel %vm4052, %v7082, -1e+30
        %v7095 = vsel %vm4053, %v7083, -1e+30
        %v7096 = vmax.f32 %v6772, %v7094
        %v7097 = vmax.f32 %v6773, %v7095
        %v7098 = vld [vmem:[%s3383] sm:$0xff]
        %v7099 = vld [vmem:[%s3383 + $0x8] sm:$0xff]
        %v7100 = vld [vmem:[%s3383 + $0x10] sm:$0xff]
        %v7101 = vld [vmem:[%s3383 + $0x18] sm:$0xff]
        %v7102 = vld [vmem:[%s3378 + $0x20] sm:$0xff]
        %v7103 = vld [vmem:[%s3378 + $0x28] sm:$0xff]
        %v7104 = vld [vmem:[%s3378 + $0x30] sm:$0xff]
        %v7105 = vld [vmem:[%s3378 + $0x38] sm:$0xff]
        %v7106 = vpack.c.bf16 %v7085, %v7084
        %v7107 = vpack.c.bf16 %v7089, %v7088
        %7108 = vmatprep.subr.bf16.mxu0 %v2435
        %7109 = vmatpush1.bf16.msra.mxu0 %v2434
        %7110 = vmatprep.subr.bf16.mxu0 %v2443
        %7111 = vmatpush1.bf16.msra.mxu0 %v2442
        %7112 = vmatprep.subr.bf16.mxu0 %v2451
        %7113 = vmatpush1.bf16.msra.mxu0 %v2450
        %7114 = vmatprep.subr.bf16.mxu0 %v2459
        %7115 = vmatpush1.bf16.msra.mxu0 %v2458
        %7116 = vmatprep.subr.bf16.mxu0 %v2467
        %7117 = vmatpush1.bf16.msra.mxu0 %v2466
        %7118 = vmatprep.subr.bf16.mxu0 %v2475
        %7119 = vmatpush1.bf16.msra.mxu0 %v2474
        %7120 = vmatprep.subr.bf16.mxu0 %v2483
        %7121 = vmatpush1.bf16.msra.mxu0 %v2482
        %7122 = vmatprep.subr.bf16.mxu0 %v2491
        %7123 = vmatpush1.bf16.msra.mxu0 %v2490
        %7124 = vmatprep.subr.bf16.mxu0 %v2499
        %7125 = vmatpush1.bf16.msra.mxu0 %v2498
        %7126 = vmatprep.subr.bf16.mxu0 %v2507
        %7127 = vmatpush1.bf16.msra.mxu0 %v2506
        %7128 = vmatprep.subr.bf16.mxu0 %v2515
        %7129 = vmatpush1.bf16.msra.mxu0 %v2514
        %7130 = vmatprep.subr.bf16.mxu0 %v2523
        %7131 = vmatpush1.bf16.msra.mxu0 %v2522
        %7132 = vmatprep.subr.bf16.mxu0 %v2531
        %7133 = vmatpush1.bf16.msra.mxu0 %v2530
        %7134 = vmatprep.subr.bf16.mxu0 %v2539
        %7135 = vmatpush1.bf16.msra.mxu0 %v2538
        %7136 = vmatprep.subr.bf16.mxu0 %v2547
        %7137 = vmatpush1.bf16.msra.mxu0 %v2546
        %7138 = vmatprep.subr.bf16.mxu0 %v2555
        %7139 = vmatpush1.bf16.msra.mxu0 %v2554
        %7140 = vmatprep.mubr.bf16.mxu0 %v7107
        %7141 = vmatmul.mubr.bf16.gmra.mrb[0].mxu0 %v7106
        %v7142 = vpop.f32.mrb[0].mxu0
        %v7143 = vadd.f32 0.0, %v7142
        %v7144 = vpop.f32.mrb[0].mxu0
        %v7145 = vadd.f32 0.0, %v7144
        %v7146 = vpop.f32.mrb[0].mxu0
        %v7147 = vadd.f32 0.0, %v7146
        %v7148 = vpop.f32.mrb[0].mxu0
        %v7149 = vadd.f32 0.0, %v7148
        %7150 = vdwg.mxu0
        %7151 = vmatprep.subr.bf16.mxu0 %v2437
        %7152 = vmatpush1.bf16.msra.mxu0 %v2436
        %7153 = vmatprep.subr.bf16.mxu0 %v2445
        %7154 = vmatpush1.bf16.msra.mxu0 %v2444
        %7155 = vmatprep.subr.bf16.mxu0 %v2453
        %7156 = vmatpush1.bf16.msra.mxu0 %v2452
        %7157 = vmatprep.subr.bf16.mxu0 %v2461
        %7158 = vmatpush1.bf16.msra.mxu0 %v2460
        %7159 = vmatprep.subr.bf16.mxu0 %v2469
        %7160 = vmatpush1.bf16.msra.mxu0 %v2468
        %7161 = vmatprep.subr.bf16.mxu0 %v2477
        %7162 = vmatpush1.bf16.msra.mxu0 %v2476
        %7163 = vmatprep.subr.bf16.mxu0 %v2485
        %7164 = vmatpush1.bf16.msra.mxu0 %v2484
        %7165 = vmatprep.subr.bf16.mxu0 %v2493
        %7166 = vmatpush1.bf16.msra.mxu0 %v2492
        %7167 = vmatprep.subr.bf16.mxu0 %v2501
        %7168 = vmatpush1.bf16.msra.mxu0 %v2500
        %7169 = vmatprep.subr.bf16.mxu0 %v2509
        %7170 = vmatpush1.bf16.msra.mxu0 %v2508
        %7171 = vmatprep.subr.bf16.mxu0 %v2517
        %7172 = vmatpush1.bf16.msra.mxu0 %v2516
        %7173 = vmatprep.subr.bf16.mxu0 %v2525
        %7174 = vmatpush1.bf16.msra.mxu0 %v2524
        %7175 = vmatprep.subr.bf16.mxu0 %v2533
        %7176 = vmatpush1.bf16.msra.mxu0 %v2532
        %7177 = vmatprep.subr.bf16.mxu0 %v2541
        %7178 = vmatpush1.bf16.msra.mxu0 %v2540
        %7179 = vmatprep.subr.bf16.mxu0 %v2549
        %7180 = vmatpush1.bf16.msra.mxu0 %v2548
        %7181 = vmatprep.subr.bf16.mxu0 %v2557
        %7182 = vmatpush1.bf16.msra.mxu0 %v2556
        %7183 = vmatprep.mubr.bf16.mxu0 %v7107
        %7184 = vmatmul.mubr.bf16.gmra.mrb[0].mxu0 %v7106
        %v7185 = vpop.f32.mrb[0].mxu0
        %v7186 = vadd.f32 0.0, %v7185
        %v7187 = vpop.f32.mrb[0].mxu0
        %v7188 = vadd.f32 0.0, %v7187
        %v7189 = vpop.f32.mrb[0].mxu0
        %v7190 = vadd.f32 0.0, %v7189
        %v7191 = vpop.f32.mrb[0].mxu0
        %v7192 = vadd.f32 0.0, %v7191
        %7193 = vdwg.mxu0
        %7194 = vmatprep.subr.bf16.mxu0 %v2439
        %7195 = vmatpush1.bf16.msra.mxu0 %v2438
        %7196 = vmatprep.subr.bf16.mxu0 %v2447
        %7197 = vmatpush1.bf16.msra.mxu0 %v2446
        %7198 = vmatprep.subr.bf16.mxu0 %v2455
        %7199 = vmatpush1.bf16.msra.mxu0 %v2454
        %7200 = vmatprep.subr.bf16.mxu0 %v2463
        %7201 = vmatpush1.bf16.msra.mxu0 %v2462
        %7202 = vmatprep.subr.bf16.mxu0 %v2471
        %7203 = vmatpush1.bf16.msra.mxu0 %v2470
        %7204 = vmatprep.subr.bf16.mxu0 %v2479
        %7205 = vmatpush1.bf16.msra.mxu0 %v2478
        %7206 = vmatprep.subr.bf16.mxu0 %v2487
        %7207 = vmatpush1.bf16.msra.mxu0 %v2486
        %7208 = vmatprep.subr.bf16.mxu0 %v2495
        %7209 = vmatpush1.bf16.msra.mxu0 %v2494
        %7210 = vmatprep.subr.bf16.mxu0 %v2503
        %7211 = vmatpush1.bf16.msra.mxu0 %v2502
        %7212 = vmatprep.subr.bf16.mxu0 %v2511
        %7213 = vmatpush1.bf16.msra.mxu0 %v2510
        %7214 = vmatprep.subr.bf16.mxu0 %v2519
        %7215 = vmatpush1.bf16.msra.mxu0 %v2518
        %7216 = vmatprep.subr.bf16.mxu0 %v2527
        %7217 = vmatpush1.bf16.msra.mxu0 %v2526
        %7218 = vmatprep.subr.bf16.mxu0 %v2535
        %7219 = vmatpush1.bf16.msra.mxu0 %v2534
        %7220 = vmatprep.subr.bf16.mxu0 %v2543
        %7221 = vmatpush1.bf16.msra.mxu0 %v2542
        %7222 = vmatprep.subr.bf16.mxu0 %v2551
        %7223 = vmatpush1.bf16.msra.mxu0 %v2550
        %7224 = vmatprep.subr.bf16.mxu0 %v2559
        %7225 = vmatpush1.bf16.msra.mxu0 %v2558
        %7226 = vmatprep.mubr.bf16.mxu0 %v7107
        %7227 = vmatmul.mubr.bf16.gmra.mrb[0].mxu0 %v7106
        %v7228 = vpop.f32.mrb[0].mxu0
        %v7229 = vadd.f32 0.0, %v7228
        %v7230 = vpop.f32.mrb[0].mxu0
        %v7231 = vadd.f32 0.0, %v7230
        %v7232 = vpop.f32.mrb[0].mxu0
        %v7233 = vadd.f32 0.0, %v7232
        %v7234 = vpop.f32.mrb[0].mxu0
        %v7235 = vadd.f32 0.0, %v7234
        %7236 = vdwg.mxu0
        %7237 = vmatprep.subr.bf16.mxu0 %v2441
        %7238 = vmatpush1.bf16.msra.mxu0 %v2440
        %7239 = vmatprep.subr.bf16.mxu0 %v2449
        %7240 = vmatpush1.bf16.msra.mxu0 %v2448
        %7241 = vmatprep.subr.bf16.mxu0 %v2457
        %7242 = vmatpush1.bf16.msra.mxu0 %v2456
        %7243 = vmatprep.subr.bf16.mxu0 %v2465
        %7244 = vmatpush1.bf16.msra.mxu0 %v2464
        %7245 = vmatprep.subr.bf16.mxu0 %v2473
        %7246 = vmatpush1.bf16.msra.mxu0 %v2472
        %7247 = vmatprep.subr.bf16.mxu0 %v2481
        %7248 = vmatpush1.bf16.msra.mxu0 %v2480
        %7249 = vmatprep.subr.bf16.mxu0 %v2489
        %7250 = vmatpush1.bf16.msra.mxu0 %v2488
        %7251 = vmatprep.subr.bf16.mxu0 %v2497
        %7252 = vmatpush1.bf16.msra.mxu0 %v2496
        %7253 = vmatprep.subr.bf16.mxu0 %v2505
        %7254 = vmatpush1.bf16.msra.mxu0 %v2504
        %7255 = vmatprep.subr.bf16.mxu0 %v2513
        %7256 = vmatpush1.bf16.msra.mxu0 %v2512
        %7257 = vmatprep.subr.bf16.mxu0 %v2521
        %7258 = vmatpush1.bf16.msra.mxu0 %v2520
        %7259 = vmatprep.subr.bf16.mxu0 %v2529
        %7260 = vmatpush1.bf16.msra.mxu0 %v2528
        %7261 = vmatprep.subr.bf16.mxu0 %v2537
        %7262 = vmatpush1.bf16.msra.mxu0 %v2536
        %7263 = vmatprep.subr.bf16.mxu0 %v2545
        %7264 = vmatpush1.bf16.msra.mxu0 %v2544
        %7265 = vmatprep.subr.bf16.mxu0 %v2553
        %7266 = vmatpush1.bf16.msra.mxu0 %v2552
        %7267 = vmatprep.subr.bf16.mxu0 %v2561
        %7268 = vmatpush1.bf16.msra.mxu0 %v2560
        %7269 = vmatprep.mubr.bf16.mxu0 %v7107
        %7270 = vmatmul.mubr.bf16.gmra.mrb[0].mxu0 %v7106
        %v7271 = vpop.f32.mrb[0].mxu0
        %v7272 = vadd.f32 0.0, %v7271
        %v7273 = vpop.f32.mrb[0].mxu0
        %v7274 = vadd.f32 0.0, %v7273
        %v7275 = vpop.f32.mrb[0].mxu0
        %v7276 = vadd.f32 0.0, %v7275
        %v7277 = vpop.f32.mrb[0].mxu0
        %v7278 = vadd.f32 0.0, %v7277
        %7279 = vdwg.mxu0
        %v7280 = vunpack.c.l.bf16 %v7098
        %v7281 = vunpack.c.l.bf16 %v7099
        %v7282 = vunpack.c.l.bf16 %v7100
        %v7283 = vunpack.c.l.bf16 %v7101
        %v7284 = vunpack.c.h.bf16 %v7098
        %v7285 = vunpack.c.h.bf16 %v7099
        %v7286 = vunpack.c.h.bf16 %v7100
        %v7287 = vunpack.c.h.bf16 %v7101
        %v7288 = vadd.f32 %v7280, %v7143
        %v7289 = vadd.f32 %v7281, %v7145
        %v7290 = vadd.f32 %v7282, %v7186
        %v7291 = vadd.f32 %v7283, %v7188
        %v7292 = vadd.f32 %v7284, %v7147
        %v7293 = vadd.f32 %v7285, %v7149
        %v7294 = vadd.f32 %v7286, %v7190
        %v7295 = vadd.f32 %v7287, %v7192
        %v7296 = vunpack.c.l.bf16 %v7102
        %v7297 = vunpack.c.l.bf16 %v7103
        %v7298 = vunpack.c.l.bf16 %v7104
        %v7299 = vunpack.c.l.bf16 %v7105
        %v7300 = vunpack.c.h.bf16 %v7102
        %v7301 = vunpack.c.h.bf16 %v7103
        %v7302 = vunpack.c.h.bf16 %v7104
        %v7303 = vunpack.c.h.bf16 %v7105
        %v7304 = vadd.f32 %v7296, %v7229
        %v7305 = vadd.f32 %v7297, %v7231
        %v7306 = vadd.f32 %v7298, %v7272
        %v7307 = vadd.f32 %v7299, %v7274
        %v7308 = vadd.f32 %v7300, %v7233
        %v7309 = vadd.f32 %v7301, %v7235
        %v7310 = vadd.f32 %v7302, %v7276
        %v7311 = vadd.f32 %v7303, %v7278
        %v7312 = vxor.u32 %v7288, 2147483648
        %v7313 = vxor.u32 %v7292, 2147483648
        %v7314 = vmul.f32 %v7312, 1.442695
        %v7315 = vpow.pop %v7314
        %v7316 = vmul.f32 %v7313, 1.442695
        %v7317 = vpow.pop %v7316
        %v7318 = vadd.f32 %v7315, 1.0
        %v7319 = vadd.f32 %v7317, 1.0
        %v7320 = vrcp.pop %v7318
        %v7321 = vmul.f32 1.0, %v7320
        %v7322 = vrcp.pop %v7319
        %v7323 = vmul.f32 1.0, %v7322
        %v7324 = vxor.u32 %v7289, 2147483648
        %v7325 = vxor.u32 %v7293, 2147483648
        %v7326 = vmul.f32 %v7324, 1.442695
        %v7327 = vpow.pop %v7326
        %v7328 = vmul.f32 %v7325, 1.442695
        %v7329 = vpow.pop %v7328
        %v7330 = vadd.f32 %v7327, 1.0
        %v7331 = vadd.f32 %v7329, 1.0
        %v7332 = vrcp.pop %v7330
        %v7333 = vmul.f32 1.0, %v7332
        %v7334 = vrcp.pop %v7331
        %v7335 = vmul.f32 1.0, %v7334
        %v7336 = vtanh.pop %v7290
        %v7337 = vtanh.pop %v7294
        %v7338 = vxor.u32 %v7291, 2147483648
        %v7339 = vxor.u32 %v7295, 2147483648
        %v7340 = vmul.f32 %v7338, 1.442695
        %v7341 = vpow.pop %v7340
        %v7342 = vmul.f32 %v7339, 1.442695
        %v7343 = vpow.pop %v7342
        %v7344 = vadd.f32 %v7341, 1.0
        %v7345 = vadd.f32 %v7343, 1.0
        %v7346 = vrcp.pop %v7344
        %v7347 = vmul.f32 1.0, %v7346
        %v7348 = vrcp.pop %v7345
        %v7349 = vmul.f32 1.0, %v7348
        %v7350 = vmul.f32 %v7333, %v7086
        %v7351 = vmul.f32 %v7335, %v7087
        %v7352 = vmul.f32 %v7321, %v7336
        %v7353 = vmul.f32 %v7323, %v7337
        %v7354 = vadd.f32 %v7350, %v7352
        %v7355 = vadd.f32 %v7351, %v7353
        %v7356 = vtanh.pop %v7354
        %v7357 = vtanh.pop %v7355
        %v7358 = vmul.f32 %v7347, %v7356
        %v7359 = vmul.f32 %v7349, %v7357
        %v7360 = vxor.u32 %v7304, 2147483648
        %v7361 = vxor.u32 %v7308, 2147483648
        %v7362 = vmul.f32 %v7360, 1.442695
        %v7363 = vpow.pop %v7362
        %v7364 = vmul.f32 %v7361, 1.442695
        %v7365 = vpow.pop %v7364
        %v7366 = vadd.f32 %v7363, 1.0
        %v7367 = vadd.f32 %v7365, 1.0
        %v7368 = vrcp.pop %v7366
        %v7369 = vmul.f32 1.0, %v7368
        %v7370 = vrcp.pop %v7367
        %v7371 = vmul.f32 1.0, %v7370
        %v7372 = vxor.u32 %v7305, 2147483648
        %v7373 = vxor.u32 %v7309, 2147483648
        %v7374 = vmul.f32 %v7372, 1.442695
        %v7375 = vpow.pop %v7374
        %v7376 = vmul.f32 %v7373, 1.442695
        %v7377 = vpow.pop %v7376
        %v7378 = vadd.f32 %v7375, 1.0
        %v7379 = vadd.f32 %v7377, 1.0
        %v7380 = vrcp.pop %v7378
        %v7381 = vmul.f32 1.0, %v7380
        %v7382 = vrcp.pop %v7379
        %v7383 = vmul.f32 1.0, %v7382
        %v7384 = vtanh.pop %v7306
        %v7385 = vtanh.pop %v7310
        %v7386 = vxor.u32 %v7307, 2147483648
        %v7387 = vxor.u32 %v7311, 2147483648
        %v7388 = vmul.f32 %v7386, 1.442695
        %v7389 = vpow.pop %v7388
        %v7390 = vmul.f32 %v7387, 1.442695
        %v7391 = vpow.pop %v7390
        %v7392 = vadd.f32 %v7389, 1.0
        %v7393 = vadd.f32 %v7391, 1.0
        %v7394 = vrcp.pop %v7392
        %v7395 = vmul.f32 1.0, %v7394
        %v7396 = vrcp.pop %v7393
        %v7397 = vmul.f32 1.0, %v7396
        %v7398 = vmul.f32 %v7381, %v7090
        %v7399 = vmul.f32 %v7383, %v7091
        %v7400 = vmul.f32 %v7369, %v7384
        %v7401 = vmul.f32 %v7371, %v7385
        %v7402 = vadd.f32 %v7398, %v7400
        %v7403 = vadd.f32 %v7399, %v7401
        %v7404 = vtanh.pop %v7402
        %v7405 = vtanh.pop %v7403
        %v7406 = vmul.f32 %v7395, %v7404
        %v7407 = vmul.f32 %v7397, %v7405
        %v7408 = vsel %vm3716, %v7358, %v7084
        %v7409 = vsel %vm3717, %v7359, %v7085
        %v7410 = vsel %vm3716, %v7354, %v7086
        %v7411 = vsel %vm3717, %v7355, %v7087
        %v7412 = vsel %vm3702, %v7406, %v7088
        %v7413 = vsel %vm3703, %v7407, %v7089
        %v7414 = vsel %vm3702, %v7402, %v7090
        %v7415 = vsel %vm3703, %v7403, %v7091
        %v7416 = vmax.f32 %v7092, %v7408
        %v7417 = vmax.f32 %v7093, %v7409
        %v7418 = vsel %vm3702, %v7406, -1e+30
        %v7419 = vsel %vm3703, %v7407, -1e+30
        %v7420 = vmax.f32 %v7096, %v7418
        %v7421 = vmax.f32 %v7097, %v7419
        %v7422 = vld [vmem:[%s3033] sm:$0xff]
        %v7423 = vld [vmem:[%s3033 + $0x8] sm:$0xff]
        %v7424 = vld [vmem:[%s3033 + $0x10] sm:$0xff]
        %v7425 = vld [vmem:[%s3033 + $0x18] sm:$0xff]
        %v7426 = vld [vmem:[%s3028 + $0x20] sm:$0xff]
        %v7427 = vld [vmem:[%s3028 + $0x28] sm:$0xff]
        %v7428 = vld [vmem:[%s3028 + $0x30] sm:$0xff]
        %v7429 = vld [vmem:[%s3028 + $0x38] sm:$0xff]
        %v7430 = vpack.c.bf16 %v7409, %v7408
        %v7431 = vpack.c.bf16 %v7413, %v7412
        %7432 = vmatprep.subr.bf16.mxu0 %v2435
        %7433 = vmatpush1.bf16.msra.mxu0 %v2434
        %7434 = vmatprep.subr.bf16.mxu0 %v2443
        %7435 = vmatpush1.bf16.msra.mxu0 %v2442
        %7436 = vmatprep.subr.bf16.mxu0 %v2451
        %7437 = vmatpush1.bf16.msra.mxu0 %v2450
        %7438 = vmatprep.subr.bf16.mxu0 %v2459
        %7439 = vmatpush1.bf16.msra.mxu0 %v2458
        %7440 = vmatprep.subr.bf16.mxu0 %v2467
        %7441 = vmatpush1.bf16.msra.mxu0 %v2466
        %7442 = vmatprep.subr.bf16.mxu0 %v2475
        %7443 = vmatpush1.bf16.msra.mxu0 %v2474
        %7444 = vmatprep.subr.bf16.mxu0 %v2483
        %7445 = vmatpush1.bf16.msra.mxu0 %v2482
        %7446 = vmatprep.subr.bf16.mxu0 %v2491
        %7447 = vmatpush1.bf16.msra.mxu0 %v2490
        %7448 = vmatprep.subr.bf16.mxu0 %v2499
        %7449 = vmatpush1.bf16.msra.mxu0 %v2498
        %7450 = vmatprep.subr.bf16.mxu0 %v2507
        %7451 = vmatpush1.bf16.msra.mxu0 %v2506
        %7452 = vmatprep.subr.bf16.mxu0 %v2515
        %7453 = vmatpush1.bf16.msra.mxu0 %v2514
        %7454 = vmatprep.subr.bf16.mxu0 %v2523
        %7455 = vmatpush1.bf16.msra.mxu0 %v2522
        %7456 = vmatprep.subr.bf16.mxu0 %v2531
        %7457 = vmatpush1.bf16.msra.mxu0 %v2530
        %7458 = vmatprep.subr.bf16.mxu0 %v2539
        %7459 = vmatpush1.bf16.msra.mxu0 %v2538
        %7460 = vmatprep.subr.bf16.mxu0 %v2547
        %7461 = vmatpush1.bf16.msra.mxu0 %v2546
        %7462 = vmatprep.subr.bf16.mxu0 %v2555
        %7463 = vmatpush1.bf16.msra.mxu0 %v2554
        %7464 = vmatprep.mubr.bf16.mxu0 %v7431
        %7465 = vmatmul.mubr.bf16.gmra.mrb[0].mxu0 %v7430
        %v7466 = vpop.f32.mrb[0].mxu0
        %v7467 = vadd.f32 0.0, %v7466
        %v7468 = vpop.f32.mrb[0].mxu0
        %v7469 = vadd.f32 0.0, %v7468
        %v7470 = vpop.f32.mrb[0].mxu0
        %v7471 = vadd.f32 0.0, %v7470
        %v7472 = vpop.f32.mrb[0].mxu0
        %v7473 = vadd.f32 0.0, %v7472
        %7474 = vdwg.mxu0
        %7475 = vmatprep.subr.bf16.mxu0 %v2437
        %7476 = vmatpush1.bf16.msra.mxu0 %v2436
        %7477 = vmatprep.subr.bf16.mxu0 %v2445
        %7478 = vmatpush1.bf16.msra.mxu0 %v2444
        %7479 = vmatprep.subr.bf16.mxu0 %v2453
        %7480 = vmatpush1.bf16.msra.mxu0 %v2452
        %7481 = vmatprep.subr.bf16.mxu0 %v2461
        %7482 = vmatpush1.bf16.msra.mxu0 %v2460
        %7483 = vmatprep.subr.bf16.mxu0 %v2469
        %7484 = vmatpush1.bf16.msra.mxu0 %v2468
        %7485 = vmatprep.subr.bf16.mxu0 %v2477
        %7486 = vmatpush1.bf16.msra.mxu0 %v2476
        %7487 = vmatprep.subr.bf16.mxu0 %v2485
        %7488 = vmatpush1.bf16.msra.mxu0 %v2484
        %7489 = vmatprep.subr.bf16.mxu0 %v2493
        %7490 = vmatpush1.bf16.msra.mxu0 %v2492
        %7491 = vmatprep.subr.bf16.mxu0 %v2501
        %7492 = vmatpush1.bf16.msra.mxu0 %v2500
        %7493 = vmatprep.subr.bf16.mxu0 %v2509
        %7494 = vmatpush1.bf16.msra.mxu0 %v2508
        %7495 = vmatprep.subr.bf16.mxu0 %v2517
        %7496 = vmatpush1.bf16.msra.mxu0 %v2516
        %7497 = vmatprep.subr.bf16.mxu0 %v2525
        %7498 = vmatpush1.bf16.msra.mxu0 %v2524
        %7499 = vmatprep.subr.bf16.mxu0 %v2533
        %7500 = vmatpush1.bf16.msra.mxu0 %v2532
        %7501 = vmatprep.subr.bf16.mxu0 %v2541
        %7502 = vmatpush1.bf16.msra.mxu0 %v2540
        %7503 = vmatprep.subr.bf16.mxu0 %v2549
        %7504 = vmatpush1.bf16.msra.mxu0 %v2548
        %7505 = vmatprep.subr.bf16.mxu0 %v2557
        %7506 = vmatpush1.bf16.msra.mxu0 %v2556
        %7507 = vmatprep.mubr.bf16.mxu0 %v7431
        %7508 = vmatmul.mubr.bf16.gmra.mrb[0].mxu0 %v7430
        %v7509 = vpop.f32.mrb[0].mxu0
        %v7510 = vadd.f32 0.0, %v7509
        %v7511 = vpop.f32.mrb[0].mxu0
        %v7512 = vadd.f32 0.0, %v7511
        %v7513 = vpop.f32.mrb[0].mxu0
        %v7514 = vadd.f32 0.0, %v7513
        %v7515 = vpop.f32.mrb[0].mxu0
        %v7516 = vadd.f32 0.0, %v7515
        %7517 = vdwg.mxu0
        %7518 = vmatprep.subr.bf16.mxu0 %v2439
        %7519 = vmatpush1.bf16.msra.mxu0 %v2438
        %7520 = vmatprep.subr.bf16.mxu0 %v2447
        %7521 = vmatpush1.bf16.msra.mxu0 %v2446
        %7522 = vmatprep.subr.bf16.mxu0 %v2455
        %7523 = vmatpush1.bf16.msra.mxu0 %v2454
        %7524 = vmatprep.subr.bf16.mxu0 %v2463
        %7525 = vmatpush1.bf16.msra.mxu0 %v2462
        %7526 = vmatprep.subr.bf16.mxu0 %v2471
        %7527 = vmatpush1.bf16.msra.mxu0 %v2470
        %7528 = vmatprep.subr.bf16.mxu0 %v2479
        %7529 = vmatpush1.bf16.msra.mxu0 %v2478
        %7530 = vmatprep.subr.bf16.mxu0 %v2487
        %7531 = vmatpush1.bf16.msra.mxu0 %v2486
        %7532 = vmatprep.subr.bf16.mxu0 %v2495
        %7533 = vmatpush1.bf16.msra.mxu0 %v2494
        %7534 = vmatprep.subr.bf16.mxu0 %v2503
        %7535 = vmatpush1.bf16.msra.mxu0 %v2502
        %7536 = vmatprep.subr.bf16.mxu0 %v2511
        %7537 = vmatpush1.bf16.msra.mxu0 %v2510
        %7538 = vmatprep.subr.bf16.mxu0 %v2519
        %7539 = vmatpush1.bf16.msra.mxu0 %v2518
        %7540 = vmatprep.subr.bf16.mxu0 %v2527
        %7541 = vmatpush1.bf16.msra.mxu0 %v2526
        %7542 = vmatprep.subr.bf16.mxu0 %v2535
        %7543 = vmatpush1.bf16.msra.mxu0 %v2534
        %7544 = vmatprep.subr.bf16.mxu0 %v2543
        %7545 = vmatpush1.bf16.msra.mxu0 %v2542
        %7546 = vmatprep.subr.bf16.mxu0 %v2551
        %7547 = vmatpush1.bf16.msra.mxu0 %v2550
        %7548 = vmatprep.subr.bf16.mxu0 %v2559
        %7549 = vmatpush1.bf16.msra.mxu0 %v2558
        %7550 = vmatprep.mubr.bf16.mxu0 %v7431
        %7551 = vmatmul.mubr.bf16.gmra.mrb[0].mxu0 %v7430
        %v7552 = vpop.f32.mrb[0].mxu0
        %v7553 = vadd.f32 0.0, %v7552
        %v7554 = vpop.f32.mrb[0].mxu0
        %v7555 = vadd.f32 0.0, %v7554
        %v7556 = vpop.f32.mrb[0].mxu0
        %v7557 = vadd.f32 0.0, %v7556
        %v7558 = vpop.f32.mrb[0].mxu0
        %v7559 = vadd.f32 0.0, %v7558
        %7560 = vdwg.mxu0
        %7561 = vmatprep.subr.bf16.mxu0 %v2441
        %7562 = vmatpush1.bf16.msra.mxu0 %v2440
        %7563 = vmatprep.subr.bf16.mxu0 %v2449
        %7564 = vmatpush1.bf16.msra.mxu0 %v2448
        %7565 = vmatprep.subr.bf16.mxu0 %v2457
        %7566 = vmatpush1.bf16.msra.mxu0 %v2456
        %7567 = vmatprep.subr.bf16.mxu0 %v2465
        %7568 = vmatpush1.bf16.msra.mxu0 %v2464
        %7569 = vmatprep.subr.bf16.mxu0 %v2473
        %7570 = vmatpush1.bf16.msra.mxu0 %v2472
        %7571 = vmatprep.subr.bf16.mxu0 %v2481
        %7572 = vmatpush1.bf16.msra.mxu0 %v2480
        %7573 = vmatprep.subr.bf16.mxu0 %v2489
        %7574 = vmatpush1.bf16.msra.mxu0 %v2488
        %7575 = vmatprep.subr.bf16.mxu0 %v2497
        %7576 = vmatpush1.bf16.msra.mxu0 %v2496
        %7577 = vmatprep.subr.bf16.mxu0 %v2505
        %7578 = vmatpush1.bf16.msra.mxu0 %v2504
        %7579 = vmatprep.subr.bf16.mxu0 %v2513
        %7580 = vmatpush1.bf16.msra.mxu0 %v2512
        %7581 = vmatprep.subr.bf16.mxu0 %v2521
        %7582 = vmatpush1.bf16.msra.mxu0 %v2520
        %7583 = vmatprep.subr.bf16.mxu0 %v2529
        %7584 = vmatpush1.bf16.msra.mxu0 %v2528
        %7585 = vmatprep.subr.bf16.mxu0 %v2537
        %7586 = vmatpush1.bf16.msra.mxu0 %v2536
        %7587 = vmatprep.subr.bf16.mxu0 %v2545
        %7588 = vmatpush1.bf16.msra.mxu0 %v2544
        %7589 = vmatprep.subr.bf16.mxu0 %v2553
        %7590 = vmatpush1.bf16.msra.mxu0 %v2552
        %7591 = vmatprep.subr.bf16.mxu0 %v2561
        %7592 = vmatpush1.bf16.msra.mxu0 %v2560
        %7593 = vmatprep.mubr.bf16.mxu0 %v7431
        %7594 = vmatmul.mubr.bf16.gmra.mrb[0].mxu0 %v7430
        %v7595 = vpop.f32.mrb[0].mxu0
        %v7596 = vadd.f32 0.0, %v7595
        %v7597 = vpop.f32.mrb[0].mxu0
        %v7598 = vadd.f32 0.0, %v7597
        %v7599 = vpop.f32.mrb[0].mxu0
        %v7600 = vadd.f32 0.0, %v7599
        %v7601 = vpop.f32.mrb[0].mxu0
        %v7602 = vadd.f32 0.0, %v7601
        %7603 = vdwg.mxu0
        %v7604 = vunpack.c.l.bf16 %v7422
        %v7605 = vunpack.c.l.bf16 %v7423
        %v7606 = vunpack.c.l.bf16 %v7424
        %v7607 = vunpack.c.l.bf16 %v7425
        %v7608 = vunpack.c.h.bf16 %v7422
        %v7609 = vunpack.c.h.bf16 %v7423
        %v7610 = vunpack.c.h.bf16 %v7424
        %v7611 = vunpack.c.h.bf16 %v7425
        %v7612 = vadd.f32 %v7604, %v7467
        %v7613 = vadd.f32 %v7605, %v7469
        %v7614 = vadd.f32 %v7606, %v7510
        %v7615 = vadd.f32 %v7607, %v7512
        %v7616 = vadd.f32 %v7608, %v7471
        %v7617 = vadd.f32 %v7609, %v7473
        %v7618 = vadd.f32 %v7610, %v7514
        %v7619 = vadd.f32 %v7611, %v7516
        %v7620 = vunpack.c.l.bf16 %v7426
        %v7621 = vunpack.c.l.bf16 %v7427
        %v7622 = vunpack.c.l.bf16 %v7428
        %v7623 = vunpack.c.l.bf16 %v7429
        %v7624 = vunpack.c.h.bf16 %v7426
        %v7625 = vunpack.c.h.bf16 %v7427
        %v7626 = vunpack.c.h.bf16 %v7428
        %v7627 = vunpack.c.h.bf16 %v7429
        %v7628 = vadd.f32 %v7620, %v7553
        %v7629 = vadd.f32 %v7621, %v7555
        %v7630 = vadd.f32 %v7622, %v7596
        %v7631 = vadd.f32 %v7623, %v7598
        %v7632 = vadd.f32 %v7624, %v7557
        %v7633 = vadd.f32 %v7625, %v7559
        %v7634 = vadd.f32 %v7626, %v7600
        %v7635 = vadd.f32 %v7627, %v7602
        %v7636 = vxor.u32 %v7612, 2147483648
        %v7637 = vxor.u32 %v7616, 2147483648
        %v7638 = vmul.f32 %v7636, 1.442695
        %v7639 = vpow.pop %v7638
        %v7640 = vmul.f32 %v7637, 1.442695
        %v7641 = vpow.pop %v7640
        %v7642 = vadd.f32 %v7639, 1.0
        %v7643 = vadd.f32 %v7641, 1.0
        %v7644 = vrcp.pop %v7642
        %v7645 = vmul.f32 1.0, %v7644
        %v7646 = vrcp.pop %v7643
        %v7647 = vmul.f32 1.0, %v7646
        %v7648 = vxor.u32 %v7613, 2147483648
        %v7649 = vxor.u32 %v7617, 2147483648
        %v7650 = vmul.f32 %v7648, 1.442695
        %v7651 = vpow.pop %v7650
        %v7652 = vmul.f32 %v7649, 1.442695
        %v7653 = vpow.pop %v7652
        %v7654 = vadd.f32 %v7651, 1.0
        %v7655 = vadd.f32 %v7653, 1.0
        %v7656 = vrcp.pop %v7654
        %v7657 = vmul.f32 1.0, %v7656
        %v7658 = vrcp.pop %v7655
        %v7659 = vmul.f32 1.0, %v7658
        %v7660 = vtanh.pop %v7614
        %v7661 = vtanh.pop %v7618
        %v7662 = vxor.u32 %v7615, 2147483648
        %v7663 = vxor.u32 %v7619, 2147483648
        %v7664 = vmul.f32 %v7662, 1.442695
        %v7665 = vpow.pop %v7664
        %v7666 = vmul.f32 %v7663, 1.442695
        %v7667 = vpow.pop %v7666
        %v7668 = vadd.f32 %v7665, 1.0
        %v7669 = vadd.f32 %v7667, 1.0
        %v7670 = vrcp.pop %v7668
        %v7671 = vmul.f32 1.0, %v7670
        %v7672 = vrcp.pop %v7669
        %v7673 = vmul.f32 1.0, %v7672
        %v7674 = vmul.f32 %v7657, %v7410
        %v7675 = vmul.f32 %v7659, %v7411
        %v7676 = vmul.f32 %v7645, %v7660
        %v7677 = vmul.f32 %v7647, %v7661
        %v7678 = vadd.f32 %v7674, %v7676
        %v7679 = vadd.f32 %v7675, %v7677
        %v7680 = vtanh.pop %v7678
        %v7681 = vtanh.pop %v7679
        %v7682 = vmul.f32 %v7671, %v7680
        %v7683 = vmul.f32 %v7673, %v7681
        %v7684 = vxor.u32 %v7628, 2147483648
        %v7685 = vxor.u32 %v7632, 2147483648
        %v7686 = vmul.f32 %v7684, 1.442695
        %v7687 = vpow.pop %v7686
        %v7688 = vmul.f32 %v7685, 1.442695
        %v7689 = vpow.pop %v7688
        %v7690 = vadd.f32 %v7687, 1.0
        %v7691 = vadd.f32 %v7689, 1.0
        %v7692 = vrcp.pop %v7690
        %v7693 = vmul.f32 1.0, %v7692
        %v7694 = vrcp.pop %v7691
        %v7695 = vmul.f32 1.0, %v7694
        %v7696 = vxor.u32 %v7629, 2147483648
        %v7697 = vxor.u32 %v7633, 2147483648
        %v7698 = vmul.f32 %v7696, 1.442695
        %v7699 = vpow.pop %v7698
        %v7700 = vmul.f32 %v7697, 1.442695
        %v7701 = vpow.pop %v7700
        %v7702 = vadd.f32 %v7699, 1.0
        %v7703 = vadd.f32 %v7701, 1.0
        %v7704 = vrcp.pop %v7702
        %v7705 = vmul.f32 1.0, %v7704
        %v7706 = vrcp.pop %v7703
        %v7707 = vmul.f32 1.0, %v7706
        %v7708 = vtanh.pop %v7630
        %v7709 = vtanh.pop %v7634
        %v7710 = vxor.u32 %v7631, 2147483648
        %v7711 = vxor.u32 %v7635, 2147483648
        %v7712 = vmul.f32 %v7710, 1.442695
        %v7713 = vpow.pop %v7712
        %v7714 = vmul.f32 %v7711, 1.442695
        %v7715 = vpow.pop %v7714
        %v7716 = vadd.f32 %v7713, 1.0
        %v7717 = vadd.f32 %v7715, 1.0
        %v7718 = vrcp.pop %v7716
        %v7719 = vmul.f32 1.0, %v7718
        %v7720 = vrcp.pop %v7717
        %v7721 = vmul.f32 1.0, %v7720
        %v7722 = vmul.f32 %v7705, %v7414
        %v7723 = vmul.f32 %v7707, %v7415
        %v7724 = vmul.f32 %v7693, %v7708
        %v7725 = vmul.f32 %v7695, %v7709
        %v7726 = vadd.f32 %v7722, %v7724
        %v7727 = vadd.f32 %v7723, %v7725
        %v7728 = vtanh.pop %v7726
        %v7729 = vtanh.pop %v7727
        %v7730 = vmul.f32 %v7719, %v7728
        %v7731 = vmul.f32 %v7721, %v7729
        %v7732 = vsel %vm3366, %v7682, %v7408
        %v7733 = vsel %vm3367, %v7683, %v7409
        %v7734 = vsel %vm3366, %v7678, %v7410
        %v7735 = vsel %vm3367, %v7679, %v7411
        %v7736 = vsel %vm3352, %v7730, %v7412
        %v7737 = vsel %vm3353, %v7731, %v7413
        %v7738 = vsel %vm3352, %v7726, %v7414
        %v7739 = vsel %vm3353, %v7727, %v7415
        %v7740 = vmax.f32 %v7416, %v7732
        %v7741 = vmax.f32 %v7417, %v7733
        %v7742 = vsel %vm3352, %v7730, -1e+30
        %v7743 = vsel %vm3353, %v7731, -1e+30
        %v7744 = vmax.f32 %v7420, %v7742
        %v7745 = vmax.f32 %v7421, %v7743
        %v7746 = vld [vmem:[%s1916] sm:$0xff]
        %v7747 = vld [vmem:[%s1916 + $0x8] sm:$0xff]
        %v7748 = vld [vmem:[%s1916 + $0x10] sm:$0xff]
        %v7749 = vld [vmem:[%s1916 + $0x18] sm:$0xff]
        %v7750 = vld [vmem:[#allocation2 + $0x20] sm:$0xff]
        %v7751 = vld [vmem:[#allocation2 + $0x28] sm:$0xff]
        %v7752 = vld [vmem:[#allocation2 + $0x30] sm:$0xff]
        %v7753 = vld [vmem:[#allocation2 + $0x38] sm:$0xff]
        %v7754 = vpack.c.bf16 %v7733, %v7732
        %v7755 = vpack.c.bf16 %v7737, %v7736
        %7756 = vmatprep.subr.bf16.mxu0 %v2435
        %7757 = vmatpush1.bf16.msra.mxu0 %v2434
        %7758 = vmatprep.subr.bf16.mxu0 %v2443
        %7759 = vmatpush1.bf16.msra.mxu0 %v2442
        %7760 = vmatprep.subr.bf16.mxu0 %v2451
        %7761 = vmatpush1.bf16.msra.mxu0 %v2450
        %7762 = vmatprep.subr.bf16.mxu0 %v2459
        %7763 = vmatpush1.bf16.msra.mxu0 %v2458
        %7764 = vmatprep.subr.bf16.mxu0 %v2467
        %7765 = vmatpush1.bf16.msra.mxu0 %v2466
        %7766 = vmatprep.subr.bf16.mxu0 %v2475
        %7767 = vmatpush1.bf16.msra.mxu0 %v2474
        %7768 = vmatprep.subr.bf16.mxu0 %v2483
        %7769 = vmatpush1.bf16.msra.mxu0 %v2482
        %7770 = vmatprep.subr.bf16.mxu0 %v2491
        %7771 = vmatpush1.bf16.msra.mxu0 %v2490
        %7772 = vmatprep.subr.bf16.mxu0 %v2499
        %7773 = vmatpush1.bf16.msra.mxu0 %v2498
        %7774 = vmatprep.subr.bf16.mxu0 %v2507
        %7775 = vmatpush1.bf16.msra.mxu0 %v2506
        %7776 = vmatprep.subr.bf16.mxu0 %v2515
        %7777 = vmatpush1.bf16.msra.mxu0 %v2514
        %7778 = vmatprep.subr.bf16.mxu0 %v2523
        %7779 = vmatpush1.bf16.msra.mxu0 %v2522
        %7780 = vmatprep.subr.bf16.mxu0 %v2531
        %7781 = vmatpush1.bf16.msra.mxu0 %v2530
        %7782 = vmatprep.subr.bf16.mxu0 %v2539
        %7783 = vmatpush1.bf16.msra.mxu0 %v2538
        %7784 = vmatprep.subr.bf16.mxu0 %v2547
        %7785 = vmatpush1.bf16.msra.mxu0 %v2546
        %7786 = vmatprep.subr.bf16.mxu0 %v2555
        %7787 = vmatpush1.bf16.msra.mxu0 %v2554
        %7788 = vmatprep.mubr.bf16.mxu0 %v7755
        %7789 = vmatmul.mubr.bf16.gmra.mrb[0].mxu0 %v7754
        %v7790 = vpop.f32.mrb[0].mxu0
        %v7791 = vadd.f32 0.0, %v7790
        %v7792 = vpop.f32.mrb[0].mxu0
        %v7793 = vadd.f32 0.0, %v7792
        %v7794 = vpop.f32.mrb[0].mxu0
        %v7795 = vadd.f32 0.0, %v7794
        %v7796 = vpop.f32.mrb[0].mxu0
        %v7797 = vadd.f32 0.0, %v7796
        %7798 = vdwg.mxu0
        %7799 = vmatprep.subr.bf16.mxu0 %v2437
        %7800 = vmatpush1.bf16.msra.mxu0 %v2436
        %7801 = vmatprep.subr.bf16.mxu0 %v2445
        %7802 = vmatpush1.bf16.msra.mxu0 %v2444
        %7803 = vmatprep.subr.bf16.mxu0 %v2453
        %7804 = vmatpush1.bf16.msra.mxu0 %v2452
        %7805 = vmatprep.subr.bf16.mxu0 %v2461
        %7806 = vmatpush1.bf16.msra.mxu0 %v2460
        %7807 = vmatprep.subr.bf16.mxu0 %v2469
        %7808 = vmatpush1.bf16.msra.mxu0 %v2468
        %7809 = vmatprep.subr.bf16.mxu0 %v2477
        %7810 = vmatpush1.bf16.msra.mxu0 %v2476
        %7811 = vmatprep.subr.bf16.mxu0 %v2485
        %7812 = vmatpush1.bf16.msra.mxu0 %v2484
        %7813 = vmatprep.subr.bf16.mxu0 %v2493
        %7814 = vmatpush1.bf16.msra.mxu0 %v2492
        %7815 = vmatprep.subr.bf16.mxu0 %v2501
        %7816 = vmatpush1.bf16.msra.mxu0 %v2500
        %7817 = vmatprep.subr.bf16.mxu0 %v2509
        %7818 = vmatpush1.bf16.msra.mxu0 %v2508
        %7819 = vmatprep.subr.bf16.mxu0 %v2517
        %7820 = vmatpush1.bf16.msra.mxu0 %v2516
        %7821 = vmatprep.subr.bf16.mxu0 %v2525
        %7822 = vmatpush1.bf16.msra.mxu0 %v2524
        %7823 = vmatprep.subr.bf16.mxu0 %v2533
        %7824 = vmatpush1.bf16.msra.mxu0 %v2532
        %7825 = vmatprep.subr.bf16.mxu0 %v2541
        %7826 = vmatpush1.bf16.msra.mxu0 %v2540
        %7827 = vmatprep.subr.bf16.mxu0 %v2549
        %7828 = vmatpush1.bf16.msra.mxu0 %v2548
        %7829 = vmatprep.subr.bf16.mxu0 %v2557
        %7830 = vmatpush1.bf16.msra.mxu0 %v2556
        %7831 = vmatprep.mubr.bf16.mxu0 %v7755
        %7832 = vmatmul.mubr.bf16.gmra.mrb[0].mxu0 %v7754
        %v7833 = vpop.f32.mrb[0].mxu0
        %v7834 = vadd.f32 0.0, %v7833
        %v7835 = vpop.f32.mrb[0].mxu0
        %v7836 = vadd.f32 0.0, %v7835
        %v7837 = vpop.f32.mrb[0].mxu0
        %v7838 = vadd.f32 0.0, %v7837
        %v7839 = vpop.f32.mrb[0].mxu0
        %v7840 = vadd.f32 0.0, %v7839
        %7841 = vdwg.mxu0
        %7842 = vmatprep.subr.bf16.mxu0 %v2439
        %7843 = vmatpush1.bf16.msra.mxu0 %v2438
        %7844 = vmatprep.subr.bf16.mxu0 %v2447
        %7845 = vmatpush1.bf16.msra.mxu0 %v2446
        %7846 = vmatprep.subr.bf16.mxu0 %v2455
        %7847 = vmatpush1.bf16.msra.mxu0 %v2454
        %7848 = vmatprep.subr.bf16.mxu0 %v2463
        %7849 = vmatpush1.bf16.msra.mxu0 %v2462
        %7850 = vmatprep.subr.bf16.mxu0 %v2471
        %7851 = vmatpush1.bf16.msra.mxu0 %v2470
        %7852 = vmatprep.subr.bf16.mxu0 %v2479
        %7853 = vmatpush1.bf16.msra.mxu0 %v2478
        %7854 = vmatprep.subr.bf16.mxu0 %v2487
        %7855 = vmatpush1.bf16.msra.mxu0 %v2486
        %7856 = vmatprep.subr.bf16.mxu0 %v2495
        %7857 = vmatpush1.bf16.msra.mxu0 %v2494
        %7858 = vmatprep.subr.bf16.mxu0 %v2503
        %7859 = vmatpush1.bf16.msra.mxu0 %v2502
        %7860 = vmatprep.subr.bf16.mxu0 %v2511
        %7861 = vmatpush1.bf16.msra.mxu0 %v2510
        %7862 = vmatprep.subr.bf16.mxu0 %v2519
        %7863 = vmatpush1.bf16.msra.mxu0 %v2518
        %7864 = vmatprep.subr.bf16.mxu0 %v2527
        %7865 = vmatpush1.bf16.msra.mxu0 %v2526
        %7866 = vmatprep.subr.bf16.mxu0 %v2535
        %7867 = vmatpush1.bf16.msra.mxu0 %v2534
        %7868 = vmatprep.subr.bf16.mxu0 %v2543
        %7869 = vmatpush1.bf16.msra.mxu0 %v2542
        %7870 = vmatprep.subr.bf16.mxu0 %v2551
        %7871 = vmatpush1.bf16.msra.mxu0 %v2550
        %7872 = vmatprep.subr.bf16.mxu0 %v2559
        %7873 = vmatpush1.bf16.msra.mxu0 %v2558
        %7874 = vmatprep.mubr.bf16.mxu0 %v7755
        %7875 = vmatmul.mubr.bf16.gmra.mrb[0].mxu0 %v7754
        %v7876 = vpop.f32.mrb[0].mxu0
        %v7877 = vadd.f32 0.0, %v7876
        %v7878 = vpop.f32.mrb[0].mxu0
        %v7879 = vadd.f32 0.0, %v7878
        %v7880 = vpop.f32.mrb[0].mxu0
        %v7881 = vadd.f32 0.0, %v7880
        %v7882 = vpop.f32.mrb[0].mxu0
        %v7883 = vadd.f32 0.0, %v7882
        %7884 = vdwg.mxu0
        %7885 = vmatprep.subr.bf16.mxu0 %v2441
        %7886 = vmatpush1.bf16.msra.mxu0 %v2440
        %7887 = vmatprep.subr.bf16.mxu0 %v2449
        %7888 = vmatpush1.bf16.msra.mxu0 %v2448
        %7889 = vmatprep.subr.bf16.mxu0 %v2457
        %7890 = vmatpush1.bf16.msra.mxu0 %v2456
        %7891 = vmatprep.subr.bf16.mxu0 %v2465
        %7892 = vmatpush1.bf16.msra.mxu0 %v2464
        %7893 = vmatprep.subr.bf16.mxu0 %v2473
        %7894 = vmatpush1.bf16.msra.mxu0 %v2472
        %7895 = vmatprep.subr.bf16.mxu0 %v2481
        %7896 = vmatpush1.bf16.msra.mxu0 %v2480
        %7897 = vmatprep.subr.bf16.mxu0 %v2489
        %7898 = vmatpush1.bf16.msra.mxu0 %v2488
        %7899 = vmatprep.subr.bf16.mxu0 %v2497
        %7900 = vmatpush1.bf16.msra.mxu0 %v2496
        %7901 = vmatprep.subr.bf16.mxu0 %v2505
        %7902 = vmatpush1.bf16.msra.mxu0 %v2504
        %7903 = vmatprep.subr.bf16.mxu0 %v2513
        %7904 = vmatpush1.bf16.msra.mxu0 %v2512
        %7905 = vmatprep.subr.bf16.mxu0 %v2521
        %7906 = vmatpush1.bf16.msra.mxu0 %v2520
        %7907 = vmatprep.subr.bf16.mxu0 %v2529
        %7908 = vmatpush1.bf16.msra.mxu0 %v2528
        %7909 = vmatprep.subr.bf16.mxu0 %v2537
        %7910 = vmatpush1.bf16.msra.mxu0 %v2536
        %7911 = vmatprep.subr.bf16.mxu0 %v2545
        %7912 = vmatpush1.bf16.msra.mxu0 %v2544
        %7913 = vmatprep.subr.bf16.mxu0 %v2553
        %7914 = vmatpush1.bf16.msra.mxu0 %v2552
        %7915 = vmatprep.subr.bf16.mxu0 %v2561
        %7916 = vmatpush1.bf16.msra.mxu0 %v2560
        %7917 = vmatprep.mubr.bf16.mxu0 %v7755
        %7918 = vmatmul.mubr.bf16.gmra.mrb[0].mxu0 %v7754
        %v7919 = vpop.f32.mrb[0].mxu0
        %v7920 = vadd.f32 0.0, %v7919
        %v7921 = vpop.f32.mrb[0].mxu0
        %v7922 = vadd.f32 0.0, %v7921
        %v7923 = vpop.f32.mrb[0].mxu0
        %v7924 = vadd.f32 0.0, %v7923
        %v7925 = vpop.f32.mrb[0].mxu0
        %v7926 = vadd.f32 0.0, %v7925
        %7927 = vdwg.mxu0
        %v7928 = vunpack.c.l.bf16 %v7746
        %v7929 = vunpack.c.l.bf16 %v7747
        %v7930 = vunpack.c.l.bf16 %v7748
        %v7931 = vunpack.c.l.bf16 %v7749
        %v7932 = vunpack.c.h.bf16 %v7746
        %v7933 = vunpack.c.h.bf16 %v7747
        %v7934 = vunpack.c.h.bf16 %v7748
        %v7935 = vunpack.c.h.bf16 %v7749
        %v7936 = vadd.f32 %v7928, %v7791
        %v7937 = vadd.f32 %v7929, %v7793
        %v7938 = vadd.f32 %v7930, %v7834
        %v7939 = vadd.f32 %v7931, %v7836
        %v7940 = vadd.f32 %v7932, %v7795
        %v7941 = vadd.f32 %v7933, %v7797
        %v7942 = vadd.f32 %v7934, %v7838
        %v7943 = vadd.f32 %v7935, %v7840
        %v7944 = vunpack.c.l.bf16 %v7750
        %v7945 = vunpack.c.l.bf16 %v7751
        %v7946 = vunpack.c.l.bf16 %v7752
        %v7947 = vunpack.c.l.bf16 %v7753
        %v7948 = vunpack.c.h.bf16 %v7750
        %v7949 = vunpack.c.h.bf16 %v7751
        %v7950 = vunpack.c.h.bf16 %v7752
        %v7951 = vunpack.c.h.bf16 %v7753
        %v7952 = vadd.f32 %v7944, %v7877
        %v7953 = vadd.f32 %v7945, %v7879
        %v7954 = vadd.f32 %v7946, %v7920
        %v7955 = vadd.f32 %v7947, %v7922
        %v7956 = vadd.f32 %v7948, %v7881
        %v7957 = vadd.f32 %v7949, %v7883
        %v7958 = vadd.f32 %v7950, %v7924
        %v7959 = vadd.f32 %v7951, %v7926
        %v7960 = vxor.u32 %v7936, 2147483648
        %v7961 = vxor.u32 %v7940, 2147483648
        %v7962 = vmul.f32 %v7960, 1.442695
        %v7963 = vpow.pop %v7962
        %v7964 = vmul.f32 %v7961, 1.442695
        %v7965 = vpow.pop %v7964
        %v7966 = vadd.f32 %v7963, 1.0
        %v7967 = vadd.f32 %v7965, 1.0
        %v7968 = vrcp.pop %v7966
        %v7969 = vmul.f32 1.0, %v7968
        %v7970 = vrcp.pop %v7967
        %v7971 = vmul.f32 1.0, %v7970
        %v7972 = vxor.u32 %v7937, 2147483648
        %v7973 = vxor.u32 %v7941, 2147483648
        %v7974 = vmul.f32 %v7972, 1.442695
        %v7975 = vpow.pop %v7974
        %v7976 = vmul.f32 %v7973, 1.442695
        %v7977 = vpow.pop %v7976
        %v7978 = vadd.f32 %v7975, 1.0
        %v7979 = vadd.f32 %v7977, 1.0
        %v7980 = vrcp.pop %v7978
        %v7981 = vmul.f32 1.0, %v7980
        %v7982 = vrcp.pop %v7979
        %v7983 = vmul.f32 1.0, %v7982
        %v7984 = vtanh.pop %v7938
        %v7985 = vtanh.pop %v7942
        %v7986 = vxor.u32 %v7939, 2147483648
        %v7987 = vxor.u32 %v7943, 2147483648
        %v7988 = vmul.f32 %v7986, 1.442695
        %v7989 = vpow.pop %v7988
        %v7990 = vmul.f32 %v7987, 1.442695
        %v7991 = vpow.pop %v7990
        %v7992 = vadd.f32 %v7989, 1.0
        %v7993 = vadd.f32 %v7991, 1.0
        %v7994 = vrcp.pop %v7992
        %v7995 = vmul.f32 1.0, %v7994
        %v7996 = vrcp.pop %v7993
        %v7997 = vmul.f32 1.0, %v7996
        %v7998 = vmul.f32 %v7981, %v7734
        %v7999 = vmul.f32 %v7983, %v7735
        %v8000 = vmul.f32 %v7969, %v7984
        %v8001 = vmul.f32 %v7971, %v7985
        %v8002 = vadd.f32 %v7998, %v8000
        %v8003 = vadd.f32 %v7999, %v8001
        %v8004 = vtanh.pop %v8002
        %v8005 = vtanh.pop %v8003
        %v8006 = vmul.f32 %v7995, %v8004
        %v8007 = vmul.f32 %v7997, %v8005
        %v8008 = vxor.u32 %v7952, 2147483648
        %v8009 = vxor.u32 %v7956, 2147483648
        %v8010 = vmul.f32 %v8008, 1.442695
        %v8011 = vpow.pop %v8010
        %v8012 = vmul.f32 %v8009, 1.442695
        %v8013 = vpow.pop %v8012
        %v8014 = vadd.f32 %v8011, 1.0
        %v8015 = vadd.f32 %v8013, 1.0
        %v8016 = vrcp.pop %v8014
        %v8017 = vmul.f32 1.0, %v8016
        %v8018 = vrcp.pop %v8015
        %v8019 = vmul.f32 1.0, %v8018
        %v8020 = vxor.u32 %v7953, 2147483648
        %v8021 = vxor.u32 %v7957, 2147483648
        %v8022 = vmul.f32 %v8020, 1.442695
        %v8023 = vpow.pop %v8022
        %v8024 = vmul.f32 %v8021, 1.442695
        %v8025 = vpow.pop %v8024
        %v8026 = vadd.f32 %v8023, 1.0
        %v8027 = vadd.f32 %v8025, 1.0
        %v8028 = vrcp.pop %v8026
        %v8029 = vmul.f32 1.0, %v8028
        %v8030 = vrcp.pop %v8027
        %v8031 = vmul.f32 1.0, %v8030
        %v8032 = vtanh.pop %v7954
        %v8033 = vtanh.pop %v7958
        %v8034 = vxor.u32 %v7955, 2147483648
        %v8035 = vxor.u32 %v7959, 2147483648
        %v8036 = vmul.f32 %v8034, 1.442695
        %v8037 = vpow.pop %v8036
        %v8038 = vmul.f32 %v8035, 1.442695
        %v8039 = vpow.pop %v8038
        %v8040 = vadd.f32 %v8037, 1.0
        %v8041 = vadd.f32 %v8039, 1.0
        %v8042 = vrcp.pop %v8040
        %v8043 = vmul.f32 1.0, %v8042
        %v8044 = vrcp.pop %v8041
        %v8045 = vmul.f32 1.0, %v8044
        %v8046 = vmul.f32 %v8029, %v7738
        %v8047 = vmul.f32 %v8031, %v7739
        %v8048 = vmul.f32 %v8017, %v8032
        %v8049 = vmul.f32 %v8019, %v8033
        %v8050 = vadd.f32 %v8046, %v8048
        %v8051 = vadd.f32 %v8047, %v8049
        %v8052 = vtanh.pop %v8050
        %v8053 = vtanh.pop %v8051
        %v8054 = vmul.f32 %v8043, %v8052
        %v8055 = vmul.f32 %v8045, %v8053
        %v8056 = vsel %vm3016, %v8006, %v7732
        %v8057 = vsel %vm3017, %v8007, %v7733
        %v8058 = vmax.f32 %v7740, %v8056
        %v8059 = vmax.f32 %v7741, %v8057
        %v8060 = vsel %vm3002, %v8054, -1e+30
        %v8061 = vsel %vm3003, %v8055, -1e+30
        %v8062 = vmax.f32 %v7744, %v8060
        %v8063 = vmax.f32 %v7745, %v8061
        %8064 = vst [vmem:[%s312] sm:$0xff] %v8058
        %8065 = vst [vmem:[%s312 + $0x10] sm:$0xff] %v8059
        %8066 = vst [vmem:[%s312 + $0x8] sm:$0xff] %v8062
        %8067 = vst [vmem:[%s312 + $0x18] sm:$0xff] %v8063
        %s8068 = sand.u32 %s146, 1
        %s8069 = scalar_lea.sflag [#allocation5], %s8068
        %s8070 = sand.u32 %s146, 1
        %s8071 = smul.addr %s8070, 32
        %s8072 = scalar_lea.vmem [#allocation9], %s8071
        // Predicated region
        $region53: #{tpu_custom_call.1} parent=39 // pred_check
          %p8073 = pneg %p156
        $region54: #{tpu_custom_call.1} parent=39 // pred_check_branch
          %8075 = sbr.rel (%p8073) target = $region56
        $region55: #{tpu_custom_call.1} parent=39 // pred_region
          %s8076 = smul.u32 2, %s23
          %s8078 = ssub.s32 512, 512
          %8079 = vsyncadd %s8069, %s8078
          %s8080 = smul.addr %s8076, 2
          %s8081 = smul.addr %s8080, 128
          %s8082 = scalar_lea.hbm %s5, %s8081
          %s8083 = sshll.u32 %s8072, 4
          %s8084 = int_to_ptr.vmem [resolvable:$true] %s8083
          %8089 = dma.vmem_to_hbm [thread:$0]  %s8084, 512, %s8082, %s8069, 256, 256, 16
        $region56: #{tpu_custom_call.1} parent=39 // pred_fallthru
          _
      $region40: #{tpu_custom_call.1} parent=5 // pred_fallthru
        _
      %p8090 = scmp.le.s32.totalorder 2, %s18
      // Predicated region
      $region57: #{tpu_custom_call.1} parent=5 // pred_check
        %p8091 = pneg %p8090
      $region58: #{tpu_custom_call.1} parent=5 // pred_check_branch
        %8093 = sbr.rel (%p8091) target = $region60
      $region59: #{tpu_custom_call.1} parent=5 // pred_region
        %s8094 = ssub.s32 %s18, 2
        // Predicated region
        $region61: #{tpu_custom_call.1} parent=59 // pred_check
          %p8095 = pneg %p162
        $region62: #{tpu_custom_call.1} parent=59 // pred_check_branch
          %8097 = sbr.rel (%p8095) target = $region64
        $region63: #{tpu_custom_call.1} parent=59 // pred_region
          %s8098 = sand.u32 %s147, 1
          %s8099 = scalar_lea.sflag [#allocation5], %s8098
          %s8100 = sand.u32 %s147, 1
          %s8101 = smul.addr %s8100, 32
          %s8102 = scalar_lea.vmem [#allocation9], %s8101
          %8103 = dma.done %s8099, 512
        $region64: #{tpu_custom_call.1} parent=59 // pred_fallthru
          _
      $region60: #{tpu_custom_call.1} parent=5 // pred_fallthru
        _
    $region6: #{tpu_custom_call.1} parent=1 // loop_footer
      %s22 = sadd.s32 1, %s18
    $region7: #{tpu_custom_call.1} parent=1 // loop_footer_branch
      %17 = sbr.rel target = $region3
    $region8: #{tpu_custom_call.1} parent=1 // loop_exit
      _
    %8104 = vsyncpa [#allocation4], 1
    %s8105 = scalar_lea.sflag [#allocation4], 1
    %8106 = vsyncpa %s8105, 1
    %8107 = vsyncpa [#allocation7], 1
    %8108 = vsyncpa [#allocation5], 1
    %s8109 = scalar_lea.sflag [#allocation5], 1
    %8110 = vsyncpa %s8109, 1

</llo_original>
